<compile_context>
chip_gen: v7x
topology: tpu7x:2x2x1
jax: 0.10.0
libtpu: 0.0.40
codegen_flags: <defaults>
</compile_context>

<pallas_src>
import functools

import jax
import jax.numpy as jnp
import numpy as np
from jax.experimental import pallas as pl
from jax.experimental.pallas import tpu as pltpu


def _round_up(x, m):
    return ((x + m - 1) // m) * m


# --------------------------------------------------------------------------- #
# Fused ABAM kernel (TFAM + AnchorBoxAlignment + adaptive fusion)
# --------------------------------------------------------------------------- #
def _abam_kernel(rgb_ref, tir_ref, mask_ref,
                 rdw_ref, rpw_ref, rs_ref, rb_ref,
                 tdw_ref, tpw_ref, ts_ref, tb_ref,
                 w1_ref, s1_ref, b1_ref, wd_ref,
                 caw1_ref, caw2_ref, saw_ref,
                 sw_ref, ss_ref, sb_ref,
                 ocw_ref, ocb_ref,
                 afw_ref, afs_ref, afb_ref, rw_ref,
                 out_ref, off_ref, conf_ref, wrgb_ref,
                 slab, pool_sc,
                 *, H, W, N, A, thr):
    f32 = jnp.float32
    bf16 = jnp.bfloat16
    Wp = W + 2
    C = rdw_ref.shape[0]
    inv_hw = 1.0 / float(H * W)

    # ---- in-kernel zero pad: build the stacked (2C, Lp) bf16 slab [rgb; tir] --
    # Halo / dead / tail lanes must be zero; valid rows are rewritten each step.
    slab[...] = jnp.zeros_like(slab)
    pool_sc[...] = jnp.zeros_like(pool_sc)
    xr = rgb_ref[0].astype(bf16)                       # (C, H*W)
    xt = tir_ref[0].astype(bf16)
    for y in range(H):
        base = (y + 1) * Wp + 1
        slab[0:C, base:base + W] = xr[:, y * W:(y + 1) * W]
        slab[C:2 * C, base:base + W] = xt[:, y * W:(y + 1) * W]
    slab_v = slab[...]                                 # (2C, Lp) bf16
    rgb_pad = slab_v[0:C]
    tir_pad = slab_v[C:2 * C]
    mask = mask_ref[...]                               # (1, N) f32, 1 on real px

    def dw3x3(xp, w_ref):
        w = w_ref[...]                                 # (C, 9) f32
        acc = None
        for dy in range(3):
            for dx in range(3):
                off = dy * Wp + dx
                k = dy * 3 + dx
                term = xp[:, off:off + N] * w[:, k:k + 1]
                acc = term if acc is None else acc + term
        return acc                                     # (C, N) f32

    # ---- TFAM: dw3x3 + 1x1/BN/ReLU per modality (bf16 MXU, f32 accumulate) ---
    rt = dw3x3(rgb_pad, rdw_ref)
    tt = dw3x3(tir_pad, tdw_ref)
    rgb_t = jnp.maximum(
        jnp.dot(rpw_ref[...], rt.astype(bf16), preferred_element_type=f32)
        * rs_ref[...] + rb_ref[...], 0.0)
    tir_t = jnp.maximum(
        jnp.dot(tpw_ref[...], tt.astype(bf16), preferred_element_type=f32)
        * ts_ref[...] + tb_ref[...], 0.0)

    # weight predictor: softmax over 2 rows == sigmoid of the logit difference
    fi = rgb_t + tir_t
    h = jnp.maximum(
        jnp.dot(w1_ref[...], fi.astype(bf16), preferred_element_type=f32)
        * s1_ref[...] + b1_ref[...], 0.0)
    w_rgb = jax.nn.sigmoid(
        jnp.dot(wd_ref[...], h, preferred_element_type=f32))          # (1, N)
    wrgb_ref[0] = w_rgb
    fused0 = rgb_t * w_rgb + tir_t * (1.0 - w_rgb)

    # channel attention (mask removes dead / tail lanes from the mean)
    avg = jnp.sum(fused0 * mask, axis=1, keepdims=True) * inv_hw      # (C, 1)
    hh = jnp.maximum(jnp.dot(caw1_ref[...], avg, preferred_element_type=f32), 0.0)
    catt = jax.nn.sigmoid(jnp.dot(caw2_ref[...], hh, preferred_element_type=f32))
    ca = fused0 * catt

    # spatial attention: zero-padded pooled maps, 2x3x3 conv as 9 VPU MACs
    pool_sc[0:1, Wp + 1:Wp + 1 + N] = jnp.mean(ca, axis=0, keepdims=True) * mask
    pool_sc[1:2, Wp + 1:Wp + 1 + N] = jnp.max(ca, axis=0, keepdims=True) * mask
    pooled = pool_sc[...]                                             # (2, Lp)
    saw = saw_ref[...]                                                # (2, 9)
    att = None
    for dy in range(3):
        for dx in range(3):
            off = dy * Wp + dx
            k = dy * 3 + dx
            term = (pooled[0:1, off:off + N] * saw[0:1, k:k + 1]
                    + pooled[1:2, off:off + N] * saw[1:2, k:k + 1])
            att = term if att is None else att + term
    initial = ca * jax.nn.sigmoid(att)                                # (C, N)

    # ---- AnchorBoxAlignment: shared 3x3 conv = 9 MXU dots with K = 2C --------
    acc = None
    for dy in range(3):
        for dx in range(3):
            off = dy * Wp + dx
            k = dy * 3 + dx
            t = jnp.dot(sw_ref[k], slab_v[:, off:off + N],
                        preferred_element_type=f32)
            acc = t if acc is None else acc + t
    shared = jnp.maximum(acc * ss_ref[...] + sb_ref[...], 0.0)        # (Ch, N)

    # merged offset + confidence predictor (single MXU pass),
    # rows ordered [off_x (A) | off_y (A) | conf_rgb (A) | conf_tir (A)]
    oc = (jnp.dot(ocw_ref[...], shared.astype(bf16), preferred_element_type=f32)
          + ocb_ref[...])                                             # (4A, N)
    offs = oc[0:2 * A]
    confs = jax.nn.sigmoid(oc[2 * A:4 * A])
    off_ref[0] = offs
    conf_ref[0] = confs

    ox = offs[0:A]
    oy = offs[A:2 * A]
    # sqrt(ox^2+oy^2) < thr  <=>  ox^2+oy^2 < thr^2  (thr > 0); avoids the sqrt.
    amask = (ox * ox + oy * oy < thr * thr).astype(f32)               # (A, N)
    ascore = jnp.mean(amask, axis=0, keepdims=True)                   # (1, N)
    rgb_conf = jnp.mean(confs[0:A], axis=0, keepdims=True)
    tir_conf = jnp.mean(confs[A:2 * A], axis=0, keepdims=True)

    rgb_v = rgb_pad[:, Wp + 1:Wp + 1 + N].astype(f32)   # raw inputs, valid px
    tir_v = tir_pad[:, Wp + 1:Wp + 1 + N].astype(f32)
    conf_mask = (rgb_conf > tir_conf).astype(f32)
    sel = jnp.where(conf_mask > thr, rgb_v, tir_v)
    final = jnp.where(ascore > thr, initial, sel)

    refined = (jnp.dot(afw_ref[...], final.astype(bf16), preferred_element_type=f32)
               * afs_ref[...] + afb_ref[...])
    out_ref[0] = refined + rw_ref[...] * initial


# --------------------------------------------------------------------------- #
# pallas_call wrapper: batch on a "parallel" grid axis, lane-dense outputs
# --------------------------------------------------------------------------- #
def _batched_spec(shape):
    nd = len(shape)
    return pl.BlockSpec((1,) + tuple(shape), lambda b, _nd=nd: (b,) + (0,) * _nd)


def _param_spec(shape):
    nd = len(shape)
    # TODO(synk): at production C, single-buffer these constant-index weight
    # blocks (pipeline_mode=pl.Buffered(1)) to halve weight VMEM residency.
    return pl.BlockSpec(tuple(shape), lambda b, _nd=nd: (0,) * _nd)


def _run_abam(p2, rgb2, tir2, mask, H, W, N, A, thr):
    B, C, HW = rgb2.shape
    Wp = W + 2
    Lp = _round_up(N + 2 * Wp + 2, 128)   # padded-slab lane width (taps in bounds)
    params = [mask,
              p2["rgb_dw"], p2["rgb_pw"], p2["rgb_bn_s"], p2["rgb_bn_b"],
              p2["tir_dw"], p2["tir_pw"], p2["tir_bn_s"], p2["tir_bn_b"],
              p2["wp_w1"], p2["wp_bn_s"], p2["wp_bn_b"], p2["wp_wd"],
              p2["ca_w1"], p2["ca_w2"], p2["sa_w"],
              p2["sh_w"], p2["sh_bn_s"], p2["sh_bn_b"],
              p2["oc_w"], p2["oc_b"],
              p2["af_w"], p2["af_bn_s"], p2["af_bn_b"], p2["rw"]]
    in_specs = ([_batched_spec((C, HW)), _batched_spec((C, HW))]
                + [_param_spec(x.shape) for x in params])
    out_specs = (pl.BlockSpec((1, C, N), lambda b: (b, 0, 0)),
                 pl.BlockSpec((1, 2 * A, N), lambda b: (b, 0, 0)),
                 pl.BlockSpec((1, 2 * A, N), lambda b: (b, 0, 0)),
                 pl.BlockSpec((1, 1, N), lambda b: (b, 0, 0)))
    out_shape = (jax.ShapeDtypeStruct((B, C, N), jnp.float32),
                 jax.ShapeDtypeStruct((B, 2 * A, N), jnp.float32),
                 jax.ShapeDtypeStruct((B, 2 * A, N), jnp.float32),
                 jax.ShapeDtypeStruct((B, 1, N), jnp.float32))
    return pl.pallas_call(
        functools.partial(_abam_kernel, H=H, W=W, N=N, A=A, thr=thr),
        grid=(B,),
        in_specs=in_specs,
        out_specs=out_specs,
        out_shape=out_shape,
        scratch_shapes=[pltpu.VMEM((2 * C, Lp), jnp.bfloat16),   # [rgb;tir] slab
                        pltpu.VMEM((2, Lp), jnp.float32)],       # pooled maps
        compiler_params=pltpu.CompilerParams(dimension_semantics=("parallel",)),
    )(rgb2, tir2, *params)


# --------------------------------------------------------------------------- #
# JAX glue
# --------------------------------------------------------------------------- #
def _prepare_kernel_params(p, C):
    Ch = C // 2
    bf = jnp.bfloat16
    sw = p["sh_w"].reshape(Ch, 2 * C, 9)
    return {
        "rgb_dw": p["rgb_dw"], "rgb_pw": p["rgb_pw"].astype(bf),
        "rgb_bn_s": p["rgb_bn_s"], "rgb_bn_b": p["rgb_bn_b"],
        "tir_dw": p["tir_dw"], "tir_pw": p["tir_pw"].astype(bf),
        "tir_bn_s": p["tir_bn_s"], "tir_bn_b": p["tir_bn_b"],
        "wp_w1": p["wp_w1"].astype(bf),
        "wp_bn_s": p["wp_bn_s"], "wp_bn_b": p["wp_bn_b"],
        # 2-way softmax only needs the logit difference
        "wp_wd": p["wp_w2"][0:1] - p["wp_w2"][1:2],
        "ca_w1": p["ca_w1"], "ca_w2": p["ca_w2"],
        "sa_w": p["sa_w"].reshape(2, 9),
        # shared 3x3 conv: per-tap (Ch, 2C) matmul weights, rgb|tir concatenated
        "sh_w": jnp.transpose(sw, (2, 0, 1)).astype(bf),          # (9, Ch, 2C)
        "sh_bn_s": p["sh_bn_s"], "sh_bn_b": p["sh_bn_b"],
        # merged offset+confidence predictor, rows de-interleaved to
        # [off_x (A) | off_y (A) | conf_rgb (A) | conf_tir (A)]
        "oc_w": jnp.concatenate([p["off_w"][0::2], p["off_w"][1::2],
                                 p["conf_w"][0::2], p["conf_w"][1::2]],
                                axis=0).astype(bf),
        "oc_b": jnp.concatenate([p["off_b"][0::2], p["off_b"][1::2],
                                 p["conf_b"][0::2], p["conf_b"][1::2]], axis=0),
        "af_w": p["af_w"].astype(bf),
        "af_bn_s": p["af_bn_s"], "af_bn_b": p["af_bn_b"],
        "rw": jnp.full((1, 1), p["residual_weight"], jnp.float32),
    }


def abam_forward(p, rgb, tir, A=9, thr=0.5):
    B, C, H, W = rgb.shape
    Wp = W + 2
    n_valid = H * Wp
    N = _round_up(n_valid, 128)           # lane-dense output width
    rgb2 = rgb.astype(jnp.float32).reshape(B, C, H * W)
    tir2 = tir.astype(jnp.float32).reshape(B, C, H * W)
    row = jnp.concatenate([jnp.ones((W,), jnp.float32),
                           jnp.zeros((2,), jnp.float32)])
    mask = jnp.pad(jnp.tile(row, H), (0, N - n_valid))[None, :]   # (1, N)

    p2 = _prepare_kernel_params(p, C)
    out_f, off_f, conf_f, wrgb_f = _run_abam(p2, rgb2, tir2, mask, H, W, N, A, thr)

    def unflat(x, ch):
        return x[:, :, :n_valid].reshape(B, ch, H, Wp)[:, :, :, :W]

    out = unflat(out_f, C)
    offsets = (off_f[:, :, :n_valid].reshape(B, 2, A, H, Wp)[..., :W]
               .transpose(0, 2, 1, 3, 4))
    confid = (conf_f[:, :, :n_valid].reshape(B, 2, A, H, Wp)[..., :W]
              .transpose(0, 2, 1, 3, 4))
    rgb_weight = unflat(wrgb_f, 1)
    tir_weight = 1.0 - rgb_weight
    # alignment mask recomputed from offsets (avoids an extra HBM side output)
    mag = jnp.sqrt(offsets[:, :, 0] ** 2 + offsets[:, :, 1] ** 2)
    amask = (mag < thr).astype(jnp.float32)

    align_info = {
        "offsets": offsets,
        "confidences": confid,
        "alignment_mask": amask,
        "rgb_weight": rgb_weight,
        "tir_weight": tir_weight,
        # TODO(synk): PyTorch returns a Python float via .item(); kept as JAX scalar.
        "alignment_ratio": jnp.mean(amask),
    }
    return out, align_info


_abam_forward_jit = jax.jit(abam_forward, static_argnames=("A", "thr"))


def multi_scale_abam_forward(params_list, rgb_feats, tir_feats, A=9, thr=0.5):
    fused_feats, align_infos = [], []
    for p, r, t in zip(params_list, rgb_feats, tir_feats):
        o, info = _abam_forward_jit(p, r, t, A=A, thr=thr)
        fused_feats.append(o)
        align_infos.append(info)
    return fused_feats, align_infos


# --------------------------------------------------------------------------- #
# Parameters (deterministic, synthetic; eval-mode BN folded into scale/bias)
# --------------------------------------------------------------------------- #
def _make_bn(key, c, eps=1e-5):
    k1, k2 = jax.random.split(key)
    gamma = 1.0 + 0.1 * jax.random.normal(k1, (c,), jnp.float32)
    beta = 0.1 * jax.random.normal(k2, (c,), jnp.float32)
    mean = jnp.zeros((c,), jnp.float32)
    var = jnp.ones((c,), jnp.float32)
    s = gamma / jnp.sqrt(var + eps)
    b = beta - mean * s
    return s.reshape(c, 1), b.reshape(c, 1)


def init_abam_params(key, C, A=9):
    Hd = max(C // 16, 8)
    Ch = C // 2
    ks = jax.random.split(key, 20)

    def w(k, shape, scale=0.1):
        return scale * jax.random.normal(k, shape, jnp.float32)

    p = {}
    p["rgb_dw"] = w(ks[0], (C, 9))
    p["rgb_pw"] = w(ks[1], (C, C))
    p["rgb_bn_s"], p["rgb_bn_b"] = _make_bn(ks[2], C)
    p["tir_dw"] = w(ks[3], (C, 9))
    p["tir_pw"] = w(ks[4], (C, C))
    p["tir_bn_s"], p["tir_bn_b"] = _make_bn(ks[5], C)
    p["wp_w1"] = w(ks[6], (16, C))
    p["wp_bn_s"], p["wp_bn_b"] = _make_bn(ks[7], 16)
    p["wp_w2"] = w(ks[8], (2, 16))
    p["ca_w1"] = w(ks[9], (Hd, C))
    p["ca_w2"] = w(ks[10], (C, Hd))
    p["sa_w"] = w(ks[11], (1, 2 * 9))
    p["sh_w"] = w(ks[12], (Ch, 2 * C * 9), 0.05)
    p["sh_bn_s"], p["sh_bn_b"] = _make_bn(ks[13], Ch)
    p["off_w"] = w(ks[14], (2 * A, Ch))
    p["off_b"] = w(ks[15], (2 * A, 1))
    p["conf_w"] = w(ks[16], (2 * A, Ch))
    p["conf_b"] = w(ks[17], (2 * A, 1))
    p["af_w"] = w(ks[18], (C, C))
    p["af_bn_s"], p["af_bn_b"] = _make_bn(ks[19], C)
    p["residual_weight"] = 0.1
    return p


# --------------------------------------------------------------------------- #
# Pure-JAX f32 reference of the ORIGINAL formulation (im2col, sqrt, real softmax)
# --------------------------------------------------------------------------- #
def im2col3x3(x):
    B, C, H, W = x.shape
    xp = jnp.pad(x, ((0, 0), (0, 0), (1, 1), (1, 1)))
    taps = [xp[:, :, dy:dy + H, dx:dx + W] for dy in range(3) for dx in range(3)]
    return jnp.stack(taps, axis=2).reshape(B, C, 9, H * W)


def ref_abam(p, rgb, tir, A=9, thr=0.5):
    B, C, H, W = rgb.shape
    HW = H * W
    rgb = rgb.astype(jnp.float32)
    tir = tir.astype(jnp.float32)
    rgb2 = rgb.reshape(B, C, HW)
    tir2 = tir.reshape(B, C, HW)

    def mm(w, x):
        return jnp.einsum("ok,bkn->bon", w, x)

    def dw(x, w):
        return jnp.einsum("bckn,ck->bcn", im2col3x3(x), w)

    def conv_aff(x2, w, s, b, act):
        y = mm(w, x2) * s[None] + b[None]
        if act == "relu":
            y = jnp.maximum(y, 0.0)
        elif act == "sigmoid":
            y = jax.nn.sigmoid(y)
        return y

    rgb_t = conv_aff(dw(rgb, p["rgb_dw"]), p["rgb_pw"], p["rgb_bn_s"], p["rgb_bn_b"], "relu")
    tir_t = conv_aff(dw(tir, p["tir_dw"]), p["tir_pw"], p["tir_bn_s"], p["tir_bn_b"], "relu")
    fi = rgb_t + tir_t
    h = jnp.maximum(mm(p["wp_w1"], fi) * p["wp_bn_s"][None] + p["wp_bn_b"][None], 0.0)
    wts = jax.nn.softmax(mm(p["wp_w2"], h), axis=1)
    fused0 = rgb_t * wts[:, 0:1] + tir_t * wts[:, 1:2]
    avg = jnp.mean(fused0, axis=2, keepdims=True)
    catt = jax.nn.sigmoid(mm(p["ca_w2"], jnp.maximum(mm(p["ca_w1"], avg), 0.0)))
    ca = fused0 * catt
    pooled = jnp.concatenate([jnp.mean(ca, axis=1, keepdims=True),
                              jnp.max(ca, axis=1, keepdims=True)], axis=1)
    sa_p = im2col3x3(pooled.reshape(B, 2, H, W)).reshape(B, 18, HW)
    att = jax.nn.sigmoid(mm(p["sa_w"], sa_p))
    initial = ca * att
    concat = jnp.concatenate([rgb, tir], axis=1)
    shp = im2col3x3(concat).reshape(B, 2 * C * 9, HW)
    shared = conv_aff(shp, p["sh_w"], p["sh_bn_s"], p["sh_bn_b"], "relu")
    offsets = mm(p["off_w"], shared) + p["off_b"][None]
    confid = jax.nn.sigmoid(mm(p["conf_w"], shared) + p["conf_b"][None])
    offv = offsets.reshape(B, A, 2, HW)
    cv = confid.reshape(B, A, 2, HW)
    mag = jnp.sqrt(offv[:, :, 0] ** 2 + offv[:, :, 1] ** 2)
    amask = (mag < thr).astype(jnp.float32)
    rm = jnp.mean(cv[:, :, 0], axis=1, keepdims=True)
    tm = jnp.mean(cv[:, :, 1], axis=1, keepdims=True)
    ascore = jnp.mean(amask, axis=1, keepdims=True)
    conf_mask = (rm > tm).astype(jnp.float32)
    final = jnp.where(ascore > thr, initial, jnp.where(conf_mask > thr, rgb2, tir2))
    refined = conv_aff(final, p["af_w"], p["af_bn_s"], p["af_bn_b"], "none")
    out = (refined + p["residual_weight"] * initial).reshape(B, C, H, W)
    info = {
        "offsets": offv.reshape(B, A, 2, H, W),
        "confidences": cv.reshape(B, A, 2, H, W),
        "alignment_mask": amask.reshape(B, A, H, W),
        "rgb_weight": wts[:, 0:1].reshape(B, 1, H, W),
        "tir_weight": wts[:, 1:2].reshape(B, 1, H, W),
    }
    return out, info


# --------------------------------------------------------------------------- #
if __name__ == "__main__":
    key = jax.random.PRNGKey(0)
    in_channels_list = [16, 32, 64]     # small stand-in for [512, 1024, 2048]
    spatial = [16, 8, 4]
    B, A, thr = 2, 9, 0.5

    k_params, k_data = jax.random.split(key)
    pkeys = jax.random.split(k_params, len(in_channels_list))
    params_list = [init_abam_params(pk, C, A) for pk, C in zip(pkeys, in_channels_list)]

    dkeys = jax.random.split(k_data, 2 * len(in_channels_list))
    rgb_feats = [jax.random.normal(dkeys[2 * i], (B, C, s, s), jnp.float32)
                 for i, (C, s) in enumerate(zip(in_channels_list, spatial))]
    tir_feats = [jax.random.normal(dkeys[2 * i + 1], (B, C, s, s), jnp.float32)
                 for i, (C, s) in enumerate(zip(in_channels_list, spatial))]

    fused_feats, align_infos = multi_scale_abam_forward(
        params_list, rgb_feats, tir_feats, A=A, thr=thr)
    fused_feats = [jax.block_until_ready(f) for f in fused_feats]

    # Validate the bf16 fused Pallas path against the pure-f32 JAX reference.
    # Tolerances / stability margins account for bf16 MXU operands.
    for p, r, t, f, info in zip(params_list, rgb_feats, tir_feats,
                                fused_feats, align_infos):
        ref_out, ref_info = ref_abam(p, r, t, A=A, thr=thr)
        ref_out = np.asarray(jax.block_until_ready(ref_out))
        for k in ("offsets", "confidences", "rgb_weight", "tir_weight"):
            np.testing.assert_allclose(np.asarray(info[k]), np.asarray(ref_info[k]),
                                       rtol=5e-2, atol=5e-2)
        # Hard thresholds (|offset|<thr, rgb_conf>tir_conf, ascore>thr) may flip
        # vs. the f32 reference when a value sits near the boundary (bf16 noise);
        # exclude such pixels from the discrete / final-output comparisons.
        offs = np.asarray(ref_info["offsets"])
        confs = np.asarray(ref_info["confidences"])
        mag = np.sqrt(offs[:, :, 0] ** 2 + offs[:, :, 1] ** 2)        # (B, A, H, W)
        rm = confs[:, :, 0].mean(axis=1, keepdims=True)               # (B, 1, H, W)
        tm = confs[:, :, 1].mean(axis=1, keepdims=True)
        off_stable = np.abs(mag - thr) > 6e-2
        np.testing.assert_array_equal(
            np.where(off_stable, np.asarray(info["alignment_mask"]), 0.0),
            np.where(off_stable, np.asarray(ref_info["alignment_mask"]), 0.0))
        stable = off_stable.all(axis=1, keepdims=True) & (np.abs(rm - tm) > 2e-2)
        np.testing.assert_allclose(np.where(stable, np.asarray(f), 0.0),
                                   np.where(stable, ref_out, 0.0),
                                   rtol=8e-2, atol=8e-2)

    print("KERNEL_OK")
</pallas_src>

<mosaic_0001>
module attributes {stable_mosaic.version = 11 : i64} {
  func.func @_abam_kernel(%arg0: i32, %arg1: memref<1x16x256xf32, #tpu.memory_space<vmem>>, %arg2: memref<1x16x256xf32, #tpu.memory_space<vmem>>, %arg3: memref<1x384xf32, #tpu.memory_space<vmem>>, %arg4: memref<16x9xf32, #tpu.memory_space<vmem>>, %arg5: memref<16x16xbf16, #tpu.memory_space<vmem>>, %arg6: memref<16x1xf32, #tpu.memory_space<vmem>>, %arg7: memref<16x1xf32, #tpu.memory_space<vmem>>, %arg8: memref<16x9xf32, #tpu.memory_space<vmem>>, %arg9: memref<16x16xbf16, #tpu.memory_space<vmem>>, %arg10: memref<16x1xf32, #tpu.memory_space<vmem>>, %arg11: memref<16x1xf32, #tpu.memory_space<vmem>>, %arg12: memref<16x16xbf16, #tpu.memory_space<vmem>>, %arg13: memref<16x1xf32, #tpu.memory_space<vmem>>, %arg14: memref<16x1xf32, #tpu.memory_space<vmem>>, %arg15: memref<1x16xf32, #tpu.memory_space<vmem>>, %arg16: memref<8x16xf32, #tpu.memory_space<vmem>>, %arg17: memref<16x8xf32, #tpu.memory_space<vmem>>, %arg18: memref<2x9xf32, #tpu.memory_space<vmem>>, %arg19: memref<9x8x32xbf16, #tpu.memory_space<vmem>>, %arg20: memref<8x1xf32, #tpu.memory_space<vmem>>, %arg21: memref<8x1xf32, #tpu.memory_space<vmem>>, %arg22: memref<36x8xbf16, #tpu.memory_space<vmem>>, %arg23: memref<36x1xf32, #tpu.memory_space<vmem>>, %arg24: memref<16x16xbf16, #tpu.memory_space<vmem>>, %arg25: memref<16x1xf32, #tpu.memory_space<vmem>>, %arg26: memref<16x1xf32, #tpu.memory_space<vmem>>, %arg27: memref<1x1xf32, #tpu.memory_space<vmem>>, %arg28: memref<1x16x384xf32, #tpu.memory_space<vmem>>, %arg29: memref<1x18x384xf32, #tpu.memory_space<vmem>>, %arg30: memref<1x18x384xf32, #tpu.memory_space<vmem>>, %arg31: memref<1x1x384xf32, #tpu.memory_space<vmem>>, %arg32: memref<32x512xbf16, #tpu.memory_space<vmem>>, %arg33: memref<2x512xf32, #tpu.memory_space<vmem>>) attributes {dimension_semantics = [#tpu.dimension_semantics<parallel>], iteration_bounds = array<i64: 2>, scalar_prefetch = 0 : i64, scratch_operands = 2 : i64, tpu.core_type = #tpu.core_type<tc>, window_params = [{transform_indices = @transform_0, window_bounds = array<i64: 1, 16, 256>}, {transform_indices = @transform_1, window_bounds = array<i64: 1, 16, 256>}, {pipeline_mode = #tpu.pipeline_mode<synchronous>, transform_indices = @transform_2, window_bounds = array<i64: 1, 384>}, {pipeline_mode = #tpu.pipeline_mode<synchronous>, transform_indices = @transform_3, window_bounds = array<i64: 16, 9>}, {pipeline_mode = #tpu.pipeline_mode<synchronous>, transform_indices = @transform_4, window_bounds = array<i64: 16, 16>}, {pipeline_mode = #tpu.pipeline_mode<synchronous>, transform_indices = @transform_5, window_bounds = array<i64: 16, 1>}, {pipeline_mode = #tpu.pipeline_mode<synchronous>, transform_indices = @transform_6, window_bounds = array<i64: 16, 1>}, {pipeline_mode = #tpu.pipeline_mode<synchronous>, transform_indices = @transform_7, window_bounds = array<i64: 16, 9>}, {pipeline_mode = #tpu.pipeline_mode<synchronous>, transform_indices = @transform_8, window_bounds = array<i64: 16, 16>}, {pipeline_mode = #tpu.pipeline_mode<synchronous>, transform_indices = @transform_9, window_bounds = array<i64: 16, 1>}, {pipeline_mode = #tpu.pipeline_mode<synchronous>, transform_indices = @transform_10, window_bounds = array<i64: 16, 1>}, {pipeline_mode = #tpu.pipeline_mode<synchronous>, transform_indices = @transform_11, window_bounds = array<i64: 16, 16>}, {pipeline_mode = #tpu.pipeline_mode<synchronous>, transform_indices = @transform_12, window_bounds = array<i64: 16, 1>}, {pipeline_mode = #tpu.pipeline_mode<synchronous>, transform_indices = @transform_13, window_bounds = array<i64: 16, 1>}, {pipeline_mode = #tpu.pipeline_mode<synchronous>, transform_indices = @transform_14, window_bounds = array<i64: 1, 16>}, {pipeline_mode = #tpu.pipeline_mode<synchronous>, transform_indices = @transform_15, window_bounds = array<i64: 8, 16>}, {pipeline_mode = #tpu.pipeline_mode<synchronous>, transform_indices = @transform_16, window_bounds = array<i64: 16, 8>}, {pipeline_mode = #tpu.pipeline_mode<synchronous>, transform_indices = @transform_17, window_bounds = array<i64: 2, 9>}, {pipeline_mode = #tpu.pipeline_mode<synchronous>, transform_indices = @transform_18, window_bounds = array<i64: 9, 8, 32>}, {pipeline_mode = #tpu.pipeline_mode<synchronous>, transform_indices = @transform_19, window_bounds = array<i64: 8, 1>}, {pipeline_mode = #tpu.pipeline_mode<synchronous>, transform_indices = @transform_20, window_bounds = array<i64: 8, 1>}, {pipeline_mode = #tpu.pipeline_mode<synchronous>, transform_indices = @transform_21, window_bounds = array<i64: 36, 8>}, {pipeline_mode = #tpu.pipeline_mode<synchronous>, transform_indices = @transform_22, window_bounds = array<i64: 36, 1>}, {pipeline_mode = #tpu.pipeline_mode<synchronous>, transform_indices = @transform_23, window_bounds = array<i64: 16, 16>}, {pipeline_mode = #tpu.pipeline_mode<synchronous>, transform_indices = @transform_24, window_bounds = array<i64: 16, 1>}, {pipeline_mode = #tpu.pipeline_mode<synchronous>, transform_indices = @transform_25, window_bounds = array<i64: 16, 1>}, {pipeline_mode = #tpu.pipeline_mode<synchronous>, transform_indices = @transform_26, window_bounds = array<i64: 1, 1>}, {transform_indices = @transform_27, window_bounds = array<i64: 1, 16, 384>}, {transform_indices = @transform_28, window_bounds = array<i64: 1, 18, 384>}, {transform_indices = @transform_29, window_bounds = array<i64: 1, 18, 384>}, {transform_indices = @transform_30, window_bounds = array<i64: 1, 1, 384>}]} {
    %cst = arith.constant 0.000000e+00 : bf16
    %0 = vector.broadcast %cst : bf16 to vector<32x512xbf16>
    %c0 = arith.constant 0 : index
    %c0_0 = arith.constant 0 : index
    %1 = vector.load %arg32[%c0, %c0_0] : memref<32x512xbf16, #tpu.memory_space<vmem>>, vector<32x512xbf16>
    tpu.vector_store %arg32[%c0, %c0_0], %0 {strides = array<i32>} : memref<32x512xbf16, #tpu.memory_space<vmem>>, vector<32x512xbf16>,
    %cst_1 = arith.constant 0.000000e+00 : f32
    %2 = vector.broadcast %cst_1 : f32 to vector<2x512xf32>
    %c0_2 = arith.constant 0 : index
    %c0_3 = arith.constant 0 : index
    %3 = vector.load %arg33[%c0_2, %c0_3] : memref<2x512xf32, #tpu.memory_space<vmem>>, vector<2x512xf32>
    tpu.vector_store %arg33[%c0_2, %c0_3], %2 {strides = array<i32>} : memref<2x512xf32, #tpu.memory_space<vmem>>, vector<2x512xf32>,
    %c0_4 = arith.constant 0 : index
    %c0_5 = arith.constant 0 : index
    %c0_6 = arith.constant 0 : index
    %4 = vector.load %arg1[%c0_4, %c0_5, %c0_6] : memref<1x16x256xf32, #tpu.memory_space<vmem>>, vector<1x16x256xf32>
    %5 = vector.shape_cast %4 : vector<1x16x256xf32> to vector<16x256xf32>
    %6 = arith.truncf %5 : vector<16x256xf32> to vector<16x256xbf16>
    %c0_7 = arith.constant 0 : index
    %c0_8 = arith.constant 0 : index
    %c0_9 = arith.constant 0 : index
    %7 = vector.load %arg2[%c0_7, %c0_8, %c0_9] : memref<1x16x256xf32, #tpu.memory_space<vmem>>, vector<1x16x256xf32>
    %8 = vector.shape_cast %7 : vector<1x16x256xf32> to vector<16x256xf32>
    %9 = arith.truncf %8 : vector<16x256xf32> to vector<16x256xbf16>
    %10 = vector.extract_strided_slice %6 {offsets = [0, 0], sizes = [16, 16], strides = [1, 1]} : vector<16x256xbf16> to vector<16x16xbf16>
    %c0_10 = arith.constant 0 : index
    %c19 = arith.constant 19 : index
    %11 = vector.load %arg32[%c0_10, %c19] : memref<32x512xbf16, #tpu.memory_space<vmem>>, vector<16x16xbf16>
    tpu.vector_store %arg32[%c0_10, %c19], %10 {strides = array<i32>} : memref<32x512xbf16, #tpu.memory_space<vmem>>, vector<16x16xbf16>,
    %12 = vector.extract_strided_slice %9 {offsets = [0, 0], sizes = [16, 16], strides = [1, 1]} : vector<16x256xbf16> to vector<16x16xbf16>
    %c16 = arith.constant 16 : index
    %c19_11 = arith.constant 19 : index
    %13 = vector.load %arg32[%c16, %c19_11] : memref<32x512xbf16, #tpu.memory_space<vmem>>, vector<16x16xbf16>
    tpu.vector_store %arg32[%c16, %c19_11], %12 {strides = array<i32>} : memref<32x512xbf16, #tpu.memory_space<vmem>>, vector<16x16xbf16>,
    %14 = vector.extract_strided_slice %6 {offsets = [0, 16], sizes = [16, 16], strides = [1, 1]} : vector<16x256xbf16> to vector<16x16xbf16>
    %c0_12 = arith.constant 0 : index
    %c37 = arith.constant 37 : index
    %15 = vector.load %arg32[%c0_12, %c37] : memref<32x512xbf16, #tpu.memory_space<vmem>>, vector<16x16xbf16>
    tpu.vector_store %arg32[%c0_12, %c37], %14 {strides = array<i32>} : memref<32x512xbf16, #tpu.memory_space<vmem>>, vector<16x16xbf16>,
    %16 = vector.extract_strided_slice %9 {offsets = [0, 16], sizes = [16, 16], strides = [1, 1]} : vector<16x256xbf16> to vector<16x16xbf16>
    %c16_13 = arith.constant 16 : index
    %c37_14 = arith.constant 37 : index
    %17 = vector.load %arg32[%c16_13, %c37_14] : memref<32x512xbf16, #tpu.memory_space<vmem>>, vector<16x16xbf16>
    tpu.vector_store %arg32[%c16_13, %c37_14], %16 {strides = array<i32>} : memref<32x512xbf16, #tpu.memory_space<vmem>>, vector<16x16xbf16>,
    %18 = vector.extract_strided_slice %6 {offsets = [0, 32], sizes = [16, 16], strides = [1, 1]} : vector<16x256xbf16> to vector<16x16xbf16>
    %c0_15 = arith.constant 0 : index
    %c55 = arith.constant 55 : index
    %19 = vector.load %arg32[%c0_15, %c55] : memref<32x512xbf16, #tpu.memory_space<vmem>>, vector<16x16xbf16>
    tpu.vector_store %arg32[%c0_15, %c55], %18 {strides = array<i32>} : memref<32x512xbf16, #tpu.memory_space<vmem>>, vector<16x16xbf16>,
    %20 = vector.extract_strided_slice %9 {offsets = [0, 32], sizes = [16, 16], strides = [1, 1]} : vector<16x256xbf16> to vector<16x16xbf16>
    %c16_16 = arith.constant 16 : index
    %c55_17 = arith.constant 55 : index
    %21 = vector.load %arg32[%c16_16, %c55_17] : memref<32x512xbf16, #tpu.memory_space<vmem>>, vector<16x16xbf16>
    tpu.vector_store %arg32[%c16_16, %c55_17], %20 {strides = array<i32>} : memref<32x512xbf16, #tpu.memory_space<vmem>>, vector<16x16xbf16>,
    %22 = vector.extract_strided_slice %6 {offsets = [0, 48], sizes = [16, 16], strides = [1, 1]} : vector<16x256xbf16> to vector<16x16xbf16>
    %c0_18 = arith.constant 0 : index
    %c73 = arith.constant 73 : index
    %23 = vector.load %arg32[%c0_18, %c73] : memref<32x512xbf16, #tpu.memory_space<vmem>>, vector<16x16xbf16>
    tpu.vector_store %arg32[%c0_18, %c73], %22 {strides = array<i32>} : memref<32x512xbf16, #tpu.memory_space<vmem>>, vector<16x16xbf16>,
    %24 = vector.extract_strided_slice %9 {offsets = [0, 48], sizes = [16, 16], strides = [1, 1]} : vector<16x256xbf16> to vector<16x16xbf16>
    %c16_19 = arith.constant 16 : index
    %c73_20 = arith.constant 73 : index
    %25 = vector.load %arg32[%c16_19, %c73_20] : memref<32x512xbf16, #tpu.memory_space<vmem>>, vector<16x16xbf16>
    tpu.vector_store %arg32[%c16_19, %c73_20], %24 {strides = array<i32>} : memref<32x512xbf16, #tpu.memory_space<vmem>>, vector<16x16xbf16>,
    %26 = vector.extract_strided_slice %6 {offsets = [0, 64], sizes = [16, 16], strides = [1, 1]} : vector<16x256xbf16> to vector<16x16xbf16>
    %c0_21 = arith.constant 0 : index
    %c91 = arith.constant 91 : index
    %27 = vector.load %arg32[%c0_21, %c91] : memref<32x512xbf16, #tpu.memory_space<vmem>>, vector<16x16xbf16>
    tpu.vector_store %arg32[%c0_21, %c91], %26 {strides = array<i32>} : memref<32x512xbf16, #tpu.memory_space<vmem>>, vector<16x16xbf16>,
    %28 = vector.extract_strided_slice %9 {offsets = [0, 64], sizes = [16, 16], strides = [1, 1]} : vector<16x256xbf16> to vector<16x16xbf16>
    %c16_22 = arith.constant 16 : index
    %c91_23 = arith.constant 91 : index
    %29 = vector.load %arg32[%c16_22, %c91_23] : memref<32x512xbf16, #tpu.memory_space<vmem>>, vector<16x16xbf16>
    tpu.vector_store %arg32[%c16_22, %c91_23], %28 {strides = array<i32>} : memref<32x512xbf16, #tpu.memory_space<vmem>>, vector<16x16xbf16>,
    %30 = vector.extract_strided_slice %6 {offsets = [0, 80], sizes = [16, 16], strides = [1, 1]} : vector<16x256xbf16> to vector<16x16xbf16>
    %c0_24 = arith.constant 0 : index
    %c109 = arith.constant 109 : index
    %31 = vector.load %arg32[%c0_24, %c109] : memref<32x512xbf16, #tpu.memory_space<vmem>>, vector<16x16xbf16>
    tpu.vector_store %arg32[%c0_24, %c109], %30 {strides = array<i32>} : memref<32x512xbf16, #tpu.memory_space<vmem>>, vector<16x16xbf16>,
    %32 = vector.extract_strided_slice %9 {offsets = [0, 80], sizes = [16, 16], strides = [1, 1]} : vector<16x256xbf16> to vector<16x16xbf16>
    %c16_25 = arith.constant 16 : index
    %c109_26 = arith.constant 109 : index
    %33 = vector.load %arg32[%c16_25, %c109_26] : memref<32x512xbf16, #tpu.memory_space<vmem>>, vector<16x16xbf16>
    tpu.vector_store %arg32[%c16_25, %c109_26], %32 {strides = array<i32>} : memref<32x512xbf16, #tpu.memory_space<vmem>>, vector<16x16xbf16>,
    %34 = vector.extract_strided_slice %6 {offsets = [0, 96], sizes = [16, 16], strides = [1, 1]} : vector<16x256xbf16> to vector<16x16xbf16>
    %c0_27 = arith.constant 0 : index
    %c127 = arith.constant 127 : index
    %35 = vector.load %arg32[%c0_27, %c127] : memref<32x512xbf16, #tpu.memory_space<vmem>>, vector<16x16xbf16>
    tpu.vector_store %arg32[%c0_27, %c127], %34 {strides = array<i32>} : memref<32x512xbf16, #tpu.memory_space<vmem>>, vector<16x16xbf16>,
    %36 = vector.extract_strided_slice %9 {offsets = [0, 96], sizes = [16, 16], strides = [1, 1]} : vector<16x256xbf16> to vector<16x16xbf16>
    %c16_28 = arith.constant 16 : index
    %c127_29 = arith.constant 127 : index
    %37 = vector.load %arg32[%c16_28, %c127_29] : memref<32x512xbf16, #tpu.memory_space<vmem>>, vector<16x16xbf16>
    tpu.vector_store %arg32[%c16_28, %c127_29], %36 {strides = array<i32>} : memref<32x512xbf16, #tpu.memory_space<vmem>>, vector<16x16xbf16>,
    %38 = vector.extract_strided_slice %6 {offsets = [0, 112], sizes = [16, 16], strides = [1, 1]} : vector<16x256xbf16> to vector<16x16xbf16>
    %c0_30 = arith.constant 0 : index
    %c145 = arith.constant 145 : index
    %39 = vector.load %arg32[%c0_30, %c145] : memref<32x512xbf16, #tpu.memory_space<vmem>>, vector<16x16xbf16>
    tpu.vector_store %arg32[%c0_30, %c145], %38 {strides = array<i32>} : memref<32x512xbf16, #tpu.memory_space<vmem>>, vector<16x16xbf16>,
    %40 = vector.extract_strided_slice %9 {offsets = [0, 112], sizes = [16, 16], strides = [1, 1]} : vector<16x256xbf16> to vector<16x16xbf16>
    %c16_31 = arith.constant 16 : index
    %c145_32 = arith.constant 145 : index
    %41 = vector.load %arg32[%c16_31, %c145_32] : memref<32x512xbf16, #tpu.memory_space<vmem>>, vector<16x16xbf16>
    tpu.vector_store %arg32[%c16_31, %c145_32], %40 {strides = array<i32>} : memref<32x512xbf16, #tpu.memory_space<vmem>>, vector<16x16xbf16>,
    %42 = vector.extract_strided_slice %6 {offsets = [0, 128], sizes = [16, 16], strides = [1, 1]} : vector<16x256xbf16> to vector<16x16xbf16>
    %c0_33 = arith.constant 0 : index
    %c163 = arith.constant 163 : index
    %43 = vector.load %arg32[%c0_33, %c163] : memref<32x512xbf16, #tpu.memory_space<vmem>>, vector<16x16xbf16>
    tpu.vector_store %arg32[%c0_33, %c163], %42 {strides = array<i32>} : memref<32x512xbf16, #tpu.memory_space<vmem>>, vector<16x16xbf16>,
    %44 = vector.extract_strided_slice %9 {offsets = [0, 128], sizes = [16, 16], strides = [1, 1]} : vector<16x256xbf16> to vector<16x16xbf16>
    %c16_34 = arith.constant 16 : index
    %c163_35 = arith.constant 163 : index
    %45 = vector.load %arg32[%c16_34, %c163_35] : memref<32x512xbf16, #tpu.memory_space<vmem>>, vector<16x16xbf16>
    tpu.vector_store %arg32[%c16_34, %c163_35], %44 {strides = array<i32>} : memref<32x512xbf16, #tpu.memory_space<vmem>>, vector<16x16xbf16>,
    %46 = vector.extract_strided_slice %6 {offsets = [0, 144], sizes = [16, 16], strides = [1, 1]} : vector<16x256xbf16> to vector<16x16xbf16>
    %c0_36 = arith.constant 0 : index
    %c181 = arith.constant 181 : index
    %47 = vector.load %arg32[%c0_36, %c181] : memref<32x512xbf16, #tpu.memory_space<vmem>>, vector<16x16xbf16>
    tpu.vector_store %arg32[%c0_36, %c181], %46 {strides = array<i32>} : memref<32x512xbf16, #tpu.memory_space<vmem>>, vector<16x16xbf16>,
    %48 = vector.extract_strided_slice %9 {offsets = [0, 144], sizes = [16, 16], strides = [1, 1]} : vector<16x256xbf16> to vector<16x16xbf16>
    %c16_37 = arith.constant 16 : index
    %c181_38 = arith.constant 181 : index
    %49 = vector.load %arg32[%c16_37, %c181_38] : memref<32x512xbf16, #tpu.memory_space<vmem>>, vector<16x16xbf16>
    tpu.vector_store %arg32[%c16_37, %c181_38], %48 {strides = array<i32>} : memref<32x512xbf16, #tpu.memory_space<vmem>>, vector<16x16xbf16>,
    %50 = vector.extract_strided_slice %6 {offsets = [0, 160], sizes = [16, 16], strides = [1, 1]} : vector<16x256xbf16> to vector<16x16xbf16>
    %c0_39 = arith.constant 0 : index
    %c199 = arith.constant 199 : index
    %51 = vector.load %arg32[%c0_39, %c199] : memref<32x512xbf16, #tpu.memory_space<vmem>>, vector<16x16xbf16>
    tpu.vector_store %arg32[%c0_39, %c199], %50 {strides = array<i32>} : memref<32x512xbf16, #tpu.memory_space<vmem>>, vector<16x16xbf16>,
    %52 = vector.extract_strided_slice %9 {offsets = [0, 160], sizes = [16, 16], strides = [1, 1]} : vector<16x256xbf16> to vector<16x16xbf16>
    %c16_40 = arith.constant 16 : index
    %c199_41 = arith.constant 199 : index
    %53 = vector.load %arg32[%c16_40, %c199_41] : memref<32x512xbf16, #tpu.memory_space<vmem>>, vector<16x16xbf16>
    tpu.vector_store %arg32[%c16_40, %c199_41], %52 {strides = array<i32>} : memref<32x512xbf16, #tpu.memory_space<vmem>>, vector<16x16xbf16>,
    %54 = vector.extract_strided_slice %6 {offsets = [0, 176], sizes = [16, 16], strides = [1, 1]} : vector<16x256xbf16> to vector<16x16xbf16>
    %c0_42 = arith.constant 0 : index
    %c217 = arith.constant 217 : index
    %55 = vector.load %arg32[%c0_42, %c217] : memref<32x512xbf16, #tpu.memory_space<vmem>>, vector<16x16xbf16>
    tpu.vector_store %arg32[%c0_42, %c217], %54 {strides = array<i32>} : memref<32x512xbf16, #tpu.memory_space<vmem>>, vector<16x16xbf16>,
    %56 = vector.extract_strided_slice %9 {offsets = [0, 176], sizes = [16, 16], strides = [1, 1]} : vector<16x256xbf16> to vector<16x16xbf16>
    %c16_43 = arith.constant 16 : index
    %c217_44 = arith.constant 217 : index
    %57 = vector.load %arg32[%c16_43, %c217_44] : memref<32x512xbf16, #tpu.memory_space<vmem>>, vector<16x16xbf16>
    tpu.vector_store %arg32[%c16_43, %c217_44], %56 {strides = array<i32>} : memref<32x512xbf16, #tpu.memory_space<vmem>>, vector<16x16xbf16>,
    %58 = vector.extract_strided_slice %6 {offsets = [0, 192], sizes = [16, 16], strides = [1, 1]} : vector<16x256xbf16> to vector<16x16xbf16>
    %c0_45 = arith.constant 0 : index
    %c235 = arith.constant 235 : index
    %59 = vector.load %arg32[%c0_45, %c235] : memref<32x512xbf16, #tpu.memory_space<vmem>>, vector<16x16xbf16>
    tpu.vector_store %arg32[%c0_45, %c235], %58 {strides = array<i32>} : memref<32x512xbf16, #tpu.memory_space<vmem>>, vector<16x16xbf16>,
    %60 = vector.extract_strided_slice %9 {offsets = [0, 192], sizes = [16, 16], strides = [1, 1]} : vector<16x256xbf16> to vector<16x16xbf16>
    %c16_46 = arith.constant 16 : index
    %c235_47 = arith.constant 235 : index
    %61 = vector.load %arg32[%c16_46, %c235_47] : memref<32x512xbf16, #tpu.memory_space<vmem>>, vector<16x16xbf16>
    tpu.vector_store %arg32[%c16_46, %c235_47], %60 {strides = array<i32>} : memref<32x512xbf16, #tpu.memory_space<vmem>>, vector<16x16xbf16>,
    %62 = vector.extract_strided_slice %6 {offsets = [0, 208], sizes = [16, 16], strides = [1, 1]} : vector<16x256xbf16> to vector<16x16xbf16>
    %c0_48 = arith.constant 0 : index
    %c253 = arith.constant 253 : index
    %63 = vector.load %arg32[%c0_48, %c253] : memref<32x512xbf16, #tpu.memory_space<vmem>>, vector<16x16xbf16>
    tpu.vector_store %arg32[%c0_48, %c253], %62 {strides = array<i32>} : memref<32x512xbf16, #tpu.memory_space<vmem>>, vector<16x16xbf16>,
    %64 = vector.extract_strided_slice %9 {offsets = [0, 208], sizes = [16, 16], strides = [1, 1]} : vector<16x256xbf16> to vector<16x16xbf16>
    %c16_49 = arith.constant 16 : index
    %c253_50 = arith.constant 253 : index
    %65 = vector.load %arg32[%c16_49, %c253_50] : memref<32x512xbf16, #tpu.memory_space<vmem>>, vector<16x16xbf16>
    tpu.vector_store %arg32[%c16_49, %c253_50], %64 {strides = array<i32>} : memref<32x512xbf16, #tpu.memory_space<vmem>>, vector<16x16xbf16>,
    %66 = vector.extract_strided_slice %6 {offsets = [0, 224], sizes = [16, 16], strides = [1, 1]} : vector<16x256xbf16> to vector<16x16xbf16>
    %c0_51 = arith.constant 0 : index
    %c271 = arith.constant 271 : index
    %67 = vector.load %arg32[%c0_51, %c271] : memref<32x512xbf16, #tpu.memory_space<vmem>>, vector<16x16xbf16>
    tpu.vector_store %arg32[%c0_51, %c271], %66 {strides = array<i32>} : memref<32x512xbf16, #tpu.memory_space<vmem>>, vector<16x16xbf16>,
    %68 = vector.extract_strided_slice %9 {offsets = [0, 224], sizes = [16, 16], strides = [1, 1]} : vector<16x256xbf16> to vector<16x16xbf16>
    %c16_52 = arith.constant 16 : index
    %c271_53 = arith.constant 271 : index
    %69 = vector.load %arg32[%c16_52, %c271_53] : memref<32x512xbf16, #tpu.memory_space<vmem>>, vector<16x16xbf16>
    tpu.vector_store %arg32[%c16_52, %c271_53], %68 {strides = array<i32>} : memref<32x512xbf16, #tpu.memory_space<vmem>>, vector<16x16xbf16>,
    %70 = vector.extract_strided_slice %6 {offsets = [0, 240], sizes = [16, 16], strides = [1, 1]} : vector<16x256xbf16> to vector<16x16xbf16>
    %c0_54 = arith.constant 0 : index
    %c289 = arith.constant 289 : index
    %71 = vector.load %arg32[%c0_54, %c289] : memref<32x512xbf16, #tpu.memory_space<vmem>>, vector<16x16xbf16>
    tpu.vector_store %arg32[%c0_54, %c289], %70 {strides = array<i32>} : memref<32x512xbf16, #tpu.memory_space<vmem>>, vector<16x16xbf16>,
    %72 = vector.extract_strided_slice %9 {offsets = [0, 240], sizes = [16, 16], strides = [1, 1]} : vector<16x256xbf16> to vector<16x16xbf16>
    %c16_55 = arith.constant 16 : index
    %c289_56 = arith.constant 289 : index
    %73 = vector.load %arg32[%c16_55, %c289_56] : memref<32x512xbf16, #tpu.memory_space<vmem>>, vector<16x16xbf16>
    tpu.vector_store %arg32[%c16_55, %c289_56], %72 {strides = array<i32>} : memref<32x512xbf16, #tpu.memory_space<vmem>>, vector<16x16xbf16>,
    %c0_57 = arith.constant 0 : index
    %c0_58 = arith.constant 0 : index
    %74 = vector.load %arg32[%c0_57, %c0_58] : memref<32x512xbf16, #tpu.memory_space<vmem>>, vector<32x512xbf16>
    %75 = vector.extract_strided_slice %74 {offsets = [0, 0], sizes = [16, 512], strides = [1, 1]} : vector<32x512xbf16> to vector<16x512xbf16>
    %76 = vector.extract_strided_slice %74 {offsets = [16, 0], sizes = [16, 512], strides = [1, 1]} : vector<32x512xbf16> to vector<16x512xbf16>
    %c0_59 = arith.constant 0 : index
    %c0_60 = arith.constant 0 : index
    %77 = vector.load %arg3[%c0_59, %c0_60] : memref<1x384xf32, #tpu.memory_space<vmem>>, vector<1x384xf32>
    %c0_61 = arith.constant 0 : index
    %c0_62 = arith.constant 0 : index
    %78 = vector.load %arg4[%c0_61, %c0_62] : memref<16x9xf32, #tpu.memory_space<vmem>>, vector<16x9xf32>
    %79 = vector.extract_strided_slice %75 {offsets = [0, 0], sizes = [16, 384], strides = [1, 1]} : vector<16x512xbf16> to vector<16x384xbf16>
    %80 = vector.extract_strided_slice %78 {offsets = [0, 0], sizes = [16, 1], strides = [1, 1]} : vector<16x9xf32> to vector<16x1xf32>
    %81 = arith.extf %79 : vector<16x384xbf16> to vector<16x384xf32>
    %82 = vector.broadcast %80 : vector<16x1xf32> to vector<16x384xf32>
    %83 = arith.mulf %81, %82 : vector<16x384xf32>
    %84 = vector.extract_strided_slice %75 {offsets = [0, 1], sizes = [16, 384], strides = [1, 1]} : vector<16x512xbf16> to vector<16x384xbf16>
    %85 = vector.extract_strided_slice %78 {offsets = [0, 1], sizes = [16, 1], strides = [1, 1]} : vector<16x9xf32> to vector<16x1xf32>
    %86 = arith.extf %84 : vector<16x384xbf16> to vector<16x384xf32>
    %87 = vector.broadcast %85 : vector<16x1xf32> to vector<16x384xf32>
    %88 = arith.mulf %86, %87 : vector<16x384xf32>
    %89 = arith.addf %83, %88 : vector<16x384xf32>
    %90 = vector.extract_strided_slice %75 {offsets = [0, 2], sizes = [16, 384], strides = [1, 1]} : vector<16x512xbf16> to vector<16x384xbf16>
    %91 = vector.extract_strided_slice %78 {offsets = [0, 2], sizes = [16, 1], strides = [1, 1]} : vector<16x9xf32> to vector<16x1xf32>
    %92 = arith.extf %90 : vector<16x384xbf16> to vector<16x384xf32>
    %93 = vector.broadcast %91 : vector<16x1xf32> to vector<16x384xf32>
    %94 = arith.mulf %92, %93 : vector<16x384xf32>
    %95 = arith.addf %89, %94 : vector<16x384xf32>
    %96 = vector.extract_strided_slice %75 {offsets = [0, 18], sizes = [16, 384], strides = [1, 1]} : vector<16x512xbf16> to vector<16x384xbf16>
    %97 = vector.extract_strided_slice %78 {offsets = [0, 3], sizes = [16, 1], strides = [1, 1]} : vector<16x9xf32> to vector<16x1xf32>
    %98 = arith.extf %96 : vector<16x384xbf16> to vector<16x384xf32>
    %99 = vector.broadcast %97 : vector<16x1xf32> to vector<16x384xf32>
    %100 = arith.mulf %98, %99 : vector<16x384xf32>
    %101 = arith.addf %95, %100 : vector<16x384xf32>
    %102 = vector.extract_strided_slice %75 {offsets = [0, 19], sizes = [16, 384], strides = [1, 1]} : vector<16x512xbf16> to vector<16x384xbf16>
    %103 = vector.extract_strided_slice %78 {offsets = [0, 4], sizes = [16, 1], strides = [1, 1]} : vector<16x9xf32> to vector<16x1xf32>
    %104 = arith.extf %102 : vector<16x384xbf16> to vector<16x384xf32>
    %105 = vector.broadcast %103 : vector<16x1xf32> to vector<16x384xf32>
    %106 = arith.mulf %104, %105 : vector<16x384xf32>
    %107 = arith.addf %101, %106 : vector<16x384xf32>
    %108 = vector.extract_strided_slice %75 {offsets = [0, 20], sizes = [16, 384], strides = [1, 1]} : vector<16x512xbf16> to vector<16x384xbf16>
    %109 = vector.extract_strided_slice %78 {offsets = [0, 5], sizes = [16, 1], strides = [1, 1]} : vector<16x9xf32> to vector<16x1xf32>
    %110 = arith.extf %108 : vector<16x384xbf16> to vector<16x384xf32>
    %111 = vector.broadcast %109 : vector<16x1xf32> to vector<16x384xf32>
    %112 = arith.mulf %110, %111 : vector<16x384xf32>
    %113 = arith.addf %107, %112 : vector<16x384xf32>
    %114 = vector.extract_strided_slice %75 {offsets = [0, 36], sizes = [16, 384], strides = [1, 1]} : vector<16x512xbf16> to vector<16x384xbf16>
    %115 = vector.extract_strided_slice %78 {offsets = [0, 6], sizes = [16, 1], strides = [1, 1]} : vector<16x9xf32> to vector<16x1xf32>
    %116 = arith.extf %114 : vector<16x384xbf16> to vector<16x384xf32>
    %117 = vector.broadcast %115 : vector<16x1xf32> to vector<16x384xf32>
    %118 = arith.mulf %116, %117 : vector<16x384xf32>
    %119 = arith.addf %113, %118 : vector<16x384xf32>
    %120 = vector.extract_strided_slice %75 {offsets = [0, 37], sizes = [16, 384], strides = [1, 1]} : vector<16x512xbf16> to vector<16x384xbf16>
    %121 = vector.extract_strided_slice %78 {offsets = [0, 7], sizes = [16, 1], strides = [1, 1]} : vector<16x9xf32> to vector<16x1xf32>
    %122 = arith.extf %120 : vector<16x384xbf16> to vector<16x384xf32>
    %123 = vector.broadcast %121 : vector<16x1xf32> to vector<16x384xf32>
    %124 = arith.mulf %122, %123 : vector<16x384xf32>
    %125 = arith.addf %119, %124 : vector<16x384xf32>
    %126 = vector.extract_strided_slice %75 {offsets = [0, 38], sizes = [16, 384], strides = [1, 1]} : vector<16x512xbf16> to vector<16x384xbf16>
    %127 = vector.extract_strided_slice %78 {offsets = [0, 8], sizes = [16, 1], strides = [1, 1]} : vector<16x9xf32> to vector<16x1xf32>
    %128 = arith.extf %126 : vector<16x384xbf16> to vector<16x384xf32>
    %129 = vector.broadcast %127 : vector<16x1xf32> to vector<16x384xf32>
    %130 = arith.mulf %128, %129 : vector<16x384xf32>
    %131 = arith.addf %125, %130 : vector<16x384xf32>
    %c0_63 = arith.constant 0 : index
    %c0_64 = arith.constant 0 : index
    %132 = vector.load %arg8[%c0_63, %c0_64] : memref<16x9xf32, #tpu.memory_space<vmem>>, vector<16x9xf32>
    %133 = vector.extract_strided_slice %76 {offsets = [0, 0], sizes = [16, 384], strides = [1, 1]} : vector<16x512xbf16> to vector<16x384xbf16>
    %134 = vector.extract_strided_slice %132 {offsets = [0, 0], sizes = [16, 1], strides = [1, 1]} : vector<16x9xf32> to vector<16x1xf32>
    %135 = arith.extf %133 : vector<16x384xbf16> to vector<16x384xf32>
    %136 = vector.broadcast %134 : vector<16x1xf32> to vector<16x384xf32>
    %137 = arith.mulf %135, %136 : vector<16x384xf32>
    %138 = vector.extract_strided_slice %76 {offsets = [0, 1], sizes = [16, 384], strides = [1, 1]} : vector<16x512xbf16> to vector<16x384xbf16>
    %139 = vector.extract_strided_slice %132 {offsets = [0, 1], sizes = [16, 1], strides = [1, 1]} : vector<16x9xf32> to vector<16x1xf32>
    %140 = arith.extf %138 : vector<16x384xbf16> to vector<16x384xf32>
    %141 = vector.broadcast %139 : vector<16x1xf32> to vector<16x384xf32>
    %142 = arith.mulf %140, %141 : vector<16x384xf32>
    %143 = arith.addf %137, %142 : vector<16x384xf32>
    %144 = vector.extract_strided_slice %76 {offsets = [0, 2], sizes = [16, 384], strides = [1, 1]} : vector<16x512xbf16> to vector<16x384xbf16>
    %145 = vector.extract_strided_slice %132 {offsets = [0, 2], sizes = [16, 1], strides = [1, 1]} : vector<16x9xf32> to vector<16x1xf32>
    %146 = arith.extf %144 : vector<16x384xbf16> to vector<16x384xf32>
    %147 = vector.broadcast %145 : vector<16x1xf32> to vector<16x384xf32>
    %148 = arith.mulf %146, %147 : vector<16x384xf32>
    %149 = arith.addf %143, %148 : vector<16x384xf32>
    %150 = vector.extract_strided_slice %76 {offsets = [0, 18], sizes = [16, 384], strides = [1, 1]} : vector<16x512xbf16> to vector<16x384xbf16>
    %151 = vector.extract_strided_slice %132 {offsets = [0, 3], sizes = [16, 1], strides = [1, 1]} : vector<16x9xf32> to vector<16x1xf32>
    %152 = arith.extf %150 : vector<16x384xbf16> to vector<16x384xf32>
    %153 = vector.broadcast %151 : vector<16x1xf32> to vector<16x384xf32>
    %154 = arith.mulf %152, %153 : vector<16x384xf32>
    %155 = arith.addf %149, %154 : vector<16x384xf32>
    %156 = vector.extract_strided_slice %76 {offsets = [0, 19], sizes = [16, 384], strides = [1, 1]} : vector<16x512xbf16> to vector<16x384xbf16>
    %157 = vector.extract_strided_slice %132 {offsets = [0, 4], sizes = [16, 1], strides = [1, 1]} : vector<16x9xf32> to vector<16x1xf32>
    %158 = arith.extf %156 : vector<16x384xbf16> to vector<16x384xf32>
    %159 = vector.broadcast %157 : vector<16x1xf32> to vector<16x384xf32>
    %160 = arith.mulf %158, %159 : vector<16x384xf32>
    %161 = arith.addf %155, %160 : vector<16x384xf32>
    %162 = vector.extract_strided_slice %76 {offsets = [0, 20], sizes = [16, 384], strides = [1, 1]} : vector<16x512xbf16> to vector<16x384xbf16>
    %163 = vector.extract_strided_slice %132 {offsets = [0, 5], sizes = [16, 1], strides = [1, 1]} : vector<16x9xf32> to vector<16x1xf32>
    %164 = arith.extf %162 : vector<16x384xbf16> to vector<16x384xf32>
    %165 = vector.broadcast %163 : vector<16x1xf32> to vector<16x384xf32>
    %166 = arith.mulf %164, %165 : vector<16x384xf32>
    %167 = arith.addf %161, %166 : vector<16x384xf32>
    %168 = vector.extract_strided_slice %76 {offsets = [0, 36], sizes = [16, 384], strides = [1, 1]} : vector<16x512xbf16> to vector<16x384xbf16>
    %169 = vector.extract_strided_slice %132 {offsets = [0, 6], sizes = [16, 1], strides = [1, 1]} : vector<16x9xf32> to vector<16x1xf32>
    %170 = arith.extf %168 : vector<16x384xbf16> to vector<16x384xf32>
    %171 = vector.broadcast %169 : vector<16x1xf32> to vector<16x384xf32>
    %172 = arith.mulf %170, %171 : vector<16x384xf32>
    %173 = arith.addf %167, %172 : vector<16x384xf32>
    %174 = vector.extract_strided_slice %76 {offsets = [0, 37], sizes = [16, 384], strides = [1, 1]} : vector<16x512xbf16> to vector<16x384xbf16>
    %175 = vector.extract_strided_slice %132 {offsets = [0, 7], sizes = [16, 1], strides = [1, 1]} : vector<16x9xf32> to vector<16x1xf32>
    %176 = arith.extf %174 : vector<16x384xbf16> to vector<16x384xf32>
    %177 = vector.broadcast %175 : vector<16x1xf32> to vector<16x384xf32>
    %178 = arith.mulf %176, %177 : vector<16x384xf32>
    %179 = arith.addf %173, %178 : vector<16x384xf32>
    %180 = vector.extract_strided_slice %76 {offsets = [0, 38], sizes = [16, 384], strides = [1, 1]} : vector<16x512xbf16> to vector<16x384xbf16>
    %181 = vector.extract_strided_slice %132 {offsets = [0, 8], sizes = [16, 1], strides = [1, 1]} : vector<16x9xf32> to vector<16x1xf32>
    %182 = arith.extf %180 : vector<16x384xbf16> to vector<16x384xf32>
    %183 = vector.broadcast %181 : vector<16x1xf32> to vector<16x384xf32>
    %184 = arith.mulf %182, %183 : vector<16x384xf32>
    %185 = arith.addf %179, %184 : vector<16x384xf32>
    %c0_65 = arith.constant 0 : index
    %c0_66 = arith.constant 0 : index
    %186 = vector.load %arg5[%c0_65, %c0_66] : memref<16x16xbf16, #tpu.memory_space<vmem>>, vector<16x16xbf16>
    %187 = arith.truncf %131 : vector<16x384xf32> to vector<16x384xbf16>
    %cst_67 = arith.constant dense<0.000000e+00> : vector<16x384xf32>
    %188 = tpu.matmul %186, %187, %cst_67 {dimension_numbers = #tpu.dot_dimension_numbers<[1], [0], [0], [1], [0, 0, 1, 1], [], []>} : vector<16x16xbf16>, vector<16x384xbf16>, vector<16x384xf32> -> vector<16x384xf32>
    %c0_68 = arith.constant 0 : index
    %c0_69 = arith.constant 0 : index
    %189 = vector.load %arg6[%c0_68, %c0_69] : memref<16x1xf32, #tpu.memory_space<vmem>>, vector<16x1xf32>
    %190 = vector.broadcast %189 : vector<16x1xf32> to vector<16x384xf32>
    %191 = arith.mulf %188, %190 : vector<16x384xf32>
    %c0_70 = arith.constant 0 : index
    %c0_71 = arith.constant 0 : index
    %192 = vector.load %arg7[%c0_70, %c0_71] : memref<16x1xf32, #tpu.memory_space<vmem>>, vector<16x1xf32>
    %193 = vector.broadcast %192 : vector<16x1xf32> to vector<16x384xf32>
    %194 = arith.addf %191, %193 : vector<16x384xf32>
    %cst_72 = arith.constant 0.000000e+00 : f32
    %195 = vector.broadcast %cst_72 : f32 to vector<16x384xf32>
    %196 = arith.maximumf %194, %195 : vector<16x384xf32>
    %c0_73 = arith.constant 0 : index
    %c0_74 = arith.constant 0 : index
    %197 = vector.load %arg9[%c0_73, %c0_74] : memref<16x16xbf16, #tpu.memory_space<vmem>>, vector<16x16xbf16>
    %198 = arith.truncf %185 : vector<16x384xf32> to vector<16x384xbf16>
    %cst_75 = arith.constant dense<0.000000e+00> : vector<16x384xf32>
    %199 = tpu.matmul %197, %198, %cst_75 {dimension_numbers = #tpu.dot_dimension_numbers<[1], [0], [0], [1], [0, 0, 1, 1], [], []>} : vector<16x16xbf16>, vector<16x384xbf16>, vector<16x384xf32> -> vector<16x384xf32>
    %c0_76 = arith.constant 0 : index
    %c0_77 = arith.constant 0 : index
    %200 = vector.load %arg10[%c0_76, %c0_77] : memref<16x1xf32, #tpu.memory_space<vmem>>, vector<16x1xf32>
    %201 = vector.broadcast %200 : vector<16x1xf32> to vector<16x384xf32>
    %202 = arith.mulf %199, %201 : vector<16x384xf32>
    %c0_78 = arith.constant 0 : index
    %c0_79 = arith.constant 0 : index
    %203 = vector.load %arg11[%c0_78, %c0_79] : memref<16x1xf32, #tpu.memory_space<vmem>>, vector<16x1xf32>
    %204 = vector.broadcast %203 : vector<16x1xf32> to vector<16x384xf32>
    %205 = arith.addf %202, %204 : vector<16x384xf32>
    %cst_80 = arith.constant 0.000000e+00 : f32
    %206 = vector.broadcast %cst_80 : f32 to vector<16x384xf32>
    %207 = arith.maximumf %205, %206 : vector<16x384xf32>
    %208 = arith.addf %196, %207 : vector<16x384xf32>
    %c0_81 = arith.constant 0 : index
    %c0_82 = arith.constant 0 : index
    %209 = vector.load %arg12[%c0_81, %c0_82] : memref<16x16xbf16, #tpu.memory_space<vmem>>, vector<16x16xbf16>
    %210 = arith.truncf %208 : vector<16x384xf32> to vector<16x384xbf16>
    %cst_83 = arith.constant dense<0.000000e+00> : vector<16x384xf32>
    %211 = tpu.matmul %209, %210, %cst_83 {dimension_numbers = #tpu.dot_dimension_numbers<[1], [0], [0], [1], [0, 0, 1, 1], [], []>} : vector<16x16xbf16>, vector<16x384xbf16>, vector<16x384xf32> -> vector<16x384xf32>
    %c0_84 = arith.constant 0 : index
    %c0_85 = arith.constant 0 : index
    %212 = vector.load %arg13[%c0_84, %c0_85] : memref<16x1xf32, #tpu.memory_space<vmem>>, vector<16x1xf32>
    %213 = vector.broadcast %212 : vector<16x1xf32> to vector<16x384xf32>
    %214 = arith.mulf %211, %213 : vector<16x384xf32>
    %c0_86 = arith.constant 0 : index
    %c0_87 = arith.constant 0 : index
    %215 = vector.load %arg14[%c0_86, %c0_87] : memref<16x1xf32, #tpu.memory_space<vmem>>, vector<16x1xf32>
    %216 = vector.broadcast %215 : vector<16x1xf32> to vector<16x384xf32>
    %217 = arith.addf %214, %216 : vector<16x384xf32>
    %cst_88 = arith.constant 0.000000e+00 : f32
    %218 = vector.broadcast %cst_88 : f32 to vector<16x384xf32>
    %219 = arith.maximumf %217, %218 : vector<16x384xf32>
    %c0_89 = arith.constant 0 : index
    %c0_90 = arith.constant 0 : index
    %220 = vector.load %arg15[%c0_89, %c0_90] : memref<1x16xf32, #tpu.memory_space<vmem>>, vector<1x16xf32>
    %cst_91 = arith.constant dense<0.000000e+00> : vector<1x384xf32>
    %221 = tpu.matmul %220, %219, %cst_91 {dimension_numbers = #tpu.dot_dimension_numbers<[1], [0], [0], [1], [0, 0, 1, 1], [], []>} : vector<1x16xf32>, vector<16x384xf32>, vector<1x384xf32> -> vector<1x384xf32>
    %222 = arith.negf %221 : vector<1x384xf32>
    %223 = math.exp %222 : vector<1x384xf32>
    %cst_92 = arith.constant 1.000000e+00 : f32
    %224 = vector.broadcast %cst_92 : f32 to vector<1x384xf32>
    %225 = arith.addf %224, %223 : vector<1x384xf32>
    %226 = arith.divf %224, %225 : vector<1x384xf32>
    %c0_93 = arith.constant 0 : index
    %c0_94 = arith.constant 0 : index
    %c0_95 = arith.constant 0 : index
    %227 = vector.load %arg31[%c0_93, %c0_94, %c0_95] : memref<1x1x384xf32, #tpu.memory_space<vmem>>, vector<1x1x384xf32>
    %228 = vector.shape_cast %227 : vector<1x1x384xf32> to vector<1x384xf32>
    %229 = vector.shape_cast %226 : vector<1x384xf32> to vector<1x1x384xf32>
    tpu.vector_store %arg31[%c0_93, %c0_94, %c0_95], %229 {strides = array<i32>} : memref<1x1x384xf32, #tpu.memory_space<vmem>>, vector<1x1x384xf32>,
    %230 = vector.broadcast %226 : vector<1x384xf32> to vector<16x384xf32>
    %231 = arith.mulf %196, %230 : vector<16x384xf32>
    %cst_96 = arith.constant 1.000000e+00 : f32
    %232 = vector.broadcast %cst_96 : f32 to vector<1x384xf32>
    %233 = arith.subf %232, %226 : vector<1x384xf32>
    %234 = vector.broadcast %233 : vector<1x384xf32> to vector<16x384xf32>
    %235 = arith.mulf %207, %234 : vector<16x384xf32>
    %236 = arith.addf %231, %235 : vector<16x384xf32>
    %237 = vector.broadcast %77 : vector<1x384xf32> to vector<16x384xf32>
    %238 = arith.mulf %236, %237 : vector<16x384xf32>
    %cst_97 = arith.constant dense<0.000000e+00> : vector<16xf32>
    %239 = vector.multi_reduction <add>, %238, %cst_97 [1] : vector<16x384xf32> to vector<16xf32>
    %240 = vector.shape_cast %239 : vector<16xf32> to vector<16x1xf32>
    %cst_98 = arith.constant 3.906250e-03 : f32
    %241 = vector.broadcast %cst_98 : f32 to vector<16x1xf32>
    %242 = arith.mulf %240, %241 : vector<16x1xf32>
    %c0_99 = arith.constant 0 : index
    %c0_100 = arith.constant 0 : index
    %243 = vector.load %arg16[%c0_99, %c0_100] : memref<8x16xf32, #tpu.memory_space<vmem>>, vector<8x16xf32>
    %cst_101 = arith.constant dense<0.000000e+00> : vector<8x1xf32>
    %244 = tpu.matmul %243, %242, %cst_101 {dimension_numbers = #tpu.dot_dimension_numbers<[1], [0], [0], [1], [0, 0, 1, 1], [], []>} : vector<8x16xf32>, vector<16x1xf32>, vector<8x1xf32> -> vector<8x1xf32>
    %cst_102 = arith.constant 0.000000e+00 : f32
    %245 = vector.broadcast %cst_102 : f32 to vector<8x1xf32>
    %246 = arith.maximumf %244, %245 : vector<8x1xf32>
    %c0_103 = arith.constant 0 : index
    %c0_104 = arith.constant 0 : index
    %247 = vector.load %arg17[%c0_103, %c0_104] : memref<16x8xf32, #tpu.memory_space<vmem>>, vector<16x8xf32>
    %cst_105 = arith.constant dense<0.000000e+00> : vector<16x1xf32>
    %248 = tpu.matmul %247, %246, %cst_105 {dimension_numbers = #tpu.dot_dimension_numbers<[1], [0], [0], [1], [0, 0, 1, 1], [], []>} : vector<16x8xf32>, vector<8x1xf32>, vector<16x1xf32> -> vector<16x1xf32>
    %249 = arith.negf %248 : vector<16x1xf32>
    %250 = math.exp %249 : vector<16x1xf32>
    %cst_106 = arith.constant 1.000000e+00 : f32
    %251 = vector.broadcast %cst_106 : f32 to vector<16x1xf32>
    %252 = arith.addf %251, %250 : vector<16x1xf32>
    %253 = arith.divf %251, %252 : vector<16x1xf32>
    %254 = vector.broadcast %253 : vector<16x1xf32> to vector<16x384xf32>
    %255 = arith.mulf %236, %254 : vector<16x384xf32>
    %cst_107 = arith.constant dense<0.000000e+00> : vector<384xf32>
    %256 = vector.multi_reduction <add>, %255, %cst_107 [0] : vector<16x384xf32> to vector<384xf32>
    %257 = vector.shape_cast %256 : vector<384xf32> to vector<1x384xf32>
    %cst_108 = arith.constant 1.600000e+01 : f32
    %258 = vector.broadcast %cst_108 : f32 to vector<1x384xf32>
    %259 = arith.divf %257, %258 : vector<1x384xf32>
    %260 = arith.mulf %259, %77 : vector<1x384xf32>
    %c0_109 = arith.constant 0 : index
    %c19_110 = arith.constant 19 : index
    %261 = vector.load %arg33[%c0_109, %c19_110] : memref<2x512xf32, #tpu.memory_space<vmem>>, vector<1x384xf32>
    tpu.vector_store %arg33[%c0_109, %c19_110], %260 {strides = array<i32>} : memref<2x512xf32, #tpu.memory_space<vmem>>, vector<1x384xf32>,
    %cst_111 = arith.constant dense<0xFF800000> : vector<384xf32>
    %262 = vector.multi_reduction <maximumf>, %255, %cst_111 [0] : vector<16x384xf32> to vector<384xf32>
    %263 = vector.shape_cast %262 : vector<384xf32> to vector<1x384xf32>
    %264 = arith.mulf %263, %77 : vector<1x384xf32>
    %c1 = arith.constant 1 : index
    %c19_112 = arith.constant 19 : index
    %265 = vector.load %arg33[%c1, %c19_112] : memref<2x512xf32, #tpu.memory_space<vmem>>, vector<1x384xf32>
    tpu.vector_store %arg33[%c1, %c19_112], %264 {strides = array<i32>} : memref<2x512xf32, #tpu.memory_space<vmem>>, vector<1x384xf32>,
    %c0_113 = arith.constant 0 : index
    %c0_114 = arith.constant 0 : index
    %266 = vector.load %arg33[%c0_113, %c0_114] : memref<2x512xf32, #tpu.memory_space<vmem>>, vector<2x512xf32>
    %c0_115 = arith.constant 0 : index
    %c0_116 = arith.constant 0 : index
    %267 = vector.load %arg18[%c0_115, %c0_116] : memref<2x9xf32, #tpu.memory_space<vmem>>, vector<2x9xf32>
    %268 = vector.extract_strided_slice %266 {offsets = [0, 0], sizes = [1, 384], strides = [1, 1]} : vector<2x512xf32> to vector<1x384xf32>
    %269 = vector.extract_strided_slice %267 {offsets = [0, 0], sizes = [1, 1], strides = [1, 1]} : vector<2x9xf32> to vector<1x1xf32>
    %270 = vector.broadcast %269 : vector<1x1xf32> to vector<1x384xf32>
    %271 = arith.mulf %268, %270 : vector<1x384xf32>
    %272 = vector.extract_strided_slice %266 {offsets = [1, 0], sizes = [1, 384], strides = [1, 1]} : vector<2x512xf32> to vector<1x384xf32>
    %273 = vector.extract_strided_slice %267 {offsets = [1, 0], sizes = [1, 1], strides = [1, 1]} : vector<2x9xf32> to vector<1x1xf32>
    %274 = vector.broadcast %273 : vector<1x1xf32> to vector<1x384xf32>
    %275 = arith.mulf %272, %274 : vector<1x384xf32>
    %276 = arith.addf %271, %275 : vector<1x384xf32>
    %277 = vector.extract_strided_slice %266 {offsets = [0, 1], sizes = [1, 384], strides = [1, 1]} : vector<2x512xf32> to vector<1x384xf32>
    %278 = vector.extract_strided_slice %267 {offsets = [0, 1], sizes = [1, 1], strides = [1, 1]} : vector<2x9xf32> to vector<1x1xf32>
    %279 = vector.broadcast %278 : vector<1x1xf32> to vector<1x384xf32>
    %280 = arith.mulf %277, %279 : vector<1x384xf32>
    %281 = vector.extract_strided_slice %266 {offsets = [1, 1], sizes = [1, 384], strides = [1, 1]} : vector<2x512xf32> to vector<1x384xf32>
    %282 = vector.extract_strided_slice %267 {offsets = [1, 1], sizes = [1, 1], strides = [1, 1]} : vector<2x9xf32> to vector<1x1xf32>
    %283 = vector.broadcast %282 : vector<1x1xf32> to vector<1x384xf32>
    %284 = arith.mulf %281, %283 : vector<1x384xf32>
    %285 = arith.addf %280, %284 : vector<1x384xf32>
    %286 = arith.addf %276, %285 : vector<1x384xf32>
    %287 = vector.extract_strided_slice %266 {offsets = [0, 2], sizes = [1, 384], strides = [1, 1]} : vector<2x512xf32> to vector<1x384xf32>
    %288 = vector.extract_strided_slice %267 {offsets = [0, 2], sizes = [1, 1], strides = [1, 1]} : vector<2x9xf32> to vector<1x1xf32>
    %289 = vector.broadcast %288 : vector<1x1xf32> to vector<1x384xf32>
    %290 = arith.mulf %287, %289 : vector<1x384xf32>
    %291 = vector.extract_strided_slice %266 {offsets = [1, 2], sizes = [1, 384], strides = [1, 1]} : vector<2x512xf32> to vector<1x384xf32>
    %292 = vector.extract_strided_slice %267 {offsets = [1, 2], sizes = [1, 1], strides = [1, 1]} : vector<2x9xf32> to vector<1x1xf32>
    %293 = vector.broadcast %292 : vector<1x1xf32> to vector<1x384xf32>
    %294 = arith.mulf %291, %293 : vector<1x384xf32>
    %295 = arith.addf %290, %294 : vector<1x384xf32>
    %296 = arith.addf %286, %295 : vector<1x384xf32>
    %297 = vector.extract_strided_slice %266 {offsets = [0, 18], sizes = [1, 384], strides = [1, 1]} : vector<2x512xf32> to vector<1x384xf32>
    %298 = vector.extract_strided_slice %267 {offsets = [0, 3], sizes = [1, 1], strides = [1, 1]} : vector<2x9xf32> to vector<1x1xf32>
    %299 = vector.broadcast %298 : vector<1x1xf32> to vector<1x384xf32>
    %300 = arith.mulf %297, %299 : vector<1x384xf32>
    %301 = vector.extract_strided_slice %266 {offsets = [1, 18], sizes = [1, 384], strides = [1, 1]} : vector<2x512xf32> to vector<1x384xf32>
    %302 = vector.extract_strided_slice %267 {offsets = [1, 3], sizes = [1, 1], strides = [1, 1]} : vector<2x9xf32> to vector<1x1xf32>
    %303 = vector.broadcast %302 : vector<1x1xf32> to vector<1x384xf32>
    %304 = arith.mulf %301, %303 : vector<1x384xf32>
    %305 = arith.addf %300, %304 : vector<1x384xf32>
    %306 = arith.addf %296, %305 : vector<1x384xf32>
    %307 = vector.extract_strided_slice %266 {offsets = [0, 19], sizes = [1, 384], strides = [1, 1]} : vector<2x512xf32> to vector<1x384xf32>
    %308 = vector.extract_strided_slice %267 {offsets = [0, 4], sizes = [1, 1], strides = [1, 1]} : vector<2x9xf32> to vector<1x1xf32>
    %309 = vector.broadcast %308 : vector<1x1xf32> to vector<1x384xf32>
    %310 = arith.mulf %307, %309 : vector<1x384xf32>
    %311 = vector.extract_strided_slice %266 {offsets = [1, 19], sizes = [1, 384], strides = [1, 1]} : vector<2x512xf32> to vector<1x384xf32>
    %312 = vector.extract_strided_slice %267 {offsets = [1, 4], sizes = [1, 1], strides = [1, 1]} : vector<2x9xf32> to vector<1x1xf32>
    %313 = vector.broadcast %312 : vector<1x1xf32> to vector<1x384xf32>
    %314 = arith.mulf %311, %313 : vector<1x384xf32>
    %315 = arith.addf %310, %314 : vector<1x384xf32>
    %316 = arith.addf %306, %315 : vector<1x384xf32>
    %317 = vector.extract_strided_slice %266 {offsets = [0, 20], sizes = [1, 384], strides = [1, 1]} : vector<2x512xf32> to vector<1x384xf32>
    %318 = vector.extract_strided_slice %267 {offsets = [0, 5], sizes = [1, 1], strides = [1, 1]} : vector<2x9xf32> to vector<1x1xf32>
    %319 = vector.broadcast %318 : vector<1x1xf32> to vector<1x384xf32>
    %320 = arith.mulf %317, %319 : vector<1x384xf32>
    %321 = vector.extract_strided_slice %266 {offsets = [1, 20], sizes = [1, 384], strides = [1, 1]} : vector<2x512xf32> to vector<1x384xf32>
    %322 = vector.extract_strided_slice %267 {offsets = [1, 5], sizes = [1, 1], strides = [1, 1]} : vector<2x9xf32> to vector<1x1xf32>
    %323 = vector.broadcast %322 : vector<1x1xf32> to vector<1x384xf32>
    %324 = arith.mulf %321, %323 : vector<1x384xf32>
    %325 = arith.addf %320, %324 : vector<1x384xf32>
    %326 = arith.addf %316, %325 : vector<1x384xf32>
    %327 = vector.extract_strided_slice %266 {offsets = [0, 36], sizes = [1, 384], strides = [1, 1]} : vector<2x512xf32> to vector<1x384xf32>
    %328 = vector.extract_strided_slice %267 {offsets = [0, 6], sizes = [1, 1], strides = [1, 1]} : vector<2x9xf32> to vector<1x1xf32>
    %329 = vector.broadcast %328 : vector<1x1xf32> to vector<1x384xf32>
    %330 = arith.mulf %327, %329 : vector<1x384xf32>
    %331 = vector.extract_strided_slice %266 {offsets = [1, 36], sizes = [1, 384], strides = [1, 1]} : vector<2x512xf32> to vector<1x384xf32>
    %332 = vector.extract_strided_slice %267 {offsets = [1, 6], sizes = [1, 1], strides = [1, 1]} : vector<2x9xf32> to vector<1x1xf32>
    %333 = vector.broadcast %332 : vector<1x1xf32> to vector<1x384xf32>
    %334 = arith.mulf %331, %333 : vector<1x384xf32>
    %335 = arith.addf %330, %334 : vector<1x384xf32>
    %336 = arith.addf %326, %335 : vector<1x384xf32>
    %337 = vector.extract_strided_slice %266 {offsets = [0, 37], sizes = [1, 384], strides = [1, 1]} : vector<2x512xf32> to vector<1x384xf32>
    %338 = vector.extract_strided_slice %267 {offsets = [0, 7], sizes = [1, 1], strides = [1, 1]} : vector<2x9xf32> to vector<1x1xf32>
    %339 = vector.broadcast %338 : vector<1x1xf32> to vector<1x384xf32>
    %340 = arith.mulf %337, %339 : vector<1x384xf32>
    %341 = vector.extract_strided_slice %266 {offsets = [1, 37], sizes = [1, 384], strides = [1, 1]} : vector<2x512xf32> to vector<1x384xf32>
    %342 = vector.extract_strided_slice %267 {offsets = [1, 7], sizes = [1, 1], strides = [1, 1]} : vector<2x9xf32> to vector<1x1xf32>
    %343 = vector.broadcast %342 : vector<1x1xf32> to vector<1x384xf32>
    %344 = arith.mulf %341, %343 : vector<1x384xf32>
    %345 = arith.addf %340, %344 : vector<1x384xf32>
    %346 = arith.addf %336, %345 : vector<1x384xf32>
    %347 = vector.extract_strided_slice %266 {offsets = [0, 38], sizes = [1, 384], strides = [1, 1]} : vector<2x512xf32> to vector<1x384xf32>
    %348 = vector.extract_strided_slice %267 {offsets = [0, 8], sizes = [1, 1], strides = [1, 1]} : vector<2x9xf32> to vector<1x1xf32>
    %349 = vector.broadcast %348 : vector<1x1xf32> to vector<1x384xf32>
    %350 = arith.mulf %347, %349 : vector<1x384xf32>
    %351 = vector.extract_strided_slice %266 {offsets = [1, 38], sizes = [1, 384], strides = [1, 1]} : vector<2x512xf32> to vector<1x384xf32>
    %352 = vector.extract_strided_slice %267 {offsets = [1, 8], sizes = [1, 1], strides = [1, 1]} : vector<2x9xf32> to vector<1x1xf32>
    %353 = vector.broadcast %352 : vector<1x1xf32> to vector<1x384xf32>
    %354 = arith.mulf %351, %353 : vector<1x384xf32>
    %355 = arith.addf %350, %354 : vector<1x384xf32>
    %356 = arith.addf %346, %355 : vector<1x384xf32>
    %357 = arith.negf %356 : vector<1x384xf32>
    %358 = math.exp %357 : vector<1x384xf32>
    %cst_117 = arith.constant 1.000000e+00 : f32
    %359 = vector.broadcast %cst_117 : f32 to vector<1x384xf32>
    %360 = arith.addf %359, %358 : vector<1x384xf32>
    %361 = arith.divf %359, %360 : vector<1x384xf32>
    %362 = vector.broadcast %361 : vector<1x384xf32> to vector<16x384xf32>
    %363 = arith.mulf %255, %362 : vector<16x384xf32>
    %c0_118 = arith.constant 0 : index
    %c0_119 = arith.constant 0 : index
    %c0_120 = arith.constant 0 : index
    %364 = vector.load %arg19[%c0_118, %c0_119, %c0_120] : memref<9x8x32xbf16, #tpu.memory_space<vmem>>, vector<1x8x32xbf16>
    %365 = vector.shape_cast %364 : vector<1x8x32xbf16> to vector<8x32xbf16>
    %366 = vector.extract_strided_slice %74 {offsets = [0, 0], sizes = [32, 384], strides = [1, 1]} : vector<32x512xbf16> to vector<32x384xbf16>
    %cst_121 = arith.constant dense<0.000000e+00> : vector<8x384xf32>
    %367 = tpu.matmul %365, %366, %cst_121 {dimension_numbers = #tpu.dot_dimension_numbers<[1], [0], [0], [1], [0, 0, 1, 1], [], []>} : vector<8x32xbf16>, vector<32x384xbf16>, vector<8x384xf32> -> vector<8x384xf32>
    %c1_122 = arith.constant 1 : index
    %c0_123 = arith.constant 0 : index
    %c0_124 = arith.constant 0 : index
    %368 = vector.load %arg19[%c1_122, %c0_123, %c0_124] : memref<9x8x32xbf16, #tpu.memory_space<vmem>>, vector<1x8x32xbf16>
    %369 = vector.shape_cast %368 : vector<1x8x32xbf16> to vector<8x32xbf16>
    %370 = vector.extract_strided_slice %74 {offsets = [0, 1], sizes = [32, 384], strides = [1, 1]} : vector<32x512xbf16> to vector<32x384xbf16>
    %cst_125 = arith.constant dense<0.000000e+00> : vector<8x384xf32>
    %371 = tpu.matmul %369, %370, %cst_125 {dimension_numbers = #tpu.dot_dimension_numbers<[1], [0], [0], [1], [0, 0, 1, 1], [], []>} : vector<8x32xbf16>, vector<32x384xbf16>, vector<8x384xf32> -> vector<8x384xf32>
    %372 = arith.addf %367, %371 : vector<8x384xf32>
    %c2 = arith.constant 2 : index
    %c0_126 = arith.constant 0 : index
    %c0_127 = arith.constant 0 : index
    %373 = vector.load %arg19[%c2, %c0_126, %c0_127] : memref<9x8x32xbf16, #tpu.memory_space<vmem>>, vector<1x8x32xbf16>
    %374 = vector.shape_cast %373 : vector<1x8x32xbf16> to vector<8x32xbf16>
    %375 = vector.extract_strided_slice %74 {offsets = [0, 2], sizes = [32, 384], strides = [1, 1]} : vector<32x512xbf16> to vector<32x384xbf16>
    %cst_128 = arith.constant dense<0.000000e+00> : vector<8x384xf32>
    %376 = tpu.matmul %374, %375, %cst_128 {dimension_numbers = #tpu.dot_dimension_numbers<[1], [0], [0], [1], [0, 0, 1, 1], [], []>} : vector<8x32xbf16>, vector<32x384xbf16>, vector<8x384xf32> -> vector<8x384xf32>
    %377 = arith.addf %372, %376 : vector<8x384xf32>
    %c3 = arith.constant 3 : index
    %c0_129 = arith.constant 0 : index
    %c0_130 = arith.constant 0 : index
    %378 = vector.load %arg19[%c3, %c0_129, %c0_130] : memref<9x8x32xbf16, #tpu.memory_space<vmem>>, vector<1x8x32xbf16>
    %379 = vector.shape_cast %378 : vector<1x8x32xbf16> to vector<8x32xbf16>
    %380 = vector.extract_strided_slice %74 {offsets = [0, 18], sizes = [32, 384], strides = [1, 1]} : vector<32x512xbf16> to vector<32x384xbf16>
    %cst_131 = arith.constant dense<0.000000e+00> : vector<8x384xf32>
    %381 = tpu.matmul %379, %380, %cst_131 {dimension_numbers = #tpu.dot_dimension_numbers<[1], [0], [0], [1], [0, 0, 1, 1], [], []>} : vector<8x32xbf16>, vector<32x384xbf16>, vector<8x384xf32> -> vector<8x384xf32>
    %382 = arith.addf %377, %381 : vector<8x384xf32>
    %c4 = arith.constant 4 : index
    %c0_132 = arith.constant 0 : index
    %c0_133 = arith.constant 0 : index
    %383 = vector.load %arg19[%c4, %c0_132, %c0_133] : memref<9x8x32xbf16, #tpu.memory_space<vmem>>, vector<1x8x32xbf16>
    %384 = vector.shape_cast %383 : vector<1x8x32xbf16> to vector<8x32xbf16>
    %385 = vector.extract_strided_slice %74 {offsets = [0, 19], sizes = [32, 384], strides = [1, 1]} : vector<32x512xbf16> to vector<32x384xbf16>
    %cst_134 = arith.constant dense<0.000000e+00> : vector<8x384xf32>
    %386 = tpu.matmul %384, %385, %cst_134 {dimension_numbers = #tpu.dot_dimension_numbers<[1], [0], [0], [1], [0, 0, 1, 1], [], []>} : vector<8x32xbf16>, vector<32x384xbf16>, vector<8x384xf32> -> vector<8x384xf32>
    %387 = arith.addf %382, %386 : vector<8x384xf32>
    %c5 = arith.constant 5 : index
    %c0_135 = arith.constant 0 : index
    %c0_136 = arith.constant 0 : index
    %388 = vector.load %arg19[%c5, %c0_135, %c0_136] : memref<9x8x32xbf16, #tpu.memory_space<vmem>>, vector<1x8x32xbf16>
    %389 = vector.shape_cast %388 : vector<1x8x32xbf16> to vector<8x32xbf16>
    %390 = vector.extract_strided_slice %74 {offsets = [0, 20], sizes = [32, 384], strides = [1, 1]} : vector<32x512xbf16> to vector<32x384xbf16>
    %cst_137 = arith.constant dense<0.000000e+00> : vector<8x384xf32>
    %391 = tpu.matmul %389, %390, %cst_137 {dimension_numbers = #tpu.dot_dimension_numbers<[1], [0], [0], [1], [0, 0, 1, 1], [], []>} : vector<8x32xbf16>, vector<32x384xbf16>, vector<8x384xf32> -> vector<8x384xf32>
    %392 = arith.addf %387, %391 : vector<8x384xf32>
    %c6 = arith.constant 6 : index
    %c0_138 = arith.constant 0 : index
    %c0_139 = arith.constant 0 : index
    %393 = vector.load %arg19[%c6, %c0_138, %c0_139] : memref<9x8x32xbf16, #tpu.memory_space<vmem>>, vector<1x8x32xbf16>
    %394 = vector.shape_cast %393 : vector<1x8x32xbf16> to vector<8x32xbf16>
    %395 = vector.extract_strided_slice %74 {offsets = [0, 36], sizes = [32, 384], strides = [1, 1]} : vector<32x512xbf16> to vector<32x384xbf16>
    %cst_140 = arith.constant dense<0.000000e+00> : vector<8x384xf32>
    %396 = tpu.matmul %394, %395, %cst_140 {dimension_numbers = #tpu.dot_dimension_numbers<[1], [0], [0], [1], [0, 0, 1, 1], [], []>} : vector<8x32xbf16>, vector<32x384xbf16>, vector<8x384xf32> -> vector<8x384xf32>
    %397 = arith.addf %392, %396 : vector<8x384xf32>
    %c7 = arith.constant 7 : index
    %c0_141 = arith.constant 0 : index
    %c0_142 = arith.constant 0 : index
    %398 = vector.load %arg19[%c7, %c0_141, %c0_142] : memref<9x8x32xbf16, #tpu.memory_space<vmem>>, vector<1x8x32xbf16>
    %399 = vector.shape_cast %398 : vector<1x8x32xbf16> to vector<8x32xbf16>
    %400 = vector.extract_strided_slice %74 {offsets = [0, 37], sizes = [32, 384], strides = [1, 1]} : vector<32x512xbf16> to vector<32x384xbf16>
    %cst_143 = arith.constant dense<0.000000e+00> : vector<8x384xf32>
    %401 = tpu.matmul %399, %400, %cst_143 {dimension_numbers = #tpu.dot_dimension_numbers<[1], [0], [0], [1], [0, 0, 1, 1], [], []>} : vector<8x32xbf16>, vector<32x384xbf16>, vector<8x384xf32> -> vector<8x384xf32>
    %402 = arith.addf %397, %401 : vector<8x384xf32>
    %c8 = arith.constant 8 : index
    %c0_144 = arith.constant 0 : index
    %c0_145 = arith.constant 0 : index
    %403 = vector.load %arg19[%c8, %c0_144, %c0_145] : memref<9x8x32xbf16, #tpu.memory_space<vmem>>, vector<1x8x32xbf16>
    %404 = vector.shape_cast %403 : vector<1x8x32xbf16> to vector<8x32xbf16>
    %405 = vector.extract_strided_slice %74 {offsets = [0, 38], sizes = [32, 384], strides = [1, 1]} : vector<32x512xbf16> to vector<32x384xbf16>
    %cst_146 = arith.constant dense<0.000000e+00> : vector<8x384xf32>
    %406 = tpu.matmul %404, %405, %cst_146 {dimension_numbers = #tpu.dot_dimension_numbers<[1], [0], [0], [1], [0, 0, 1, 1], [], []>} : vector<8x32xbf16>, vector<32x384xbf16>, vector<8x384xf32> -> vector<8x384xf32>
    %407 = arith.addf %402, %406 : vector<8x384xf32>
    %c0_147 = arith.constant 0 : index
    %c0_148 = arith.constant 0 : index
    %408 = vector.load %arg20[%c0_147, %c0_148] : memref<8x1xf32, #tpu.memory_space<vmem>>, vector<8x1xf32>
    %409 = vector.broadcast %408 : vector<8x1xf32> to vector<8x384xf32>
    %410 = arith.mulf %407, %409 : vector<8x384xf32>
    %c0_149 = arith.constant 0 : index
    %c0_150 = arith.constant 0 : index
    %411 = vector.load %arg21[%c0_149, %c0_150] : memref<8x1xf32, #tpu.memory_space<vmem>>, vector<8x1xf32>
    %412 = vector.broadcast %411 : vector<8x1xf32> to vector<8x384xf32>
    %413 = arith.addf %410, %412 : vector<8x384xf32>
    %cst_151 = arith.constant 0.000000e+00 : f32
    %414 = vector.broadcast %cst_151 : f32 to vector<8x384xf32>
    %415 = arith.maximumf %413, %414 : vector<8x384xf32>
    %c0_152 = arith.constant 0 : index
    %c0_153 = arith.constant 0 : index
    %416 = vector.load %arg22[%c0_152, %c0_153] : memref<36x8xbf16, #tpu.memory_space<vmem>>, vector<36x8xbf16>
    %417 = arith.truncf %415 : vector<8x384xf32> to vector<8x384xbf16>
    %cst_154 = arith.constant dense<0.000000e+00> : vector<36x384xf32>
    %418 = tpu.matmul %416, %417, %cst_154 {dimension_numbers = #tpu.dot_dimension_numbers<[1], [0], [0], [1], [0, 0, 1, 1], [], []>} : vector<36x8xbf16>, vector<8x384xbf16>, vector<36x384xf32> -> vector<36x384xf32>
    %c0_155 = arith.constant 0 : index
    %c0_156 = arith.constant 0 : index
    %419 = vector.load %arg23[%c0_155, %c0_156] : memref<36x1xf32, #tpu.memory_space<vmem>>, vector<36x1xf32>
    %420 = vector.broadcast %419 : vector<36x1xf32> to vector<36x384xf32>
    %421 = arith.addf %418, %420 : vector<36x384xf32>
    %422 = vector.extract_strided_slice %421 {offsets = [0, 0], sizes = [18, 384], strides = [1, 1]} : vector<36x384xf32> to vector<18x384xf32>
    %423 = vector.extract_strided_slice %421 {offsets = [18, 0], sizes = [18, 384], strides = [1, 1]} : vector<36x384xf32> to vector<18x384xf32>
    %424 = arith.negf %423 : vector<18x384xf32>
    %425 = math.exp %424 : vector<18x384xf32>
    %cst_157 = arith.constant 1.000000e+00 : f32
    %426 = vector.broadcast %cst_157 : f32 to vector<18x384xf32>
    %427 = arith.addf %426, %425 : vector<18x384xf32>
    %428 = arith.divf %426, %427 : vector<18x384xf32>
    %c0_158 = arith.constant 0 : index
    %c0_159 = arith.constant 0 : index
    %c0_160 = arith.constant 0 : index
    %429 = vector.load %arg29[%c0_158, %c0_159, %c0_160] : memref<1x18x384xf32, #tpu.memory_space<vmem>>, vector<1x18x384xf32>
    %430 = vector.shape_cast %429 : vector<1x18x384xf32> to vector<18x384xf32>
    %431 = vector.shape_cast %422 : vector<18x384xf32> to vector<1x18x384xf32>
    tpu.vector_store %arg29[%c0_158, %c0_159, %c0_160], %431 {strides = array<i32>} : memref<1x18x384xf32, #tpu.memory_space<vmem>>, vector<1x18x384xf32>,
    %c0_161 = arith.constant 0 : index
    %c0_162 = arith.constant 0 : index
    %c0_163 = arith.constant 0 : index
    %432 = vector.load %arg30[%c0_161, %c0_162, %c0_163] : memref<1x18x384xf32, #tpu.memory_space<vmem>>, vector<1x18x384xf32>
    %433 = vector.shape_cast %432 : vector<1x18x384xf32> to vector<18x384xf32>
    %434 = vector.shape_cast %428 : vector<18x384xf32> to vector<1x18x384xf32>
    tpu.vector_store %arg30[%c0_161, %c0_162, %c0_163], %434 {strides = array<i32>} : memref<1x18x384xf32, #tpu.memory_space<vmem>>, vector<1x18x384xf32>,
    %435 = vector.extract_strided_slice %422 {offsets = [0, 0], sizes = [9, 384], strides = [1, 1]} : vector<18x384xf32> to vector<9x384xf32>
    %436 = vector.extract_strided_slice %422 {offsets = [9, 0], sizes = [9, 384], strides = [1, 1]} : vector<18x384xf32> to vector<9x384xf32>
    %437 = arith.mulf %435, %435 : vector<9x384xf32>
    %438 = arith.mulf %436, %436 : vector<9x384xf32>
    %439 = arith.addf %437, %438 : vector<9x384xf32>
    %cst_164 = arith.constant 2.500000e-01 : f32
    %440 = vector.broadcast %cst_164 : f32 to vector<9x384xf32>
    %441 = arith.cmpf olt, %439, %440 : vector<9x384xf32>
    %442 = arith.extui %441 : vector<9x384xi1> to vector<9x384xi32>
    %443 = arith.sitofp %442 : vector<9x384xi32> to vector<9x384xf32>
    %cst_165 = arith.constant dense<0.000000e+00> : vector<384xf32>
    %444 = vector.multi_reduction <add>, %443, %cst_165 [0] : vector<9x384xf32> to vector<384xf32>
    %445 = vector.shape_cast %444 : vector<384xf32> to vector<1x384xf32>
    %cst_166 = arith.constant 9.000000e+00 : f32
    %446 = vector.broadcast %cst_166 : f32 to vector<1x384xf32>
    %447 = arith.divf %445, %446 : vector<1x384xf32>
    %448 = vector.extract_strided_slice %428 {offsets = [0, 0], sizes = [9, 384], strides = [1, 1]} : vector<18x384xf32> to vector<9x384xf32>
    %cst_167 = arith.constant dense<0.000000e+00> : vector<384xf32>
    %449 = vector.multi_reduction <add>, %448, %cst_167 [0] : vector<9x384xf32> to vector<384xf32>
    %450 = vector.shape_cast %449 : vector<384xf32> to vector<1x384xf32>
    %cst_168 = arith.constant 9.000000e+00 : f32
    %451 = vector.broadcast %cst_168 : f32 to vector<1x384xf32>
    %452 = arith.divf %450, %451 : vector<1x384xf32>
    %453 = vector.extract_strided_slice %428 {offsets = [9, 0], sizes = [9, 384], strides = [1, 1]} : vector<18x384xf32> to vector<9x384xf32>
    %cst_169 = arith.constant dense<0.000000e+00> : vector<384xf32>
    %454 = vector.multi_reduction <add>, %453, %cst_169 [0] : vector<9x384xf32> to vector<384xf32>
    %455 = vector.shape_cast %454 : vector<384xf32> to vector<1x384xf32>
    %cst_170 = arith.constant 9.000000e+00 : f32
    %456 = vector.broadcast %cst_170 : f32 to vector<1x384xf32>
    %457 = arith.divf %455, %456 : vector<1x384xf32>
    %458 = vector.extract_strided_slice %75 {offsets = [0, 19], sizes = [16, 384], strides = [1, 1]} : vector<16x512xbf16> to vector<16x384xbf16>
    %459 = arith.extf %458 : vector<16x384xbf16> to vector<16x384xf32>
    %460 = vector.extract_strided_slice %76 {offsets = [0, 19], sizes = [16, 384], strides = [1, 1]} : vector<16x512xbf16> to vector<16x384xbf16>
    %461 = arith.extf %460 : vector<16x384xbf16> to vector<16x384xf32>
    %462 = arith.cmpf ogt, %452, %457 : vector<1x384xf32>
    %463 = arith.extui %462 : vector<1x384xi1> to vector<1x384xi32>
    %464 = arith.sitofp %463 : vector<1x384xi32> to vector<1x384xf32>
    %cst_171 = arith.constant 5.000000e-01 : f32
    %465 = vector.broadcast %cst_171 : f32 to vector<1x384xf32>
    %466 = arith.cmpf ogt, %464, %465 : vector<1x384xf32>
    %467 = vector.shape_cast %466 : vector<1x384xi1> to vector<1x384xi1>
    %468 = vector.broadcast %467 : vector<1x384xi1> to vector<16x384xi1>
    %469 = arith.select %468, %459, %461 : vector<16x384xi1>, vector<16x384xf32>
    %cst_172 = arith.constant 5.000000e-01 : f32
    %470 = vector.broadcast %cst_172 : f32 to vector<1x384xf32>
    %471 = arith.cmpf ogt, %447, %470 : vector<1x384xf32>
    %472 = vector.shape_cast %471 : vector<1x384xi1> to vector<1x384xi1>
    %473 = vector.broadcast %472 : vector<1x384xi1> to vector<16x384xi1>
    %474 = arith.select %473, %363, %469 : vector<16x384xi1>, vector<16x384xf32>
    %c0_173 = arith.constant 0 : index
    %c0_174 = arith.constant 0 : index
    %475 = vector.load %arg24[%c0_173, %c0_174] : memref<16x16xbf16, #tpu.memory_space<vmem>>, vector<16x16xbf16>
    %476 = arith.truncf %474 : vector<16x384xf32> to vector<16x384xbf16>
    %cst_175 = arith.constant dense<0.000000e+00> : vector<16x384xf32>
    %477 = tpu.matmul %475, %476, %cst_175 {dimension_numbers = #tpu.dot_dimension_numbers<[1], [0], [0], [1], [0, 0, 1, 1], [], []>} : vector<16x16xbf16>, vector<16x384xbf16>, vector<16x384xf32> -> vector<16x384xf32>
    %c0_176 = arith.constant 0 : index
    %c0_177 = arith.constant 0 : index
    %478 = vector.load %arg25[%c0_176, %c0_177] : memref<16x1xf32, #tpu.memory_space<vmem>>, vector<16x1xf32>
    %479 = vector.broadcast %478 : vector<16x1xf32> to vector<16x384xf32>
    %480 = arith.mulf %477, %479 : vector<16x384xf32>
    %c0_178 = arith.constant 0 : index
    %c0_179 = arith.constant 0 : index
    %481 = vector.load %arg26[%c0_178, %c0_179] : memref<16x1xf32, #tpu.memory_space<vmem>>, vector<16x1xf32>
    %482 = vector.broadcast %481 : vector<16x1xf32> to vector<16x384xf32>
    %483 = arith.addf %480, %482 : vector<16x384xf32>
    %c0_180 = arith.constant 0 : index
    %c0_181 = arith.constant 0 : index
    %484 = vector.load %arg27[%c0_180, %c0_181] : memref<1x1xf32, #tpu.memory_space<vmem>>, vector<1x1xf32>
    %485 = vector.broadcast %484 : vector<1x1xf32> to vector<16x384xf32>
    %486 = arith.mulf %485, %363 : vector<16x384xf32>
    %487 = arith.addf %483, %486 : vector<16x384xf32>
    %c0_182 = arith.constant 0 : index
    %c0_183 = arith.constant 0 : index
    %c0_184 = arith.constant 0 : index
    %488 = vector.load %arg28[%c0_182, %c0_183, %c0_184] : memref<1x16x384xf32, #tpu.memory_space<vmem>>, vector<1x16x384xf32>
    %489 = vector.shape_cast %488 : vector<1x16x384xf32> to vector<16x384xf32>
    %490 = vector.shape_cast %487 : vector<16x384xf32> to vector<1x16x384xf32>
    tpu.vector_store %arg28[%c0_182, %c0_183, %c0_184], %490 {strides = array<i32>} : memref<1x16x384xf32, #tpu.memory_space<vmem>>, vector<1x16x384xf32>,
    return
  }
  func.func @transform_0(%arg0: i32) -> (i32, i32, i32) {
    %c0_i32 = arith.constant 0 : i32
    %c0_i32_0 = arith.constant 0 : i32
    %c0_i32_1 = arith.constant 0 : i32
    return %arg0, %c0_i32, %c0_i32_0 : i32, i32, i32
  }
  func.func @transform_1(%arg0: i32) -> (i32, i32, i32) {
    %c0_i32 = arith.constant 0 : i32
    %c0_i32_0 = arith.constant 0 : i32
    %c0_i32_1 = arith.constant 0 : i32
    return %arg0, %c0_i32, %c0_i32_0 : i32, i32, i32
  }
  func.func @transform_2(%arg0: i32) -> (i32, i32) {
    %c0_i32 = arith.constant 0 : i32
    %c0_i32_0 = arith.constant 0 : i32
    %c0_i32_1 = arith.constant 0 : i32
    return %c0_i32, %c0_i32_0 : i32, i32
  }
  func.func @transform_3(%arg0: i32) -> (i32, i32) {
    %c0_i32 = arith.constant 0 : i32
    %c0_i32_0 = arith.constant 0 : i32
    %c0_i32_1 = arith.constant 0 : i32
    return %c0_i32, %c0_i32_0 : i32, i32
  }
  func.func @transform_4(%arg0: i32) -> (i32, i32) {
    %c0_i32 = arith.constant 0 : i32
    %c0_i32_0 = arith.constant 0 : i32
    %c0_i32_1 = arith.constant 0 : i32
    return %c0_i32, %c0_i32_0 : i32, i32
  }
  func.func @transform_5(%arg0: i32) -> (i32, i32) {
    %c0_i32 = arith.constant 0 : i32
    %c0_i32_0 = arith.constant 0 : i32
    %c0_i32_1 = arith.constant 0 : i32
    return %c0_i32, %c0_i32_0 : i32, i32
  }
  func.func @transform_6(%arg0: i32) -> (i32, i32) {
    %c0_i32 = arith.constant 0 : i32
    %c0_i32_0 = arith.constant 0 : i32
    %c0_i32_1 = arith.constant 0 : i32
    return %c0_i32, %c0_i32_0 : i32, i32
  }
  func.func @transform_7(%arg0: i32) -> (i32, i32) {
    %c0_i32 = arith.constant 0 : i32
    %c0_i32_0 = arith.constant 0 : i32
    %c0_i32_1 = arith.constant 0 : i32
    return %c0_i32, %c0_i32_0 : i32, i32
  }
  func.func @transform_8(%arg0: i32) -> (i32, i32) {
    %c0_i32 = arith.constant 0 : i32
    %c0_i32_0 = arith.constant 0 : i32
    %c0_i32_1 = arith.constant 0 : i32
    return %c0_i32, %c0_i32_0 : i32, i32
  }
  func.func @transform_9(%arg0: i32) -> (i32, i32) {
    %c0_i32 = arith.constant 0 : i32
    %c0_i32_0 = arith.constant 0 : i32
    %c0_i32_1 = arith.constant 0 : i32
    return %c0_i32, %c0_i32_0 : i32, i32
  }
  func.func @transform_10(%arg0: i32) -> (i32, i32) {
    %c0_i32 = arith.constant 0 : i32
    %c0_i32_0 = arith.constant 0 : i32
    %c0_i32_1 = arith.constant 0 : i32
    return %c0_i32, %c0_i32_0 : i32, i32
  }
  func.func @transform_11(%arg0: i32) -> (i32, i32) {
    %c0_i32 = arith.constant 0 : i32
    %c0_i32_0 = arith.constant 0 : i32
    %c0_i32_1 = arith.constant 0 : i32
    return %c0_i32, %c0_i32_0 : i32, i32
  }
  func.func @transform_12(%arg0: i32) -> (i32, i32) {
    %c0_i32 = arith.constant 0 : i32
    %c0_i32_0 = arith.constant 0 : i32
    %c0_i32_1 = arith.constant 0 : i32
    return %c0_i32, %c0_i32_0 : i32, i32
  }
  func.func @transform_13(%arg0: i32) -> (i32, i32) {
    %c0_i32 = arith.constant 0 : i32
    %c0_i32_0 = arith.constant 0 : i32
    %c0_i32_1 = arith.constant 0 : i32
    return %c0_i32, %c0_i32_0 : i32, i32
  }
  func.func @transform_14(%arg0: i32) -> (i32, i32) {
    %c0_i32 = arith.constant 0 : i32
    %c0_i32_0 = arith.constant 0 : i32
    %c0_i32_1 = arith.constant 0 : i32
    return %c0_i32, %c0_i32_0 : i32, i32
  }
  func.func @transform_15(%arg0: i32) -> (i32, i32) {
    %c0_i32 = arith.constant 0 : i32
    %c0_i32_0 = arith.constant 0 : i32
    %c0_i32_1 = arith.constant 0 : i32
    return %c0_i32, %c0_i32_0 : i32, i32
  }
  func.func @transform_16(%arg0: i32) -> (i32, i32) {
    %c0_i32 = arith.constant 0 : i32
    %c0_i32_0 = arith.constant 0 : i32
    %c0_i32_1 = arith.constant 0 : i32
    return %c0_i32, %c0_i32_0 : i32, i32
  }
  func.func @transform_17(%arg0: i32) -> (i32, i32) {
    %c0_i32 = arith.constant 0 : i32
    %c0_i32_0 = arith.constant 0 : i32
    %c0_i32_1 = arith.constant 0 : i32
    return %c0_i32, %c0_i32_0 : i32, i32
  }
  func.func @transform_18(%arg0: i32) -> (i32, i32, i32) {
    %c0_i32 = arith.constant 0 : i32
    %c0_i32_0 = arith.constant 0 : i32
    %c0_i32_1 = arith.constant 0 : i32
    %c0_i32_2 = arith.constant 0 : i32
    return %c0_i32, %c0_i32_0, %c0_i32_1 : i32, i32, i32
  }
  func.func @transform_19(%arg0: i32) -> (i32, i32) {
    %c0_i32 = arith.constant 0 : i32
    %c0_i32_0 = arith.constant 0 : i32
    %c0_i32_1 = arith.constant 0 : i32
    return %c0_i32, %c0_i32_0 : i32, i32
  }
  func.func @transform_20(%arg0: i32) -> (i32, i32) {
    %c0_i32 = arith.constant 0 : i32
    %c0_i32_0 = arith.constant 0 : i32
    %c0_i32_1 = arith.constant 0 : i32
    return %c0_i32, %c0_i32_0 : i32, i32
  }
  func.func @transform_21(%arg0: i32) -> (i32, i32) {
    %c0_i32 = arith.constant 0 : i32
    %c0_i32_0 = arith.constant 0 : i32
    %c0_i32_1 = arith.constant 0 : i32
    return %c0_i32, %c0_i32_0 : i32, i32
  }
  func.func @transform_22(%arg0: i32) -> (i32, i32) {
    %c0_i32 = arith.constant 0 : i32
    %c0_i32_0 = arith.constant 0 : i32
    %c0_i32_1 = arith.constant 0 : i32
    return %c0_i32, %c0_i32_0 : i32, i32
  }
  func.func @transform_23(%arg0: i32) -> (i32, i32) {
    %c0_i32 = arith.constant 0 : i32
    %c0_i32_0 = arith.constant 0 : i32
    %c0_i32_1 = arith.constant 0 : i32
    return %c0_i32, %c0_i32_0 : i32, i32
  }
  func.func @transform_24(%arg0: i32) -> (i32, i32) {
    %c0_i32 = arith.constant 0 : i32
    %c0_i32_0 = arith.constant 0 : i32
    %c0_i32_1 = arith.constant 0 : i32
    return %c0_i32, %c0_i32_0 : i32, i32
  }
  func.func @transform_25(%arg0: i32) -> (i32, i32) {
    %c0_i32 = arith.constant 0 : i32
    %c0_i32_0 = arith.constant 0 : i32
    %c0_i32_1 = arith.constant 0 : i32
    return %c0_i32, %c0_i32_0 : i32, i32
  }
  func.func @transform_26(%arg0: i32) -> (i32, i32) {
    %c0_i32 = arith.constant 0 : i32
    %c0_i32_0 = arith.constant 0 : i32
    %c0_i32_1 = arith.constant 0 : i32
    return %c0_i32, %c0_i32_0 : i32, i32
  }
  func.func @transform_27(%arg0: i32) -> (i32, i32, i32) {
    %c0_i32 = arith.constant 0 : i32
    %c0_i32_0 = arith.constant 0 : i32
    %c0_i32_1 = arith.constant 0 : i32
    return %arg0, %c0_i32, %c0_i32_0 : i32, i32, i32
  }
  func.func @transform_28(%arg0: i32) -> (i32, i32, i32) {
    %c0_i32 = arith.constant 0 : i32
    %c0_i32_0 = arith.constant 0 : i32
    %c0_i32_1 = arith.constant 0 : i32
    return %arg0, %c0_i32, %c0_i32_0 : i32, i32, i32
  }
  func.func @transform_29(%arg0: i32) -> (i32, i32, i32) {
    %c0_i32 = arith.constant 0 : i32
    %c0_i32_0 = arith.constant 0 : i32
    %c0_i32_1 = arith.constant 0 : i32
    return %arg0, %c0_i32, %c0_i32_0 : i32, i32, i32
  }
  func.func @transform_30(%arg0: i32) -> (i32, i32, i32) {
    %c0_i32 = arith.constant 0 : i32
    %c0_i32_0 = arith.constant 0 : i32
    %c0_i32_1 = arith.constant 0 : i32
    return %arg0, %c0_i32, %c0_i32_0 : i32, i32, i32
  }
}

</mosaic_0001>

<llo_original>
// kernel: tile.6
$region0: #{tile.6}
  #allocation0 [shape = 's32[1]{0}', space=sflag, size = 0x4, scoped, tag = 'scoped memory for tile.6']
  %s0 = inlined_call_operand.vmem [shape: f32[18], index: 0, kind: input, shape index: {}]
  %s1 = inlined_call_operand.vmem [shape: f32[16,18], index: 1, kind: output, shape index: {}]
  // Predicated region
  $region2: #{tile.6} parent=0 // pred_check
    _
  $region3: #{tile.6} parent=0 // pred_check_branch
    %3 = sbr.rel (0) target = $region5
  $region4: #{tile.6} parent=0 // pred_region
    _
  $region5: #{tile.6} parent=0 // pred_fallthru
    _
  %v4 = vld [vmem:[%s0] ss:$0 sm:$0xff]
  %5 = vst [vmem:[%s1] sm:$0xff] %v4
  %s6 = scalar_lea.vmem %s1, 8
  %7 = vst [vmem:[%s6] sm:$0xff] %v4

// kernel: tile.7
$region0: #{tile.7}
  %s0 = inlined_call_operand.vmem [shape: f32[16,18], index: 0, kind: input, shape index: {}]
  %s1 = inlined_call_operand.vmem [shape: f32[288], index: 1, kind: output, shape index: {}]
  $region1: #{tile.7} parent=0
    #allocation0 [shape = 'u8[4096]{0}', space=vmem, size = 0x1000, scoped, tag = 'scoped mem for output reshape']
    %v2 = vld [vmem:[%s0] sm:$0x1]
    %vm3 = vcmask 146432
    %4 = vst.msk [vmem:[#allocation0] sm:$0x1] %vm3, %v2
    %s5 = scalar_lea.vmem %s0, 7
    %v6 = vld [vmem:[%s5] sm:$0x1]
    %s7 = scalar_lea.vmem %s0, 7
    %v8 = vld [vmem:[%s7] sm:$0x1]
    %vm9 = vcmask 15360
    %v10 = vsel %vm9, %v8, %v6
    %11 = vrot.lane.b32.xlu0 %v10, 126
    %v12 = vpop.permute.xlu0 %11
    %vm13 = vcmask 130048
    %s14 = scalar_lea.vmem [#allocation0], 1
    %15 = vst.msk [vmem:[%s14] sm:$0x1] %vm13, %v12
    %vm16 = vcmask 1048560
    %17 = vst.msk [vmem:[#allocation0] sm:$0x1] %vm16, %v12
    %s18 = scalar_lea.vmem %s0, 14
    %v19 = vld [vmem:[%s18] sm:$0x1]
    %s20 = scalar_lea.vmem %s0, 14
    %v21 = vld [vmem:[%s20] sm:$0x1]
    %vm22 = vcmask 31744
    %v23 = vsel %vm22, %v21, %v19
    %24 = vrot.lane.b32.xlu0 %v23, 124
    %v25 = vpop.permute.xlu0 %24
    %vm26 = vcmask 113664
    %s27 = scalar_lea.vmem [#allocation0], 2
    %28 = vst.msk [vmem:[%s27] sm:$0x1] %vm26, %v25
    %vm29 = vcmask 1048544
    %s30 = scalar_lea.vmem [#allocation0], 1
    %31 = vst.msk [vmem:[%s30] sm:$0x1] %vm29, %v25
    %s32 = scalar_lea.vmem %s0, 6
    %v33 = vld [vmem:[%s32] sm:$0x1]
    %34 = vrot.lane.b32.xlu0 %v33, 108
    %v35 = vpop.permute.xlu0 %34
    %vm36 = vcmask 1032032
    %37 = vst.msk [vmem:[#allocation0] sm:$0x1] %vm36, %v35
    %s38 = scalar_lea.vmem %s0, 13
    %v39 = vld [vmem:[%s38] sm:$0x1]
    %40 = vrot.lane.b32.xlu0 %v39, 106
    %v41 = vpop.permute.xlu0 %40
    %vm42 = vcmask 1015632
    %s43 = scalar_lea.vmem [#allocation0], 1
    %44 = vst.msk [vmem:[%s43] sm:$0x1] %vm42, %v41
    %s45 = scalar_lea.vmem %s0, 5
    %v46 = vld [vmem:[%s45] sm:$0x1]
    %47 = vrot.lane.b32.xlu0 %v46, 90
    %v48 = vpop.permute.xlu0 %47
    %vm49 = vcmask 884432
    %50 = vst.msk [vmem:[#allocation0] sm:$0x1] %vm49, %v48
    %s51 = scalar_lea.vmem %s0, 12
    %v52 = vld [vmem:[%s51] sm:$0x1]
    %53 = vrot.lane.b32.xlu0 %v52, 88
    %v54 = vpop.permute.xlu0 %53
    %vm55 = vcmask 868032
    %s56 = scalar_lea.vmem [#allocation0], 1
    %57 = vst.msk [vmem:[%s56] sm:$0x1] %vm55, %v54
    %s58 = scalar_lea.vmem %s0, 4
    %v59 = vld [vmem:[%s58] sm:$0x1]
    %60 = vrot.lane.b32.xlu0 %v59, 72
    %v61 = vpop.permute.xlu0 %60
    %vm62 = vcmask 736832
    %63 = vst.msk [vmem:[#allocation0] sm:$0x1] %vm62, %v61
    %s64 = scalar_lea.vmem %s0, 11
    %v65 = vld [vmem:[%s64] sm:$0x1]
    %66 = vrot.lane.b32.xlu0 %v65, 70
    %v67 = vpop.permute.xlu0 %66
    %vm68 = vcmask 720432
    %s69 = scalar_lea.vmem [#allocation0], 1
    %70 = vst.msk [vmem:[%s69] sm:$0x1] %vm68, %v67
    %s71 = scalar_lea.vmem %s0, 3
    %v72 = vld [vmem:[%s71] sm:$0x1]
    %73 = vrot.lane.b32.xlu0 %v72, 54
    %v74 = vpop.permute.xlu0 %73
    %vm75 = vcmask 589232
    %76 = vst.msk [vmem:[#allocation0] sm:$0x1] %vm75, %v74
    %s77 = scalar_lea.vmem %s0, 10
    %v78 = vld [vmem:[%s77] sm:$0x1]
    %79 = vrot.lane.b32.xlu0 %v78, 52
    %v80 = vpop.permute.xlu0 %79
    %vm81 = vcmask 572832
    %s82 = scalar_lea.vmem [#allocation0], 1
    %83 = vst.msk [vmem:[%s82] sm:$0x1] %vm81, %v80
    %s84 = scalar_lea.vmem %s0, 2
    %v85 = vld [vmem:[%s84] sm:$0x1]
    %86 = vrot.lane.b32.xlu0 %v85, 36
    %v87 = vpop.permute.xlu0 %86
    %vm88 = vcmask 441632
    %89 = vst.msk [vmem:[#allocation0] sm:$0x1] %vm88, %v87
    %s90 = scalar_lea.vmem %s0, 9
    %v91 = vld [vmem:[%s90] sm:$0x1]
    %92 = vrot.lane.b32.xlu0 %v91, 34
    %v93 = vpop.permute.xlu0 %92
    %vm94 = vcmask 425232
    %s95 = scalar_lea.vmem [#allocation0], 1
    %96 = vst.msk [vmem:[%s95] sm:$0x1] %vm94, %v93
    %s97 = scalar_lea.vmem %s0, 1
    %v98 = vld [vmem:[%s97] sm:$0x1]
    %99 = vrot.lane.b32.xlu0 %v98, 18
    %v100 = vpop.permute.xlu0 %99
    %vm101 = vcmask 294032
    %102 = vst.msk [vmem:[#allocation0] sm:$0x1] %vm101, %v100
    %s103 = scalar_lea.vmem %s0, 8
    %v104 = vld [vmem:[%s103] sm:$0x1]
    %105 = vrot.lane.b32.xlu0 %v104, 16
    %v106 = vpop.permute.xlu0 %105
    %vm107 = vcmask 277632
    %s108 = scalar_lea.vmem [#allocation0], 1
    %109 = vst.msk [vmem:[%s108] sm:$0x1] %vm107, %v106
    %s110 = scalar_lea.vmem %s0, 15
    %v111 = vld [vmem:[%s110] sm:$0x1]
    %112 = vrot.lane.b32.xlu0 %v111, 14
    %v113 = vpop.permute.xlu0 %112
    %vm114 = vcmask 261232
    %s115 = scalar_lea.vmem [#allocation0], 2
    %116 = vst.msk [vmem:[%s115] sm:$0x1] %vm114, %v113
    %s118 = sshllo.u32 0, 4
    %v120 = vld [vmem:[#allocation0] sm:%s118]
    %s121 = sshllo.u32 0, 4
    %122 = vst [vmem:[%s1] sm:%s121] %v120

// kernel: abam_forward.1
$region0: #{abam_forward.1}
  #allocation0 [shape = 'u32[]', space=smem, size = 0x4, offset = 0x4, fixed_abs, tag = 'smem constant byte address 0x4 - core index']
  #allocation1 [shape = 'u32[144,128]{1,0:T(1,128)}', space=vmem, size = 0x12000, scoped, tag = 'internal scratch']
  #allocation2 [shape = 'bf16[32,512]{1,0:T(16,128)(2,1)}', space=vmem, size = 0x8000, scoped, tag = 'scratch operand']
  #allocation3 [shape = 'f32[2,512]{1,0:T(2,128)}', space=vmem, size = 0x1000, scoped, tag = 'scratch operand']
  #allocation4 [shape = 'f32[1,1]{1,0:T(1,128)S(1)}', space=vmem, size = 0x200, scoped, tag = 'scoped memory for abam_forward.1']
  %s0 = inlined_call_operand.smem [shape: u32[31], index: -1, kind: input, shape index: {}]
  %s1 = sld [smem:[%s0]]
  %s2 = scalar_lea.smem %s0, 1
  %s3 = sld [smem:[%s2]]
  %s4 = scalar_lea.smem %s0, 2
  %s5 = sld [smem:[%s4]]
  %s6 = scalar_lea.smem %s0, 3
  %s7 = sld [smem:[%s6]]
  %s8 = scalar_lea.smem %s0, 4
  %s9 = sld [smem:[%s8]]
  %s10 = scalar_lea.smem %s0, 5
  %s11 = sld [smem:[%s10]]
  %s12 = scalar_lea.smem %s0, 6
  %s13 = sld [smem:[%s12]]
  %s14 = scalar_lea.smem %s0, 7
  %s15 = sld [smem:[%s14]]
  %s16 = scalar_lea.smem %s0, 8
  %s17 = sld [smem:[%s16]]
  %s18 = scalar_lea.smem %s0, 9
  %s19 = sld [smem:[%s18]]
  %s20 = scalar_lea.smem %s0, 10
  %s21 = sld [smem:[%s20]]
  %s22 = scalar_lea.smem %s0, 11
  %s23 = sld [smem:[%s22]]
  %s24 = scalar_lea.smem %s0, 12
  %s25 = sld [smem:[%s24]]
  %s26 = scalar_lea.smem %s0, 13
  %s27 = sld [smem:[%s26]]
  %s28 = scalar_lea.smem %s0, 14
  %s29 = sld [smem:[%s28]]
  %s30 = scalar_lea.smem %s0, 15
  %s31 = sld [smem:[%s30]]
  %s32 = scalar_lea.smem %s0, 16
  %s33 = sld [smem:[%s32]]
  %s34 = scalar_lea.smem %s0, 17
  %s35 = sld [smem:[%s34]]
  %s36 = scalar_lea.smem %s0, 18
  %s37 = sld [smem:[%s36]]
  %s38 = scalar_lea.smem %s0, 19
  %s39 = sld [smem:[%s38]]
  %s40 = scalar_lea.smem %s0, 20
  %s41 = sld [smem:[%s40]]
  %s42 = scalar_lea.smem %s0, 21
  %s43 = sld [smem:[%s42]]
  %s44 = scalar_lea.smem %s0, 22
  %s45 = sld [smem:[%s44]]
  %s46 = scalar_lea.smem %s0, 23
  %s47 = sld [smem:[%s46]]
  %s48 = scalar_lea.smem %s0, 24
  %s49 = sld [smem:[%s48]]
  %s50 = scalar_lea.smem %s0, 25
  %s51 = sld [smem:[%s50]]
  %s52 = scalar_lea.smem %s0, 26
  %s53 = sld [smem:[%s52]]
  %s54 = scalar_lea.smem %s0, 27
  %s55 = sld [smem:[%s54]]
  %s56 = scalar_lea.smem %s0, 28
  %s57 = sld [smem:[%s56]]
  %s58 = scalar_lea.smem %s0, 29
  %s59 = sld [smem:[%s58]]
  %s60 = scalar_lea.smem %s0, 30
  %s61 = sld [smem:[%s60]]
  %62 = xla_tuple %s55, %s57, %s59, %s61
  %s63 = sld [smem:[#allocation0]]
  $region165: #{abam_forward.1} parent=0
    _
  %s65 = ssub.s32 1, %s63
  %s66 = scalar_select 0, %s65, %s63
  %v67 = vstv %s53
  %68 = vst [vmem:[#allocation4] sm:$0x1] %v67
  loop: start=0, step=1, limit=4
  $region2: #{abam_forward.1} parent=0 // loop_pre_header
    _
  $region3: #{abam_forward.1} parent=0 // loop_header
    %s70 = sphi 0, %s74
    %p71 = scmp.ge.s32.totalorder %s70, 4
    %s80 = sphi 0, %s82
    %s83 = sphi 0, %s80
    %s84 = sphi 0, %s83
    %s100 = sphi 0, %s84
    %s106 = sphi 0, %s108
    %s109 = sphi 0, %s106
    %s110 = sphi 0, %s109
    %s126 = sphi 0, %s110
    %s130 = sphi 0, %s130
    %s132 = sphi 0, %s130
    %s133 = sphi 0, %s132
    %s147 = sphi 0, %s133
    %s151 = sphi 0, %s151
    %s153 = sphi 0, %s151
    %s154 = sphi 0, %s153
    %s168 = sphi 0, %s154
    %s172 = sphi 0, %s172
    %s174 = sphi 0, %s172
    %s175 = sphi 0, %s174
    %s189 = sphi 0, %s175
    %s193 = sphi 0, %s193
    %s195 = sphi 0, %s193
    %s196 = sphi 0, %s195
    %s210 = sphi 0, %s196
    %s214 = sphi 0, %s214
    %s216 = sphi 0, %s214
    %s217 = sphi 0, %s216
    %s231 = sphi 0, %s217
    %s235 = sphi 0, %s235
    %s237 = sphi 0, %s235
    %s238 = sphi 0, %s237
    %s252 = sphi 0, %s238
    %s256 = sphi 0, %s256
    %s258 = sphi 0, %s256
    %s259 = sphi 0, %s258
    %s273 = sphi 0, %s259
    %s277 = sphi 0, %s277
    %s279 = sphi 0, %s277
    %s280 = sphi 0, %s279
    %s294 = sphi 0, %s280
    %s298 = sphi 0, %s298
    %s300 = sphi 0, %s298
    %s301 = sphi 0, %s300
    %s315 = sphi 0, %s301
    %s319 = sphi 0, %s319
    %s321 = sphi 0, %s319
    %s322 = sphi 0, %s321
    %s336 = sphi 0, %s322
    %s340 = sphi 0, %s340
    %s342 = sphi 0, %s340
    %s343 = sphi 0, %s342
    %s357 = sphi 0, %s343
    %s361 = sphi 0, %s361
    %s363 = sphi 0, %s361
    %s364 = sphi 0, %s363
    %s378 = sphi 0, %s364
    %s382 = sphi 0, %s382
    %s384 = sphi 0, %s382
    %s385 = sphi 0, %s384
    %s399 = sphi 0, %s385
    %s403 = sphi 0, %s403
    %s405 = sphi 0, %s403
    %s406 = sphi 0, %s405
    %s420 = sphi 0, %s406
    %s424 = sphi 0, %s424
    %s426 = sphi 0, %s424
    %s427 = sphi 0, %s426
    %s441 = sphi 0, %s427
    %s445 = sphi 0, %s445
    %s447 = sphi 0, %s445
    %s448 = sphi 0, %s447
    %s462 = sphi 0, %s448
    %s466 = sphi 0, %s466
    %s468 = sphi 0, %s466
    %s469 = sphi 0, %s468
    %s483 = sphi 0, %s469
    %s487 = sphi 0, %s487
    %s489 = sphi 0, %s487
    %s490 = sphi 0, %s489
    %s504 = sphi 0, %s490
    %s508 = sphi 0, %s508
    %s510 = sphi 0, %s508
    %s511 = sphi 0, %s510
    %s525 = sphi 0, %s511
    %s529 = sphi 0, %s529
    %s531 = sphi 0, %s529
    %s532 = sphi 0, %s531
    %s546 = sphi 0, %s532
    %s550 = sphi 0, %s550
    %s552 = sphi 0, %s550
    %s553 = sphi 0, %s552
    %s567 = sphi 0, %s553
    %s571 = sphi 0, %s571
    %s573 = sphi 0, %s571
    %s574 = sphi 0, %s573
    %s588 = sphi 0, %s574
    %s592 = sphi 0, %s592
    %s594 = sphi 0, %s592
    %s595 = sphi 0, %s594
    %s609 = sphi 0, %s595
    %s613 = sphi 0, %s613
    %s615 = sphi 0, %s613
    %s616 = sphi 0, %s615
    %s630 = sphi 0, %s616
    %s634 = sphi 0, %s634
    %s636 = sphi 0, %s634
    %s637 = sphi 0, %s636
    %s651 = sphi 0, %s637
    %s657 = sphi 0, %s659
    %s660 = sphi 0, %s657
    %s661 = sphi 0, %s660
    %s677 = sphi 0, %s661
    %s683 = sphi 0, %s685
    %s686 = sphi 0, %s683
    %s687 = sphi 0, %s686
    %s703 = sphi 0, %s687
    %s709 = sphi 0, %s711
    %s712 = sphi 0, %s709
    %s713 = sphi 0, %s712
    %s729 = sphi 0, %s713
    %s735 = sphi 0, %s737
    %s738 = sphi 0, %s735
    %s739 = sphi 0, %s738
    %s755 = sphi 0, %s739
  $region4: #{abam_forward.1} parent=0 // loop_header_branch
    %73 = sbr.rel (%p71) target = $region8
  $region5: #{abam_forward.1} parent=0 // loop_body
    %s75 = ssub.s32 %s70, 1
    %s76 = ssub.s32 %s70, 2
    %s77 = sadd.s32 %s70, 1
    %s78 = ssub.s32 %s70, %s77
    %p79 = scmp.eq.s32.totalorder %s78, 0
    %s81 = sadd.s32 %s80, 1
    %s82 = scalar_select %p79, %s80, %s81
    %p85 = pneg %p79
    %p86 = scmp.eq.s32.totalorder %s70, 1
    %p87 = por %p85, %p86
    %p88 = scmp.ne.s32.totalorder %s80, %s83
    %p89 = scmp.eq.s32.totalorder %s70, 0
    %p90 = por %p88, %p89
    %p91 = scmp.ne.s32.totalorder %s80, %s83
    %p92 = scmp.eq.s32.totalorder %s75, 1
    %p93 = por %p91, %p92
    %p94 = scmp.ne.s32.totalorder %s83, %s84
    %p95 = scmp.eq.s32.totalorder %s75, 0
    %p96 = por %p94, %p95
    %p97 = scmp.ne.s32.totalorder %s83, %s84
    %p98 = scmp.eq.s32.totalorder %s76, 1
    %p99 = por %p97, %p98
    %p101 = scmp.ne.s32.totalorder %s84, %s100
    %p102 = scmp.eq.s32.totalorder %s76, 0
    %p103 = por %p101, %p102
    %s104 = ssub.s32 %s70, %s77
    %p105 = scmp.eq.s32.totalorder %s104, 0
    %s107 = sadd.s32 %s106, 1
    %s108 = scalar_select %p105, %s106, %s107
    %p111 = pneg %p105
    %p112 = scmp.eq.s32.totalorder %s70, 1
    %p113 = por %p111, %p112
    %p114 = scmp.ne.s32.totalorder %s106, %s109
    %p115 = scmp.eq.s32.totalorder %s70, 0
    %p116 = por %p114, %p115
    %p117 = scmp.ne.s32.totalorder %s106, %s109
    %p118 = scmp.eq.s32.totalorder %s75, 1
    %p119 = por %p117, %p118
    %p120 = scmp.ne.s32.totalorder %s109, %s110
    %p121 = scmp.eq.s32.totalorder %s75, 0
    %p122 = por %p120, %p121
    %p123 = scmp.ne.s32.totalorder %s109, %s110
    %p124 = scmp.eq.s32.totalorder %s76, 1
    %p125 = por %p123, %p124
    %p127 = scmp.ne.s32.totalorder %s110, %s126
    %p128 = scmp.eq.s32.totalorder %s76, 0
    %p129 = por %p127, %p128
    %s131 = sadd.s32 %s130, 1
    %p134 = scmp.eq.s32.totalorder %s70, 1
    %p135 = scmp.ne.s32.totalorder %s130, %s132
    %p136 = scmp.eq.s32.totalorder %s70, 0
    %p137 = por %p135, %p136
    %p138 = scmp.ne.s32.totalorder %s130, %s132
    %p139 = scmp.eq.s32.totalorder %s75, 1
    %p140 = por %p138, %p139
    %p141 = scmp.ne.s32.totalorder %s132, %s133
    %p142 = scmp.eq.s32.totalorder %s75, 0
    %p143 = por %p141, %p142
    %p144 = scmp.ne.s32.totalorder %s132, %s133
    %p145 = scmp.eq.s32.totalorder %s76, 1
    %p146 = por %p144, %p145
    %p148 = scmp.ne.s32.totalorder %s133, %s147
    %p149 = scmp.eq.s32.totalorder %s76, 0
    %p150 = por %p148, %p149
    %s152 = sadd.s32 %s151, 1
    %p155 = scmp.eq.s32.totalorder %s70, 1
    %p156 = scmp.ne.s32.totalorder %s151, %s153
    %p157 = scmp.eq.s32.totalorder %s70, 0
    %p158 = por %p156, %p157
    %p159 = scmp.ne.s32.totalorder %s151, %s153
    %p160 = scmp.eq.s32.totalorder %s75, 1
    %p161 = por %p159, %p160
    %p162 = scmp.ne.s32.totalorder %s153, %s154
    %p163 = scmp.eq.s32.totalorder %s75, 0
    %p164 = por %p162, %p163
    %p165 = scmp.ne.s32.totalorder %s153, %s154
    %p166 = scmp.eq.s32.totalorder %s76, 1
    %p167 = por %p165, %p166
    %p169 = scmp.ne.s32.totalorder %s154, %s168
    %p170 = scmp.eq.s32.totalorder %s76, 0
    %p171 = por %p169, %p170
    %s173 = sadd.s32 %s172, 1
    %p176 = scmp.eq.s32.totalorder %s70, 1
    %p177 = scmp.ne.s32.totalorder %s172, %s174
    %p178 = scmp.eq.s32.totalorder %s70, 0
    %p179 = por %p177, %p178
    %p180 = scmp.ne.s32.totalorder %s172, %s174
    %p181 = scmp.eq.s32.totalorder %s75, 1
    %p182 = por %p180, %p181
    %p183 = scmp.ne.s32.totalorder %s174, %s175
    %p184 = scmp.eq.s32.totalorder %s75, 0
    %p185 = por %p183, %p184
    %p186 = scmp.ne.s32.totalorder %s174, %s175
    %p187 = scmp.eq.s32.totalorder %s76, 1
    %p188 = por %p186, %p187
    %p190 = scmp.ne.s32.totalorder %s175, %s189
    %p191 = scmp.eq.s32.totalorder %s76, 0
    %p192 = por %p190, %p191
    %s194 = sadd.s32 %s193, 1
    %p197 = scmp.eq.s32.totalorder %s70, 1
    %p198 = scmp.ne.s32.totalorder %s193, %s195
    %p199 = scmp.eq.s32.totalorder %s70, 0
    %p200 = por %p198, %p199
    %p201 = scmp.ne.s32.totalorder %s193, %s195
    %p202 = scmp.eq.s32.totalorder %s75, 1
    %p203 = por %p201, %p202
    %p204 = scmp.ne.s32.totalorder %s195, %s196
    %p205 = scmp.eq.s32.totalorder %s75, 0
    %p206 = por %p204, %p205
    %p207 = scmp.ne.s32.totalorder %s195, %s196
    %p208 = scmp.eq.s32.totalorder %s76, 1
    %p209 = por %p207, %p208
    %p211 = scmp.ne.s32.totalorder %s196, %s210
    %p212 = scmp.eq.s32.totalorder %s76, 0
    %p213 = por %p211, %p212
    %s215 = sadd.s32 %s214, 1
    %p218 = scmp.eq.s32.totalorder %s70, 1
    %p219 = scmp.ne.s32.totalorder %s214, %s216
    %p220 = scmp.eq.s32.totalorder %s70, 0
    %p221 = por %p219, %p220
    %p222 = scmp.ne.s32.totalorder %s214, %s216
    %p223 = scmp.eq.s32.totalorder %s75, 1
    %p224 = por %p222, %p223
    %p225 = scmp.ne.s32.totalorder %s216, %s217
    %p226 = scmp.eq.s32.totalorder %s75, 0
    %p227 = por %p225, %p226
    %p228 = scmp.ne.s32.totalorder %s216, %s217
    %p229 = scmp.eq.s32.totalorder %s76, 1
    %p230 = por %p228, %p229
    %p232 = scmp.ne.s32.totalorder %s217, %s231
    %p233 = scmp.eq.s32.totalorder %s76, 0
    %p234 = por %p232, %p233
    %s236 = sadd.s32 %s235, 1
    %p239 = scmp.eq.s32.totalorder %s70, 1
    %p240 = scmp.ne.s32.totalorder %s235, %s237
    %p241 = scmp.eq.s32.totalorder %s70, 0
    %p242 = por %p240, %p241
    %p243 = scmp.ne.s32.totalorder %s235, %s237
    %p244 = scmp.eq.s32.totalorder %s75, 1
    %p245 = por %p243, %p244
    %p246 = scmp.ne.s32.totalorder %s237, %s238
    %p247 = scmp.eq.s32.totalorder %s75, 0
    %p248 = por %p246, %p247
    %p249 = scmp.ne.s32.totalorder %s237, %s238
    %p250 = scmp.eq.s32.totalorder %s76, 1
    %p251 = por %p249, %p250
    %p253 = scmp.ne.s32.totalorder %s238, %s252
    %p254 = scmp.eq.s32.totalorder %s76, 0
    %p255 = por %p253, %p254
    %s257 = sadd.s32 %s256, 1
    %p260 = scmp.eq.s32.totalorder %s70, 1
    %p261 = scmp.ne.s32.totalorder %s256, %s258
    %p262 = scmp.eq.s32.totalorder %s70, 0
    %p263 = por %p261, %p262
    %p264 = scmp.ne.s32.totalorder %s256, %s258
    %p265 = scmp.eq.s32.totalorder %s75, 1
    %p266 = por %p264, %p265
    %p267 = scmp.ne.s32.totalorder %s258, %s259
    %p268 = scmp.eq.s32.totalorder %s75, 0
    %p269 = por %p267, %p268
    %p270 = scmp.ne.s32.totalorder %s258, %s259
    %p271 = scmp.eq.s32.totalorder %s76, 1
    %p272 = por %p270, %p271
    %p274 = scmp.ne.s32.totalorder %s259, %s273
    %p275 = scmp.eq.s32.totalorder %s76, 0
    %p276 = por %p274, %p275
    %s278 = sadd.s32 %s277, 1
    %p281 = scmp.eq.s32.totalorder %s70, 1
    %p282 = scmp.ne.s32.totalorder %s277, %s279
    %p283 = scmp.eq.s32.totalorder %s70, 0
    %p284 = por %p282, %p283
    %p285 = scmp.ne.s32.totalorder %s277, %s279
    %p286 = scmp.eq.s32.totalorder %s75, 1
    %p287 = por %p285, %p286
    %p288 = scmp.ne.s32.totalorder %s279, %s280
    %p289 = scmp.eq.s32.totalorder %s75, 0
    %p290 = por %p288, %p289
    %p291 = scmp.ne.s32.totalorder %s279, %s280
    %p292 = scmp.eq.s32.totalorder %s76, 1
    %p293 = por %p291, %p292
    %p295 = scmp.ne.s32.totalorder %s280, %s294
    %p296 = scmp.eq.s32.totalorder %s76, 0
    %p297 = por %p295, %p296
    %s299 = sadd.s32 %s298, 1
    %p302 = scmp.eq.s32.totalorder %s70, 1
    %p303 = scmp.ne.s32.totalorder %s298, %s300
    %p304 = scmp.eq.s32.totalorder %s70, 0
    %p305 = por %p303, %p304
    %p306 = scmp.ne.s32.totalorder %s298, %s300
    %p307 = scmp.eq.s32.totalorder %s75, 1
    %p308 = por %p306, %p307
    %p309 = scmp.ne.s32.totalorder %s300, %s301
    %p310 = scmp.eq.s32.totalorder %s75, 0
    %p311 = por %p309, %p310
    %p312 = scmp.ne.s32.totalorder %s300, %s301
    %p313 = scmp.eq.s32.totalorder %s76, 1
    %p314 = por %p312, %p313
    %p316 = scmp.ne.s32.totalorder %s301, %s315
    %p317 = scmp.eq.s32.totalorder %s76, 0
    %p318 = por %p316, %p317
    %s320 = sadd.s32 %s319, 1
    %p323 = scmp.eq.s32.totalorder %s70, 1
    %p324 = scmp.ne.s32.totalorder %s319, %s321
    %p325 = scmp.eq.s32.totalorder %s70, 0
    %p326 = por %p324, %p325
    %p327 = scmp.ne.s32.totalorder %s319, %s321
    %p328 = scmp.eq.s32.totalorder %s75, 1
    %p329 = por %p327, %p328
    %p330 = scmp.ne.s32.totalorder %s321, %s322
    %p331 = scmp.eq.s32.totalorder %s75, 0
    %p332 = por %p330, %p331
    %p333 = scmp.ne.s32.totalorder %s321, %s322
    %p334 = scmp.eq.s32.totalorder %s76, 1
    %p335 = por %p333, %p334
    %p337 = scmp.ne.s32.totalorder %s322, %s336
    %p338 = scmp.eq.s32.totalorder %s76, 0
    %p339 = por %p337, %p338
    %s341 = sadd.s32 %s340, 1
    %p344 = scmp.eq.s32.totalorder %s70, 1
    %p345 = scmp.ne.s32.totalorder %s340, %s342
    %p346 = scmp.eq.s32.totalorder %s70, 0
    %p347 = por %p345, %p346
    %p348 = scmp.ne.s32.totalorder %s340, %s342
    %p349 = scmp.eq.s32.totalorder %s75, 1
    %p350 = por %p348, %p349
    %p351 = scmp.ne.s32.totalorder %s342, %s343
    %p352 = scmp.eq.s32.totalorder %s75, 0
    %p353 = por %p351, %p352
    %p354 = scmp.ne.s32.totalorder %s342, %s343
    %p355 = scmp.eq.s32.totalorder %s76, 1
    %p356 = por %p354, %p355
    %p358 = scmp.ne.s32.totalorder %s343, %s357
    %p359 = scmp.eq.s32.totalorder %s76, 0
    %p360 = por %p358, %p359
    %s362 = sadd.s32 %s361, 1
    %p365 = scmp.eq.s32.totalorder %s70, 1
    %p366 = scmp.ne.s32.totalorder %s361, %s363
    %p367 = scmp.eq.s32.totalorder %s70, 0
    %p368 = por %p366, %p367
    %p369 = scmp.ne.s32.totalorder %s361, %s363
    %p370 = scmp.eq.s32.totalorder %s75, 1
    %p371 = por %p369, %p370
    %p372 = scmp.ne.s32.totalorder %s363, %s364
    %p373 = scmp.eq.s32.totalorder %s75, 0
    %p374 = por %p372, %p373
    %p375 = scmp.ne.s32.totalorder %s363, %s364
    %p376 = scmp.eq.s32.totalorder %s76, 1
    %p377 = por %p375, %p376
    %p379 = scmp.ne.s32.totalorder %s364, %s378
    %p380 = scmp.eq.s32.totalorder %s76, 0
    %p381 = por %p379, %p380
    %s383 = sadd.s32 %s382, 1
    %p386 = scmp.eq.s32.totalorder %s70, 1
    %p387 = scmp.ne.s32.totalorder %s382, %s384
    %p388 = scmp.eq.s32.totalorder %s70, 0
    %p389 = por %p387, %p388
    %p390 = scmp.ne.s32.totalorder %s382, %s384
    %p391 = scmp.eq.s32.totalorder %s75, 1
    %p392 = por %p390, %p391
    %p393 = scmp.ne.s32.totalorder %s384, %s385
    %p394 = scmp.eq.s32.totalorder %s75, 0
    %p395 = por %p393, %p394
    %p396 = scmp.ne.s32.totalorder %s384, %s385
    %p397 = scmp.eq.s32.totalorder %s76, 1
    %p398 = por %p396, %p397
    %p400 = scmp.ne.s32.totalorder %s385, %s399
    %p401 = scmp.eq.s32.totalorder %s76, 0
    %p402 = por %p400, %p401
    %s404 = sadd.s32 %s403, 1
    %p407 = scmp.eq.s32.totalorder %s70, 1
    %p408 = scmp.ne.s32.totalorder %s403, %s405
    %p409 = scmp.eq.s32.totalorder %s70, 0
    %p410 = por %p408, %p409
    %p411 = scmp.ne.s32.totalorder %s403, %s405
    %p412 = scmp.eq.s32.totalorder %s75, 1
    %p413 = por %p411, %p412
    %p414 = scmp.ne.s32.totalorder %s405, %s406
    %p415 = scmp.eq.s32.totalorder %s75, 0
    %p416 = por %p414, %p415
    %p417 = scmp.ne.s32.totalorder %s405, %s406
    %p418 = scmp.eq.s32.totalorder %s76, 1
    %p419 = por %p417, %p418
    %p421 = scmp.ne.s32.totalorder %s406, %s420
    %p422 = scmp.eq.s32.totalorder %s76, 0
    %p423 = por %p421, %p422
    %s425 = sadd.s32 %s424, 1
    %p428 = scmp.eq.s32.totalorder %s70, 1
    %p429 = scmp.ne.s32.totalorder %s424, %s426
    %p430 = scmp.eq.s32.totalorder %s70, 0
    %p431 = por %p429, %p430
    %p432 = scmp.ne.s32.totalorder %s424, %s426
    %p433 = scmp.eq.s32.totalorder %s75, 1
    %p434 = por %p432, %p433
    %p435 = scmp.ne.s32.totalorder %s426, %s427
    %p436 = scmp.eq.s32.totalorder %s75, 0
    %p437 = por %p435, %p436
    %p438 = scmp.ne.s32.totalorder %s426, %s427
    %p439 = scmp.eq.s32.totalorder %s76, 1
    %p440 = por %p438, %p439
    %p442 = scmp.ne.s32.totalorder %s427, %s441
    %p443 = scmp.eq.s32.totalorder %s76, 0
    %p444 = por %p442, %p443
    %s446 = sadd.s32 %s445, 1
    %p449 = scmp.eq.s32.totalorder %s70, 1
    %p450 = scmp.ne.s32.totalorder %s445, %s447
    %p451 = scmp.eq.s32.totalorder %s70, 0
    %p452 = por %p450, %p451
    %p453 = scmp.ne.s32.totalorder %s445, %s447
    %p454 = scmp.eq.s32.totalorder %s75, 1
    %p455 = por %p453, %p454
    %p456 = scmp.ne.s32.totalorder %s447, %s448
    %p457 = scmp.eq.s32.totalorder %s75, 0
    %p458 = por %p456, %p457
    %p459 = scmp.ne.s32.totalorder %s447, %s448
    %p460 = scmp.eq.s32.totalorder %s76, 1
    %p461 = por %p459, %p460
    %p463 = scmp.ne.s32.totalorder %s448, %s462
    %p464 = scmp.eq.s32.totalorder %s76, 0
    %p465 = por %p463, %p464
    %s467 = sadd.s32 %s466, 1
    %p470 = scmp.eq.s32.totalorder %s70, 1
    %p471 = scmp.ne.s32.totalorder %s466, %s468
    %p472 = scmp.eq.s32.totalorder %s70, 0
    %p473 = por %p471, %p472
    %p474 = scmp.ne.s32.totalorder %s466, %s468
    %p475 = scmp.eq.s32.totalorder %s75, 1
    %p476 = por %p474, %p475
    %p477 = scmp.ne.s32.totalorder %s468, %s469
    %p478 = scmp.eq.s32.totalorder %s75, 0
    %p479 = por %p477, %p478
    %p480 = scmp.ne.s32.totalorder %s468, %s469
    %p481 = scmp.eq.s32.totalorder %s76, 1
    %p482 = por %p480, %p481
    %p484 = scmp.ne.s32.totalorder %s469, %s483
    %p485 = scmp.eq.s32.totalorder %s76, 0
    %p486 = por %p484, %p485
    %s488 = sadd.s32 %s487, 1
    %p491 = scmp.eq.s32.totalorder %s70, 1
    %p492 = scmp.ne.s32.totalorder %s487, %s489
    %p493 = scmp.eq.s32.totalorder %s70, 0
    %p494 = por %p492, %p493
    %p495 = scmp.ne.s32.totalorder %s487, %s489
    %p496 = scmp.eq.s32.totalorder %s75, 1
    %p497 = por %p495, %p496
    %p498 = scmp.ne.s32.totalorder %s489, %s490
    %p499 = scmp.eq.s32.totalorder %s75, 0
    %p500 = por %p498, %p499
    %p501 = scmp.ne.s32.totalorder %s489, %s490
    %p502 = scmp.eq.s32.totalorder %s76, 1
    %p503 = por %p501, %p502
    %p505 = scmp.ne.s32.totalorder %s490, %s504
    %p506 = scmp.eq.s32.totalorder %s76, 0
    %p507 = por %p505, %p506
    %s509 = sadd.s32 %s508, 1
    %p512 = scmp.eq.s32.totalorder %s70, 1
    %p513 = scmp.ne.s32.totalorder %s508, %s510
    %p514 = scmp.eq.s32.totalorder %s70, 0
    %p515 = por %p513, %p514
    %p516 = scmp.ne.s32.totalorder %s508, %s510
    %p517 = scmp.eq.s32.totalorder %s75, 1
    %p518 = por %p516, %p517
    %p519 = scmp.ne.s32.totalorder %s510, %s511
    %p520 = scmp.eq.s32.totalorder %s75, 0
    %p521 = por %p519, %p520
    %p522 = scmp.ne.s32.totalorder %s510, %s511
    %p523 = scmp.eq.s32.totalorder %s76, 1
    %p524 = por %p522, %p523
    %p526 = scmp.ne.s32.totalorder %s511, %s525
    %p527 = scmp.eq.s32.totalorder %s76, 0
    %p528 = por %p526, %p527
    %s530 = sadd.s32 %s529, 1
    %p533 = scmp.eq.s32.totalorder %s70, 1
    %p534 = scmp.ne.s32.totalorder %s529, %s531
    %p535 = scmp.eq.s32.totalorder %s70, 0
    %p536 = por %p534, %p535
    %p537 = scmp.ne.s32.totalorder %s529, %s531
    %p538 = scmp.eq.s32.totalorder %s75, 1
    %p539 = por %p537, %p538
    %p540 = scmp.ne.s32.totalorder %s531, %s532
    %p541 = scmp.eq.s32.totalorder %s75, 0
    %p542 = por %p540, %p541
    %p543 = scmp.ne.s32.totalorder %s531, %s532
    %p544 = scmp.eq.s32.totalorder %s76, 1
    %p545 = por %p543, %p544
    %p547 = scmp.ne.s32.totalorder %s532, %s546
    %p548 = scmp.eq.s32.totalorder %s76, 0
    %p549 = por %p547, %p548
    %s551 = sadd.s32 %s550, 1
    %p554 = scmp.eq.s32.totalorder %s70, 1
    %p555 = scmp.ne.s32.totalorder %s550, %s552
    %p556 = scmp.eq.s32.totalorder %s70, 0
    %p557 = por %p555, %p556
    %p558 = scmp.ne.s32.totalorder %s550, %s552
    %p559 = scmp.eq.s32.totalorder %s75, 1
    %p560 = por %p558, %p559
    %p561 = scmp.ne.s32.totalorder %s552, %s553
    %p562 = scmp.eq.s32.totalorder %s75, 0
    %p563 = por %p561, %p562
    %p564 = scmp.ne.s32.totalorder %s552, %s553
    %p565 = scmp.eq.s32.totalorder %s76, 1
    %p566 = por %p564, %p565
    %p568 = scmp.ne.s32.totalorder %s553, %s567
    %p569 = scmp.eq.s32.totalorder %s76, 0
    %p570 = por %p568, %p569
    %s572 = sadd.s32 %s571, 1
    %p575 = scmp.eq.s32.totalorder %s70, 1
    %p576 = scmp.ne.s32.totalorder %s571, %s573
    %p577 = scmp.eq.s32.totalorder %s70, 0
    %p578 = por %p576, %p577
    %p579 = scmp.ne.s32.totalorder %s571, %s573
    %p580 = scmp.eq.s32.totalorder %s75, 1
    %p581 = por %p579, %p580
    %p582 = scmp.ne.s32.totalorder %s573, %s574
    %p583 = scmp.eq.s32.totalorder %s75, 0
    %p584 = por %p582, %p583
    %p585 = scmp.ne.s32.totalorder %s573, %s574
    %p586 = scmp.eq.s32.totalorder %s76, 1
    %p587 = por %p585, %p586
    %p589 = scmp.ne.s32.totalorder %s574, %s588
    %p590 = scmp.eq.s32.totalorder %s76, 0
    %p591 = por %p589, %p590
    %s593 = sadd.s32 %s592, 1
    %p596 = scmp.eq.s32.totalorder %s70, 1
    %p597 = scmp.ne.s32.totalorder %s592, %s594
    %p598 = scmp.eq.s32.totalorder %s70, 0
    %p599 = por %p597, %p598
    %p600 = scmp.ne.s32.totalorder %s592, %s594
    %p601 = scmp.eq.s32.totalorder %s75, 1
    %p602 = por %p600, %p601
    %p603 = scmp.ne.s32.totalorder %s594, %s595
    %p604 = scmp.eq.s32.totalorder %s75, 0
    %p605 = por %p603, %p604
    %p606 = scmp.ne.s32.totalorder %s594, %s595
    %p607 = scmp.eq.s32.totalorder %s76, 1
    %p608 = por %p606, %p607
    %p610 = scmp.ne.s32.totalorder %s595, %s609
    %p611 = scmp.eq.s32.totalorder %s76, 0
    %p612 = por %p610, %p611
    %s614 = sadd.s32 %s613, 1
    %p617 = scmp.eq.s32.totalorder %s70, 1
    %p618 = scmp.ne.s32.totalorder %s613, %s615
    %p619 = scmp.eq.s32.totalorder %s70, 0
    %p620 = por %p618, %p619
    %p621 = scmp.ne.s32.totalorder %s613, %s615
    %p622 = scmp.eq.s32.totalorder %s75, 1
    %p623 = por %p621, %p622
    %p624 = scmp.ne.s32.totalorder %s615, %s616
    %p625 = scmp.eq.s32.totalorder %s75, 0
    %p626 = por %p624, %p625
    %p627 = scmp.ne.s32.totalorder %s615, %s616
    %p628 = scmp.eq.s32.totalorder %s76, 1
    %p629 = por %p627, %p628
    %p631 = scmp.ne.s32.totalorder %s616, %s630
    %p632 = scmp.eq.s32.totalorder %s76, 0
    %p633 = por %p631, %p632
    %s635 = sadd.s32 %s634, 1
    %p638 = scmp.eq.s32.totalorder %s70, 1
    %p639 = scmp.ne.s32.totalorder %s634, %s636
    %p640 = scmp.eq.s32.totalorder %s70, 0
    %p641 = por %p639, %p640
    %p642 = scmp.ne.s32.totalorder %s634, %s636
    %p643 = scmp.eq.s32.totalorder %s75, 1
    %p644 = por %p642, %p643
    %p645 = scmp.ne.s32.totalorder %s636, %s637
    %p646 = scmp.eq.s32.totalorder %s75, 0
    %p647 = por %p645, %p646
    %p648 = scmp.ne.s32.totalorder %s636, %s637
    %p649 = scmp.eq.s32.totalorder %s76, 1
    %p650 = por %p648, %p649
    %p652 = scmp.ne.s32.totalorder %s637, %s651
    %p653 = scmp.eq.s32.totalorder %s76, 0
    %p654 = por %p652, %p653
    %s655 = ssub.s32 %s70, %s77
    %p656 = scmp.eq.s32.totalorder %s655, 0
    %s658 = sadd.s32 %s657, 1
    %s659 = scalar_select %p656, %s657, %s658
    %p662 = pneg %p656
    %p663 = scmp.eq.s32.totalorder %s70, 1
    %p664 = por %p662, %p663
    %p665 = scmp.ne.s32.totalorder %s657, %s660
    %p666 = scmp.eq.s32.totalorder %s70, 0
    %p667 = por %p665, %p666
    %p668 = scmp.ne.s32.totalorder %s657, %s660
    %p669 = scmp.eq.s32.totalorder %s75, 1
    %p670 = por %p668, %p669
    %p671 = scmp.ne.s32.totalorder %s660, %s661
    %p672 = scmp.eq.s32.totalorder %s75, 0
    %p673 = por %p671, %p672
    %p674 = scmp.ne.s32.totalorder %s660, %s661
    %p675 = scmp.eq.s32.totalorder %s76, 1
    %p676 = por %p674, %p675
    %p678 = scmp.ne.s32.totalorder %s661, %s677
    %p679 = scmp.eq.s32.totalorder %s76, 0
    %p680 = por %p678, %p679
    %s681 = ssub.s32 %s70, %s77
    %p682 = scmp.eq.s32.totalorder %s681, 0
    %s684 = sadd.s32 %s683, 1
    %s685 = scalar_select %p682, %s683, %s684
    %p688 = pneg %p682
    %p689 = scmp.eq.s32.totalorder %s70, 1
    %p690 = por %p688, %p689
    %p691 = scmp.ne.s32.totalorder %s683, %s686
    %p692 = scmp.eq.s32.totalorder %s70, 0
    %p693 = por %p691, %p692
    %p694 = scmp.ne.s32.totalorder %s683, %s686
    %p695 = scmp.eq.s32.totalorder %s75, 1
    %p696 = por %p694, %p695
    %p697 = scmp.ne.s32.totalorder %s686, %s687
    %p698 = scmp.eq.s32.totalorder %s75, 0
    %p699 = por %p697, %p698
    %p700 = scmp.ne.s32.totalorder %s686, %s687
    %p701 = scmp.eq.s32.totalorder %s76, 1
    %p702 = por %p700, %p701
    %p704 = scmp.ne.s32.totalorder %s687, %s703
    %p705 = scmp.eq.s32.totalorder %s76, 0
    %p706 = por %p704, %p705
    %s707 = ssub.s32 %s70, %s77
    %p708 = scmp.eq.s32.totalorder %s707, 0
    %s710 = sadd.s32 %s709, 1
    %s711 = scalar_select %p708, %s709, %s710
    %p714 = pneg %p708
    %p715 = scmp.eq.s32.totalorder %s70, 1
    %p716 = por %p714, %p715
    %p717 = scmp.ne.s32.totalorder %s709, %s712
    %p718 = scmp.eq.s32.totalorder %s70, 0
    %p719 = por %p717, %p718
    %p720 = scmp.ne.s32.totalorder %s709, %s712
    %p721 = scmp.eq.s32.totalorder %s75, 1
    %p722 = por %p720, %p721
    %p723 = scmp.ne.s32.totalorder %s712, %s713
    %p724 = scmp.eq.s32.totalorder %s75, 0
    %p725 = por %p723, %p724
    %p726 = scmp.ne.s32.totalorder %s712, %s713
    %p727 = scmp.eq.s32.totalorder %s76, 1
    %p728 = por %p726, %p727
    %p730 = scmp.ne.s32.totalorder %s713, %s729
    %p731 = scmp.eq.s32.totalorder %s76, 0
    %p732 = por %p730, %p731
    %s733 = ssub.s32 %s70, %s77
    %p734 = scmp.eq.s32.totalorder %s733, 0
    %s736 = sadd.s32 %s735, 1
    %s737 = scalar_select %p734, %s735, %s736
    %p740 = pneg %p734
    %p741 = scmp.eq.s32.totalorder %s70, 1
    %p742 = por %p740, %p741
    %p743 = scmp.ne.s32.totalorder %s735, %s738
    %p744 = scmp.eq.s32.totalorder %s70, 0
    %p745 = por %p743, %p744
    %p746 = scmp.ne.s32.totalorder %s735, %s738
    %p747 = scmp.eq.s32.totalorder %s75, 1
    %p748 = por %p746, %p747
    %p749 = scmp.ne.s32.totalorder %s738, %s739
    %p750 = scmp.eq.s32.totalorder %s75, 0
    %p751 = por %p749, %p750
    %p752 = scmp.ne.s32.totalorder %s738, %s739
    %p753 = scmp.eq.s32.totalorder %s76, 1
    %p754 = por %p752, %p753
    %p756 = scmp.ne.s32.totalorder %s739, %s755
    %p757 = scmp.eq.s32.totalorder %s76, 0
    %p758 = por %p756, %p757
    %p759 = scmp.le.s32.totalorder 1, %s70
    %p760 = scmp.lt.s32.totalorder %s70, 3
    %p761 = pnand %p759, %p760
    %p762 = pneg %p761
    // Predicated region
    $region9: #{abam_forward.1} parent=5 // pred_check
      _
    $region10: #{abam_forward.1} parent=5 // pred_check_branch
      %764 = sbr.rel (%p761) target = $region12
    $region11: #{abam_forward.1} parent=5 // pred_region
      %s765 = ssub.s32 %s70, 1
      // Predicated region
      $region13: #{abam_forward.1} parent=11 // pred_check
        %p766 = pneg %p143
      $region14: #{abam_forward.1} parent=11 // pred_check_branch
        %768 = sbr.rel (%p766) target = $region16
      $region15: #{abam_forward.1} parent=11 // pred_region
        _
      $region16: #{abam_forward.1} parent=11 // pred_fallthru
        _
      // Predicated region
      $region17: #{abam_forward.1} parent=11 // pred_check
        %p769 = pneg %p164
      $region18: #{abam_forward.1} parent=11 // pred_check_branch
        %771 = sbr.rel (%p769) target = $region20
      $region19: #{abam_forward.1} parent=11 // pred_region
        _
      $region20: #{abam_forward.1} parent=11 // pred_fallthru
        _
      // Predicated region
      $region21: #{abam_forward.1} parent=11 // pred_check
        %p772 = pneg %p185
      $region22: #{abam_forward.1} parent=11 // pred_check_branch
        %774 = sbr.rel (%p772) target = $region24
      $region23: #{abam_forward.1} parent=11 // pred_region
        _
      $region24: #{abam_forward.1} parent=11 // pred_fallthru
        _
      // Predicated region
      $region25: #{abam_forward.1} parent=11 // pred_check
        %p775 = pneg %p206
      $region26: #{abam_forward.1} parent=11 // pred_check_branch
        %777 = sbr.rel (%p775) target = $region28
      $region27: #{abam_forward.1} parent=11 // pred_region
        _
      $region28: #{abam_forward.1} parent=11 // pred_fallthru
        _
      // Predicated region
      $region29: #{abam_forward.1} parent=11 // pred_check
        %p778 = pneg %p227
      $region30: #{abam_forward.1} parent=11 // pred_check_branch
        %780 = sbr.rel (%p778) target = $region32
      $region31: #{abam_forward.1} parent=11 // pred_region
        _
      $region32: #{abam_forward.1} parent=11 // pred_fallthru
        _
      // Predicated region
      $region33: #{abam_forward.1} parent=11 // pred_check
        %p781 = pneg %p248
      $region34: #{abam_forward.1} parent=11 // pred_check_branch
        %783 = sbr.rel (%p781) target = $region36
      $region35: #{abam_forward.1} parent=11 // pred_region
        _
      $region36: #{abam_forward.1} parent=11 // pred_fallthru
        _
      // Predicated region
      $region37: #{abam_forward.1} parent=11 // pred_check
        %p784 = pneg %p269
      $region38: #{abam_forward.1} parent=11 // pred_check_branch
        %786 = sbr.rel (%p784) target = $region40
      $region39: #{abam_forward.1} parent=11 // pred_region
        _
      $region40: #{abam_forward.1} parent=11 // pred_fallthru
        _
      // Predicated region
      $region41: #{abam_forward.1} parent=11 // pred_check
        %p787 = pneg %p290
      $region42: #{abam_forward.1} parent=11 // pred_check_branch
        %789 = sbr.rel (%p787) target = $region44
      $region43: #{abam_forward.1} parent=11 // pred_region
        _
      $region44: #{abam_forward.1} parent=11 // pred_fallthru
        _
      // Predicated region
      $region45: #{abam_forward.1} parent=11 // pred_check
        %p790 = pneg %p311
      $region46: #{abam_forward.1} parent=11 // pred_check_branch
        %792 = sbr.rel (%p790) target = $region48
      $region47: #{abam_forward.1} parent=11 // pred_region
        _
      $region48: #{abam_forward.1} parent=11 // pred_fallthru
        _
      // Predicated region
      $region49: #{abam_forward.1} parent=11 // pred_check
        %p793 = pneg %p332
      $region50: #{abam_forward.1} parent=11 // pred_check_branch
        %795 = sbr.rel (%p793) target = $region52
      $region51: #{abam_forward.1} parent=11 // pred_region
        _
      $region52: #{abam_forward.1} parent=11 // pred_fallthru
        _
      // Predicated region
      $region53: #{abam_forward.1} parent=11 // pred_check
        %p796 = pneg %p353
      $region54: #{abam_forward.1} parent=11 // pred_check_branch
        %798 = sbr.rel (%p796) target = $region56
      $region55: #{abam_forward.1} parent=11 // pred_region
        _
      $region56: #{abam_forward.1} parent=11 // pred_fallthru
        _
      // Predicated region
      $region57: #{abam_forward.1} parent=11 // pred_check
        %p799 = pneg %p374
      $region58: #{abam_forward.1} parent=11 // pred_check_branch
        %801 = sbr.rel (%p799) target = $region60
      $region59: #{abam_forward.1} parent=11 // pred_region
        _
      $region60: #{abam_forward.1} parent=11 // pred_fallthru
        _
      // Predicated region
      $region61: #{abam_forward.1} parent=11 // pred_check
        %p802 = pneg %p395
      $region62: #{abam_forward.1} parent=11 // pred_check_branch
        %804 = sbr.rel (%p802) target = $region64
      $region63: #{abam_forward.1} parent=11 // pred_region
        _
      $region64: #{abam_forward.1} parent=11 // pred_fallthru
        _
      // Predicated region
      $region65: #{abam_forward.1} parent=11 // pred_check
        %p805 = pneg %p416
      $region66: #{abam_forward.1} parent=11 // pred_check_branch
        %807 = sbr.rel (%p805) target = $region68
      $region67: #{abam_forward.1} parent=11 // pred_region
        _
      $region68: #{abam_forward.1} parent=11 // pred_fallthru
        _
      // Predicated region
      $region69: #{abam_forward.1} parent=11 // pred_check
        %p808 = pneg %p437
      $region70: #{abam_forward.1} parent=11 // pred_check_branch
        %810 = sbr.rel (%p808) target = $region72
      $region71: #{abam_forward.1} parent=11 // pred_region
        _
      $region72: #{abam_forward.1} parent=11 // pred_fallthru
        _
      // Predicated region
      $region73: #{abam_forward.1} parent=11 // pred_check
        %p811 = pneg %p458
      $region74: #{abam_forward.1} parent=11 // pred_check_branch
        %813 = sbr.rel (%p811) target = $region76
      $region75: #{abam_forward.1} parent=11 // pred_region
        _
      $region76: #{abam_forward.1} parent=11 // pred_fallthru
        _
      // Predicated region
      $region77: #{abam_forward.1} parent=11 // pred_check
        %p814 = pneg %p479
      $region78: #{abam_forward.1} parent=11 // pred_check_branch
        %816 = sbr.rel (%p814) target = $region80
      $region79: #{abam_forward.1} parent=11 // pred_region
        _
      $region80: #{abam_forward.1} parent=11 // pred_fallthru
        _
      // Predicated region
      $region81: #{abam_forward.1} parent=11 // pred_check
        %p817 = pneg %p500
      $region82: #{abam_forward.1} parent=11 // pred_check_branch
        %819 = sbr.rel (%p817) target = $region84
      $region83: #{abam_forward.1} parent=11 // pred_region
        _
      $region84: #{abam_forward.1} parent=11 // pred_fallthru
        _
      // Predicated region
      $region85: #{abam_forward.1} parent=11 // pred_check
        %p820 = pneg %p521
      $region86: #{abam_forward.1} parent=11 // pred_check_branch
        %822 = sbr.rel (%p820) target = $region88
      $region87: #{abam_forward.1} parent=11 // pred_region
        _
      $region88: #{abam_forward.1} parent=11 // pred_fallthru
        _
      // Predicated region
      $region89: #{abam_forward.1} parent=11 // pred_check
        %p823 = pneg %p542
      $region90: #{abam_forward.1} parent=11 // pred_check_branch
        %825 = sbr.rel (%p823) target = $region92
      $region91: #{abam_forward.1} parent=11 // pred_region
        _
      $region92: #{abam_forward.1} parent=11 // pred_fallthru
        _
      // Predicated region
      $region93: #{abam_forward.1} parent=11 // pred_check
        %p826 = pneg %p563
      $region94: #{abam_forward.1} parent=11 // pred_check_branch
        %828 = sbr.rel (%p826) target = $region96
      $region95: #{abam_forward.1} parent=11 // pred_region
        _
      $region96: #{abam_forward.1} parent=11 // pred_fallthru
        _
      // Predicated region
      $region97: #{abam_forward.1} parent=11 // pred_check
        %p829 = pneg %p584
      $region98: #{abam_forward.1} parent=11 // pred_check_branch
        %831 = sbr.rel (%p829) target = $region100
      $region99: #{abam_forward.1} parent=11 // pred_region
        _
      $region100: #{abam_forward.1} parent=11 // pred_fallthru
        _
      // Predicated region
      $region101: #{abam_forward.1} parent=11 // pred_check
        %p832 = pneg %p605
      $region102: #{abam_forward.1} parent=11 // pred_check_branch
        %834 = sbr.rel (%p832) target = $region104
      $region103: #{abam_forward.1} parent=11 // pred_region
        _
      $region104: #{abam_forward.1} parent=11 // pred_fallthru
        _
      // Predicated region
      $region105: #{abam_forward.1} parent=11 // pred_check
        %p835 = pneg %p626
      $region106: #{abam_forward.1} parent=11 // pred_check_branch
        %837 = sbr.rel (%p835) target = $region108
      $region107: #{abam_forward.1} parent=11 // pred_region
        _
      $region108: #{abam_forward.1} parent=11 // pred_fallthru
        _
      // Predicated region
      $region109: #{abam_forward.1} parent=11 // pred_check
        %p838 = pneg %p647
      $region110: #{abam_forward.1} parent=11 // pred_check_branch
        %840 = sbr.rel (%p838) target = $region112
      $region111: #{abam_forward.1} parent=11 // pred_region
        _
      $region112: #{abam_forward.1} parent=11 // pred_fallthru
        _
    $region12: #{abam_forward.1} parent=5 // pred_fallthru
      _
    %p841 = scmp.lt.s32.totalorder %s70, 2
    // Predicated region
    $region113: #{abam_forward.1} parent=5 // pred_check
      %p842 = pneg %p841
    $region114: #{abam_forward.1} parent=5 // pred_check_branch
      %844 = sbr.rel (%p842) target = $region116
    $region115: #{abam_forward.1} parent=5 // pred_region
      // Predicated region
      $region117: #{abam_forward.1} parent=115 // pred_check
        %p845 = pneg %p90
      $region118: #{abam_forward.1} parent=115 // pred_check_branch
        %847 = sbr.rel (%p845) target = $region120
      $region119: #{abam_forward.1} parent=115 // pred_region
        %p848 = scmp.lt.s32.totalorder %s70, 1
        %s849 = scalar_select %p848, %s70, 1
        %s850 = smul.addr %s849, 4
        %s851 = smul.addr %s850, 8
        %s852 = scalar_lea.vmem %s1, %s851
      $region120: #{abam_forward.1} parent=115 // pred_fallthru
        _
      // Predicated region
      $region121: #{abam_forward.1} parent=115 // pred_check
        %p853 = pneg %p116
      $region122: #{abam_forward.1} parent=115 // pred_check_branch
        %855 = sbr.rel (%p853) target = $region124
      $region123: #{abam_forward.1} parent=115 // pred_region
        %p856 = scmp.lt.s32.totalorder %s70, 1
        %s857 = scalar_select %p856, %s70, 1
        %s858 = smul.addr %s857, 4
        %s859 = smul.addr %s858, 8
        %s860 = scalar_lea.vmem %s3, %s859
      $region124: #{abam_forward.1} parent=115 // pred_fallthru
        _
    $region116: #{abam_forward.1} parent=5 // pred_fallthru
      _
    %p861 = scmp.le.s32.totalorder 1, %s70
    %p862 = scmp.lt.s32.totalorder %s70, 3
    %p863 = pnand %p861, %p862
    %p864 = pneg %p863
    // Predicated region
    $region125: #{abam_forward.1} parent=5 // pred_check
      _
    $region126: #{abam_forward.1} parent=5 // pred_check_branch
      %866 = sbr.rel (%p863) target = $region128
    $region127: #{abam_forward.1} parent=5 // pred_region
      %s867 = ssub.s32 %s70, 1
      %p868 = scmp.lt.s32.totalorder %s75, 1
      %s869 = scalar_select %p868, %s75, 1
      %s870 = smul.addr %s869, 4
      %s871 = smul.addr %s870, 8
      %s872 = scalar_lea.vmem %s1, %s871
      %p873 = pneg %p96
      %p874 = pneg %p93
      %p875 = scmp.lt.s32.totalorder %s75, 1
      %s876 = scalar_select %p875, %s75, 1
      %s877 = smul.addr %s876, 4
      %s878 = smul.addr %s877, 8
      %s879 = scalar_lea.vmem %s3, %s878
      %p880 = pneg %p122
      %p881 = pneg %p119
      %p882 = pneg %p143
      %p883 = pneg %p140
      %p884 = pneg %p164
      %p885 = pneg %p161
      %p886 = pneg %p185
      %p887 = pneg %p182
      %p888 = pneg %p206
      %p889 = pneg %p203
      %p890 = pneg %p227
      %p891 = pneg %p224
      %p892 = pneg %p248
      %p893 = pneg %p245
      %p894 = pneg %p269
      %p895 = pneg %p266
      %p896 = pneg %p290
      %p897 = pneg %p287
      %p898 = pneg %p311
      %p899 = pneg %p308
      %p900 = pneg %p332
      %p901 = pneg %p329
      %p902 = pneg %p353
      %p903 = pneg %p350
      %p904 = pneg %p374
      %p905 = pneg %p371
      %p906 = pneg %p395
      %p907 = pneg %p392
      %p908 = pneg %p416
      %p909 = pneg %p413
      %p910 = pneg %p437
      %p911 = pneg %p434
      %p912 = pneg %p458
      %p913 = pneg %p455
      %p914 = pneg %p479
      %p915 = pneg %p476
      %p916 = pneg %p500
      %p917 = pneg %p497
      %p918 = pneg %p521
      %p919 = pneg %p518
      %p920 = pneg %p542
      %p921 = pneg %p539
      %p922 = pneg %p563
      %p923 = pneg %p560
      %p924 = pneg %p584
      %p925 = pneg %p581
      %p926 = pneg %p605
      %p927 = pneg %p602
      %p928 = pneg %p626
      %p929 = pneg %p623
      %p930 = pneg %p647
      %p931 = pneg %p644
      %p932 = pneg %p673
      %p933 = pneg %p670
      %p934 = scmp.lt.s32.totalorder %s75, 1
      %s935 = scalar_select %p934, %s75, 1
      %s936 = smul.addr %s935, 6
      %s937 = smul.addr %s936, 8
      %s938 = scalar_lea.vmem %s55, %s937
      %p939 = pneg %p699
      %p940 = pneg %p696
      %p941 = scmp.lt.s32.totalorder %s75, 1
      %s942 = scalar_select %p941, %s75, 1
      %s943 = smul.addr %s942, 9
      %s944 = smul.addr %s943, 8
      %s945 = scalar_lea.vmem %s57, %s944
      %p946 = pneg %p725
      %p947 = pneg %p722
      %p948 = scmp.lt.s32.totalorder %s75, 1
      %s949 = scalar_select %p948, %s75, 1
      %s950 = smul.addr %s949, 9
      %s951 = smul.addr %s950, 8
      %s952 = scalar_lea.vmem %s59, %s951
      %p953 = pneg %p751
      %p954 = pneg %p748
      %p955 = scmp.lt.s32.totalorder %s75, 1
      %s956 = scalar_select %p955, %s75, 1
      %s957 = smul.addr %s956, 3
      %s958 = scalar_lea.vmem %s61, %s957
      %p959 = scmp.lt.s32.totalorder %s75, 1
      %s960 = scalar_select %p959, %s75, 1
      %s961 = smul.addr %s960, 4
      %s962 = smul.addr %s961, 8
      %s963 = scalar_lea.vmem %s1, %s962
      %p964 = scmp.lt.s32.totalorder %s75, 1
      %s965 = scalar_select %p964, %s75, 1
      %s966 = smul.addr %s965, 4
      %s967 = smul.addr %s966, 8
      %s968 = scalar_lea.vmem %s3, %s967
      %p969 = scmp.lt.s32.totalorder %s75, 1
      %s970 = scalar_select %p969, %s75, 1
      %s971 = smul.addr %s970, 6
      %s972 = smul.addr %s971, 8
      %s973 = scalar_lea.vmem %s55, %s972
      %p974 = scmp.lt.s32.totalorder %s75, 1
      %s975 = scalar_select %p974, %s75, 1
      %s976 = smul.addr %s975, 9
      %s977 = smul.addr %s976, 8
      %s978 = scalar_lea.vmem %s57, %s977
      %p979 = scmp.lt.s32.totalorder %s75, 1
      %s980 = scalar_select %p979, %s75, 1
      %s981 = smul.addr %s980, 9
      %s982 = smul.addr %s981, 8
      %s983 = scalar_lea.vmem %s59, %s982
      %p984 = scmp.lt.s32.totalorder %s75, 1
      %s985 = scalar_select %p984, %s75, 1
      %s986 = smul.addr %s985, 3
      %s987 = scalar_lea.vmem %s61, %s986
      %989 = vst [vmem:[#allocation2] sm:$0xff] 0
      %990 = vst [vmem:[#allocation2 + $0x8] sm:$0xff] 0
      %991 = vst [vmem:[#allocation2 + $0x10] sm:$0xff] 0
      %992 = vst [vmem:[#allocation2 + $0x18] sm:$0xff] 0
      %993 = vst [vmem:[#allocation2 + $0x20] sm:$0xff] 0
      %994 = vst [vmem:[#allocation2 + $0x28] sm:$0xff] 0
      %995 = vst [vmem:[#allocation2 + $0x30] sm:$0xff] 0
      %996 = vst [vmem:[#allocation2 + $0x38] sm:$0xff] 0
      %997 = vst [vmem:[#allocation3] sm:$0xff] 0.0
      %v998 = vld [vmem:[%s963] sm:$0xff]
      %v999 = vld [vmem:[%s963 + $0x8] sm:$0xff]
      %v1000 = vld [vmem:[%s963 + $0x10] sm:$0xff]
      %v1001 = vld [vmem:[%s963 + $0x18] sm:$0xff]
      %v1002 = vpack.c.bf16 %v1000, %v998
      %v1003 = vpack.c.bf16 %v1001, %v999
      %v1004 = vld [vmem:[%s968] sm:$0xff]
      %v1005 = vld [vmem:[%s968 + $0x8] sm:$0xff]
      %v1006 = vld [vmem:[%s968 + $0x10] sm:$0xff]
      %v1007 = vld [vmem:[%s968 + $0x18] sm:$0xff]
      %v1008 = vpack.c.bf16 %v1006, %v1004
      %v1009 = vpack.c.bf16 %v1007, %v1005
      %1011 = vrot.lane.b32.xlu0 %v1002, 19
      %v1012 = vpop.permute.xlu0 %1011
      %vm1014 = vcmask 285848
      %1015 = vst.msk [vmem:[#allocation2] sm:$0xff] %vm1014, %v1012
      %1017 = vrot.lane.b32.xlu0 %v1008, 19
      %v1018 = vpop.permute.xlu0 %1017
      %1020 = vst.msk [vmem:[#allocation2 + $0x20] sm:$0xff] %vm1014, %v1018
      %1021 = vrot.lane.b32.xlu0 %v1002, 21
      %v1022 = vpop.permute.xlu0 %1021
      %vm1024 = vcmask 433448
      %1025 = vst.msk [vmem:[#allocation2] sm:$0xff] %vm1024, %v1022
      %1026 = vrot.lane.b32.xlu0 %v1008, 21
      %v1027 = vpop.permute.xlu0 %1026
      %1029 = vst.msk [vmem:[#allocation2 + $0x20] sm:$0xff] %vm1024, %v1027
      %1030 = vrot.lane.b32.xlu0 %v1002, 23
      %v1031 = vpop.permute.xlu0 %1030
      %vm1033 = vcmask 581048
      %1034 = vst.msk [vmem:[#allocation2] sm:$0xff] %vm1033, %v1031
      %1035 = vrot.lane.b32.xlu0 %v1008, 23
      %v1036 = vpop.permute.xlu0 %1035
      %1038 = vst.msk [vmem:[#allocation2 + $0x20] sm:$0xff] %vm1033, %v1036
      %1039 = vrot.lane.b32.xlu0 %v1002, 25
      %v1040 = vpop.permute.xlu0 %1039
      %vm1042 = vcmask 728648
      %1043 = vst.msk [vmem:[#allocation2] sm:$0xff] %vm1042, %v1040
      %1044 = vrot.lane.b32.xlu0 %v1008, 25
      %v1045 = vpop.permute.xlu0 %1044
      %1047 = vst.msk [vmem:[#allocation2 + $0x20] sm:$0xff] %vm1042, %v1045
      %1048 = vrot.lane.b32.xlu0 %v1002, 27
      %v1049 = vpop.permute.xlu0 %1048
      %vm1051 = vcmask 876248
      %1052 = vst.msk [vmem:[#allocation2] sm:$0xff] %vm1051, %v1049
      %1053 = vrot.lane.b32.xlu0 %v1008, 27
      %v1054 = vpop.permute.xlu0 %1053
      %1056 = vst.msk [vmem:[#allocation2 + $0x20] sm:$0xff] %vm1051, %v1054
      %1057 = vrot.lane.b32.xlu0 %v1002, 29
      %v1058 = vpop.permute.xlu0 %1057
      %vm1060 = vcmask 1023848
      %1061 = vst.msk [vmem:[#allocation2] sm:$0xff] %vm1060, %v1058
      %1062 = vrot.lane.b32.xlu0 %v1008, 29
      %v1063 = vpop.permute.xlu0 %1062
      %1065 = vst.msk [vmem:[#allocation2 + $0x20] sm:$0xff] %vm1060, %v1063
      %1066 = vrot.lane.b32.xlu0 %v1002, 31
      %v1067 = vpop.permute.xlu0 %1066
      %vm1069 = vcmask 1048568
      %1070 = vst.msk [vmem:[#allocation2] sm:$0xff] %vm1069, %v1067
      %vm1071 = vcmask 121856
      %1072 = vst.msk [vmem:[#allocation2 + $0x8] sm:$0xff] %vm1071, %v1067
      %1073 = vrot.lane.b32.xlu0 %v1008, 31
      %v1074 = vpop.permute.xlu0 %1073
      %1076 = vst.msk [vmem:[#allocation2 + $0x20] sm:$0xff] %vm1069, %v1074
      %1077 = vst.msk [vmem:[#allocation2 + $0x28] sm:$0xff] %vm1071, %v1074
      %1078 = vrot.lane.b32.xlu0 %v1002, 33
      %v1079 = vpop.permute.xlu0 %1078
      %vm1081 = vcmask 269448
      %1082 = vst.msk [vmem:[#allocation2 + $0x8] sm:$0xff] %vm1081, %v1079
      %1083 = vrot.lane.b32.xlu0 %v1008, 33
      %v1084 = vpop.permute.xlu0 %1083
      %1086 = vst.msk [vmem:[#allocation2 + $0x28] sm:$0xff] %vm1081, %v1084
      %1088 = vrot.lane.b32.xlu0 %v1003, 35
      %v1089 = vpop.permute.xlu0 %1088
      %vm1091 = vcmask 417048
      %1092 = vst.msk [vmem:[#allocation2 + $0x8] sm:$0xff] %vm1091, %v1089
      %1094 = vrot.lane.b32.xlu0 %v1009, 35
      %v1095 = vpop.permute.xlu0 %1094
      %1097 = vst.msk [vmem:[#allocation2 + $0x28] sm:$0xff] %vm1091, %v1095
      %1098 = vrot.lane.b32.xlu0 %v1003, 37
      %v1099 = vpop.permute.xlu0 %1098
      %vm1101 = vcmask 564648
      %1102 = vst.msk [vmem:[#allocation2 + $0x8] sm:$0xff] %vm1101, %v1099
      %1103 = vrot.lane.b32.xlu0 %v1009, 37
      %v1104 = vpop.permute.xlu0 %1103
      %1106 = vst.msk [vmem:[#allocation2 + $0x28] sm:$0xff] %vm1101, %v1104
      %1107 = vrot.lane.b32.xlu0 %v1003, 39
      %v1108 = vpop.permute.xlu0 %1107
      %vm1110 = vcmask 712248
      %1111 = vst.msk [vmem:[#allocation2 + $0x8] sm:$0xff] %vm1110, %v1108
      %1112 = vrot.lane.b32.xlu0 %v1009, 39
      %v1113 = vpop.permute.xlu0 %1112
      %1115 = vst.msk [vmem:[#allocation2 + $0x28] sm:$0xff] %vm1110, %v1113
      %1116 = vrot.lane.b32.xlu0 %v1003, 41
      %v1117 = vpop.permute.xlu0 %1116
      %vm1119 = vcmask 859848
      %1120 = vst.msk [vmem:[#allocation2 + $0x8] sm:$0xff] %vm1119, %v1117
      %1121 = vrot.lane.b32.xlu0 %v1009, 41
      %v1122 = vpop.permute.xlu0 %1121
      %1124 = vst.msk [vmem:[#allocation2 + $0x28] sm:$0xff] %vm1119, %v1122
      %1125 = vrot.lane.b32.xlu0 %v1003, 43
      %v1126 = vpop.permute.xlu0 %1125
      %vm1128 = vcmask 1007448
      %1129 = vst.msk [vmem:[#allocation2 + $0x8] sm:$0xff] %vm1128, %v1126
      %1130 = vrot.lane.b32.xlu0 %v1009, 43
      %v1131 = vpop.permute.xlu0 %1130
      %1133 = vst.msk [vmem:[#allocation2 + $0x28] sm:$0xff] %vm1128, %v1131
      %1134 = vrot.lane.b32.xlu0 %v1003, 45
      %v1135 = vpop.permute.xlu0 %1134
      %vm1137 = vcmask 1048552
      %1138 = vst.msk [vmem:[#allocation2 + $0x8] sm:$0xff] %vm1137, %v1135
      %vm1139 = vcmask 105472
      %1140 = vst.msk [vmem:[#allocation2 + $0x10] sm:$0xff] %vm1139, %v1135
      %1141 = vrot.lane.b32.xlu0 %v1009, 45
      %v1142 = vpop.permute.xlu0 %1141
      %1144 = vst.msk [vmem:[#allocation2 + $0x28] sm:$0xff] %vm1137, %v1142
      %1145 = vst.msk [vmem:[#allocation2 + $0x30] sm:$0xff] %vm1139, %v1142
      %1146 = vrot.lane.b32.xlu0 %v1003, 47
      %v1147 = vpop.permute.xlu0 %1146
      %vm1149 = vcmask 253048
      %1150 = vst.msk [vmem:[#allocation2 + $0x10] sm:$0xff] %vm1149, %v1147
      %1151 = vrot.lane.b32.xlu0 %v1009, 47
      %v1152 = vpop.permute.xlu0 %1151
      %1154 = vst.msk [vmem:[#allocation2 + $0x30] sm:$0xff] %vm1149, %v1152
      %1155 = vrot.lane.b32.xlu0 %v1003, 49
      %v1156 = vpop.permute.xlu0 %1155
      %vm1158 = vcmask 400648
      %1159 = vst.msk [vmem:[#allocation2 + $0x10] sm:$0xff] %vm1158, %v1156
      %1160 = vrot.lane.b32.xlu0 %v1009, 49
      %v1161 = vpop.permute.xlu0 %1160
      %1163 = vst.msk [vmem:[#allocation2 + $0x30] sm:$0xff] %vm1158, %v1161
      %v1164 = vld [vmem:[#allocation2] sm:$0xff]
      %v1165 = vld [vmem:[#allocation2 + $0x8] sm:$0xff]
      %v1166 = vld [vmem:[#allocation2 + $0x10] sm:$0xff]
      %v1167 = vld [vmem:[#allocation2 + $0x18] sm:$0xff]
      %v1168 = vld [vmem:[#allocation2 + $0x20] sm:$0xff]
      %v1169 = vld [vmem:[#allocation2 + $0x28] sm:$0xff]
      %v1170 = vld [vmem:[#allocation2 + $0x30] sm:$0xff]
      %v1171 = vld [vmem:[#allocation2 + $0x38] sm:$0xff]
      %v1172 = vld [vmem:[%s5] sm:$0x7]
      %v1173 = vld [vmem:[%s7] sm:$0xff]
      %v1174 = vld [vmem:[%s7 + $0x8] sm:$0xff]
      %v1175 = vunpack.c.l.bf16 %v1164
      %v1176 = vunpack.c.l.bf16 %v1165
      %v1177 = vunpack.c.l.bf16 %v1166
      %v1178 = vunpack.c.h.bf16 %v1164
      %v1179 = vunpack.c.h.bf16 %v1165
      %v1180 = vunpack.c.h.bf16 %v1166
      %1182 = vset.pattern.permute.xlu0 0
      %1183 = vperm.xlu0 %1182, %v1173
      %v1184 = vpop.permute.xlu0 %1183
      %1187 = vset.pattern.permute.xlu0 0
      %1188 = vperm.xlu0 %1187, %v1174
      %v1189 = vpop.permute.xlu0 %1188
      %v1191 = vmul.f32 %v1175, %v1184
      %v1192 = vmul.f32 %v1176, %v1184
      %v1193 = vmul.f32 %v1177, %v1184
      %v1194 = vmul.f32 %v1178, %v1189
      %v1195 = vmul.f32 %v1179, %v1189
      %v1196 = vmul.f32 %v1180, %v1189
      %v1197 = vunpack.c.l.bf16 %v1167
      %v1198 = vunpack.c.h.bf16 %v1167
      %1199 = vset.pattern.permute.xlu0 1
      %1200 = vperm.xlu0 %1199, %v1173
      %v1201 = vpop.permute.xlu0 %1200
      %1203 = vset.pattern.permute.xlu0 1
      %1204 = vperm.xlu0 %1203, %v1174
      %v1205 = vpop.permute.xlu0 %1204
      %v1207 = vmul.f32 %v1175, %v1201
      %v1208 = vmul.f32 %v1176, %v1201
      %v1209 = vmul.f32 %v1177, %v1201
      %v1210 = vmul.f32 %v1197, %v1201
      %v1211 = vmul.f32 %v1178, %v1205
      %v1212 = vmul.f32 %v1179, %v1205
      %v1213 = vmul.f32 %v1180, %v1205
      %v1214 = vmul.f32 %v1198, %v1205
      %1223 = vrot.lane.b32.xlu0 %v1207, 127
      %v1224 = vpop.permute.xlu0 %1223
      %1225 = vrot.lane.b32.xlu0 %v1208, 127
      %v1226 = vpop.permute.xlu0 %1225
      %1227 = vrot.lane.b32.xlu0 %v1209, 127
      %v1228 = vpop.permute.xlu0 %1227
      %1229 = vrot.lane.b32.xlu0 %v1210, 127
      %v1230 = vpop.permute.xlu0 %1229
      %1231 = vrot.lane.b32.xlu0 %v1211, 127
      %v1232 = vpop.permute.xlu0 %1231
      %1233 = vrot.lane.b32.xlu0 %v1212, 127
      %v1234 = vpop.permute.xlu0 %1233
      %1235 = vrot.lane.b32.xlu0 %v1213, 127
      %v1236 = vpop.permute.xlu0 %1235
      %1237 = vrot.lane.b32.xlu0 %v1214, 127
      %v1238 = vpop.permute.xlu0 %1237
      %vm1239 = vcmask 1039360
      %v1240 = vsel %vm1239, %v1224, %v1226
      %v1241 = vsel %vm1239, %v1226, %v1228
      %v1242 = vsel %vm1239, %v1228, %v1230
      %v1243 = vsel %vm1239, %v1232, %v1234
      %v1244 = vsel %vm1239, %v1234, %v1236
      %v1245 = vsel %vm1239, %v1236, %v1238
      %v1252 = vadd.f32 %v1191, %v1240
      %v1253 = vadd.f32 %v1192, %v1241
      %v1254 = vadd.f32 %v1193, %v1242
      %v1255 = vadd.f32 %v1194, %v1243
      %v1256 = vadd.f32 %v1195, %v1244
      %v1257 = vadd.f32 %v1196, %v1245
      %1258 = vset.pattern.permute.xlu0 2
      %1259 = vperm.xlu0 %1258, %v1173
      %v1260 = vpop.permute.xlu0 %1259
      %1262 = vset.pattern.permute.xlu0 2
      %1263 = vperm.xlu0 %1262, %v1174
      %v1264 = vpop.permute.xlu0 %1263
      %v1266 = vmul.f32 %v1175, %v1260
      %v1267 = vmul.f32 %v1176, %v1260
      %v1268 = vmul.f32 %v1177, %v1260
      %v1269 = vmul.f32 %v1197, %v1260
      %v1270 = vmul.f32 %v1178, %v1264
      %v1271 = vmul.f32 %v1179, %v1264
      %v1272 = vmul.f32 %v1180, %v1264
      %v1273 = vmul.f32 %v1198, %v1264
      %1282 = vrot.lane.b32.xlu0 %v1266, 126
      %v1283 = vpop.permute.xlu0 %1282
      %1284 = vrot.lane.b32.xlu0 %v1267, 126
      %v1285 = vpop.permute.xlu0 %1284
      %1286 = vrot.lane.b32.xlu0 %v1268, 126
      %v1287 = vpop.permute.xlu0 %1286
      %1288 = vrot.lane.b32.xlu0 %v1269, 126
      %v1289 = vpop.permute.xlu0 %1288
      %1290 = vrot.lane.b32.xlu0 %v1270, 126
      %v1291 = vpop.permute.xlu0 %1290
      %1292 = vrot.lane.b32.xlu0 %v1271, 126
      %v1293 = vpop.permute.xlu0 %1292
      %1294 = vrot.lane.b32.xlu0 %v1272, 126
      %v1295 = vpop.permute.xlu0 %1294
      %1296 = vrot.lane.b32.xlu0 %v1273, 126
      %v1297 = vpop.permute.xlu0 %1296
      %vm1298 = vcmask 1031168
      %v1299 = vsel %vm1298, %v1283, %v1285
      %v1300 = vsel %vm1298, %v1285, %v1287
      %v1301 = vsel %vm1298, %v1287, %v1289
      %v1302 = vsel %vm1298, %v1291, %v1293
      %v1303 = vsel %vm1298, %v1293, %v1295
      %v1304 = vsel %vm1298, %v1295, %v1297
      %v1311 = vadd.f32 %v1252, %v1299
      %v1312 = vadd.f32 %v1253, %v1300
      %v1313 = vadd.f32 %v1254, %v1301
      %v1314 = vadd.f32 %v1255, %v1302
      %v1315 = vadd.f32 %v1256, %v1303
      %v1316 = vadd.f32 %v1257, %v1304
      %1317 = vset.pattern.permute.xlu0 3
      %1318 = vperm.xlu0 %1317, %v1173
      %v1319 = vpop.permute.xlu0 %1318
      %1321 = vset.pattern.permute.xlu0 3
      %1322 = vperm.xlu0 %1321, %v1174
      %v1323 = vpop.permute.xlu0 %1322
      %v1325 = vmul.f32 %v1175, %v1319
      %v1326 = vmul.f32 %v1176, %v1319
      %v1327 = vmul.f32 %v1177, %v1319
      %v1328 = vmul.f32 %v1197, %v1319
      %v1329 = vmul.f32 %v1178, %v1323
      %v1330 = vmul.f32 %v1179, %v1323
      %v1331 = vmul.f32 %v1180, %v1323
      %v1332 = vmul.f32 %v1198, %v1323
      %1341 = vrot.lane.b32.xlu0 %v1325, 110
      %v1342 = vpop.permute.xlu0 %1341
      %1343 = vrot.lane.b32.xlu0 %v1326, 110
      %v1344 = vpop.permute.xlu0 %1343
      %1345 = vrot.lane.b32.xlu0 %v1327, 110
      %v1346 = vpop.permute.xlu0 %1345
      %1347 = vrot.lane.b32.xlu0 %v1328, 110
      %v1348 = vpop.permute.xlu0 %1347
      %1349 = vrot.lane.b32.xlu0 %v1329, 110
      %v1350 = vpop.permute.xlu0 %1349
      %1351 = vrot.lane.b32.xlu0 %v1330, 110
      %v1352 = vpop.permute.xlu0 %1351
      %1353 = vrot.lane.b32.xlu0 %v1331, 110
      %v1354 = vpop.permute.xlu0 %1353
      %1355 = vrot.lane.b32.xlu0 %v1332, 110
      %v1356 = vpop.permute.xlu0 %1355
      %vm1357 = vcmask 900096
      %v1358 = vsel %vm1357, %v1342, %v1344
      %v1359 = vsel %vm1357, %v1344, %v1346
      %v1360 = vsel %vm1357, %v1346, %v1348
      %v1361 = vsel %vm1357, %v1350, %v1352
      %v1362 = vsel %vm1357, %v1352, %v1354
      %v1363 = vsel %vm1357, %v1354, %v1356
      %v1370 = vadd.f32 %v1311, %v1358
      %v1371 = vadd.f32 %v1312, %v1359
      %v1372 = vadd.f32 %v1313, %v1360
      %v1373 = vadd.f32 %v1314, %v1361
      %v1374 = vadd.f32 %v1315, %v1362
      %v1375 = vadd.f32 %v1316, %v1363
      %1376 = vset.pattern.permute.xlu0 4
      %1377 = vperm.xlu0 %1376, %v1173
      %v1378 = vpop.permute.xlu0 %1377
      %1380 = vset.pattern.permute.xlu0 4
      %1381 = vperm.xlu0 %1380, %v1174
      %v1382 = vpop.permute.xlu0 %1381
      %v1384 = vmul.f32 %v1175, %v1378
      %v1385 = vmul.f32 %v1176, %v1378
      %v1386 = vmul.f32 %v1177, %v1378
      %v1387 = vmul.f32 %v1197, %v1378
      %v1388 = vmul.f32 %v1178, %v1382
      %v1389 = vmul.f32 %v1179, %v1382
      %v1390 = vmul.f32 %v1180, %v1382
      %v1391 = vmul.f32 %v1198, %v1382
      %1400 = vrot.lane.b32.xlu0 %v1384, 109
      %v1401 = vpop.permute.xlu0 %1400
      %1402 = vrot.lane.b32.xlu0 %v1385, 109
      %v1403 = vpop.permute.xlu0 %1402
      %1404 = vrot.lane.b32.xlu0 %v1386, 109
      %v1405 = vpop.permute.xlu0 %1404
      %1406 = vrot.lane.b32.xlu0 %v1387, 109
      %v1407 = vpop.permute.xlu0 %1406
      %1408 = vrot.lane.b32.xlu0 %v1388, 109
      %v1409 = vpop.permute.xlu0 %1408
      %1410 = vrot.lane.b32.xlu0 %v1389, 109
      %v1411 = vpop.permute.xlu0 %1410
      %1412 = vrot.lane.b32.xlu0 %v1390, 109
      %v1413 = vpop.permute.xlu0 %1412
      %1414 = vrot.lane.b32.xlu0 %v1391, 109
      %v1415 = vpop.permute.xlu0 %1414
      %vm1416 = vcmask 891904
      %v1417 = vsel %vm1416, %v1401, %v1403
      %v1418 = vsel %vm1416, %v1403, %v1405
      %v1419 = vsel %vm1416, %v1405, %v1407
      %v1420 = vsel %vm1416, %v1409, %v1411
      %v1421 = vsel %vm1416, %v1411, %v1413
      %v1422 = vsel %vm1416, %v1413, %v1415
      %v1429 = vadd.f32 %v1370, %v1417
      %v1430 = vadd.f32 %v1371, %v1418
      %v1431 = vadd.f32 %v1372, %v1419
      %v1432 = vadd.f32 %v1373, %v1420
      %v1433 = vadd.f32 %v1374, %v1421
      %v1434 = vadd.f32 %v1375, %v1422
      %1435 = vset.pattern.permute.xlu0 5
      %1436 = vperm.xlu0 %1435, %v1173
      %v1437 = vpop.permute.xlu0 %1436
      %1439 = vset.pattern.permute.xlu0 5
      %1440 = vperm.xlu0 %1439, %v1174
      %v1441 = vpop.permute.xlu0 %1440
      %v1443 = vmul.f32 %v1175, %v1437
      %v1444 = vmul.f32 %v1176, %v1437
      %v1445 = vmul.f32 %v1177, %v1437
      %v1446 = vmul.f32 %v1197, %v1437
      %v1447 = vmul.f32 %v1178, %v1441
      %v1448 = vmul.f32 %v1179, %v1441
      %v1449 = vmul.f32 %v1180, %v1441
      %v1450 = vmul.f32 %v1198, %v1441
      %1459 = vrot.lane.b32.xlu0 %v1443, 108
      %v1460 = vpop.permute.xlu0 %1459
      %1461 = vrot.lane.b32.xlu0 %v1444, 108
      %v1462 = vpop.permute.xlu0 %1461
      %1463 = vrot.lane.b32.xlu0 %v1445, 108
      %v1464 = vpop.permute.xlu0 %1463
      %1465 = vrot.lane.b32.xlu0 %v1446, 108
      %v1466 = vpop.permute.xlu0 %1465
      %1467 = vrot.lane.b32.xlu0 %v1447, 108
      %v1468 = vpop.permute.xlu0 %1467
      %1469 = vrot.lane.b32.xlu0 %v1448, 108
      %v1470 = vpop.permute.xlu0 %1469
      %1471 = vrot.lane.b32.xlu0 %v1449, 108
      %v1472 = vpop.permute.xlu0 %1471
      %1473 = vrot.lane.b32.xlu0 %v1450, 108
      %v1474 = vpop.permute.xlu0 %1473
      %vm1475 = vcmask 883712
      %v1476 = vsel %vm1475, %v1460, %v1462
      %v1477 = vsel %vm1475, %v1462, %v1464
      %v1478 = vsel %vm1475, %v1464, %v1466
      %v1479 = vsel %vm1475, %v1468, %v1470
      %v1480 = vsel %vm1475, %v1470, %v1472
      %v1481 = vsel %vm1475, %v1472, %v1474
      %v1488 = vadd.f32 %v1429, %v1476
      %v1489 = vadd.f32 %v1430, %v1477
      %v1490 = vadd.f32 %v1431, %v1478
      %v1491 = vadd.f32 %v1432, %v1479
      %v1492 = vadd.f32 %v1433, %v1480
      %v1493 = vadd.f32 %v1434, %v1481
      %1494 = vset.pattern.permute.xlu0 6
      %1495 = vperm.xlu0 %1494, %v1173
      %v1496 = vpop.permute.xlu0 %1495
      %1498 = vset.pattern.permute.xlu0 6
      %1499 = vperm.xlu0 %1498, %v1174
      %v1500 = vpop.permute.xlu0 %1499
      %v1502 = vmul.f32 %v1175, %v1496
      %v1503 = vmul.f32 %v1176, %v1496
      %v1504 = vmul.f32 %v1177, %v1496
      %v1505 = vmul.f32 %v1197, %v1496
      %v1506 = vmul.f32 %v1178, %v1500
      %v1507 = vmul.f32 %v1179, %v1500
      %v1508 = vmul.f32 %v1180, %v1500
      %v1509 = vmul.f32 %v1198, %v1500
      %1518 = vrot.lane.b32.xlu0 %v1502, 92
      %v1519 = vpop.permute.xlu0 %1518
      %1520 = vrot.lane.b32.xlu0 %v1503, 92
      %v1521 = vpop.permute.xlu0 %1520
      %1522 = vrot.lane.b32.xlu0 %v1504, 92
      %v1523 = vpop.permute.xlu0 %1522
      %1524 = vrot.lane.b32.xlu0 %v1505, 92
      %v1525 = vpop.permute.xlu0 %1524
      %1526 = vrot.lane.b32.xlu0 %v1506, 92
      %v1527 = vpop.permute.xlu0 %1526
      %1528 = vrot.lane.b32.xlu0 %v1507, 92
      %v1529 = vpop.permute.xlu0 %1528
      %1530 = vrot.lane.b32.xlu0 %v1508, 92
      %v1531 = vpop.permute.xlu0 %1530
      %1532 = vrot.lane.b32.xlu0 %v1509, 92
      %v1533 = vpop.permute.xlu0 %1532
      %vm1534 = vcmask 752640
      %v1535 = vsel %vm1534, %v1519, %v1521
      %v1536 = vsel %vm1534, %v1521, %v1523
      %v1537 = vsel %vm1534, %v1523, %v1525
      %v1538 = vsel %vm1534, %v1527, %v1529
      %v1539 = vsel %vm1534, %v1529, %v1531
      %v1540 = vsel %vm1534, %v1531, %v1533
      %v1547 = vadd.f32 %v1488, %v1535
      %v1548 = vadd.f32 %v1489, %v1536
      %v1549 = vadd.f32 %v1490, %v1537
      %v1550 = vadd.f32 %v1491, %v1538
      %v1551 = vadd.f32 %v1492, %v1539
      %v1552 = vadd.f32 %v1493, %v1540
      %1553 = vset.pattern.permute.xlu0 7
      %1554 = vperm.xlu0 %1553, %v1173
      %v1555 = vpop.permute.xlu0 %1554
      %1557 = vset.pattern.permute.xlu0 7
      %1558 = vperm.xlu0 %1557, %v1174
      %v1559 = vpop.permute.xlu0 %1558
      %v1561 = vmul.f32 %v1175, %v1555
      %v1562 = vmul.f32 %v1176, %v1555
      %v1563 = vmul.f32 %v1177, %v1555
      %v1564 = vmul.f32 %v1197, %v1555
      %v1565 = vmul.f32 %v1178, %v1559
      %v1566 = vmul.f32 %v1179, %v1559
      %v1567 = vmul.f32 %v1180, %v1559
      %v1568 = vmul.f32 %v1198, %v1559
      %1577 = vrot.lane.b32.xlu0 %v1561, 91
      %v1578 = vpop.permute.xlu0 %1577
      %1579 = vrot.lane.b32.xlu0 %v1562, 91
      %v1580 = vpop.permute.xlu0 %1579
      %1581 = vrot.lane.b32.xlu0 %v1563, 91
      %v1582 = vpop.permute.xlu0 %1581
      %1583 = vrot.lane.b32.xlu0 %v1564, 91
      %v1584 = vpop.permute.xlu0 %1583
      %1585 = vrot.lane.b32.xlu0 %v1565, 91
      %v1586 = vpop.permute.xlu0 %1585
      %1587 = vrot.lane.b32.xlu0 %v1566, 91
      %v1588 = vpop.permute.xlu0 %1587
      %1589 = vrot.lane.b32.xlu0 %v1567, 91
      %v1590 = vpop.permute.xlu0 %1589
      %1591 = vrot.lane.b32.xlu0 %v1568, 91
      %v1592 = vpop.permute.xlu0 %1591
      %vm1593 = vcmask 744448
      %v1594 = vsel %vm1593, %v1578, %v1580
      %v1595 = vsel %vm1593, %v1580, %v1582
      %v1596 = vsel %vm1593, %v1582, %v1584
      %v1597 = vsel %vm1593, %v1586, %v1588
      %v1598 = vsel %vm1593, %v1588, %v1590
      %v1599 = vsel %vm1593, %v1590, %v1592
      %v1606 = vadd.f32 %v1547, %v1594
      %v1607 = vadd.f32 %v1548, %v1595
      %v1608 = vadd.f32 %v1549, %v1596
      %v1609 = vadd.f32 %v1550, %v1597
      %v1610 = vadd.f32 %v1551, %v1598
      %v1611 = vadd.f32 %v1552, %v1599
      %1612 = vset.pattern.permute.xlu0 8
      %1613 = vperm.xlu0 %1612, %v1173
      %v1614 = vpop.permute.xlu0 %1613
      %1616 = vset.pattern.permute.xlu0 8
      %1617 = vperm.xlu0 %1616, %v1174
      %v1618 = vpop.permute.xlu0 %1617
      %v1620 = vmul.f32 %v1175, %v1614
      %v1621 = vmul.f32 %v1176, %v1614
      %v1622 = vmul.f32 %v1177, %v1614
      %v1623 = vmul.f32 %v1197, %v1614
      %v1624 = vmul.f32 %v1178, %v1618
      %v1625 = vmul.f32 %v1179, %v1618
      %v1626 = vmul.f32 %v1180, %v1618
      %v1627 = vmul.f32 %v1198, %v1618
      %1636 = vrot.lane.b32.xlu0 %v1620, 90
      %v1637 = vpop.permute.xlu0 %1636
      %1638 = vrot.lane.b32.xlu0 %v1621, 90
      %v1639 = vpop.permute.xlu0 %1638
      %1640 = vrot.lane.b32.xlu0 %v1622, 90
      %v1641 = vpop.permute.xlu0 %1640
      %1642 = vrot.lane.b32.xlu0 %v1623, 90
      %v1643 = vpop.permute.xlu0 %1642
      %1644 = vrot.lane.b32.xlu0 %v1624, 90
      %v1645 = vpop.permute.xlu0 %1644
      %1646 = vrot.lane.b32.xlu0 %v1625, 90
      %v1647 = vpop.permute.xlu0 %1646
      %1648 = vrot.lane.b32.xlu0 %v1626, 90
      %v1649 = vpop.permute.xlu0 %1648
      %1650 = vrot.lane.b32.xlu0 %v1627, 90
      %v1651 = vpop.permute.xlu0 %1650
      %vm1652 = vcmask 736256
      %v1653 = vsel %vm1652, %v1637, %v1639
      %v1654 = vsel %vm1652, %v1639, %v1641
      %v1655 = vsel %vm1652, %v1641, %v1643
      %v1656 = vsel %vm1652, %v1645, %v1647
      %v1657 = vsel %vm1652, %v1647, %v1649
      %v1658 = vsel %vm1652, %v1649, %v1651
      %v1665 = vadd.f32 %v1606, %v1653
      %v1666 = vadd.f32 %v1607, %v1654
      %v1667 = vadd.f32 %v1608, %v1655
      %v1668 = vadd.f32 %v1609, %v1656
      %v1669 = vadd.f32 %v1610, %v1657
      %v1670 = vadd.f32 %v1611, %v1658
      %v1671 = vld [vmem:[%s15] sm:$0xff]
      %v1672 = vld [vmem:[%s15 + $0x8] sm:$0xff]
      %v1673 = vunpack.c.l.bf16 %v1168
      %v1674 = vunpack.c.l.bf16 %v1169
      %v1675 = vunpack.c.l.bf16 %v1170
      %v1676 = vunpack.c.h.bf16 %v1168
      %v1677 = vunpack.c.h.bf16 %v1169
      %v1678 = vunpack.c.h.bf16 %v1170
      %1680 = vset.pattern.permute.xlu0 0
      %1681 = vperm.xlu0 %1680, %v1671
      %v1682 = vpop.permute.xlu0 %1681
      %1685 = vset.pattern.permute.xlu0 0
      %1686 = vperm.xlu0 %1685, %v1672
      %v1687 = vpop.permute.xlu0 %1686
      %v1689 = vmul.f32 %v1673, %v1682
      %v1690 = vmul.f32 %v1674, %v1682
      %v1691 = vmul.f32 %v1675, %v1682
      %v1692 = vmul.f32 %v1676, %v1687
      %v1693 = vmul.f32 %v1677, %v1687
      %v1694 = vmul.f32 %v1678, %v1687
      %v1695 = vunpack.c.l.bf16 %v1171
      %v1696 = vunpack.c.h.bf16 %v1171
      %1697 = vset.pattern.permute.xlu0 1
      %1698 = vperm.xlu0 %1697, %v1671
      %v1699 = vpop.permute.xlu0 %1698
      %1701 = vset.pattern.permute.xlu0 1
      %1702 = vperm.xlu0 %1701, %v1672
      %v1703 = vpop.permute.xlu0 %1702
      %v1705 = vmul.f32 %v1673, %v1699
      %v1706 = vmul.f32 %v1674, %v1699
      %v1707 = vmul.f32 %v1675, %v1699
      %v1708 = vmul.f32 %v1695, %v1699
      %v1709 = vmul.f32 %v1676, %v1703
      %v1710 = vmul.f32 %v1677, %v1703
      %v1711 = vmul.f32 %v1678, %v1703
      %v1712 = vmul.f32 %v1696, %v1703
      %1721 = vrot.lane.b32.xlu0 %v1705, 127
      %v1722 = vpop.permute.xlu0 %1721
      %1723 = vrot.lane.b32.xlu0 %v1706, 127
      %v1724 = vpop.permute.xlu0 %1723
      %1725 = vrot.lane.b32.xlu0 %v1707, 127
      %v1726 = vpop.permute.xlu0 %1725
      %1727 = vrot.lane.b32.xlu0 %v1708, 127
      %v1728 = vpop.permute.xlu0 %1727
      %1729 = vrot.lane.b32.xlu0 %v1709, 127
      %v1730 = vpop.permute.xlu0 %1729
      %1731 = vrot.lane.b32.xlu0 %v1710, 127
      %v1732 = vpop.permute.xlu0 %1731
      %1733 = vrot.lane.b32.xlu0 %v1711, 127
      %v1734 = vpop.permute.xlu0 %1733
      %1735 = vrot.lane.b32.xlu0 %v1712, 127
      %v1736 = vpop.permute.xlu0 %1735
      %v1737 = vsel %vm1239, %v1722, %v1724
      %v1738 = vsel %vm1239, %v1724, %v1726
      %v1739 = vsel %vm1239, %v1726, %v1728
      %v1740 = vsel %vm1239, %v1730, %v1732
      %v1741 = vsel %vm1239, %v1732, %v1734
      %v1742 = vsel %vm1239, %v1734, %v1736
      %v1749 = vadd.f32 %v1689, %v1737
      %v1750 = vadd.f32 %v1690, %v1738
      %v1751 = vadd.f32 %v1691, %v1739
      %v1752 = vadd.f32 %v1692, %v1740
      %v1753 = vadd.f32 %v1693, %v1741
      %v1754 = vadd.f32 %v1694, %v1742
      %1755 = vset.pattern.permute.xlu0 2
      %1756 = vperm.xlu0 %1755, %v1671
      %v1757 = vpop.permute.xlu0 %1756
      %1759 = vset.pattern.permute.xlu0 2
      %1760 = vperm.xlu0 %1759, %v1672
      %v1761 = vpop.permute.xlu0 %1760
      %v1763 = vmul.f32 %v1673, %v1757
      %v1764 = vmul.f32 %v1674, %v1757
      %v1765 = vmul.f32 %v1675, %v1757
      %v1766 = vmul.f32 %v1695, %v1757
      %v1767 = vmul.f32 %v1676, %v1761
      %v1768 = vmul.f32 %v1677, %v1761
      %v1769 = vmul.f32 %v1678, %v1761
      %v1770 = vmul.f32 %v1696, %v1761
      %1779 = vrot.lane.b32.xlu0 %v1763, 126
      %v1780 = vpop.permute.xlu0 %1779
      %1781 = vrot.lane.b32.xlu0 %v1764, 126
      %v1782 = vpop.permute.xlu0 %1781
      %1783 = vrot.lane.b32.xlu0 %v1765, 126
      %v1784 = vpop.permute.xlu0 %1783
      %1785 = vrot.lane.b32.xlu0 %v1766, 126
      %v1786 = vpop.permute.xlu0 %1785
      %1787 = vrot.lane.b32.xlu0 %v1767, 126
      %v1788 = vpop.permute.xlu0 %1787
      %1789 = vrot.lane.b32.xlu0 %v1768, 126
      %v1790 = vpop.permute.xlu0 %1789
      %1791 = vrot.lane.b32.xlu0 %v1769, 126
      %v1792 = vpop.permute.xlu0 %1791
      %1793 = vrot.lane.b32.xlu0 %v1770, 126
      %v1794 = vpop.permute.xlu0 %1793
      %v1795 = vsel %vm1298, %v1780, %v1782
      %v1796 = vsel %vm1298, %v1782, %v1784
      %v1797 = vsel %vm1298, %v1784, %v1786
      %v1798 = vsel %vm1298, %v1788, %v1790
      %v1799 = vsel %vm1298, %v1790, %v1792
      %v1800 = vsel %vm1298, %v1792, %v1794
      %v1807 = vadd.f32 %v1749, %v1795
      %v1808 = vadd.f32 %v1750, %v1796
      %v1809 = vadd.f32 %v1751, %v1797
      %v1810 = vadd.f32 %v1752, %v1798
      %v1811 = vadd.f32 %v1753, %v1799
      %v1812 = vadd.f32 %v1754, %v1800
      %1813 = vset.pattern.permute.xlu0 3
      %1814 = vperm.xlu0 %1813, %v1671
      %v1815 = vpop.permute.xlu0 %1814
      %1817 = vset.pattern.permute.xlu0 3
      %1818 = vperm.xlu0 %1817, %v1672
      %v1819 = vpop.permute.xlu0 %1818
      %v1821 = vmul.f32 %v1673, %v1815
      %v1822 = vmul.f32 %v1674, %v1815
      %v1823 = vmul.f32 %v1675, %v1815
      %v1824 = vmul.f32 %v1695, %v1815
      %v1825 = vmul.f32 %v1676, %v1819
      %v1826 = vmul.f32 %v1677, %v1819
      %v1827 = vmul.f32 %v1678, %v1819
      %v1828 = vmul.f32 %v1696, %v1819
      %1837 = vrot.lane.b32.xlu0 %v1821, 110
      %v1838 = vpop.permute.xlu0 %1837
      %1839 = vrot.lane.b32.xlu0 %v1822, 110
      %v1840 = vpop.permute.xlu0 %1839
      %1841 = vrot.lane.b32.xlu0 %v1823, 110
      %v1842 = vpop.permute.xlu0 %1841
      %1843 = vrot.lane.b32.xlu0 %v1824, 110
      %v1844 = vpop.permute.xlu0 %1843
      %1845 = vrot.lane.b32.xlu0 %v1825, 110
      %v1846 = vpop.permute.xlu0 %1845
      %1847 = vrot.lane.b32.xlu0 %v1826, 110
      %v1848 = vpop.permute.xlu0 %1847
      %1849 = vrot.lane.b32.xlu0 %v1827, 110
      %v1850 = vpop.permute.xlu0 %1849
      %1851 = vrot.lane.b32.xlu0 %v1828, 110
      %v1852 = vpop.permute.xlu0 %1851
      %v1853 = vsel %vm1357, %v1838, %v1840
      %v1854 = vsel %vm1357, %v1840, %v1842
      %v1855 = vsel %vm1357, %v1842, %v1844
      %v1856 = vsel %vm1357, %v1846, %v1848
      %v1857 = vsel %vm1357, %v1848, %v1850
      %v1858 = vsel %vm1357, %v1850, %v1852
      %v1865 = vadd.f32 %v1807, %v1853
      %v1866 = vadd.f32 %v1808, %v1854
      %v1867 = vadd.f32 %v1809, %v1855
      %v1868 = vadd.f32 %v1810, %v1856
      %v1869 = vadd.f32 %v1811, %v1857
      %v1870 = vadd.f32 %v1812, %v1858
      %1871 = vset.pattern.permute.xlu0 4
      %1872 = vperm.xlu0 %1871, %v1671
      %v1873 = vpop.permute.xlu0 %1872
      %1875 = vset.pattern.permute.xlu0 4
      %1876 = vperm.xlu0 %1875, %v1672
      %v1877 = vpop.permute.xlu0 %1876
      %v1879 = vmul.f32 %v1673, %v1873
      %v1880 = vmul.f32 %v1674, %v1873
      %v1881 = vmul.f32 %v1675, %v1873
      %v1882 = vmul.f32 %v1695, %v1873
      %v1883 = vmul.f32 %v1676, %v1877
      %v1884 = vmul.f32 %v1677, %v1877
      %v1885 = vmul.f32 %v1678, %v1877
      %v1886 = vmul.f32 %v1696, %v1877
      %1895 = vrot.lane.b32.xlu0 %v1879, 109
      %v1896 = vpop.permute.xlu0 %1895
      %1897 = vrot.lane.b32.xlu0 %v1880, 109
      %v1898 = vpop.permute.xlu0 %1897
      %1899 = vrot.lane.b32.xlu0 %v1881, 109
      %v1900 = vpop.permute.xlu0 %1899
      %1901 = vrot.lane.b32.xlu0 %v1882, 109
      %v1902 = vpop.permute.xlu0 %1901
      %1903 = vrot.lane.b32.xlu0 %v1883, 109
      %v1904 = vpop.permute.xlu0 %1903
      %1905 = vrot.lane.b32.xlu0 %v1884, 109
      %v1906 = vpop.permute.xlu0 %1905
      %1907 = vrot.lane.b32.xlu0 %v1885, 109
      %v1908 = vpop.permute.xlu0 %1907
      %1909 = vrot.lane.b32.xlu0 %v1886, 109
      %v1910 = vpop.permute.xlu0 %1909
      %v1911 = vsel %vm1416, %v1896, %v1898
      %v1912 = vsel %vm1416, %v1898, %v1900
      %v1913 = vsel %vm1416, %v1900, %v1902
      %v1914 = vsel %vm1416, %v1904, %v1906
      %v1915 = vsel %vm1416, %v1906, %v1908
      %v1916 = vsel %vm1416, %v1908, %v1910
      %v1923 = vadd.f32 %v1865, %v1911
      %v1924 = vadd.f32 %v1866, %v1912
      %v1925 = vadd.f32 %v1867, %v1913
      %v1926 = vadd.f32 %v1868, %v1914
      %v1927 = vadd.f32 %v1869, %v1915
      %v1928 = vadd.f32 %v1870, %v1916
      %1929 = vset.pattern.permute.xlu0 5
      %1930 = vperm.xlu0 %1929, %v1671
      %v1931 = vpop.permute.xlu0 %1930
      %1933 = vset.pattern.permute.xlu0 5
      %1934 = vperm.xlu0 %1933, %v1672
      %v1935 = vpop.permute.xlu0 %1934
      %v1937 = vmul.f32 %v1673, %v1931
      %v1938 = vmul.f32 %v1674, %v1931
      %v1939 = vmul.f32 %v1675, %v1931
      %v1940 = vmul.f32 %v1695, %v1931
      %v1941 = vmul.f32 %v1676, %v1935
      %v1942 = vmul.f32 %v1677, %v1935
      %v1943 = vmul.f32 %v1678, %v1935
      %v1944 = vmul.f32 %v1696, %v1935
      %1953 = vrot.lane.b32.xlu0 %v1937, 108
      %v1954 = vpop.permute.xlu0 %1953
      %1955 = vrot.lane.b32.xlu0 %v1938, 108
      %v1956 = vpop.permute.xlu0 %1955
      %1957 = vrot.lane.b32.xlu0 %v1939, 108
      %v1958 = vpop.permute.xlu0 %1957
      %1959 = vrot.lane.b32.xlu0 %v1940, 108
      %v1960 = vpop.permute.xlu0 %1959
      %1961 = vrot.lane.b32.xlu0 %v1941, 108
      %v1962 = vpop.permute.xlu0 %1961
      %1963 = vrot.lane.b32.xlu0 %v1942, 108
      %v1964 = vpop.permute.xlu0 %1963
      %1965 = vrot.lane.b32.xlu0 %v1943, 108
      %v1966 = vpop.permute.xlu0 %1965
      %1967 = vrot.lane.b32.xlu0 %v1944, 108
      %v1968 = vpop.permute.xlu0 %1967
      %v1969 = vsel %vm1475, %v1954, %v1956
      %v1970 = vsel %vm1475, %v1956, %v1958
      %v1971 = vsel %vm1475, %v1958, %v1960
      %v1972 = vsel %vm1475, %v1962, %v1964
      %v1973 = vsel %vm1475, %v1964, %v1966
      %v1974 = vsel %vm1475, %v1966, %v1968
      %v1981 = vadd.f32 %v1923, %v1969
      %v1982 = vadd.f32 %v1924, %v1970
      %v1983 = vadd.f32 %v1925, %v1971
      %v1984 = vadd.f32 %v1926, %v1972
      %v1985 = vadd.f32 %v1927, %v1973
      %v1986 = vadd.f32 %v1928, %v1974
      %1987 = vset.pattern.permute.xlu0 6
      %1988 = vperm.xlu0 %1987, %v1671
      %v1989 = vpop.permute.xlu0 %1988
      %1991 = vset.pattern.permute.xlu0 6
      %1992 = vperm.xlu0 %1991, %v1672
      %v1993 = vpop.permute.xlu0 %1992
      %v1995 = vmul.f32 %v1673, %v1989
      %v1996 = vmul.f32 %v1674, %v1989
      %v1997 = vmul.f32 %v1675, %v1989
      %v1998 = vmul.f32 %v1695, %v1989
      %v1999 = vmul.f32 %v1676, %v1993
      %v2000 = vmul.f32 %v1677, %v1993
      %v2001 = vmul.f32 %v1678, %v1993
      %v2002 = vmul.f32 %v1696, %v1993
      %2011 = vrot.lane.b32.xlu0 %v1995, 92
      %v2012 = vpop.permute.xlu0 %2011
      %2013 = vrot.lane.b32.xlu0 %v1996, 92
      %v2014 = vpop.permute.xlu0 %2013
      %2015 = vrot.lane.b32.xlu0 %v1997, 92
      %v2016 = vpop.permute.xlu0 %2015
      %2017 = vrot.lane.b32.xlu0 %v1998, 92
      %v2018 = vpop.permute.xlu0 %2017
      %2019 = vrot.lane.b32.xlu0 %v1999, 92
      %v2020 = vpop.permute.xlu0 %2019
      %2021 = vrot.lane.b32.xlu0 %v2000, 92
      %v2022 = vpop.permute.xlu0 %2021
      %2023 = vrot.lane.b32.xlu0 %v2001, 92
      %v2024 = vpop.permute.xlu0 %2023
      %2025 = vrot.lane.b32.xlu0 %v2002, 92
      %v2026 = vpop.permute.xlu0 %2025
      %v2027 = vsel %vm1534, %v2012, %v2014
      %v2028 = vsel %vm1534, %v2014, %v2016
      %v2029 = vsel %vm1534, %v2016, %v2018
      %v2030 = vsel %vm1534, %v2020, %v2022
      %v2031 = vsel %vm1534, %v2022, %v2024
      %v2032 = vsel %vm1534, %v2024, %v2026
      %v2039 = vadd.f32 %v1981, %v2027
      %v2040 = vadd.f32 %v1982, %v2028
      %v2041 = vadd.f32 %v1983, %v2029
      %v2042 = vadd.f32 %v1984, %v2030
      %v2043 = vadd.f32 %v1985, %v2031
      %v2044 = vadd.f32 %v1986, %v2032
      %2045 = vset.pattern.permute.xlu0 7
      %2046 = vperm.xlu0 %2045, %v1671
      %v2047 = vpop.permute.xlu0 %2046
      %2049 = vset.pattern.permute.xlu0 7
      %2050 = vperm.xlu0 %2049, %v1672
      %v2051 = vpop.permute.xlu0 %2050
      %v2053 = vmul.f32 %v1673, %v2047
      %v2054 = vmul.f32 %v1674, %v2047
      %v2055 = vmul.f32 %v1675, %v2047
      %v2056 = vmul.f32 %v1695, %v2047
      %v2057 = vmul.f32 %v1676, %v2051
      %v2058 = vmul.f32 %v1677, %v2051
      %v2059 = vmul.f32 %v1678, %v2051
      %v2060 = vmul.f32 %v1696, %v2051
      %2069 = vrot.lane.b32.xlu0 %v2053, 91
      %v2070 = vpop.permute.xlu0 %2069
      %2071 = vrot.lane.b32.xlu0 %v2054, 91
      %v2072 = vpop.permute.xlu0 %2071
      %2073 = vrot.lane.b32.xlu0 %v2055, 91
      %v2074 = vpop.permute.xlu0 %2073
      %2075 = vrot.lane.b32.xlu0 %v2056, 91
      %v2076 = vpop.permute.xlu0 %2075
      %2077 = vrot.lane.b32.xlu0 %v2057, 91
      %v2078 = vpop.permute.xlu0 %2077
      %2079 = vrot.lane.b32.xlu0 %v2058, 91
      %v2080 = vpop.permute.xlu0 %2079
      %2081 = vrot.lane.b32.xlu0 %v2059, 91
      %v2082 = vpop.permute.xlu0 %2081
      %2083 = vrot.lane.b32.xlu0 %v2060, 91
      %v2084 = vpop.permute.xlu0 %2083
      %v2085 = vsel %vm1593, %v2070, %v2072
      %v2086 = vsel %vm1593, %v2072, %v2074
      %v2087 = vsel %vm1593, %v2074, %v2076
      %v2088 = vsel %vm1593, %v2078, %v2080
      %v2089 = vsel %vm1593, %v2080, %v2082
      %v2090 = vsel %vm1593, %v2082, %v2084
      %v2097 = vadd.f32 %v2039, %v2085
      %v2098 = vadd.f32 %v2040, %v2086
      %v2099 = vadd.f32 %v2041, %v2087
      %v2100 = vadd.f32 %v2042, %v2088
      %v2101 = vadd.f32 %v2043, %v2089
      %v2102 = vadd.f32 %v2044, %v2090
      %2103 = vset.pattern.permute.xlu0 8
      %2104 = vperm.xlu0 %2103, %v1671
      %v2105 = vpop.permute.xlu0 %2104
      %2107 = vset.pattern.permute.xlu0 8
      %2108 = vperm.xlu0 %2107, %v1672
      %v2109 = vpop.permute.xlu0 %2108
      %v2111 = vmul.f32 %v1673, %v2105
      %v2112 = vmul.f32 %v1674, %v2105
      %v2113 = vmul.f32 %v1675, %v2105
      %v2114 = vmul.f32 %v1695, %v2105
      %v2115 = vmul.f32 %v1676, %v2109
      %v2116 = vmul.f32 %v1677, %v2109
      %v2117 = vmul.f32 %v1678, %v2109
      %v2118 = vmul.f32 %v1696, %v2109
      %2127 = vrot.lane.b32.xlu0 %v2111, 90
      %v2128 = vpop.permute.xlu0 %2127
      %2129 = vrot.lane.b32.xlu0 %v2112, 90
      %v2130 = vpop.permute.xlu0 %2129
      %2131 = vrot.lane.b32.xlu0 %v2113, 90
      %v2132 = vpop.permute.xlu0 %2131
      %2133 = vrot.lane.b32.xlu0 %v2114, 90
      %v2134 = vpop.permute.xlu0 %2133
      %2135 = vrot.lane.b32.xlu0 %v2115, 90
      %v2136 = vpop.permute.xlu0 %2135
      %2137 = vrot.lane.b32.xlu0 %v2116, 90
      %v2138 = vpop.permute.xlu0 %2137
      %2139 = vrot.lane.b32.xlu0 %v2117, 90
      %v2140 = vpop.permute.xlu0 %2139
      %2141 = vrot.lane.b32.xlu0 %v2118, 90
      %v2142 = vpop.permute.xlu0 %2141
      %v2143 = vsel %vm1652, %v2128, %v2130
      %v2144 = vsel %vm1652, %v2130, %v2132
      %v2145 = vsel %vm1652, %v2132, %v2134
      %v2146 = vsel %vm1652, %v2136, %v2138
      %v2147 = vsel %vm1652, %v2138, %v2140
      %v2148 = vsel %vm1652, %v2140, %v2142
      %v2155 = vadd.f32 %v2097, %v2143
      %v2156 = vadd.f32 %v2098, %v2144
      %v2157 = vadd.f32 %v2099, %v2145
      %v2158 = vadd.f32 %v2100, %v2146
      %v2159 = vadd.f32 %v2101, %v2147
      %v2160 = vadd.f32 %v2102, %v2148
      %v2161 = vld [vmem:[%s9] sm:$0xf]
      %v2162 = vld [vmem:[%s9 + $0x4] sm:$0xf]
      %v2163 = vpack.c.bf16 %v1668, %v1665
      %v2164 = vpack.c.bf16 %v1669, %v1666
      %v2165 = vpack.c.bf16 %v1670, %v1667
      %v2168 = vunpack.c.l.b16 %v2161
      %v2169 = vunpack.c.l.b16 %v2162
      %v2170 = vpack.c.b16 %v2169, %v2168
      %vm2171 = vcmask 130048
      %v2173 = vsel %vm2171, %v2170, 0
      %2175 = vmatprep.subr.bf16.mxu0 %v2164
      %2176 = vmatpush1.bf16.msra.mxu0 %v2163
      %2177 = vmatprep.subr.bf16.mxu0 0
      %2178 = vmatpush1.bf16.msra.mxu0 0
      %2179 = vmatprep.subr.bf16.mxu0 0
      %2180 = vmatpush1.bf16.msra.mxu0 0
      %2181 = vmatprep.subr.bf16.mxu0 0
      %2182 = vmatpush1.bf16.msra.mxu0 0
      %2183 = vmatprep.subr.bf16.mxu0 0
      %2184 = vmatpush1.bf16.msra.mxu0 0
      %2185 = vmatprep.subr.bf16.mxu0 0
      %2186 = vmatpush1.bf16.msra.mxu0 0
      %2187 = vmatprep.subr.bf16.mxu0 0
      %2188 = vmatpush1.bf16.msra.mxu0 0
      %2189 = vmatprep.subr.bf16.mxu0 0
      %2190 = vmatpush1.bf16.msra.mxu0 0
      %2191 = vmatprep.subr.bf16.mxu0 0
      %2192 = vmatpush1.bf16.msra.mxu0 0
      %2193 = vmatprep.subr.bf16.mxu0 0
      %2194 = vmatpush1.bf16.msra.mxu0 0
      %2195 = vmatprep.subr.bf16.mxu0 0
      %2196 = vmatpush1.bf16.msra.mxu0 0
      %2197 = vmatprep.subr.bf16.mxu0 0
      %2198 = vmatpush1.bf16.msra.mxu0 0
      %2199 = vmatprep.subr.bf16.mxu0 0
      %2200 = vmatpush1.bf16.msra.mxu0 0
      %2201 = vmatprep.subr.bf16.mxu0 0
      %2202 = vmatpush1.bf16.msra.mxu0 0
      %2203 = vmatprep.subr.bf16.mxu0 0
      %2204 = vmatpush1.bf16.msra.mxu0 0
      %2205 = vmatprep.subr.bf16.mxu0 0
      %2206 = vmatpush1.bf16.msra.mxu0 0
      %2207 = vmatprep.mubr.bf16.mxu0 0
      %2208 = vmatmul.mubr.bf16.gmra.mrb[0].mxu0 %v2173
      %v2209 = vpop.f32.mrb[0].mxu0
      %v2210 = vadd.f32 0.0, %v2209
      %v2211 = vpop.f32.mrb[0].mxu0
      %v2212 = vadd.f32 0.0, %v2211
      %v2213 = vpop.f32.mrb[0].mxu0
      %v2214 = vadd.f32 0.0, %v2213
      %v2215 = vpop.f32.mrb[0].mxu0
      %v2216 = vadd.f32 0.0, %v2215
      %2217 = vdwg.mxu0
      %2218 = vmatprep.subr.bf16.mxu0 0
      %2219 = vmatpush1.bf16.msra.mxu0 %v2165
      %2220 = vmatprep.subr.bf16.mxu0 0
      %2221 = vmatpush1.bf16.msra.mxu0 0
      %2222 = vmatprep.subr.bf16.mxu0 0
      %2223 = vmatpush1.bf16.msra.mxu0 0
      %2224 = vmatprep.subr.bf16.mxu0 0
      %2225 = vmatpush1.bf16.msra.mxu0 0
      %2226 = vmatprep.subr.bf16.mxu0 0
      %2227 = vmatpush1.bf16.msra.mxu0 0
      %2228 = vmatprep.subr.bf16.mxu0 0
      %2229 = vmatpush1.bf16.msra.mxu0 0
      %2230 = vmatprep.subr.bf16.mxu0 0
      %2231 = vmatpush1.bf16.msra.mxu0 0
      %2232 = vmatprep.subr.bf16.mxu0 0
      %2233 = vmatpush1.bf16.msra.mxu0 0
      %2234 = vmatprep.subr.bf16.mxu0 0
      %2235 = vmatpush1.bf16.msra.mxu0 0
      %2236 = vmatprep.subr.bf16.mxu0 0
      %2237 = vmatpush1.bf16.msra.mxu0 0
      %2238 = vmatprep.subr.bf16.mxu0 0
      %2239 = vmatpush1.bf16.msra.mxu0 0
      %2240 = vmatprep.subr.bf16.mxu0 0
      %2241 = vmatpush1.bf16.msra.mxu0 0
      %2242 = vmatprep.subr.bf16.mxu0 0
      %2243 = vmatpush1.bf16.msra.mxu0 0
      %2244 = vmatprep.subr.bf16.mxu0 0
      %2245 = vmatpush1.bf16.msra.mxu0 0
      %2246 = vmatprep.subr.bf16.mxu0 0
      %2247 = vmatpush1.bf16.msra.mxu0 0
      %2248 = vmatprep.subr.bf16.mxu0 0
      %2249 = vmatpush1.bf16.msra.mxu0 0
      %2250 = vmatprep.mubr.bf16.mxu0 0
      %2251 = vmatmul.mubr.bf16.gmra.mrb[0].mxu0 %v2173
      %v2252 = vpop.f32.mrb[0].mxu0
      %v2253 = vadd.f32 0.0, %v2252
      %v2254 = vpop.f32.mrb[0].mxu0
      %v2255 = vpop.f32.mrb[0].mxu0
      %v2256 = vadd.f32 0.0, %v2255
      %v2257 = vpop.f32.mrb[0].mxu0
      %2258 = vdwg.mxu0
      %v2259 = vld [vmem:[%s11] sm:$0xff]
      %v2260 = vld [vmem:[%s11 + $0x8] sm:$0xff]
      %2262 = vset.pattern.permute.xlu0 0
      %2263 = vperm.xlu0 %2262, %v2259
      %v2264 = vpop.permute.xlu0 %2263
      %2267 = vset.pattern.permute.xlu0 0
      %2268 = vperm.xlu0 %2267, %v2260
      %v2269 = vpop.permute.xlu0 %2268
      %v2271 = vmul.f32 %v2210, %v2264
      %v2272 = vmul.f32 %v2212, %v2264
      %v2273 = vmul.f32 %v2253, %v2264
      %v2274 = vmul.f32 %v2214, %v2269
      %v2275 = vmul.f32 %v2216, %v2269
      %v2276 = vmul.f32 %v2256, %v2269
      %v2277 = vld [vmem:[%s13] sm:$0xff]
      %v2278 = vld [vmem:[%s13 + $0x8] sm:$0xff]
      %2280 = vset.pattern.permute.xlu0 0
      %2281 = vperm.xlu0 %2280, %v2277
      %v2282 = vpop.permute.xlu0 %2281
      %2285 = vset.pattern.permute.xlu0 0
      %2286 = vperm.xlu0 %2285, %v2278
      %v2287 = vpop.permute.xlu0 %2286
      %v2289 = vadd.f32 %v2271, %v2282
      %v2290 = vadd.f32 %v2272, %v2282
      %v2291 = vadd.f32 %v2273, %v2282
      %v2292 = vadd.f32 %v2274, %v2287
      %v2293 = vadd.f32 %v2275, %v2287
      %v2294 = vadd.f32 %v2276, %v2287
      %v2295 = vmax.f32 %v2289, 0.0
      %v2296 = vmax.f32 %v2290, 0.0
      %v2297 = vmax.f32 %v2291, 0.0
      %v2298 = vmax.f32 %v2292, 0.0
      %v2299 = vmax.f32 %v2293, 0.0
      %v2300 = vmax.f32 %v2294, 0.0
      %v2301 = vld [vmem:[%s17] sm:$0xf]
      %v2302 = vld [vmem:[%s17 + $0x4] sm:$0xf]
      %v2303 = vpack.c.bf16 %v2158, %v2155
      %v2304 = vpack.c.bf16 %v2159, %v2156
      %v2305 = vpack.c.bf16 %v2160, %v2157
      %v2308 = vunpack.c.l.b16 %v2301
      %v2309 = vunpack.c.l.b16 %v2302
      %v2310 = vpack.c.b16 %v2309, %v2308
      %v2312 = vsel %vm2171, %v2310, 0
      %2314 = vmatprep.subr.bf16.mxu0 %v2304
      %2315 = vmatpush1.bf16.msra.mxu0 %v2303
      %2316 = vmatprep.subr.bf16.mxu0 0
      %2317 = vmatpush1.bf16.msra.mxu0 0
      %2318 = vmatprep.subr.bf16.mxu0 0
      %2319 = vmatpush1.bf16.msra.mxu0 0
      %2320 = vmatprep.subr.bf16.mxu0 0
      %2321 = vmatpush1.bf16.msra.mxu0 0
      %2322 = vmatprep.subr.bf16.mxu0 0
      %2323 = vmatpush1.bf16.msra.mxu0 0
      %2324 = vmatprep.subr.bf16.mxu0 0
      %2325 = vmatpush1.bf16.msra.mxu0 0
      %2326 = vmatprep.subr.bf16.mxu0 0
      %2327 = vmatpush1.bf16.msra.mxu0 0
      %2328 = vmatprep.subr.bf16.mxu0 0
      %2329 = vmatpush1.bf16.msra.mxu0 0
      %2330 = vmatprep.subr.bf16.mxu0 0
      %2331 = vmatpush1.bf16.msra.mxu0 0
      %2332 = vmatprep.subr.bf16.mxu0 0
      %2333 = vmatpush1.bf16.msra.mxu0 0
      %2334 = vmatprep.subr.bf16.mxu0 0
      %2335 = vmatpush1.bf16.msra.mxu0 0
      %2336 = vmatprep.subr.bf16.mxu0 0
      %2337 = vmatpush1.bf16.msra.mxu0 0
      %2338 = vmatprep.subr.bf16.mxu0 0
      %2339 = vmatpush1.bf16.msra.mxu0 0
      %2340 = vmatprep.subr.bf16.mxu0 0
      %2341 = vmatpush1.bf16.msra.mxu0 0
      %2342 = vmatprep.subr.bf16.mxu0 0
      %2343 = vmatpush1.bf16.msra.mxu0 0
      %2344 = vmatprep.subr.bf16.mxu0 0
      %2345 = vmatpush1.bf16.msra.mxu0 0
      %2346 = vmatprep.mubr.bf16.mxu0 0
      %2347 = vmatmul.mubr.bf16.gmra.mrb[0].mxu0 %v2312
      %v2348 = vpop.f32.mrb[0].mxu0
      %v2349 = vadd.f32 0.0, %v2348
      %v2350 = vpop.f32.mrb[0].mxu0
      %v2351 = vadd.f32 0.0, %v2350
      %v2352 = vpop.f32.mrb[0].mxu0
      %v2353 = vadd.f32 0.0, %v2352
      %v2354 = vpop.f32.mrb[0].mxu0
      %v2355 = vadd.f32 0.0, %v2354
      %2356 = vdwg.mxu0
      %2357 = vmatprep.subr.bf16.mxu0 0
      %2358 = vmatpush1.bf16.msra.mxu0 %v2305
      %2359 = vmatprep.subr.bf16.mxu0 0
      %2360 = vmatpush1.bf16.msra.mxu0 0
      %2361 = vmatprep.subr.bf16.mxu0 0
      %2362 = vmatpush1.bf16.msra.mxu0 0
      %2363 = vmatprep.subr.bf16.mxu0 0
      %2364 = vmatpush1.bf16.msra.mxu0 0
      %2365 = vmatprep.subr.bf16.mxu0 0
      %2366 = vmatpush1.bf16.msra.mxu0 0
      %2367 = vmatprep.subr.bf16.mxu0 0
      %2368 = vmatpush1.bf16.msra.mxu0 0
      %2369 = vmatprep.subr.bf16.mxu0 0
      %2370 = vmatpush1.bf16.msra.mxu0 0
      %2371 = vmatprep.subr.bf16.mxu0 0
      %2372 = vmatpush1.bf16.msra.mxu0 0
      %2373 = vmatprep.subr.bf16.mxu0 0
      %2374 = vmatpush1.bf16.msra.mxu0 0
      %2375 = vmatprep.subr.bf16.mxu0 0
      %2376 = vmatpush1.bf16.msra.mxu0 0
      %2377 = vmatprep.subr.bf16.mxu0 0
      %2378 = vmatpush1.bf16.msra.mxu0 0
      %2379 = vmatprep.subr.bf16.mxu0 0
      %2380 = vmatpush1.bf16.msra.mxu0 0
      %2381 = vmatprep.subr.bf16.mxu0 0
      %2382 = vmatpush1.bf16.msra.mxu0 0
      %2383 = vmatprep.subr.bf16.mxu0 0
      %2384 = vmatpush1.bf16.msra.mxu0 0
      %2385 = vmatprep.subr.bf16.mxu0 0
      %2386 = vmatpush1.bf16.msra.mxu0 0
      %2387 = vmatprep.subr.bf16.mxu0 0
      %2388 = vmatpush1.bf16.msra.mxu0 0
      %2389 = vmatprep.mubr.bf16.mxu0 0
      %2390 = vmatmul.mubr.bf16.gmra.mrb[0].mxu0 %v2312
      %v2391 = vpop.f32.mrb[0].mxu0
      %v2392 = vadd.f32 0.0, %v2391
      %v2393 = vpop.f32.mrb[0].mxu0
      %v2394 = vpop.f32.mrb[0].mxu0
      %v2395 = vadd.f32 0.0, %v2394
      %v2396 = vpop.f32.mrb[0].mxu0
      %2397 = vdwg.mxu0
      %v2398 = vld [vmem:[%s19] sm:$0xff]
      %v2399 = vld [vmem:[%s19 + $0x8] sm:$0xff]
      %2401 = vset.pattern.permute.xlu0 0
      %2402 = vperm.xlu0 %2401, %v2398
      %v2403 = vpop.permute.xlu0 %2402
      %2406 = vset.pattern.permute.xlu0 0
      %2407 = vperm.xlu0 %2406, %v2399
      %v2408 = vpop.permute.xlu0 %2407
      %v2410 = vmul.f32 %v2349, %v2403
      %v2411 = vmul.f32 %v2351, %v2403
      %v2412 = vmul.f32 %v2392, %v2403
      %v2413 = vmul.f32 %v2353, %v2408
      %v2414 = vmul.f32 %v2355, %v2408
      %v2415 = vmul.f32 %v2395, %v2408
      %v2416 = vld [vmem:[%s21] sm:$0xff]
      %v2417 = vld [vmem:[%s21 + $0x8] sm:$0xff]
      %2419 = vset.pattern.permute.xlu0 0
      %2420 = vperm.xlu0 %2419, %v2416
      %v2421 = vpop.permute.xlu0 %2420
      %2424 = vset.pattern.permute.xlu0 0
      %2425 = vperm.xlu0 %2424, %v2417
      %v2426 = vpop.permute.xlu0 %2425
      %v2428 = vadd.f32 %v2410, %v2421
      %v2429 = vadd.f32 %v2411, %v2421
      %v2430 = vadd.f32 %v2412, %v2421
      %v2431 = vadd.f32 %v2413, %v2426
      %v2432 = vadd.f32 %v2414, %v2426
      %v2433 = vadd.f32 %v2415, %v2426
      %v2434 = vmax.f32 %v2428, 0.0
      %v2435 = vmax.f32 %v2429, 0.0
      %v2436 = vmax.f32 %v2430, 0.0
      %v2437 = vmax.f32 %v2431, 0.0
      %v2438 = vmax.f32 %v2432, 0.0
      %v2439 = vmax.f32 %v2433, 0.0
      %v2440 = vadd.f32 %v2295, %v2434
      %v2441 = vadd.f32 %v2296, %v2435
      %v2442 = vadd.f32 %v2297, %v2436
      %v2443 = vadd.f32 %v2298, %v2437
      %v2444 = vadd.f32 %v2299, %v2438
      %v2445 = vadd.f32 %v2300, %v2439
      %v2446 = vld [vmem:[%s23] sm:$0xf]
      %v2447 = vld [vmem:[%s23 + $0x4] sm:$0xf]
      %v2448 = vpack.c.bf16 %v2443, %v2440
      %v2449 = vpack.c.bf16 %v2444, %v2441
      %v2450 = vpack.c.bf16 %v2445, %v2442
      %v2453 = vunpack.c.l.b16 %v2446
      %v2454 = vunpack.c.l.b16 %v2447
      %v2455 = vpack.c.b16 %v2454, %v2453
      %v2457 = vsel %vm2171, %v2455, 0
      %2459 = vmatprep.subr.bf16.mxu0 %v2449
      %2460 = vmatpush1.bf16.msra.mxu0 %v2448
      %2461 = vmatprep.subr.bf16.mxu0 0
      %2462 = vmatpush1.bf16.msra.mxu0 0
      %2463 = vmatprep.subr.bf16.mxu0 0
      %2464 = vmatpush1.bf16.msra.mxu0 0
      %2465 = vmatprep.subr.bf16.mxu0 0
      %2466 = vmatpush1.bf16.msra.mxu0 0
      %2467 = vmatprep.subr.bf16.mxu0 0
      %2468 = vmatpush1.bf16.msra.mxu0 0
      %2469 = vmatprep.subr.bf16.mxu0 0
      %2470 = vmatpush1.bf16.msra.mxu0 0
      %2471 = vmatprep.subr.bf16.mxu0 0
      %2472 = vmatpush1.bf16.msra.mxu0 0
      %2473 = vmatprep.subr.bf16.mxu0 0
      %2474 = vmatpush1.bf16.msra.mxu0 0
      %2475 = vmatprep.subr.bf16.mxu0 0
      %2476 = vmatpush1.bf16.msra.mxu0 0
      %2477 = vmatprep.subr.bf16.mxu0 0
      %2478 = vmatpush1.bf16.msra.mxu0 0
      %2479 = vmatprep.subr.bf16.mxu0 0
      %2480 = vmatpush1.bf16.msra.mxu0 0
      %2481 = vmatprep.subr.bf16.mxu0 0
      %2482 = vmatpush1.bf16.msra.mxu0 0
      %2483 = vmatprep.subr.bf16.mxu0 0
      %2484 = vmatpush1.bf16.msra.mxu0 0
      %2485 = vmatprep.subr.bf16.mxu0 0
      %2486 = vmatpush1.bf16.msra.mxu0 0
      %2487 = vmatprep.subr.bf16.mxu0 0
      %2488 = vmatpush1.bf16.msra.mxu0 0
      %2489 = vmatprep.subr.bf16.mxu0 0
      %2490 = vmatpush1.bf16.msra.mxu0 0
      %2491 = vmatprep.mubr.bf16.mxu0 0
      %2492 = vmatmul.mubr.bf16.gmra.mrb[0].mxu0 %v2457
      %v2493 = vpop.f32.mrb[0].mxu0
      %v2494 = vadd.f32 0.0, %v2493
      %v2495 = vpop.f32.mrb[0].mxu0
      %v2496 = vadd.f32 0.0, %v2495
      %v2497 = vpop.f32.mrb[0].mxu0
      %v2498 = vadd.f32 0.0, %v2497
      %v2499 = vpop.f32.mrb[0].mxu0
      %v2500 = vadd.f32 0.0, %v2499
      %2501 = vdwg.mxu0
      %2502 = vmatprep.subr.bf16.mxu0 0
      %2503 = vmatpush1.bf16.msra.mxu0 %v2450
      %2504 = vmatprep.subr.bf16.mxu0 0
      %2505 = vmatpush1.bf16.msra.mxu0 0
      %2506 = vmatprep.subr.bf16.mxu0 0
      %2507 = vmatpush1.bf16.msra.mxu0 0
      %2508 = vmatprep.subr.bf16.mxu0 0
      %2509 = vmatpush1.bf16.msra.mxu0 0
      %2510 = vmatprep.subr.bf16.mxu0 0
      %2511 = vmatpush1.bf16.msra.mxu0 0
      %2512 = vmatprep.subr.bf16.mxu0 0
      %2513 = vmatpush1.bf16.msra.mxu0 0
      %2514 = vmatprep.subr.bf16.mxu0 0
      %2515 = vmatpush1.bf16.msra.mxu0 0
      %2516 = vmatprep.subr.bf16.mxu0 0
      %2517 = vmatpush1.bf16.msra.mxu0 0
      %2518 = vmatprep.subr.bf16.mxu0 0
      %2519 = vmatpush1.bf16.msra.mxu0 0
      %2520 = vmatprep.subr.bf16.mxu0 0
      %2521 = vmatpush1.bf16.msra.mxu0 0
      %2522 = vmatprep.subr.bf16.mxu0 0
      %2523 = vmatpush1.bf16.msra.mxu0 0
      %2524 = vmatprep.subr.bf16.mxu0 0
      %2525 = vmatpush1.bf16.msra.mxu0 0
      %2526 = vmatprep.subr.bf16.mxu0 0
      %2527 = vmatpush1.bf16.msra.mxu0 0
      %2528 = vmatprep.subr.bf16.mxu0 0
      %2529 = vmatpush1.bf16.msra.mxu0 0
      %2530 = vmatprep.subr.bf16.mxu0 0
      %2531 = vmatpush1.bf16.msra.mxu0 0
      %2532 = vmatprep.subr.bf16.mxu0 0
      %2533 = vmatpush1.bf16.msra.mxu0 0
      %2534 = vmatprep.mubr.bf16.mxu0 0
      %2535 = vmatmul.mubr.bf16.gmra.mrb[0].mxu0 %v2457
      %v2536 = vpop.f32.mrb[0].mxu0
      %v2537 = vadd.f32 0.0, %v2536
      %v2538 = vpop.f32.mrb[0].mxu0
      %v2539 = vpop.f32.mrb[0].mxu0
      %v2540 = vadd.f32 0.0, %v2539
      %v2541 = vpop.f32.mrb[0].mxu0
      %2542 = vdwg.mxu0
      %v2543 = vld [vmem:[%s25] sm:$0xff]
      %v2544 = vld [vmem:[%s25 + $0x8] sm:$0xff]
      %2546 = vset.pattern.permute.xlu0 0
      %2547 = vperm.xlu0 %2546, %v2543
      %v2548 = vpop.permute.xlu0 %2547
      %2551 = vset.pattern.permute.xlu0 0
      %2552 = vperm.xlu0 %2551, %v2544
      %v2553 = vpop.permute.xlu0 %2552
      %v2555 = vmul.f32 %v2494, %v2548
      %v2556 = vmul.f32 %v2496, %v2548
      %v2557 = vmul.f32 %v2537, %v2548
      %v2558 = vmul.f32 %v2498, %v2553
      %v2559 = vmul.f32 %v2500, %v2553
      %v2560 = vmul.f32 %v2540, %v2553
      %v2561 = vld [vmem:[%s27] sm:$0xff]
      %v2562 = vld [vmem:[%s27 + $0x8] sm:$0xff]
      %2564 = vset.pattern.permute.xlu0 0
      %2565 = vperm.xlu0 %2564, %v2561
      %v2566 = vpop.permute.xlu0 %2565
      %2569 = vset.pattern.permute.xlu0 0
      %2570 = vperm.xlu0 %2569, %v2562
      %v2571 = vpop.permute.xlu0 %2570
      %v2573 = vadd.f32 %v2555, %v2566
      %v2574 = vadd.f32 %v2556, %v2566
      %v2575 = vadd.f32 %v2557, %v2566
      %v2576 = vadd.f32 %v2558, %v2571
      %v2577 = vadd.f32 %v2559, %v2571
      %v2578 = vadd.f32 %v2560, %v2571
      %v2579 = vmax.f32 %v2573, 0.0
      %v2580 = vmax.f32 %v2574, 0.0
      %v2581 = vmax.f32 %v2575, 0.0
      %v2582 = vmax.f32 %v2576, 0.0
      %v2583 = vmax.f32 %v2577, 0.0
      %v2584 = vmax.f32 %v2578, 0.0
      %v2585 = vld [vmem:[%s29] sm:$0x1]
      %v2587 = vsel %vm2171, %v2585, 0
      %2589 = vmatprep.subr.mxu0 %v2580
      %2590 = vmatpush1.msra.mxu0 %v2579
      %2591 = vmatprep.subr.mxu0 %v2583
      %2592 = vmatpush1.msra.mxu0 %v2582
      %2593 = vmatprep.subr.mxu0 0.0
      %2594 = vmatpush1.msra.mxu0 0.0
      %2595 = vmatprep.subr.mxu0 0.0
      %2596 = vmatpush1.msra.mxu0 0.0
      %2597 = vmatprep.subr.mxu0 0.0
      %2598 = vmatpush1.msra.mxu0 0.0
      %2599 = vmatprep.subr.mxu0 0.0
      %2600 = vmatpush1.msra.mxu0 0.0
      %2601 = vmatprep.subr.mxu0 0.0
      %2602 = vmatpush1.msra.mxu0 0.0
      %2603 = vmatprep.subr.mxu0 0.0
      %2604 = vmatpush1.msra.mxu0 0.0
      %2605 = vmatprep.subr.mxu0 0.0
      %2606 = vmatpush1.msra.mxu0 0.0
      %2607 = vmatprep.subr.mxu0 0.0
      %2608 = vmatpush1.msra.mxu0 0.0
      %2609 = vmatprep.subr.mxu0 0.0
      %2610 = vmatpush1.msra.mxu0 0.0
      %2611 = vmatprep.subr.mxu0 0.0
      %2612 = vmatpush1.msra.mxu0 0.0
      %2613 = vmatprep.subr.mxu0 0.0
      %2614 = vmatpush1.msra.mxu0 0.0
      %2615 = vmatprep.subr.mxu0 0.0
      %2616 = vmatpush1.msra.mxu0 0.0
      %2617 = vmatprep.subr.mxu0 0.0
      %2618 = vmatpush1.msra.mxu0 0.0
      %2619 = vmatprep.subr.mxu0 0.0
      %2620 = vmatpush1.msra.mxu0 0.0
      %2621 = vmatprep.subr.mxu0 0.0
      %2622 = vmatpush1.msra.mxu0 0.0
      %2623 = vmatprep.subr.mxu0 0.0
      %2624 = vmatpush1.msra.mxu0 0.0
      %2625 = vmatprep.subr.mxu0 0.0
      %2626 = vmatpush1.msra.mxu0 0.0
      %2627 = vmatprep.subr.mxu0 0.0
      %2628 = vmatpush1.msra.mxu0 0.0
      %2629 = vmatprep.subr.mxu0 0.0
      %2630 = vmatpush1.msra.mxu0 0.0
      %2631 = vmatprep.subr.mxu0 0.0
      %2632 = vmatpush1.msra.mxu0 0.0
      %2633 = vmatprep.subr.mxu0 0.0
      %2634 = vmatpush1.msra.mxu0 0.0
      %2635 = vmatprep.subr.mxu0 0.0
      %2636 = vmatpush1.msra.mxu0 0.0
      %2637 = vmatprep.subr.mxu0 0.0
      %2638 = vmatpush1.msra.mxu0 0.0
      %2639 = vmatprep.subr.mxu0 0.0
      %2640 = vmatpush1.msra.mxu0 0.0
      %2641 = vmatprep.subr.mxu0 0.0
      %2642 = vmatpush1.msra.mxu0 0.0
      %2643 = vmatprep.subr.mxu0 0.0
      %2644 = vmatpush1.msra.mxu0 0.0
      %2645 = vmatprep.subr.mxu0 0.0
      %2646 = vmatpush1.msra.mxu0 0.0
      %2647 = vmatprep.subr.mxu0 0.0
      %2648 = vmatpush1.msra.mxu0 0.0
      %2649 = vmatprep.subr.mxu0 0.0
      %2650 = vmatpush1.msra.mxu0 0.0
      %2651 = vmatprep.subr.mxu0 0.0
      %2652 = vmatpush1.msra.mxu0 0.0
      %2653 = vmatprep.mubr.f32.mxu0 0.0
      %2654 = vmatmul.mubr.f32.gmra.mrb[0].mxu0 %v2587
      %v2655 = vpop.f32.mrb[0].mxu0
      %v2656 = vadd.f32 0.0, %v2655
      %v2657 = vpop.f32.mrb[0].mxu0
      %v2658 = vadd.f32 0.0, %v2657
      %2659 = vdwg.mxu0
      %2660 = vmatprep.subr.mxu0 0.0
      %2661 = vmatpush1.msra.mxu0 %v2581
      %2662 = vmatprep.subr.mxu0 0.0
      %2663 = vmatpush1.msra.mxu0 %v2584
      %2664 = vmatprep.subr.mxu0 0.0
      %2665 = vmatpush1.msra.mxu0 0.0
      %2666 = vmatprep.subr.mxu0 0.0
      %2667 = vmatpush1.msra.mxu0 0.0
      %2668 = vmatprep.subr.mxu0 0.0
      %2669 = vmatpush1.msra.mxu0 0.0
      %2670 = vmatprep.subr.mxu0 0.0
      %2671 = vmatpush1.msra.mxu0 0.0
      %2672 = vmatprep.subr.mxu0 0.0
      %2673 = vmatpush1.msra.mxu0 0.0
      %2674 = vmatprep.subr.mxu0 0.0
      %2675 = vmatpush1.msra.mxu0 0.0
      %2676 = vmatprep.subr.mxu0 0.0
      %2677 = vmatpush1.msra.mxu0 0.0
      %2678 = vmatprep.subr.mxu0 0.0
      %2679 = vmatpush1.msra.mxu0 0.0
      %2680 = vmatprep.subr.mxu0 0.0
      %2681 = vmatpush1.msra.mxu0 0.0
      %2682 = vmatprep.subr.mxu0 0.0
      %2683 = vmatpush1.msra.mxu0 0.0
      %2684 = vmatprep.subr.mxu0 0.0
      %2685 = vmatpush1.msra.mxu0 0.0
      %2686 = vmatprep.subr.mxu0 0.0
      %2687 = vmatpush1.msra.mxu0 0.0
      %2688 = vmatprep.subr.mxu0 0.0
      %2689 = vmatpush1.msra.mxu0 0.0
      %2690 = vmatprep.subr.mxu0 0.0
      %2691 = vmatpush1.msra.mxu0 0.0
      %2692 = vmatprep.subr.mxu0 0.0
      %2693 = vmatpush1.msra.mxu0 0.0
      %2694 = vmatprep.subr.mxu0 0.0
      %2695 = vmatpush1.msra.mxu0 0.0
      %2696 = vmatprep.subr.mxu0 0.0
      %2697 = vmatpush1.msra.mxu0 0.0
      %2698 = vmatprep.subr.mxu0 0.0
      %2699 = vmatpush1.msra.mxu0 0.0
      %2700 = vmatprep.subr.mxu0 0.0
      %2701 = vmatpush1.msra.mxu0 0.0
      %2702 = vmatprep.subr.mxu0 0.0
      %2703 = vmatpush1.msra.mxu0 0.0
      %2704 = vmatprep.subr.mxu0 0.0
      %2705 = vmatpush1.msra.mxu0 0.0
      %2706 = vmatprep.subr.mxu0 0.0
      %2707 = vmatpush1.msra.mxu0 0.0
      %2708 = vmatprep.subr.mxu0 0.0
      %2709 = vmatpush1.msra.mxu0 0.0
      %2710 = vmatprep.subr.mxu0 0.0
      %2711 = vmatpush1.msra.mxu0 0.0
      %2712 = vmatprep.subr.mxu0 0.0
      %2713 = vmatpush1.msra.mxu0 0.0
      %2714 = vmatprep.subr.mxu0 0.0
      %2715 = vmatpush1.msra.mxu0 0.0
      %2716 = vmatprep.subr.mxu0 0.0
      %2717 = vmatpush1.msra.mxu0 0.0
      %2718 = vmatprep.subr.mxu0 0.0
      %2719 = vmatpush1.msra.mxu0 0.0
      %2720 = vmatprep.subr.mxu0 0.0
      %2721 = vmatpush1.msra.mxu0 0.0
      %2722 = vmatprep.subr.mxu0 0.0
      %2723 = vmatpush1.msra.mxu0 0.0
      %2724 = vmatprep.mubr.f32.mxu0 0.0
      %2725 = vmatmul.mubr.f32.gmra.mrb[0].mxu0 %v2587
      %v2726 = vpop.f32.mrb[0].mxu0
      %v2727 = vadd.f32 0.0, %v2726
      %v2728 = vpop.f32.mrb[0].mxu0
      %2729 = vdwg.mxu0
      %v2730 = vxor.u32 %v2656, 2147483648
      %v2731 = vxor.u32 %v2658, 2147483648
      %v2732 = vxor.u32 %v2727, 2147483648
      %v2733 = vmul.f32 %v2730, 1.442695
      %v2734 = vpow.pop %v2733
      %v2735 = vmul.f32 %v2731, 1.442695
      %v2736 = vpow.pop %v2735
      %v2737 = vmul.f32 %v2732, 1.442695
      %v2738 = vpow.pop %v2737
      %v2739 = vadd.f32 %v2734, 1.0
      %v2740 = vadd.f32 %v2736, 1.0
      %v2741 = vadd.f32 %v2738, 1.0
      %v2742 = vrcp.pop %v2739
      %v2743 = vmul.f32 1.0, %v2742
      %v2744 = vrcp.pop %v2740
      %v2745 = vmul.f32 1.0, %v2744
      %v2746 = vrcp.pop %v2741
      %v2747 = vmul.f32 1.0, %v2746
      %v2751 = vcombine.low %v2743, %v2745
      %v2753 = vunpack.c.l.s4 1966171168
      %v2754 = vunpack.c.0.s8 %v2753
      %v2755 = vlaneseq
      %v2756 = vshrl.u32 %v2755, 7
      %v2757 = vsub.s32 %v2754, %v2756
      %v2758 = vrot.slane %v2751, %v2757
      %v2760 = vunpack.c.l.s4 1966171168
      %v2761 = vunpack.c.0.s8 %v2760
      %v2762 = vlaneseq
      %v2763 = vshrl.u32 %v2762, 7
      %v2764 = vsub.s32 %v2761, %v2763
      %v2765 = vrot.slane %v2747, %v2764
      %v2766 = vcombine.low %v2758, %v2765
      %v2768 = vunpack.c.l.s4 1966171168
      %v2769 = vunpack.c.0.s8 %v2768
      %v2770 = vlaneseq
      %v2771 = vshrl.u32 %v2770, 7
      %v2772 = vsub.s32 %v2769, %v2771
      %v2773 = vrot.slane %v2766, %v2772
      %v2775 = vlaneseq
      %vm2776 = vcmp.ge.s32.totalorder %v2775, 0
      %vm2777 = vcmp.lt.s32.totalorder %v2775, 384
      %vm2778 = vmand %vm2776, %vm2777
      %2779 = vst.msk [vmem:[%s987] sm:$0x7] %vm2778, %v2773
      %v2780 = vlaneseq
      %v2781 = vshrl.u32 %v2780, 7
      %v2782 = vsub.s32 0, %v2781
      %v2783 = vrot.slane %v2743, %v2782
      %v2784 = vlaneseq
      %v2785 = vshrl.u32 %v2784, 7
      %v2786 = vsub.s32 0, %v2785
      %v2787 = vrot.slane %v2745, %v2786
      %v2788 = vlaneseq
      %v2789 = vshrl.u32 %v2788, 7
      %v2790 = vsub.s32 0, %v2789
      %v2791 = vrot.slane %v2747, %v2790
      %v2792 = vmul.f32 %v2295, %v2783
      %v2793 = vmul.f32 %v2296, %v2787
      %v2794 = vmul.f32 %v2297, %v2791
      %v2795 = vmul.f32 %v2298, %v2783
      %v2796 = vmul.f32 %v2299, %v2787
      %v2797 = vmul.f32 %v2300, %v2791
      %v2798 = vsub.f32 1.0, %v2743
      %v2799 = vsub.f32 1.0, %v2745
      %v2800 = vsub.f32 1.0, %v2747
      %v2801 = vlaneseq
      %v2802 = vshrl.u32 %v2801, 7
      %v2803 = vsub.s32 0, %v2802
      %v2804 = vrot.slane %v2798, %v2803
      %v2805 = vlaneseq
      %v2806 = vshrl.u32 %v2805, 7
      %v2807 = vsub.s32 0, %v2806
      %v2808 = vrot.slane %v2799, %v2807
      %v2809 = vlaneseq
      %v2810 = vshrl.u32 %v2809, 7
      %v2811 = vsub.s32 0, %v2810
      %v2812 = vrot.slane %v2800, %v2811
      %v2813 = vmul.f32 %v2434, %v2804
      %v2814 = vmul.f32 %v2435, %v2808
      %v2815 = vmul.f32 %v2436, %v2812
      %v2816 = vmul.f32 %v2437, %v2804
      %v2817 = vmul.f32 %v2438, %v2808
      %v2818 = vmul.f32 %v2439, %v2812
      %v2819 = vadd.f32 %v2792, %v2813
      %v2820 = vadd.f32 %v2793, %v2814
      %v2821 = vadd.f32 %v2794, %v2815
      %v2822 = vadd.f32 %v2795, %v2816
      %v2823 = vadd.f32 %v2796, %v2817
      %v2824 = vadd.f32 %v2797, %v2818
      %v2826 = vlaneseq
      %v2827 = vshrl.u32 %v2826, 7
      %v2828 = vsub.s32 0, %v2827
      %v2829 = vrot.slane %v1172, %v2828
      %v2830 = vlaneseq
      %v2831 = vshrl.u32 %v2830, 7
      %v2832 = vsub.s32 1, %v2831
      %v2833 = vrot.slane %v1172, %v2832
      %v2834 = vlaneseq
      %v2835 = vshrl.u32 %v2834, 7
      %v2836 = vsub.s32 2, %v2835
      %v2837 = vrot.slane %v1172, %v2836
      %v2841 = vmul.f32 %v2819, %v2829
      %v2842 = vmul.f32 %v2820, %v2833
      %v2843 = vmul.f32 %v2821, %v2837
      %v2844 = vmul.f32 %v2822, %v2829
      %v2845 = vmul.f32 %v2823, %v2833
      %v2846 = vmul.f32 %v2824, %v2837
      %v2847 = vadd.f32 %v2841, %v2842
      %v2848 = vadd.f32 %v2847, %v2843
      %2849 = vadd.xlane.f32.xlu0 %v2848
      %v2850 = vpop.xlane.xlu0 %2849
      %v2851 = vadd.f32 %v2844, %v2845
      %v2852 = vadd.f32 %v2851, %v2846
      %2853 = vadd.xlane.f32.xlu0 %v2852
      %v2854 = vpop.xlane.xlu0 %2853
      %v2855 = vmul.f32 %v2850, 0.00390625
      %v2856 = vmul.f32 %v2854, 0.00390625
      %v2857 = vld [vmem:[%s31] sm:$0xff]
      %v2859 = vsel %vm2171, %v2857, 0
      %2861 = vmatprep.subr.mxu0 0.0
      %2862 = vmatpush1.msra.mxu0 %v2855
      %2863 = vmatprep.subr.mxu0 0.0
      %2864 = vmatpush1.msra.mxu0 %v2856
      %2865 = vmatprep.subr.mxu0 0.0
      %2866 = vmatpush1.msra.mxu0 0.0
      %2867 = vmatprep.subr.mxu0 0.0
      %2868 = vmatpush1.msra.mxu0 0.0
      %2869 = vmatprep.subr.mxu0 0.0
      %2870 = vmatpush1.msra.mxu0 0.0
      %2871 = vmatprep.subr.mxu0 0.0
      %2872 = vmatpush1.msra.mxu0 0.0
      %2873 = vmatprep.subr.mxu0 0.0
      %2874 = vmatpush1.msra.mxu0 0.0
      %2875 = vmatprep.subr.mxu0 0.0
      %2876 = vmatpush1.msra.mxu0 0.0
      %2877 = vmatprep.subr.mxu0 0.0
      %2878 = vmatpush1.msra.mxu0 0.0
      %2879 = vmatprep.subr.mxu0 0.0
      %2880 = vmatpush1.msra.mxu0 0.0
      %2881 = vmatprep.subr.mxu0 0.0
      %2882 = vmatpush1.msra.mxu0 0.0
      %2883 = vmatprep.subr.mxu0 0.0
      %2884 = vmatpush1.msra.mxu0 0.0
      %2885 = vmatprep.subr.mxu0 0.0
      %2886 = vmatpush1.msra.mxu0 0.0
      %2887 = vmatprep.subr.mxu0 0.0
      %2888 = vmatpush1.msra.mxu0 0.0
      %2889 = vmatprep.subr.mxu0 0.0
      %2890 = vmatpush1.msra.mxu0 0.0
      %2891 = vmatprep.subr.mxu0 0.0
      %2892 = vmatpush1.msra.mxu0 0.0
      %2893 = vmatprep.subr.mxu0 0.0
      %2894 = vmatpush1.msra.mxu0 0.0
      %2895 = vmatprep.subr.mxu0 0.0
      %2896 = vmatpush1.msra.mxu0 0.0
      %2897 = vmatprep.subr.mxu0 0.0
      %2898 = vmatpush1.msra.mxu0 0.0
      %2899 = vmatprep.subr.mxu0 0.0
      %2900 = vmatpush1.msra.mxu0 0.0
      %2901 = vmatprep.subr.mxu0 0.0
      %2902 = vmatpush1.msra.mxu0 0.0
      %2903 = vmatprep.subr.mxu0 0.0
      %2904 = vmatpush1.msra.mxu0 0.0
      %2905 = vmatprep.subr.mxu0 0.0
      %2906 = vmatpush1.msra.mxu0 0.0
      %2907 = vmatprep.subr.mxu0 0.0
      %2908 = vmatpush1.msra.mxu0 0.0
      %2909 = vmatprep.subr.mxu0 0.0
      %2910 = vmatpush1.msra.mxu0 0.0
      %2911 = vmatprep.subr.mxu0 0.0
      %2912 = vmatpush1.msra.mxu0 0.0
      %2913 = vmatprep.subr.mxu0 0.0
      %2914 = vmatpush1.msra.mxu0 0.0
      %2915 = vmatprep.subr.mxu0 0.0
      %2916 = vmatpush1.msra.mxu0 0.0
      %2917 = vmatprep.subr.mxu0 0.0
      %2918 = vmatpush1.msra.mxu0 0.0
      %2919 = vmatprep.subr.mxu0 0.0
      %2920 = vmatpush1.msra.mxu0 0.0
      %2921 = vmatprep.subr.mxu0 0.0
      %2922 = vmatpush1.msra.mxu0 0.0
      %2923 = vmatprep.subr.mxu0 0.0
      %2924 = vmatpush1.msra.mxu0 0.0
      %2925 = vmatprep.mubr.f32.mxu0 0.0
      %2926 = vmatmul.mubr.f32.gmra.mrb[0].mxu0 %v2859
      %v2927 = vpop.f32.mrb[0].mxu0
      %v2928 = vadd.f32 0.0, %v2927
      %v2929 = vpop.f32.mrb[0].mxu0
      %2930 = vdwg.mxu0
      %v2931 = vmax.f32 %v2928, 0.0
      %v2932 = vld [vmem:[%s33] sm:$0xff]
      %v2933 = vld [vmem:[%s33 + $0x8] sm:$0xff]
      %vm2934 = vcmask 64512
      %v2936 = vsel %vm2934, %v2932, 0
      %v2939 = vsel %vm2934, %v2933, 0
      %2941 = vmatprep.subr.mxu0 0.0
      %2942 = vmatpush1.msra.mxu0 %v2931
      %2943 = vmatprep.subr.mxu0 0.0
      %2944 = vmatpush1.msra.mxu0 0.0
      %2945 = vmatprep.subr.mxu0 0.0
      %2946 = vmatpush1.msra.mxu0 0.0
      %2947 = vmatprep.subr.mxu0 0.0
      %2948 = vmatpush1.msra.mxu0 0.0
      %2949 = vmatprep.subr.mxu0 0.0
      %2950 = vmatpush1.msra.mxu0 0.0
      %2951 = vmatprep.subr.mxu0 0.0
      %2952 = vmatpush1.msra.mxu0 0.0
      %2953 = vmatprep.subr.mxu0 0.0
      %2954 = vmatpush1.msra.mxu0 0.0
      %2955 = vmatprep.subr.mxu0 0.0
      %2956 = vmatpush1.msra.mxu0 0.0
      %2957 = vmatprep.subr.mxu0 0.0
      %2958 = vmatpush1.msra.mxu0 0.0
      %2959 = vmatprep.subr.mxu0 0.0
      %2960 = vmatpush1.msra.mxu0 0.0
      %2961 = vmatprep.subr.mxu0 0.0
      %2962 = vmatpush1.msra.mxu0 0.0
      %2963 = vmatprep.subr.mxu0 0.0
      %2964 = vmatpush1.msra.mxu0 0.0
      %2965 = vmatprep.subr.mxu0 0.0
      %2966 = vmatpush1.msra.mxu0 0.0
      %2967 = vmatprep.subr.mxu0 0.0
      %2968 = vmatpush1.msra.mxu0 0.0
      %2969 = vmatprep.subr.mxu0 0.0
      %2970 = vmatpush1.msra.mxu0 0.0
      %2971 = vmatprep.subr.mxu0 0.0
      %2972 = vmatpush1.msra.mxu0 0.0
      %2973 = vmatprep.subr.mxu0 0.0
      %2974 = vmatpush1.msra.mxu0 0.0
      %2975 = vmatprep.subr.mxu0 0.0
      %2976 = vmatpush1.msra.mxu0 0.0
      %2977 = vmatprep.subr.mxu0 0.0
      %2978 = vmatpush1.msra.mxu0 0.0
      %2979 = vmatprep.subr.mxu0 0.0
      %2980 = vmatpush1.msra.mxu0 0.0
      %2981 = vmatprep.subr.mxu0 0.0
      %2982 = vmatpush1.msra.mxu0 0.0
      %2983 = vmatprep.subr.mxu0 0.0
      %2984 = vmatpush1.msra.mxu0 0.0
      %2985 = vmatprep.subr.mxu0 0.0
      %2986 = vmatpush1.msra.mxu0 0.0
      %2987 = vmatprep.subr.mxu0 0.0
      %2988 = vmatpush1.msra.mxu0 0.0
      %2989 = vmatprep.subr.mxu0 0.0
      %2990 = vmatpush1.msra.mxu0 0.0
      %2991 = vmatprep.subr.mxu0 0.0
      %2992 = vmatpush1.msra.mxu0 0.0
      %2993 = vmatprep.subr.mxu0 0.0
      %2994 = vmatpush1.msra.mxu0 0.0
      %2995 = vmatprep.subr.mxu0 0.0
      %2996 = vmatpush1.msra.mxu0 0.0
      %2997 = vmatprep.subr.mxu0 0.0
      %2998 = vmatpush1.msra.mxu0 0.0
      %2999 = vmatprep.subr.mxu0 0.0
      %3000 = vmatpush1.msra.mxu0 0.0
      %3001 = vmatprep.subr.mxu0 0.0
      %3002 = vmatpush1.msra.mxu0 0.0
      %3003 = vmatprep.subr.mxu0 0.0
      %3004 = vmatpush1.msra.mxu0 0.0
      %3005 = vmatprep.mubr.f32.mxu0 0.0
      %3006 = vmatmul.mubr.f32.gmra.mrb[0].mxu0 %v2936
      %v3007 = vpop.f32.mrb[0].mxu0
      %v3008 = vadd.f32 0.0, %v3007
      %v3009 = vpop.f32.mrb[0].mxu0
      %3010 = vmatprep.mubr.f32.mxu0 0.0
      %3011 = vmatmul.mubr.f32.gmra.mrb[0].mxu0 %v2939
      %v3012 = vpop.f32.mrb[0].mxu0
      %v3013 = vadd.f32 0.0, %v3012
      %v3014 = vpop.f32.mrb[0].mxu0
      %3015 = vdwg.mxu0
      %v3016 = vxor.u32 %v3008, 2147483648
      %v3017 = vxor.u32 %v3013, 2147483648
      %v3018 = vmul.f32 %v3016, 1.442695
      %v3019 = vpow.pop %v3018
      %v3020 = vmul.f32 %v3017, 1.442695
      %v3021 = vpow.pop %v3020
      %v3022 = vadd.f32 %v3019, 1.0
      %v3023 = vadd.f32 %v3021, 1.0
      %v3024 = vrcp.pop %v3022
      %v3025 = vmul.f32 1.0, %v3024
      %v3026 = vrcp.pop %v3023
      %v3027 = vmul.f32 1.0, %v3026
      %3029 = vset.pattern.permute.xlu0 0
      %3030 = vperm.xlu0 %3029, %v3025
      %v3031 = vpop.permute.xlu0 %3030
      %3034 = vset.pattern.permute.xlu0 0
      %3035 = vperm.xlu0 %3034, %v3027
      %v3036 = vpop.permute.xlu0 %3035
      %v3038 = vmul.f32 %v2819, %v3031
      %v3039 = vmul.f32 %v2820, %v3031
      %v3040 = vmul.f32 %v2821, %v3031
      %v3041 = vmul.f32 %v2822, %v3036
      %v3042 = vmul.f32 %v2823, %v3036
      %v3043 = vmul.f32 %v2824, %v3036
      %v3044 = vadd.f32 %v3038, %v3041
      %v3045 = vrot.slane %v3044, 4
      %v3046 = vadd.f32 %v3044, %v3045
      %v3047 = vrot.slane %v3046, 2
      %v3048 = vadd.f32 %v3046, %v3047
      %v3049 = vrot.slane %v3048, 1
      %v3050 = vadd.f32 %v3048, %v3049
      %v3051 = vadd.f32 %v3039, %v3042
      %v3052 = vrot.slane %v3051, 4
      %v3053 = vadd.f32 %v3051, %v3052
      %v3054 = vrot.slane %v3053, 2
      %v3055 = vadd.f32 %v3053, %v3054
      %v3056 = vrot.slane %v3055, 1
      %v3057 = vadd.f32 %v3055, %v3056
      %v3058 = vadd.f32 %v3040, %v3043
      %v3059 = vrot.slane %v3058, 4
      %v3060 = vadd.f32 %v3058, %v3059
      %v3061 = vrot.slane %v3060, 2
      %v3062 = vadd.f32 %v3060, %v3061
      %v3063 = vrot.slane %v3062, 1
      %v3064 = vadd.f32 %v3062, %v3063
      %v3065 = vrcp.pop 16.0
      %v3066 = vmul.f32 %v3050, %v3065
      %v3067 = vmul.f32 %v3057, %v3065
      %v3068 = vmul.f32 %v3064, %v3065
      %v3069 = vmul.f32 %v3066, %v2829
      %v3070 = vmul.f32 %v3067, %v2833
      %v3071 = vmul.f32 %v3068, %v2837
      %v3075 = vcombine.low %v3069, %v3070
      %v3077 = vunpack.c.l.s4 1966171168
      %v3078 = vunpack.c.0.s8 %v3077
      %v3079 = vlaneseq
      %v3080 = vshrl.u32 %v3079, 7
      %v3081 = vsub.s32 %v3078, %v3080
      %v3082 = vrot.slane %v3075, %v3081
      %v3084 = vunpack.c.l.s4 1966171168
      %v3085 = vunpack.c.0.s8 %v3084
      %v3086 = vlaneseq
      %v3087 = vshrl.u32 %v3086, 7
      %v3088 = vsub.s32 %v3085, %v3087
      %v3089 = vrot.slane %v3071, %v3088
      %v3090 = vcombine.low %v3082, %v3089
      %v3092 = vunpack.c.l.s4 1966171168
      %v3093 = vunpack.c.0.s8 %v3092
      %v3094 = vlaneseq
      %v3095 = vshrl.u32 %v3094, 7
      %v3096 = vsub.s32 %v3093, %v3095
      %v3097 = vrot.slane %v3090, %v3096
      %3098 = vrot.lane.b32.xlu0 %v3097, 19
      %v3099 = vpop.permute.xlu0 %3098
      %v3100 = vrot.slane %v3099, 7
      %vm3101 = vcmask 154624
      %v3102 = vsel %vm3101, %v3100, %v3099
      %vm3104 = vcmp.ge.s32.totalorder %v2775, 19
      %vm3105 = vcmp.lt.s32.totalorder %v2775, 403
      %vm3106 = vmand %vm3104, %vm3105
      %3107 = vst.msk [vmem:[#allocation3] ss:$2 sm:$0xf] %vm3106, %v3102
      %v3108 = vmax.f32 %v3038, %v3041
      %v3109 = vrot.slane %v3108, 4
      %v3110 = vmax.f32 %v3108, %v3109
      %v3111 = vrot.slane %v3110, 2
      %v3112 = vmax.f32 %v3110, %v3111
      %v3113 = vrot.slane %v3112, 1
      %v3114 = vmax.f32 %v3112, %v3113
      %v3115 = vmax.f32 %v3039, %v3042
      %v3116 = vrot.slane %v3115, 4
      %v3117 = vmax.f32 %v3115, %v3116
      %v3118 = vrot.slane %v3117, 2
      %v3119 = vmax.f32 %v3117, %v3118
      %v3120 = vrot.slane %v3119, 1
      %v3121 = vmax.f32 %v3119, %v3120
      %v3122 = vmax.f32 %v3040, %v3043
      %v3123 = vrot.slane %v3122, 4
      %v3124 = vmax.f32 %v3122, %v3123
      %v3125 = vrot.slane %v3124, 2
      %v3126 = vmax.f32 %v3124, %v3125
      %v3127 = vrot.slane %v3126, 1
      %v3128 = vmax.f32 %v3126, %v3127
      %v3129 = vmul.f32 %v3114, %v2829
      %v3130 = vmul.f32 %v3121, %v2833
      %v3131 = vmul.f32 %v3128, %v2837
      %v3135 = vcombine.low %v3129, %v3130
      %v3137 = vunpack.c.l.s4 1966171168
      %v3138 = vunpack.c.0.s8 %v3137
      %v3139 = vlaneseq
      %v3140 = vshrl.u32 %v3139, 7
      %v3141 = vsub.s32 %v3138, %v3140
      %v3142 = vrot.slane %v3135, %v3141
      %v3144 = vunpack.c.l.s4 1966171168
      %v3145 = vunpack.c.0.s8 %v3144
      %v3146 = vlaneseq
      %v3147 = vshrl.u32 %v3146, 7
      %v3148 = vsub.s32 %v3145, %v3147
      %v3149 = vrot.slane %v3131, %v3148
      %v3150 = vcombine.low %v3142, %v3149
      %v3152 = vunpack.c.l.s4 1966171168
      %v3153 = vunpack.c.0.s8 %v3152
      %v3154 = vlaneseq
      %v3155 = vshrl.u32 %v3154, 7
      %v3156 = vsub.s32 %v3153, %v3155
      %v3157 = vrot.slane %v3150, %v3156
      %3158 = vrot.lane.b32.xlu0 %v3157, 19
      %v3159 = vpop.permute.xlu0 %3158
      %v3160 = vrot.slane %v3159, 7
      %v3161 = vsel %vm3101, %v3160, %v3159
      %s3163 = scalar_lea.vmem [#allocation3], 1
      %3164 = vst.msk [vmem:[%s3163] ss:$2 sm:$0xf] %vm3106, %v3161
      %v3165 = vld [vmem:[#allocation3] sm:$0xff]
      %v3166 = vld [vmem:[%s35] sm:$0x3]
      %3168 = vset.pattern.permute.xlu0 0
      %3169 = vperm.xlu0 %3168, %v3166
      %v3170 = vpop.permute.xlu0 %3169
      %v3172 = vunpack.c.l.s4 269488144
      %v3173 = vunpack.c.0.s8 %v3172
      %v3174 = vlaneseq
      %v3175 = vshrl.u32 %v3174, 7
      %v3176 = vsub.s32 %v3173, %v3175
      %v3177 = vrot.slane %v3170, %v3176
      %v3179 = vmul.f32 %v3165, %v3177
      %v3181 = vrot.slane %v3179, 7
      %v3182 = vrot.slane %v3181, 2
      %v3184 = vadd.f32 %v3179, %v3182
      %3185 = vset.pattern.permute.xlu0 1
      %3186 = vperm.xlu0 %3185, %v3166
      %v3187 = vpop.permute.xlu0 %3186
      %v3189 = vunpack.c.l.s4 269488144
      %v3190 = vunpack.c.0.s8 %v3189
      %v3191 = vlaneseq
      %v3192 = vshrl.u32 %v3191, 7
      %v3193 = vsub.s32 %v3190, %v3192
      %v3194 = vrot.slane %v3187, %v3193
      %v3196 = vmul.f32 %v3165, %v3194
      %v3198 = vrot.slane %v3196, 7
      %v3199 = vrot.slane %v3198, 2
      %v3201 = vadd.f32 %v3196, %v3199
      %3203 = vrot.lane.b32.xlu0 %v3201, 127
      %v3204 = vpop.permute.xlu0 %3203
      %v3205 = vrot.slane %v3204, 2
      %v3206 = vsel %vm1239, %v3204, %v3205
      %v3208 = vadd.f32 %v3184, %v3206
      %3209 = vset.pattern.permute.xlu0 2
      %3210 = vperm.xlu0 %3209, %v3166
      %v3211 = vpop.permute.xlu0 %3210
      %v3213 = vunpack.c.l.s4 269488144
      %v3214 = vunpack.c.0.s8 %v3213
      %v3215 = vlaneseq
      %v3216 = vshrl.u32 %v3215, 7
      %v3217 = vsub.s32 %v3214, %v3216
      %v3218 = vrot.slane %v3211, %v3217
      %v3220 = vmul.f32 %v3165, %v3218
      %v3222 = vrot.slane %v3220, 7
      %v3223 = vrot.slane %v3222, 2
      %v3225 = vadd.f32 %v3220, %v3223
      %3227 = vrot.lane.b32.xlu0 %v3225, 126
      %v3228 = vpop.permute.xlu0 %3227
      %v3229 = vrot.slane %v3228, 2
      %v3230 = vsel %vm1298, %v3228, %v3229
      %v3232 = vadd.f32 %v3208, %v3230
      %3233 = vset.pattern.permute.xlu0 3
      %3234 = vperm.xlu0 %3233, %v3166
      %v3235 = vpop.permute.xlu0 %3234
      %v3237 = vunpack.c.l.s4 269488144
      %v3238 = vunpack.c.0.s8 %v3237
      %v3239 = vlaneseq
      %v3240 = vshrl.u32 %v3239, 7
      %v3241 = vsub.s32 %v3238, %v3240
      %v3242 = vrot.slane %v3235, %v3241
      %v3244 = vmul.f32 %v3165, %v3242
      %v3246 = vrot.slane %v3244, 7
      %v3247 = vrot.slane %v3246, 2
      %v3249 = vadd.f32 %v3244, %v3247
      %3251 = vrot.lane.b32.xlu0 %v3249, 110
      %v3252 = vpop.permute.xlu0 %3251
      %v3253 = vrot.slane %v3252, 2
      %v3254 = vsel %vm1357, %v3252, %v3253
      %v3256 = vadd.f32 %v3232, %v3254
      %3257 = vset.pattern.permute.xlu0 4
      %3258 = vperm.xlu0 %3257, %v3166
      %v3259 = vpop.permute.xlu0 %3258
      %v3261 = vunpack.c.l.s4 269488144
      %v3262 = vunpack.c.0.s8 %v3261
      %v3263 = vlaneseq
      %v3264 = vshrl.u32 %v3263, 7
      %v3265 = vsub.s32 %v3262, %v3264
      %v3266 = vrot.slane %v3259, %v3265
      %v3268 = vmul.f32 %v3165, %v3266
      %v3270 = vrot.slane %v3268, 7
      %v3271 = vrot.slane %v3270, 2
      %v3273 = vadd.f32 %v3268, %v3271
      %3275 = vrot.lane.b32.xlu0 %v3273, 109
      %v3276 = vpop.permute.xlu0 %3275
      %v3277 = vrot.slane %v3276, 2
      %v3278 = vsel %vm1416, %v3276, %v3277
      %v3280 = vadd.f32 %v3256, %v3278
      %3281 = vset.pattern.permute.xlu0 5
      %3282 = vperm.xlu0 %3281, %v3166
      %v3283 = vpop.permute.xlu0 %3282
      %v3285 = vunpack.c.l.s4 269488144
      %v3286 = vunpack.c.0.s8 %v3285
      %v3287 = vlaneseq
      %v3288 = vshrl.u32 %v3287, 7
      %v3289 = vsub.s32 %v3286, %v3288
      %v3290 = vrot.slane %v3283, %v3289
      %v3292 = vmul.f32 %v3165, %v3290
      %v3294 = vrot.slane %v3292, 7
      %v3295 = vrot.slane %v3294, 2
      %v3297 = vadd.f32 %v3292, %v3295
      %3299 = vrot.lane.b32.xlu0 %v3297, 108
      %v3300 = vpop.permute.xlu0 %3299
      %v3301 = vrot.slane %v3300, 2
      %v3302 = vsel %vm1475, %v3300, %v3301
      %v3304 = vadd.f32 %v3280, %v3302
      %3305 = vset.pattern.permute.xlu0 6
      %3306 = vperm.xlu0 %3305, %v3166
      %v3307 = vpop.permute.xlu0 %3306
      %v3309 = vunpack.c.l.s4 269488144
      %v3310 = vunpack.c.0.s8 %v3309
      %v3311 = vlaneseq
      %v3312 = vshrl.u32 %v3311, 7
      %v3313 = vsub.s32 %v3310, %v3312
      %v3314 = vrot.slane %v3307, %v3313
      %v3316 = vmul.f32 %v3165, %v3314
      %v3318 = vrot.slane %v3316, 7
      %v3319 = vrot.slane %v3318, 2
      %v3321 = vadd.f32 %v3316, %v3319
      %3323 = vrot.lane.b32.xlu0 %v3321, 92
      %v3324 = vpop.permute.xlu0 %3323
      %v3325 = vrot.slane %v3324, 2
      %v3326 = vsel %vm1534, %v3324, %v3325
      %v3328 = vadd.f32 %v3304, %v3326
      %3329 = vset.pattern.permute.xlu0 7
      %3330 = vperm.xlu0 %3329, %v3166
      %v3331 = vpop.permute.xlu0 %3330
      %v3333 = vunpack.c.l.s4 269488144
      %v3334 = vunpack.c.0.s8 %v3333
      %v3335 = vlaneseq
      %v3336 = vshrl.u32 %v3335, 7
      %v3337 = vsub.s32 %v3334, %v3336
      %v3338 = vrot.slane %v3331, %v3337
      %v3340 = vmul.f32 %v3165, %v3338
      %v3342 = vrot.slane %v3340, 7
      %v3343 = vrot.slane %v3342, 2
      %v3345 = vadd.f32 %v3340, %v3343
      %3347 = vrot.lane.b32.xlu0 %v3345, 91
      %v3348 = vpop.permute.xlu0 %3347
      %v3349 = vrot.slane %v3348, 2
      %v3350 = vsel %vm1593, %v3348, %v3349
      %v3352 = vadd.f32 %v3328, %v3350
      %3353 = vset.pattern.permute.xlu0 8
      %3354 = vperm.xlu0 %3353, %v3166
      %v3355 = vpop.permute.xlu0 %3354
      %v3357 = vunpack.c.l.s4 269488144
      %v3358 = vunpack.c.0.s8 %v3357
      %v3359 = vlaneseq
      %v3360 = vshrl.u32 %v3359, 7
      %v3361 = vsub.s32 %v3358, %v3360
      %v3362 = vrot.slane %v3355, %v3361
      %v3364 = vmul.f32 %v3165, %v3362
      %v3366 = vrot.slane %v3364, 7
      %v3367 = vrot.slane %v3366, 2
      %v3369 = vadd.f32 %v3364, %v3367
      %3371 = vrot.lane.b32.xlu0 %v3369, 90
      %v3372 = vpop.permute.xlu0 %3371
      %v3373 = vrot.slane %v3372, 2
      %v3374 = vsel %vm1652, %v3372, %v3373
      %v3376 = vadd.f32 %v3352, %v3374
      %v3377 = vxor.u32 %v3376, 2147483648
      %v3378 = vmul.f32 %v3377, 1.442695
      %v3379 = vpow.pop %v3378
      %v3380 = vadd.f32 %v3379, 1.0
      %v3381 = vrcp.pop %v3380
      %v3382 = vmul.f32 1.0, %v3381
      %v3384 = vlaneseq
      %v3385 = vshrl.u32 %v3384, 7
      %v3386 = vsub.s32 0, %v3385
      %v3387 = vrot.slane %v3382, %v3386
      %v3388 = vlaneseq
      %v3389 = vshrl.u32 %v3388, 7
      %v3390 = vsub.s32 2, %v3389
      %v3391 = vrot.slane %v3382, %v3390
      %v3392 = vlaneseq
      %v3393 = vshrl.u32 %v3392, 7
      %v3394 = vsub.s32 4, %v3393
      %v3395 = vrot.slane %v3382, %v3394
      %v3399 = vlaneseq
      %v3400 = vshrl.u32 %v3399, 7
      %v3401 = vsub.s32 0, %v3400
      %v3402 = vrot.slane %v3387, %v3401
      %v3403 = vlaneseq
      %v3404 = vshrl.u32 %v3403, 7
      %v3405 = vsub.s32 0, %v3404
      %v3406 = vrot.slane %v3391, %v3405
      %v3407 = vlaneseq
      %v3408 = vshrl.u32 %v3407, 7
      %v3409 = vsub.s32 0, %v3408
      %v3410 = vrot.slane %v3395, %v3409
      %v3411 = vmul.f32 %v3038, %v3402
      %v3412 = vmul.f32 %v3039, %v3406
      %v3413 = vmul.f32 %v3040, %v3410
      %v3414 = vmul.f32 %v3041, %v3402
      %v3415 = vmul.f32 %v3042, %v3406
      %v3416 = vmul.f32 %v3043, %v3410
      %v3417 = vld [vmem:[%s37] sm:$0xf]
      %s3418 = scalar_lea.vmem %s37, 4
      %v3419 = vld [vmem:[%s3418] sm:$0xf]
      %3428 = vrot.lane.b32.xlu0 %v1164, 127
      %v3429 = vpop.permute.xlu0 %3428
      %3430 = vrot.lane.b32.xlu0 %v1165, 127
      %v3431 = vpop.permute.xlu0 %3430
      %3432 = vrot.lane.b32.xlu0 %v1166, 127
      %v3433 = vpop.permute.xlu0 %3432
      %3434 = vrot.lane.b32.xlu0 %v1167, 127
      %v3435 = vpop.permute.xlu0 %3434
      %3436 = vrot.lane.b32.xlu0 %v1168, 127
      %v3437 = vpop.permute.xlu0 %3436
      %3438 = vrot.lane.b32.xlu0 %v1169, 127
      %v3439 = vpop.permute.xlu0 %3438
      %3440 = vrot.lane.b32.xlu0 %v1170, 127
      %v3441 = vpop.permute.xlu0 %3440
      %3442 = vrot.lane.b32.xlu0 %v1171, 127
      %v3443 = vpop.permute.xlu0 %3442
      %vm3444 = vcmask 1039360
      %v3445 = vsel %vm3444, %v3429, %v3431
      %v3446 = vsel %vm3444, %v3431, %v3433
      %v3447 = vsel %vm3444, %v3433, %v3435
      %v3448 = vsel %vm3444, %v3437, %v3439
      %v3449 = vsel %vm3444, %v3439, %v3441
      %v3450 = vsel %vm3444, %v3441, %v3443
      %vm3457 = vcmask 261120
      %v3459 = vsel %vm3457, %v3419, 0
      %3461 = vmatprep.subr.bf16.mxu0 %v3446
      %3462 = vmatpush1.bf16.msra.mxu0 %v3445
      %3463 = vmatprep.subr.bf16.mxu0 %v3449
      %3464 = vmatpush1.bf16.msra.mxu0 %v3448
      %3465 = vmatprep.subr.bf16.mxu0 0
      %3466 = vmatpush1.bf16.msra.mxu0 0
      %3467 = vmatprep.subr.bf16.mxu0 0
      %3468 = vmatpush1.bf16.msra.mxu0 0
      %3469 = vmatprep.subr.bf16.mxu0 0
      %3470 = vmatpush1.bf16.msra.mxu0 0
      %3471 = vmatprep.subr.bf16.mxu0 0
      %3472 = vmatpush1.bf16.msra.mxu0 0
      %3473 = vmatprep.subr.bf16.mxu0 0
      %3474 = vmatpush1.bf16.msra.mxu0 0
      %3475 = vmatprep.subr.bf16.mxu0 0
      %3476 = vmatpush1.bf16.msra.mxu0 0
      %3477 = vmatprep.subr.bf16.mxu0 0
      %3478 = vmatpush1.bf16.msra.mxu0 0
      %3479 = vmatprep.subr.bf16.mxu0 0
      %3480 = vmatpush1.bf16.msra.mxu0 0
      %3481 = vmatprep.subr.bf16.mxu0 0
      %3482 = vmatpush1.bf16.msra.mxu0 0
      %3483 = vmatprep.subr.bf16.mxu0 0
      %3484 = vmatpush1.bf16.msra.mxu0 0
      %3485 = vmatprep.subr.bf16.mxu0 0
      %3486 = vmatpush1.bf16.msra.mxu0 0
      %3487 = vmatprep.subr.bf16.mxu0 0
      %3488 = vmatpush1.bf16.msra.mxu0 0
      %3489 = vmatprep.subr.bf16.mxu0 0
      %3490 = vmatpush1.bf16.msra.mxu0 0
      %3491 = vmatprep.subr.bf16.mxu0 0
      %3492 = vmatpush1.bf16.msra.mxu0 0
      %3493 = vmatprep.mubr.bf16.mxu0 0
      %3494 = vmatmul.mubr.bf16.gmra.mrb[0].mxu0 %v3459
      %v3495 = vpop.f32.mrb[0].mxu0
      %v3496 = vadd.f32 0.0, %v3495
      %v3497 = vpop.f32.mrb[0].mxu0
      %v3498 = vadd.f32 0.0, %v3497
      %v3499 = vpop.f32.mrb[0].mxu0
      %v3500 = vpop.f32.mrb[0].mxu0
      %3501 = vdwg.mxu0
      %3502 = vmatprep.subr.bf16.mxu0 0
      %3503 = vmatpush1.bf16.msra.mxu0 %v3447
      %3504 = vmatprep.subr.bf16.mxu0 0
      %3505 = vmatpush1.bf16.msra.mxu0 %v3450
      %3506 = vmatprep.subr.bf16.mxu0 0
      %3507 = vmatpush1.bf16.msra.mxu0 0
      %3508 = vmatprep.subr.bf16.mxu0 0
      %3509 = vmatpush1.bf16.msra.mxu0 0
      %3510 = vmatprep.subr.bf16.mxu0 0
      %3511 = vmatpush1.bf16.msra.mxu0 0
      %3512 = vmatprep.subr.bf16.mxu0 0
      %3513 = vmatpush1.bf16.msra.mxu0 0
      %3514 = vmatprep.subr.bf16.mxu0 0
      %3515 = vmatpush1.bf16.msra.mxu0 0
      %3516 = vmatprep.subr.bf16.mxu0 0
      %3517 = vmatpush1.bf16.msra.mxu0 0
      %3518 = vmatprep.subr.bf16.mxu0 0
      %3519 = vmatpush1.bf16.msra.mxu0 0
      %3520 = vmatprep.subr.bf16.mxu0 0
      %3521 = vmatpush1.bf16.msra.mxu0 0
      %3522 = vmatprep.subr.bf16.mxu0 0
      %3523 = vmatpush1.bf16.msra.mxu0 0
      %3524 = vmatprep.subr.bf16.mxu0 0
      %3525 = vmatpush1.bf16.msra.mxu0 0
      %3526 = vmatprep.subr.bf16.mxu0 0
      %3527 = vmatpush1.bf16.msra.mxu0 0
      %3528 = vmatprep.subr.bf16.mxu0 0
      %3529 = vmatpush1.bf16.msra.mxu0 0
      %3530 = vmatprep.subr.bf16.mxu0 0
      %3531 = vmatpush1.bf16.msra.mxu0 0
      %3532 = vmatprep.subr.bf16.mxu0 0
      %3533 = vmatpush1.bf16.msra.mxu0 0
      %3534 = vmatprep.mubr.bf16.mxu0 0
      %3535 = vmatmul.mubr.bf16.gmra.mrb[0].mxu0 %v3459
      %v3536 = vpop.f32.mrb[0].mxu0
      %v3537 = vadd.f32 0.0, %v3536
      %v3538 = vpop.f32.mrb[0].mxu0
      %v3539 = vpop.f32.mrb[0].mxu0
      %v3540 = vpop.f32.mrb[0].mxu0
      %3541 = vdwg.mxu0
      %v3543 = vsel %vm3457, %v3417, 0
      %3545 = vmatprep.subr.bf16.mxu0 %v1165
      %3546 = vmatpush1.bf16.msra.mxu0 %v1164
      %3547 = vmatprep.subr.bf16.mxu0 %v1169
      %3548 = vmatpush1.bf16.msra.mxu0 %v1168
      %3549 = vmatprep.subr.bf16.mxu0 0
      %3550 = vmatpush1.bf16.msra.mxu0 0
      %3551 = vmatprep.subr.bf16.mxu0 0
      %3552 = vmatpush1.bf16.msra.mxu0 0
      %3553 = vmatprep.subr.bf16.mxu0 0
      %3554 = vmatpush1.bf16.msra.mxu0 0
      %3555 = vmatprep.subr.bf16.mxu0 0
      %3556 = vmatpush1.bf16.msra.mxu0 0
      %3557 = vmatprep.subr.bf16.mxu0 0
      %3558 = vmatpush1.bf16.msra.mxu0 0
      %3559 = vmatprep.subr.bf16.mxu0 0
      %3560 = vmatpush1.bf16.msra.mxu0 0
      %3561 = vmatprep.subr.bf16.mxu0 0
      %3562 = vmatpush1.bf16.msra.mxu0 0
      %3563 = vmatprep.subr.bf16.mxu0 0
      %3564 = vmatpush1.bf16.msra.mxu0 0
      %3565 = vmatprep.subr.bf16.mxu0 0
      %3566 = vmatpush1.bf16.msra.mxu0 0
      %3567 = vmatprep.subr.bf16.mxu0 0
      %3568 = vmatpush1.bf16.msra.mxu0 0
      %3569 = vmatprep.subr.bf16.mxu0 0
      %3570 = vmatpush1.bf16.msra.mxu0 0
      %3571 = vmatprep.subr.bf16.mxu0 0
      %3572 = vmatpush1.bf16.msra.mxu0 0
      %3573 = vmatprep.subr.bf16.mxu0 0
      %3574 = vmatpush1.bf16.msra.mxu0 0
      %3575 = vmatprep.subr.bf16.mxu0 0
      %3576 = vmatpush1.bf16.msra.mxu0 0
      %3577 = vmatprep.mubr.bf16.mxu0 0
      %3578 = vmatmul.mubr.bf16.gmra.mrb[0].mxu0 %v3543
      %v3579 = vpop.f32.mrb[0].mxu0
      %v3580 = vadd.f32 %v3496, %v3579
      %v3581 = vpop.f32.mrb[0].mxu0
      %v3582 = vadd.f32 %v3498, %v3581
      %v3583 = vpop.f32.mrb[0].mxu0
      %v3584 = vpop.f32.mrb[0].mxu0
      %3585 = vdwg.mxu0
      %3586 = vmatprep.subr.bf16.mxu0 0
      %3587 = vmatpush1.bf16.msra.mxu0 %v1166
      %3588 = vmatprep.subr.bf16.mxu0 0
      %3589 = vmatpush1.bf16.msra.mxu0 %v1170
      %3590 = vmatprep.subr.bf16.mxu0 0
      %3591 = vmatpush1.bf16.msra.mxu0 0
      %3592 = vmatprep.subr.bf16.mxu0 0
      %3593 = vmatpush1.bf16.msra.mxu0 0
      %3594 = vmatprep.subr.bf16.mxu0 0
      %3595 = vmatpush1.bf16.msra.mxu0 0
      %3596 = vmatprep.subr.bf16.mxu0 0
      %3597 = vmatpush1.bf16.msra.mxu0 0
      %3598 = vmatprep.subr.bf16.mxu0 0
      %3599 = vmatpush1.bf16.msra.mxu0 0
      %3600 = vmatprep.subr.bf16.mxu0 0
      %3601 = vmatpush1.bf16.msra.mxu0 0
      %3602 = vmatprep.subr.bf16.mxu0 0
      %3603 = vmatpush1.bf16.msra.mxu0 0
      %3604 = vmatprep.subr.bf16.mxu0 0
      %3605 = vmatpush1.bf16.msra.mxu0 0
      %3606 = vmatprep.subr.bf16.mxu0 0
      %3607 = vmatpush1.bf16.msra.mxu0 0
      %3608 = vmatprep.subr.bf16.mxu0 0
      %3609 = vmatpush1.bf16.msra.mxu0 0
      %3610 = vmatprep.subr.bf16.mxu0 0
      %3611 = vmatpush1.bf16.msra.mxu0 0
      %3612 = vmatprep.subr.bf16.mxu0 0
      %3613 = vmatpush1.bf16.msra.mxu0 0
      %3614 = vmatprep.subr.bf16.mxu0 0
      %3615 = vmatpush1.bf16.msra.mxu0 0
      %3616 = vmatprep.subr.bf16.mxu0 0
      %3617 = vmatpush1.bf16.msra.mxu0 0
      %3618 = vmatprep.mubr.bf16.mxu0 0
      %3619 = vmatmul.mubr.bf16.gmra.mrb[0].mxu0 %v3543
      %v3620 = vpop.f32.mrb[0].mxu0
      %v3621 = vadd.f32 %v3537, %v3620
      %v3622 = vpop.f32.mrb[0].mxu0
      %v3623 = vpop.f32.mrb[0].mxu0
      %v3624 = vpop.f32.mrb[0].mxu0
      %3625 = vdwg.mxu0
      %s3626 = scalar_lea.vmem %s37, 8
      %v3627 = vld [vmem:[%s3626] sm:$0xf]
      %3628 = vrot.lane.b32.xlu0 %v1164, 126
      %v3629 = vpop.permute.xlu0 %3628
      %3630 = vrot.lane.b32.xlu0 %v1165, 126
      %v3631 = vpop.permute.xlu0 %3630
      %3632 = vrot.lane.b32.xlu0 %v1166, 126
      %v3633 = vpop.permute.xlu0 %3632
      %3634 = vrot.lane.b32.xlu0 %v1167, 126
      %v3635 = vpop.permute.xlu0 %3634
      %3636 = vrot.lane.b32.xlu0 %v1168, 126
      %v3637 = vpop.permute.xlu0 %3636
      %3638 = vrot.lane.b32.xlu0 %v1169, 126
      %v3639 = vpop.permute.xlu0 %3638
      %3640 = vrot.lane.b32.xlu0 %v1170, 126
      %v3641 = vpop.permute.xlu0 %3640
      %3642 = vrot.lane.b32.xlu0 %v1171, 126
      %v3643 = vpop.permute.xlu0 %3642
      %vm3644 = vcmask 1031168
      %v3645 = vsel %vm3644, %v3629, %v3631
      %v3646 = vsel %vm3644, %v3631, %v3633
      %v3647 = vsel %vm3644, %v3633, %v3635
      %v3648 = vsel %vm3644, %v3637, %v3639
      %v3649 = vsel %vm3644, %v3639, %v3641
      %v3650 = vsel %vm3644, %v3641, %v3643
      %v3658 = vsel %vm3457, %v3627, 0
      %3660 = vmatprep.subr.bf16.mxu0 %v3646
      %3661 = vmatpush1.bf16.msra.mxu0 %v3645
      %3662 = vmatprep.subr.bf16.mxu0 %v3649
      %3663 = vmatpush1.bf16.msra.mxu0 %v3648
      %3664 = vmatprep.subr.bf16.mxu0 0
      %3665 = vmatpush1.bf16.msra.mxu0 0
      %3666 = vmatprep.subr.bf16.mxu0 0
      %3667 = vmatpush1.bf16.msra.mxu0 0
      %3668 = vmatprep.subr.bf16.mxu0 0
      %3669 = vmatpush1.bf16.msra.mxu0 0
      %3670 = vmatprep.subr.bf16.mxu0 0
      %3671 = vmatpush1.bf16.msra.mxu0 0
      %3672 = vmatprep.subr.bf16.mxu0 0
      %3673 = vmatpush1.bf16.msra.mxu0 0
      %3674 = vmatprep.subr.bf16.mxu0 0
      %3675 = vmatpush1.bf16.msra.mxu0 0
      %3676 = vmatprep.subr.bf16.mxu0 0
      %3677 = vmatpush1.bf16.msra.mxu0 0
      %3678 = vmatprep.subr.bf16.mxu0 0
      %3679 = vmatpush1.bf16.msra.mxu0 0
      %3680 = vmatprep.subr.bf16.mxu0 0
      %3681 = vmatpush1.bf16.msra.mxu0 0
      %3682 = vmatprep.subr.bf16.mxu0 0
      %3683 = vmatpush1.bf16.msra.mxu0 0
      %3684 = vmatprep.subr.bf16.mxu0 0
      %3685 = vmatpush1.bf16.msra.mxu0 0
      %3686 = vmatprep.subr.bf16.mxu0 0
      %3687 = vmatpush1.bf16.msra.mxu0 0
      %3688 = vmatprep.subr.bf16.mxu0 0
      %3689 = vmatpush1.bf16.msra.mxu0 0
      %3690 = vmatprep.subr.bf16.mxu0 0
      %3691 = vmatpush1.bf16.msra.mxu0 0
      %3692 = vmatprep.mubr.bf16.mxu0 0
      %3693 = vmatmul.mubr.bf16.gmra.mrb[0].mxu0 %v3658
      %v3694 = vpop.f32.mrb[0].mxu0
      %v3695 = vadd.f32 0.0, %v3694
      %v3696 = vpop.f32.mrb[0].mxu0
      %v3697 = vadd.f32 0.0, %v3696
      %v3698 = vpop.f32.mrb[0].mxu0
      %v3699 = vpop.f32.mrb[0].mxu0
      %3700 = vdwg.mxu0
      %3701 = vmatprep.subr.bf16.mxu0 0
      %3702 = vmatpush1.bf16.msra.mxu0 %v3647
      %3703 = vmatprep.subr.bf16.mxu0 0
      %3704 = vmatpush1.bf16.msra.mxu0 %v3650
      %3705 = vmatprep.subr.bf16.mxu0 0
      %3706 = vmatpush1.bf16.msra.mxu0 0
      %3707 = vmatprep.subr.bf16.mxu0 0
      %3708 = vmatpush1.bf16.msra.mxu0 0
      %3709 = vmatprep.subr.bf16.mxu0 0
      %3710 = vmatpush1.bf16.msra.mxu0 0
      %3711 = vmatprep.subr.bf16.mxu0 0
      %3712 = vmatpush1.bf16.msra.mxu0 0
      %3713 = vmatprep.subr.bf16.mxu0 0
      %3714 = vmatpush1.bf16.msra.mxu0 0
      %3715 = vmatprep.subr.bf16.mxu0 0
      %3716 = vmatpush1.bf16.msra.mxu0 0
      %3717 = vmatprep.subr.bf16.mxu0 0
      %3718 = vmatpush1.bf16.msra.mxu0 0
      %3719 = vmatprep.subr.bf16.mxu0 0
      %3720 = vmatpush1.bf16.msra.mxu0 0
      %3721 = vmatprep.subr.bf16.mxu0 0
      %3722 = vmatpush1.bf16.msra.mxu0 0
      %3723 = vmatprep.subr.bf16.mxu0 0
      %3724 = vmatpush1.bf16.msra.mxu0 0
      %3725 = vmatprep.subr.bf16.mxu0 0
      %3726 = vmatpush1.bf16.msra.mxu0 0
      %3727 = vmatprep.subr.bf16.mxu0 0
      %3728 = vmatpush1.bf16.msra.mxu0 0
      %3729 = vmatprep.subr.bf16.mxu0 0
      %3730 = vmatpush1.bf16.msra.mxu0 0
      %3731 = vmatprep.subr.bf16.mxu0 0
      %3732 = vmatpush1.bf16.msra.mxu0 0
      %3733 = vmatprep.mubr.bf16.mxu0 0
      %3734 = vmatmul.mubr.bf16.gmra.mrb[0].mxu0 %v3658
      %v3735 = vpop.f32.mrb[0].mxu0
      %v3736 = vadd.f32 0.0, %v3735
      %v3737 = vpop.f32.mrb[0].mxu0
      %v3738 = vpop.f32.mrb[0].mxu0
      %v3739 = vpop.f32.mrb[0].mxu0
      %3740 = vdwg.mxu0
      %v3741 = vadd.f32 %v3580, %v3695
      %v3742 = vadd.f32 %v3582, %v3697
      %v3743 = vadd.f32 %v3621, %v3736
      %s3744 = scalar_lea.vmem %s37, 12
      %v3745 = vld [vmem:[%s3744] sm:$0xf]
      %3746 = vrot.lane.b32.xlu0 %v1164, 110
      %v3747 = vpop.permute.xlu0 %3746
      %3748 = vrot.lane.b32.xlu0 %v1165, 110
      %v3749 = vpop.permute.xlu0 %3748
      %3750 = vrot.lane.b32.xlu0 %v1166, 110
      %v3751 = vpop.permute.xlu0 %3750
      %3752 = vrot.lane.b32.xlu0 %v1167, 110
      %v3753 = vpop.permute.xlu0 %3752
      %3754 = vrot.lane.b32.xlu0 %v1168, 110
      %v3755 = vpop.permute.xlu0 %3754
      %3756 = vrot.lane.b32.xlu0 %v1169, 110
      %v3757 = vpop.permute.xlu0 %3756
      %3758 = vrot.lane.b32.xlu0 %v1170, 110
      %v3759 = vpop.permute.xlu0 %3758
      %3760 = vrot.lane.b32.xlu0 %v1171, 110
      %v3761 = vpop.permute.xlu0 %3760
      %vm3762 = vcmask 900096
      %v3763 = vsel %vm3762, %v3747, %v3749
      %v3764 = vsel %vm3762, %v3749, %v3751
      %v3765 = vsel %vm3762, %v3751, %v3753
      %v3766 = vsel %vm3762, %v3755, %v3757
      %v3767 = vsel %vm3762, %v3757, %v3759
      %v3768 = vsel %vm3762, %v3759, %v3761
      %v3776 = vsel %vm3457, %v3745, 0
      %3778 = vmatprep.subr.bf16.mxu0 %v3764
      %3779 = vmatpush1.bf16.msra.mxu0 %v3763
      %3780 = vmatprep.subr.bf16.mxu0 %v3767
      %3781 = vmatpush1.bf16.msra.mxu0 %v3766
      %3782 = vmatprep.subr.bf16.mxu0 0
      %3783 = vmatpush1.bf16.msra.mxu0 0
      %3784 = vmatprep.subr.bf16.mxu0 0
      %3785 = vmatpush1.bf16.msra.mxu0 0
      %3786 = vmatprep.subr.bf16.mxu0 0
      %3787 = vmatpush1.bf16.msra.mxu0 0
      %3788 = vmatprep.subr.bf16.mxu0 0
      %3789 = vmatpush1.bf16.msra.mxu0 0
      %3790 = vmatprep.subr.bf16.mxu0 0
      %3791 = vmatpush1.bf16.msra.mxu0 0
      %3792 = vmatprep.subr.bf16.mxu0 0
      %3793 = vmatpush1.bf16.msra.mxu0 0
      %3794 = vmatprep.subr.bf16.mxu0 0
      %3795 = vmatpush1.bf16.msra.mxu0 0
      %3796 = vmatprep.subr.bf16.mxu0 0
      %3797 = vmatpush1.bf16.msra.mxu0 0
      %3798 = vmatprep.subr.bf16.mxu0 0
      %3799 = vmatpush1.bf16.msra.mxu0 0
      %3800 = vmatprep.subr.bf16.mxu0 0
      %3801 = vmatpush1.bf16.msra.mxu0 0
      %3802 = vmatprep.subr.bf16.mxu0 0
      %3803 = vmatpush1.bf16.msra.mxu0 0
      %3804 = vmatprep.subr.bf16.mxu0 0
      %3805 = vmatpush1.bf16.msra.mxu0 0
      %3806 = vmatprep.subr.bf16.mxu0 0
      %3807 = vmatpush1.bf16.msra.mxu0 0
      %3808 = vmatprep.subr.bf16.mxu0 0
      %3809 = vmatpush1.bf16.msra.mxu0 0
      %3810 = vmatprep.mubr.bf16.mxu0 0
      %3811 = vmatmul.mubr.bf16.gmra.mrb[0].mxu0 %v3776
      %v3812 = vpop.f32.mrb[0].mxu0
      %v3813 = vadd.f32 0.0, %v3812
      %v3814 = vpop.f32.mrb[0].mxu0
      %v3815 = vadd.f32 0.0, %v3814
      %v3816 = vpop.f32.mrb[0].mxu0
      %v3817 = vpop.f32.mrb[0].mxu0
      %3818 = vdwg.mxu0
      %3819 = vmatprep.subr.bf16.mxu0 0
      %3820 = vmatpush1.bf16.msra.mxu0 %v3765
      %3821 = vmatprep.subr.bf16.mxu0 0
      %3822 = vmatpush1.bf16.msra.mxu0 %v3768
      %3823 = vmatprep.subr.bf16.mxu0 0
      %3824 = vmatpush1.bf16.msra.mxu0 0
      %3825 = vmatprep.subr.bf16.mxu0 0
      %3826 = vmatpush1.bf16.msra.mxu0 0
      %3827 = vmatprep.subr.bf16.mxu0 0
      %3828 = vmatpush1.bf16.msra.mxu0 0
      %3829 = vmatprep.subr.bf16.mxu0 0
      %3830 = vmatpush1.bf16.msra.mxu0 0
      %3831 = vmatprep.subr.bf16.mxu0 0
      %3832 = vmatpush1.bf16.msra.mxu0 0
      %3833 = vmatprep.subr.bf16.mxu0 0
      %3834 = vmatpush1.bf16.msra.mxu0 0
      %3835 = vmatprep.subr.bf16.mxu0 0
      %3836 = vmatpush1.bf16.msra.mxu0 0
      %3837 = vmatprep.subr.bf16.mxu0 0
      %3838 = vmatpush1.bf16.msra.mxu0 0
      %3839 = vmatprep.subr.bf16.mxu0 0
      %3840 = vmatpush1.bf16.msra.mxu0 0
      %3841 = vmatprep.subr.bf16.mxu0 0
      %3842 = vmatpush1.bf16.msra.mxu0 0
      %3843 = vmatprep.subr.bf16.mxu0 0
      %3844 = vmatpush1.bf16.msra.mxu0 0
      %3845 = vmatprep.subr.bf16.mxu0 0
      %3846 = vmatpush1.bf16.msra.mxu0 0
      %3847 = vmatprep.subr.bf16.mxu0 0
      %3848 = vmatpush1.bf16.msra.mxu0 0
      %3849 = vmatprep.subr.bf16.mxu0 0
      %3850 = vmatpush1.bf16.msra.mxu0 0
      %3851 = vmatprep.mubr.bf16.mxu0 0
      %3852 = vmatmul.mubr.bf16.gmra.mrb[0].mxu0 %v3776
      %v3853 = vpop.f32.mrb[0].mxu0
      %v3854 = vadd.f32 0.0, %v3853
      %v3855 = vpop.f32.mrb[0].mxu0
      %v3856 = vpop.f32.mrb[0].mxu0
      %v3857 = vpop.f32.mrb[0].mxu0
      %3858 = vdwg.mxu0
      %v3859 = vadd.f32 %v3741, %v3813
      %v3860 = vadd.f32 %v3742, %v3815
      %v3861 = vadd.f32 %v3743, %v3854
      %s3862 = scalar_lea.vmem %s37, 16
      %v3863 = vld [vmem:[%s3862] sm:$0xf]
      %3864 = vrot.lane.b32.xlu0 %v1164, 109
      %v3865 = vpop.permute.xlu0 %3864
      %3866 = vrot.lane.b32.xlu0 %v1165, 109
      %v3867 = vpop.permute.xlu0 %3866
      %3868 = vrot.lane.b32.xlu0 %v1166, 109
      %v3869 = vpop.permute.xlu0 %3868
      %3870 = vrot.lane.b32.xlu0 %v1167, 109
      %v3871 = vpop.permute.xlu0 %3870
      %3872 = vrot.lane.b32.xlu0 %v1168, 109
      %v3873 = vpop.permute.xlu0 %3872
      %3874 = vrot.lane.b32.xlu0 %v1169, 109
      %v3875 = vpop.permute.xlu0 %3874
      %3876 = vrot.lane.b32.xlu0 %v1170, 109
      %v3877 = vpop.permute.xlu0 %3876
      %3878 = vrot.lane.b32.xlu0 %v1171, 109
      %v3879 = vpop.permute.xlu0 %3878
      %vm3880 = vcmask 891904
      %v3881 = vsel %vm3880, %v3865, %v3867
      %v3882 = vsel %vm3880, %v3867, %v3869
      %v3883 = vsel %vm3880, %v3869, %v3871
      %v3884 = vsel %vm3880, %v3873, %v3875
      %v3885 = vsel %vm3880, %v3875, %v3877
      %v3886 = vsel %vm3880, %v3877, %v3879
      %v3894 = vsel %vm3457, %v3863, 0
      %3896 = vmatprep.subr.bf16.mxu0 %v3882
      %3897 = vmatpush1.bf16.msra.mxu0 %v3881
      %3898 = vmatprep.subr.bf16.mxu0 %v3885
      %3899 = vmatpush1.bf16.msra.mxu0 %v3884
      %3900 = vmatprep.subr.bf16.mxu0 0
      %3901 = vmatpush1.bf16.msra.mxu0 0
      %3902 = vmatprep.subr.bf16.mxu0 0
      %3903 = vmatpush1.bf16.msra.mxu0 0
      %3904 = vmatprep.subr.bf16.mxu0 0
      %3905 = vmatpush1.bf16.msra.mxu0 0
      %3906 = vmatprep.subr.bf16.mxu0 0
      %3907 = vmatpush1.bf16.msra.mxu0 0
      %3908 = vmatprep.subr.bf16.mxu0 0
      %3909 = vmatpush1.bf16.msra.mxu0 0
      %3910 = vmatprep.subr.bf16.mxu0 0
      %3911 = vmatpush1.bf16.msra.mxu0 0
      %3912 = vmatprep.subr.bf16.mxu0 0
      %3913 = vmatpush1.bf16.msra.mxu0 0
      %3914 = vmatprep.subr.bf16.mxu0 0
      %3915 = vmatpush1.bf16.msra.mxu0 0
      %3916 = vmatprep.subr.bf16.mxu0 0
      %3917 = vmatpush1.bf16.msra.mxu0 0
      %3918 = vmatprep.subr.bf16.mxu0 0
      %3919 = vmatpush1.bf16.msra.mxu0 0
      %3920 = vmatprep.subr.bf16.mxu0 0
      %3921 = vmatpush1.bf16.msra.mxu0 0
      %3922 = vmatprep.subr.bf16.mxu0 0
      %3923 = vmatpush1.bf16.msra.mxu0 0
      %3924 = vmatprep.subr.bf16.mxu0 0
      %3925 = vmatpush1.bf16.msra.mxu0 0
      %3926 = vmatprep.subr.bf16.mxu0 0
      %3927 = vmatpush1.bf16.msra.mxu0 0
      %3928 = vmatprep.mubr.bf16.mxu0 0
      %3929 = vmatmul.mubr.bf16.gmra.mrb[0].mxu0 %v3894
      %v3930 = vpop.f32.mrb[0].mxu0
      %v3931 = vadd.f32 0.0, %v3930
      %v3932 = vpop.f32.mrb[0].mxu0
      %v3933 = vadd.f32 0.0, %v3932
      %v3934 = vpop.f32.mrb[0].mxu0
      %v3935 = vpop.f32.mrb[0].mxu0
      %3936 = vdwg.mxu0
      %3937 = vmatprep.subr.bf16.mxu0 0
      %3938 = vmatpush1.bf16.msra.mxu0 %v3883
      %3939 = vmatprep.subr.bf16.mxu0 0
      %3940 = vmatpush1.bf16.msra.mxu0 %v3886
      %3941 = vmatprep.subr.bf16.mxu0 0
      %3942 = vmatpush1.bf16.msra.mxu0 0
      %3943 = vmatprep.subr.bf16.mxu0 0
      %3944 = vmatpush1.bf16.msra.mxu0 0
      %3945 = vmatprep.subr.bf16.mxu0 0
      %3946 = vmatpush1.bf16.msra.mxu0 0
      %3947 = vmatprep.subr.bf16.mxu0 0
      %3948 = vmatpush1.bf16.msra.mxu0 0
      %3949 = vmatprep.subr.bf16.mxu0 0
      %3950 = vmatpush1.bf16.msra.mxu0 0
      %3951 = vmatprep.subr.bf16.mxu0 0
      %3952 = vmatpush1.bf16.msra.mxu0 0
      %3953 = vmatprep.subr.bf16.mxu0 0
      %3954 = vmatpush1.bf16.msra.mxu0 0
      %3955 = vmatprep.subr.bf16.mxu0 0
      %3956 = vmatpush1.bf16.msra.mxu0 0
      %3957 = vmatprep.subr.bf16.mxu0 0
      %3958 = vmatpush1.bf16.msra.mxu0 0
      %3959 = vmatprep.subr.bf16.mxu0 0
      %3960 = vmatpush1.bf16.msra.mxu0 0
      %3961 = vmatprep.subr.bf16.mxu0 0
      %3962 = vmatpush1.bf16.msra.mxu0 0
      %3963 = vmatprep.subr.bf16.mxu0 0
      %3964 = vmatpush1.bf16.msra.mxu0 0
      %3965 = vmatprep.subr.bf16.mxu0 0
      %3966 = vmatpush1.bf16.msra.mxu0 0
      %3967 = vmatprep.subr.bf16.mxu0 0
      %3968 = vmatpush1.bf16.msra.mxu0 0
      %3969 = vmatprep.mubr.bf16.mxu0 0
      %3970 = vmatmul.mubr.bf16.gmra.mrb[0].mxu0 %v3894
      %v3971 = vpop.f32.mrb[0].mxu0
      %v3972 = vadd.f32 0.0, %v3971
      %v3973 = vpop.f32.mrb[0].mxu0
      %v3974 = vpop.f32.mrb[0].mxu0
      %v3975 = vpop.f32.mrb[0].mxu0
      %3976 = vdwg.mxu0
      %v3977 = vadd.f32 %v3859, %v3931
      %v3978 = vadd.f32 %v3860, %v3933
      %v3979 = vadd.f32 %v3861, %v3972
      %s3980 = scalar_lea.vmem %s37, 20
      %v3981 = vld [vmem:[%s3980] sm:$0xf]
      %3982 = vrot.lane.b32.xlu0 %v1164, 108
      %v3983 = vpop.permute.xlu0 %3982
      %3984 = vrot.lane.b32.xlu0 %v1165, 108
      %v3985 = vpop.permute.xlu0 %3984
      %3986 = vrot.lane.b32.xlu0 %v1166, 108
      %v3987 = vpop.permute.xlu0 %3986
      %3988 = vrot.lane.b32.xlu0 %v1167, 108
      %v3989 = vpop.permute.xlu0 %3988
      %3990 = vrot.lane.b32.xlu0 %v1168, 108
      %v3991 = vpop.permute.xlu0 %3990
      %3992 = vrot.lane.b32.xlu0 %v1169, 108
      %v3993 = vpop.permute.xlu0 %3992
      %3994 = vrot.lane.b32.xlu0 %v1170, 108
      %v3995 = vpop.permute.xlu0 %3994
      %3996 = vrot.lane.b32.xlu0 %v1171, 108
      %v3997 = vpop.permute.xlu0 %3996
      %vm3998 = vcmask 883712
      %v3999 = vsel %vm3998, %v3983, %v3985
      %v4000 = vsel %vm3998, %v3985, %v3987
      %v4001 = vsel %vm3998, %v3987, %v3989
      %v4002 = vsel %vm3998, %v3991, %v3993
      %v4003 = vsel %vm3998, %v3993, %v3995
      %v4004 = vsel %vm3998, %v3995, %v3997
      %v4012 = vsel %vm3457, %v3981, 0
      %4014 = vmatprep.subr.bf16.mxu0 %v4000
      %4015 = vmatpush1.bf16.msra.mxu0 %v3999
      %4016 = vmatprep.subr.bf16.mxu0 %v4003
      %4017 = vmatpush1.bf16.msra.mxu0 %v4002
      %4018 = vmatprep.subr.bf16.mxu0 0
      %4019 = vmatpush1.bf16.msra.mxu0 0
      %4020 = vmatprep.subr.bf16.mxu0 0
      %4021 = vmatpush1.bf16.msra.mxu0 0
      %4022 = vmatprep.subr.bf16.mxu0 0
      %4023 = vmatpush1.bf16.msra.mxu0 0
      %4024 = vmatprep.subr.bf16.mxu0 0
      %4025 = vmatpush1.bf16.msra.mxu0 0
      %4026 = vmatprep.subr.bf16.mxu0 0
      %4027 = vmatpush1.bf16.msra.mxu0 0
      %4028 = vmatprep.subr.bf16.mxu0 0
      %4029 = vmatpush1.bf16.msra.mxu0 0
      %4030 = vmatprep.subr.bf16.mxu0 0
      %4031 = vmatpush1.bf16.msra.mxu0 0
      %4032 = vmatprep.subr.bf16.mxu0 0
      %4033 = vmatpush1.bf16.msra.mxu0 0
      %4034 = vmatprep.subr.bf16.mxu0 0
      %4035 = vmatpush1.bf16.msra.mxu0 0
      %4036 = vmatprep.subr.bf16.mxu0 0
      %4037 = vmatpush1.bf16.msra.mxu0 0
      %4038 = vmatprep.subr.bf16.mxu0 0
      %4039 = vmatpush1.bf16.msra.mxu0 0
      %4040 = vmatprep.subr.bf16.mxu0 0
      %4041 = vmatpush1.bf16.msra.mxu0 0
      %4042 = vmatprep.subr.bf16.mxu0 0
      %4043 = vmatpush1.bf16.msra.mxu0 0
      %4044 = vmatprep.subr.bf16.mxu0 0
      %4045 = vmatpush1.bf16.msra.mxu0 0
      %4046 = vmatprep.mubr.bf16.mxu0 0
      %4047 = vmatmul.mubr.bf16.gmra.mrb[0].mxu0 %v4012
      %v4048 = vpop.f32.mrb[0].mxu0
      %v4049 = vadd.f32 0.0, %v4048
      %v4050 = vpop.f32.mrb[0].mxu0
      %v4051 = vadd.f32 0.0, %v4050
      %v4052 = vpop.f32.mrb[0].mxu0
      %v4053 = vpop.f32.mrb[0].mxu0
      %4054 = vdwg.mxu0
      %4055 = vmatprep.subr.bf16.mxu0 0
      %4056 = vmatpush1.bf16.msra.mxu0 %v4001
      %4057 = vmatprep.subr.bf16.mxu0 0
      %4058 = vmatpush1.bf16.msra.mxu0 %v4004
      %4059 = vmatprep.subr.bf16.mxu0 0
      %4060 = vmatpush1.bf16.msra.mxu0 0
      %4061 = vmatprep.subr.bf16.mxu0 0
      %4062 = vmatpush1.bf16.msra.mxu0 0
      %4063 = vmatprep.subr.bf16.mxu0 0
      %4064 = vmatpush1.bf16.msra.mxu0 0
      %4065 = vmatprep.subr.bf16.mxu0 0
      %4066 = vmatpush1.bf16.msra.mxu0 0
      %4067 = vmatprep.subr.bf16.mxu0 0
      %4068 = vmatpush1.bf16.msra.mxu0 0
      %4069 = vmatprep.subr.bf16.mxu0 0
      %4070 = vmatpush1.bf16.msra.mxu0 0
      %4071 = vmatprep.subr.bf16.mxu0 0
      %4072 = vmatpush1.bf16.msra.mxu0 0
      %4073 = vmatprep.subr.bf16.mxu0 0
      %4074 = vmatpush1.bf16.msra.mxu0 0
      %4075 = vmatprep.subr.bf16.mxu0 0
      %4076 = vmatpush1.bf16.msra.mxu0 0
      %4077 = vmatprep.subr.bf16.mxu0 0
      %4078 = vmatpush1.bf16.msra.mxu0 0
      %4079 = vmatprep.subr.bf16.mxu0 0
      %4080 = vmatpush1.bf16.msra.mxu0 0
      %4081 = vmatprep.subr.bf16.mxu0 0
      %4082 = vmatpush1.bf16.msra.mxu0 0
      %4083 = vmatprep.subr.bf16.mxu0 0
      %4084 = vmatpush1.bf16.msra.mxu0 0
      %4085 = vmatprep.subr.bf16.mxu0 0
      %4086 = vmatpush1.bf16.msra.mxu0 0
      %4087 = vmatprep.mubr.bf16.mxu0 0
      %4088 = vmatmul.mubr.bf16.gmra.mrb[0].mxu0 %v4012
      %v4089 = vpop.f32.mrb[0].mxu0
      %v4090 = vadd.f32 0.0, %v4089
      %v4091 = vpop.f32.mrb[0].mxu0
      %v4092 = vpop.f32.mrb[0].mxu0
      %v4093 = vpop.f32.mrb[0].mxu0
      %4094 = vdwg.mxu0
      %v4095 = vadd.f32 %v3977, %v4049
      %v4096 = vadd.f32 %v3978, %v4051
      %v4097 = vadd.f32 %v3979, %v4090
      %s4098 = scalar_lea.vmem %s37, 24
      %v4099 = vld [vmem:[%s4098] sm:$0xf]
      %4100 = vrot.lane.b32.xlu0 %v1164, 92
      %v4101 = vpop.permute.xlu0 %4100
      %4102 = vrot.lane.b32.xlu0 %v1165, 92
      %v4103 = vpop.permute.xlu0 %4102
      %4104 = vrot.lane.b32.xlu0 %v1166, 92
      %v4105 = vpop.permute.xlu0 %4104
      %4106 = vrot.lane.b32.xlu0 %v1167, 92
      %v4107 = vpop.permute.xlu0 %4106
      %4108 = vrot.lane.b32.xlu0 %v1168, 92
      %v4109 = vpop.permute.xlu0 %4108
      %4110 = vrot.lane.b32.xlu0 %v1169, 92
      %v4111 = vpop.permute.xlu0 %4110
      %4112 = vrot.lane.b32.xlu0 %v1170, 92
      %v4113 = vpop.permute.xlu0 %4112
      %4114 = vrot.lane.b32.xlu0 %v1171, 92
      %v4115 = vpop.permute.xlu0 %4114
      %vm4116 = vcmask 752640
      %v4117 = vsel %vm4116, %v4101, %v4103
      %v4118 = vsel %vm4116, %v4103, %v4105
      %v4119 = vsel %vm4116, %v4105, %v4107
      %v4120 = vsel %vm4116, %v4109, %v4111
      %v4121 = vsel %vm4116, %v4111, %v4113
      %v4122 = vsel %vm4116, %v4113, %v4115
      %v4130 = vsel %vm3457, %v4099, 0
      %4132 = vmatprep.subr.bf16.mxu0 %v4118
      %4133 = vmatpush1.bf16.msra.mxu0 %v4117
      %4134 = vmatprep.subr.bf16.mxu0 %v4121
      %4135 = vmatpush1.bf16.msra.mxu0 %v4120
      %4136 = vmatprep.subr.bf16.mxu0 0
      %4137 = vmatpush1.bf16.msra.mxu0 0
      %4138 = vmatprep.subr.bf16.mxu0 0
      %4139 = vmatpush1.bf16.msra.mxu0 0
      %4140 = vmatprep.subr.bf16.mxu0 0
      %4141 = vmatpush1.bf16.msra.mxu0 0
      %4142 = vmatprep.subr.bf16.mxu0 0
      %4143 = vmatpush1.bf16.msra.mxu0 0
      %4144 = vmatprep.subr.bf16.mxu0 0
      %4145 = vmatpush1.bf16.msra.mxu0 0
      %4146 = vmatprep.subr.bf16.mxu0 0
      %4147 = vmatpush1.bf16.msra.mxu0 0
      %4148 = vmatprep.subr.bf16.mxu0 0
      %4149 = vmatpush1.bf16.msra.mxu0 0
      %4150 = vmatprep.subr.bf16.mxu0 0
      %4151 = vmatpush1.bf16.msra.mxu0 0
      %4152 = vmatprep.subr.bf16.mxu0 0
      %4153 = vmatpush1.bf16.msra.mxu0 0
      %4154 = vmatprep.subr.bf16.mxu0 0
      %4155 = vmatpush1.bf16.msra.mxu0 0
      %4156 = vmatprep.subr.bf16.mxu0 0
      %4157 = vmatpush1.bf16.msra.mxu0 0
      %4158 = vmatprep.subr.bf16.mxu0 0
      %4159 = vmatpush1.bf16.msra.mxu0 0
      %4160 = vmatprep.subr.bf16.mxu0 0
      %4161 = vmatpush1.bf16.msra.mxu0 0
      %4162 = vmatprep.subr.bf16.mxu0 0
      %4163 = vmatpush1.bf16.msra.mxu0 0
      %4164 = vmatprep.mubr.bf16.mxu0 0
      %4165 = vmatmul.mubr.bf16.gmra.mrb[0].mxu0 %v4130
      %v4166 = vpop.f32.mrb[0].mxu0
      %v4167 = vadd.f32 0.0, %v4166
      %v4168 = vpop.f32.mrb[0].mxu0
      %v4169 = vadd.f32 0.0, %v4168
      %v4170 = vpop.f32.mrb[0].mxu0
      %v4171 = vpop.f32.mrb[0].mxu0
      %4172 = vdwg.mxu0
      %4173 = vmatprep.subr.bf16.mxu0 0
      %4174 = vmatpush1.bf16.msra.mxu0 %v4119
      %4175 = vmatprep.subr.bf16.mxu0 0
      %4176 = vmatpush1.bf16.msra.mxu0 %v4122
      %4177 = vmatprep.subr.bf16.mxu0 0
      %4178 = vmatpush1.bf16.msra.mxu0 0
      %4179 = vmatprep.subr.bf16.mxu0 0
      %4180 = vmatpush1.bf16.msra.mxu0 0
      %4181 = vmatprep.subr.bf16.mxu0 0
      %4182 = vmatpush1.bf16.msra.mxu0 0
      %4183 = vmatprep.subr.bf16.mxu0 0
      %4184 = vmatpush1.bf16.msra.mxu0 0
      %4185 = vmatprep.subr.bf16.mxu0 0
      %4186 = vmatpush1.bf16.msra.mxu0 0
      %4187 = vmatprep.subr.bf16.mxu0 0
      %4188 = vmatpush1.bf16.msra.mxu0 0
      %4189 = vmatprep.subr.bf16.mxu0 0
      %4190 = vmatpush1.bf16.msra.mxu0 0
      %4191 = vmatprep.subr.bf16.mxu0 0
      %4192 = vmatpush1.bf16.msra.mxu0 0
      %4193 = vmatprep.subr.bf16.mxu0 0
      %4194 = vmatpush1.bf16.msra.mxu0 0
      %4195 = vmatprep.subr.bf16.mxu0 0
      %4196 = vmatpush1.bf16.msra.mxu0 0
      %4197 = vmatprep.subr.bf16.mxu0 0
      %4198 = vmatpush1.bf16.msra.mxu0 0
      %4199 = vmatprep.subr.bf16.mxu0 0
      %4200 = vmatpush1.bf16.msra.mxu0 0
      %4201 = vmatprep.subr.bf16.mxu0 0
      %4202 = vmatpush1.bf16.msra.mxu0 0
      %4203 = vmatprep.subr.bf16.mxu0 0
      %4204 = vmatpush1.bf16.msra.mxu0 0
      %4205 = vmatprep.mubr.bf16.mxu0 0
      %4206 = vmatmul.mubr.bf16.gmra.mrb[0].mxu0 %v4130
      %v4207 = vpop.f32.mrb[0].mxu0
      %v4208 = vadd.f32 0.0, %v4207
      %v4209 = vpop.f32.mrb[0].mxu0
      %v4210 = vpop.f32.mrb[0].mxu0
      %v4211 = vpop.f32.mrb[0].mxu0
      %4212 = vdwg.mxu0
      %v4213 = vadd.f32 %v4095, %v4167
      %v4214 = vadd.f32 %v4096, %v4169
      %v4215 = vadd.f32 %v4097, %v4208
      %s4216 = scalar_lea.vmem %s37, 28
      %v4217 = vld [vmem:[%s4216] sm:$0xf]
      %4218 = vrot.lane.b32.xlu0 %v1164, 91
      %v4219 = vpop.permute.xlu0 %4218
      %4220 = vrot.lane.b32.xlu0 %v1165, 91
      %v4221 = vpop.permute.xlu0 %4220
      %4222 = vrot.lane.b32.xlu0 %v1166, 91
      %v4223 = vpop.permute.xlu0 %4222
      %4224 = vrot.lane.b32.xlu0 %v1167, 91
      %v4225 = vpop.permute.xlu0 %4224
      %4226 = vrot.lane.b32.xlu0 %v1168, 91
      %v4227 = vpop.permute.xlu0 %4226
      %4228 = vrot.lane.b32.xlu0 %v1169, 91
      %v4229 = vpop.permute.xlu0 %4228
      %4230 = vrot.lane.b32.xlu0 %v1170, 91
      %v4231 = vpop.permute.xlu0 %4230
      %4232 = vrot.lane.b32.xlu0 %v1171, 91
      %v4233 = vpop.permute.xlu0 %4232
      %vm4234 = vcmask 744448
      %v4235 = vsel %vm4234, %v4219, %v4221
      %v4236 = vsel %vm4234, %v4221, %v4223
      %v4237 = vsel %vm4234, %v4223, %v4225
      %v4238 = vsel %vm4234, %v4227, %v4229
      %v4239 = vsel %vm4234, %v4229, %v4231
      %v4240 = vsel %vm4234, %v4231, %v4233
      %v4248 = vsel %vm3457, %v4217, 0
      %4250 = vmatprep.subr.bf16.mxu0 %v4236
      %4251 = vmatpush1.bf16.msra.mxu0 %v4235
      %4252 = vmatprep.subr.bf16.mxu0 %v4239
      %4253 = vmatpush1.bf16.msra.mxu0 %v4238
      %4254 = vmatprep.subr.bf16.mxu0 0
      %4255 = vmatpush1.bf16.msra.mxu0 0
      %4256 = vmatprep.subr.bf16.mxu0 0
      %4257 = vmatpush1.bf16.msra.mxu0 0
      %4258 = vmatprep.subr.bf16.mxu0 0
      %4259 = vmatpush1.bf16.msra.mxu0 0
      %4260 = vmatprep.subr.bf16.mxu0 0
      %4261 = vmatpush1.bf16.msra.mxu0 0
      %4262 = vmatprep.subr.bf16.mxu0 0
      %4263 = vmatpush1.bf16.msra.mxu0 0
      %4264 = vmatprep.subr.bf16.mxu0 0
      %4265 = vmatpush1.bf16.msra.mxu0 0
      %4266 = vmatprep.subr.bf16.mxu0 0
      %4267 = vmatpush1.bf16.msra.mxu0 0
      %4268 = vmatprep.subr.bf16.mxu0 0
      %4269 = vmatpush1.bf16.msra.mxu0 0
      %4270 = vmatprep.subr.bf16.mxu0 0
      %4271 = vmatpush1.bf16.msra.mxu0 0
      %4272 = vmatprep.subr.bf16.mxu0 0
      %4273 = vmatpush1.bf16.msra.mxu0 0
      %4274 = vmatprep.subr.bf16.mxu0 0
      %4275 = vmatpush1.bf16.msra.mxu0 0
      %4276 = vmatprep.subr.bf16.mxu0 0
      %4277 = vmatpush1.bf16.msra.mxu0 0
      %4278 = vmatprep.subr.bf16.mxu0 0
      %4279 = vmatpush1.bf16.msra.mxu0 0
      %4280 = vmatprep.subr.bf16.mxu0 0
      %4281 = vmatpush1.bf16.msra.mxu0 0
      %4282 = vmatprep.mubr.bf16.mxu0 0
      %4283 = vmatmul.mubr.bf16.gmra.mrb[0].mxu0 %v4248
      %v4284 = vpop.f32.mrb[0].mxu0
      %v4285 = vadd.f32 0.0, %v4284
      %v4286 = vpop.f32.mrb[0].mxu0
      %v4287 = vadd.f32 0.0, %v4286
      %v4288 = vpop.f32.mrb[0].mxu0
      %v4289 = vpop.f32.mrb[0].mxu0
      %4290 = vdwg.mxu0
      %4291 = vmatprep.subr.bf16.mxu0 0
      %4292 = vmatpush1.bf16.msra.mxu0 %v4237
      %4293 = vmatprep.subr.bf16.mxu0 0
      %4294 = vmatpush1.bf16.msra.mxu0 %v4240
      %4295 = vmatprep.subr.bf16.mxu0 0
      %4296 = vmatpush1.bf16.msra.mxu0 0
      %4297 = vmatprep.subr.bf16.mxu0 0
      %4298 = vmatpush1.bf16.msra.mxu0 0
      %4299 = vmatprep.subr.bf16.mxu0 0
      %4300 = vmatpush1.bf16.msra.mxu0 0
      %4301 = vmatprep.subr.bf16.mxu0 0
      %4302 = vmatpush1.bf16.msra.mxu0 0
      %4303 = vmatprep.subr.bf16.mxu0 0
      %4304 = vmatpush1.bf16.msra.mxu0 0
      %4305 = vmatprep.subr.bf16.mxu0 0
      %4306 = vmatpush1.bf16.msra.mxu0 0
      %4307 = vmatprep.subr.bf16.mxu0 0
      %4308 = vmatpush1.bf16.msra.mxu0 0
      %4309 = vmatprep.subr.bf16.mxu0 0
      %4310 = vmatpush1.bf16.msra.mxu0 0
      %4311 = vmatprep.subr.bf16.mxu0 0
      %4312 = vmatpush1.bf16.msra.mxu0 0
      %4313 = vmatprep.subr.bf16.mxu0 0
      %4314 = vmatpush1.bf16.msra.mxu0 0
      %4315 = vmatprep.subr.bf16.mxu0 0
      %4316 = vmatpush1.bf16.msra.mxu0 0
      %4317 = vmatprep.subr.bf16.mxu0 0
      %4318 = vmatpush1.bf16.msra.mxu0 0
      %4319 = vmatprep.subr.bf16.mxu0 0
      %4320 = vmatpush1.bf16.msra.mxu0 0
      %4321 = vmatprep.subr.bf16.mxu0 0
      %4322 = vmatpush1.bf16.msra.mxu0 0
      %4323 = vmatprep.mubr.bf16.mxu0 0
      %4324 = vmatmul.mubr.bf16.gmra.mrb[0].mxu0 %v4248
      %v4325 = vpop.f32.mrb[0].mxu0
      %v4326 = vadd.f32 0.0, %v4325
      %v4327 = vpop.f32.mrb[0].mxu0
      %v4328 = vpop.f32.mrb[0].mxu0
      %v4329 = vpop.f32.mrb[0].mxu0
      %4330 = vdwg.mxu0
      %v4331 = vadd.f32 %v4213, %v4285
      %v4332 = vadd.f32 %v4214, %v4287
      %v4333 = vadd.f32 %v4215, %v4326
      %s4334 = scalar_lea.vmem %s37, 32
      %v4335 = vld [vmem:[%s4334] sm:$0xf]
      %4336 = vrot.lane.b32.xlu0 %v1164, 90
      %v4337 = vpop.permute.xlu0 %4336
      %4338 = vrot.lane.b32.xlu0 %v1165, 90
      %v4339 = vpop.permute.xlu0 %4338
      %4340 = vrot.lane.b32.xlu0 %v1166, 90
      %v4341 = vpop.permute.xlu0 %4340
      %4342 = vrot.lane.b32.xlu0 %v1167, 90
      %v4343 = vpop.permute.xlu0 %4342
      %4344 = vrot.lane.b32.xlu0 %v1168, 90
      %v4345 = vpop.permute.xlu0 %4344
      %4346 = vrot.lane.b32.xlu0 %v1169, 90
      %v4347 = vpop.permute.xlu0 %4346
      %4348 = vrot.lane.b32.xlu0 %v1170, 90
      %v4349 = vpop.permute.xlu0 %4348
      %4350 = vrot.lane.b32.xlu0 %v1171, 90
      %v4351 = vpop.permute.xlu0 %4350
      %vm4352 = vcmask 736256
      %v4353 = vsel %vm4352, %v4337, %v4339
      %v4354 = vsel %vm4352, %v4339, %v4341
      %v4355 = vsel %vm4352, %v4341, %v4343
      %v4356 = vsel %vm4352, %v4345, %v4347
      %v4357 = vsel %vm4352, %v4347, %v4349
      %v4358 = vsel %vm4352, %v4349, %v4351
      %v4366 = vsel %vm3457, %v4335, 0
      %4368 = vmatprep.subr.bf16.mxu0 %v4354
      %4369 = vmatpush1.bf16.msra.mxu0 %v4353
      %4370 = vmatprep.subr.bf16.mxu0 %v4357
      %4371 = vmatpush1.bf16.msra.mxu0 %v4356
      %4372 = vmatprep.subr.bf16.mxu0 0
      %4373 = vmatpush1.bf16.msra.mxu0 0
      %4374 = vmatprep.subr.bf16.mxu0 0
      %4375 = vmatpush1.bf16.msra.mxu0 0
      %4376 = vmatprep.subr.bf16.mxu0 0
      %4377 = vmatpush1.bf16.msra.mxu0 0
      %4378 = vmatprep.subr.bf16.mxu0 0
      %4379 = vmatpush1.bf16.msra.mxu0 0
      %4380 = vmatprep.subr.bf16.mxu0 0
      %4381 = vmatpush1.bf16.msra.mxu0 0
      %4382 = vmatprep.subr.bf16.mxu0 0
      %4383 = vmatpush1.bf16.msra.mxu0 0
      %4384 = vmatprep.subr.bf16.mxu0 0
      %4385 = vmatpush1.bf16.msra.mxu0 0
      %4386 = vmatprep.subr.bf16.mxu0 0
      %4387 = vmatpush1.bf16.msra.mxu0 0
      %4388 = vmatprep.subr.bf16.mxu0 0
      %4389 = vmatpush1.bf16.msra.mxu0 0
      %4390 = vmatprep.subr.bf16.mxu0 0
      %4391 = vmatpush1.bf16.msra.mxu0 0
      %4392 = vmatprep.subr.bf16.mxu0 0
      %4393 = vmatpush1.bf16.msra.mxu0 0
      %4394 = vmatprep.subr.bf16.mxu0 0
      %4395 = vmatpush1.bf16.msra.mxu0 0
      %4396 = vmatprep.subr.bf16.mxu0 0
      %4397 = vmatpush1.bf16.msra.mxu0 0
      %4398 = vmatprep.subr.bf16.mxu0 0
      %4399 = vmatpush1.bf16.msra.mxu0 0
      %4400 = vmatprep.mubr.bf16.mxu0 0
      %4401 = vmatmul.mubr.bf16.gmra.mrb[0].mxu0 %v4366
      %v4402 = vpop.f32.mrb[0].mxu0
      %v4403 = vadd.f32 0.0, %v4402
      %v4404 = vpop.f32.mrb[0].mxu0
      %v4405 = vadd.f32 0.0, %v4404
      %v4406 = vpop.f32.mrb[0].mxu0
      %v4407 = vpop.f32.mrb[0].mxu0
      %4408 = vdwg.mxu0
      %4409 = vmatprep.subr.bf16.mxu0 0
      %4410 = vmatpush1.bf16.msra.mxu0 %v4355
      %4411 = vmatprep.subr.bf16.mxu0 0
      %4412 = vmatpush1.bf16.msra.mxu0 %v4358
      %4413 = vmatprep.subr.bf16.mxu0 0
      %4414 = vmatpush1.bf16.msra.mxu0 0
      %4415 = vmatprep.subr.bf16.mxu0 0
      %4416 = vmatpush1.bf16.msra.mxu0 0
      %4417 = vmatprep.subr.bf16.mxu0 0
      %4418 = vmatpush1.bf16.msra.mxu0 0
      %4419 = vmatprep.subr.bf16.mxu0 0
      %4420 = vmatpush1.bf16.msra.mxu0 0
      %4421 = vmatprep.subr.bf16.mxu0 0
      %4422 = vmatpush1.bf16.msra.mxu0 0
      %4423 = vmatprep.subr.bf16.mxu0 0
      %4424 = vmatpush1.bf16.msra.mxu0 0
      %4425 = vmatprep.subr.bf16.mxu0 0
      %4426 = vmatpush1.bf16.msra.mxu0 0
      %4427 = vmatprep.subr.bf16.mxu0 0
      %4428 = vmatpush1.bf16.msra.mxu0 0
      %4429 = vmatprep.subr.bf16.mxu0 0
      %4430 = vmatpush1.bf16.msra.mxu0 0
      %4431 = vmatprep.subr.bf16.mxu0 0
      %4432 = vmatpush1.bf16.msra.mxu0 0
      %4433 = vmatprep.subr.bf16.mxu0 0
      %4434 = vmatpush1.bf16.msra.mxu0 0
      %4435 = vmatprep.subr.bf16.mxu0 0
      %4436 = vmatpush1.bf16.msra.mxu0 0
      %4437 = vmatprep.subr.bf16.mxu0 0
      %4438 = vmatpush1.bf16.msra.mxu0 0
      %4439 = vmatprep.subr.bf16.mxu0 0
      %4440 = vmatpush1.bf16.msra.mxu0 0
      %4441 = vmatprep.mubr.bf16.mxu0 0
      %4442 = vmatmul.mubr.bf16.gmra.mrb[0].mxu0 %v4366
      %v4443 = vpop.f32.mrb[0].mxu0
      %v4444 = vadd.f32 0.0, %v4443
      %v4445 = vpop.f32.mrb[0].mxu0
      %v4446 = vpop.f32.mrb[0].mxu0
      %v4447 = vpop.f32.mrb[0].mxu0
      %4448 = vdwg.mxu0
      %v4449 = vadd.f32 %v4331, %v4403
      %v4450 = vadd.f32 %v4332, %v4405
      %v4451 = vadd.f32 %v4333, %v4444
      %v4452 = vld [vmem:[%s39] sm:$0xff]
      %4454 = vset.pattern.permute.xlu0 0
      %4455 = vperm.xlu0 %4454, %v4452
      %v4456 = vpop.permute.xlu0 %4455
      %v4458 = vmul.f32 %v4449, %v4456
      %v4459 = vmul.f32 %v4450, %v4456
      %v4460 = vmul.f32 %v4451, %v4456
      %v4461 = vld [vmem:[%s41] sm:$0xff]
      %4463 = vset.pattern.permute.xlu0 0
      %4464 = vperm.xlu0 %4463, %v4461
      %v4465 = vpop.permute.xlu0 %4464
      %v4467 = vadd.f32 %v4458, %v4465
      %v4468 = vadd.f32 %v4459, %v4465
      %v4469 = vadd.f32 %v4460, %v4465
      %v4470 = vmax.f32 %v4467, 0.0
      %v4471 = vmax.f32 %v4468, 0.0
      %v4472 = vmax.f32 %v4469, 0.0
      %v4473 = vld [vmem:[%s43] sm:$0xf]
      %v4474 = vld [vmem:[%s43 + $0x4] sm:$0xf]
      %v4475 = vld [vmem:[%s43 + $0x8] sm:$0xf]
      %v4476 = vld [vmem:[%s43 + $0xc] sm:$0xf]
      %v4477 = vld [vmem:[%s43 + $0x10] sm:$0x3]
      %v4478 = vpack.c.bf16 %v4470, %v4470
      %v4479 = vpack.c.bf16 %v4471, %v4471
      %v4480 = vpack.c.bf16 %v4472, %v4472
      %v4481 = vld [vmem:[%s45] sm:$0xff]
      %v4482 = vld [vmem:[%s45 + $0x8] sm:$0xff]
      %v4483 = vld [vmem:[%s45 + $0x10] sm:$0xff]
      %v4484 = vld [vmem:[%s45 + $0x18] sm:$0xff]
      %v4485 = vld [vmem:[%s45 + $0x20] sm:$0xf]
      %4487 = vset.pattern.permute.xlu0 0
      %4488 = vperm.xlu0 %4487, %v4481
      %v4489 = vpop.permute.xlu0 %4488
      %4492 = vset.pattern.permute.xlu0 0
      %4493 = vperm.xlu0 %4492, %v4482
      %v4494 = vpop.permute.xlu0 %4493
      %4497 = vset.pattern.permute.xlu0 0
      %4498 = vperm.xlu0 %4497, %v4483
      %v4499 = vpop.permute.xlu0 %4498
      %4502 = vset.pattern.permute.xlu0 0
      %4503 = vperm.xlu0 %4502, %v4484
      %v4504 = vpop.permute.xlu0 %4503
      %4507 = vset.pattern.permute.xlu0 0
      %4508 = vperm.xlu0 %4507, %v4485
      %v4509 = vpop.permute.xlu0 %4508
      %v4516 = vunpack.c.l.b16 %v4473
      %v4517 = vunpack.c.l.b16 %v4474
      %v4518 = vunpack.c.l.b16 %v4475
      %v4519 = vunpack.c.l.b16 %v4476
      %v4520 = vunpack.c.l.b16 %v4477
      %v4521 = vpack.c.b16 %v4517, %v4516
      %v4522 = vpack.c.b16 %v4519, %v4518
      %v4523 = vpack.c.b16 %v4520, %v4520
      %v4525 = vsel %vm2934, %v4521, 0
      %v4528 = vsel %vm2934, %v4522, 0
      %v4531 = vsel %vm2934, %v4523, 0
      %vm4533 = vcmask 1043456
      %v4535 = vsel %vm4533, %v4478, 0
      %v4538 = vsel %vm4533, %v4479, 0
      %v4541 = vsel %vm4533, %v4480, 0
      %4543 = vmatprep.subr.bf16.mxu0 %v4538
      %4544 = vmatpush1.bf16.msra.mxu0 %v4535
      %4545 = vmatprep.subr.bf16.mxu0 0
      %4546 = vmatpush1.bf16.msra.mxu0 0
      %4547 = vmatprep.subr.bf16.mxu0 0
      %4548 = vmatpush1.bf16.msra.mxu0 0
      %4549 = vmatprep.subr.bf16.mxu0 0
      %4550 = vmatpush1.bf16.msra.mxu0 0
      %4551 = vmatprep.subr.bf16.mxu0 0
      %4552 = vmatpush1.bf16.msra.mxu0 0
      %4553 = vmatprep.subr.bf16.mxu0 0
      %4554 = vmatpush1.bf16.msra.mxu0 0
      %4555 = vmatprep.subr.bf16.mxu0 0
      %4556 = vmatpush1.bf16.msra.mxu0 0
      %4557 = vmatprep.subr.bf16.mxu0 0
      %4558 = vmatpush1.bf16.msra.mxu0 0
      %4559 = vmatprep.subr.bf16.mxu0 0
      %4560 = vmatpush1.bf16.msra.mxu0 0
      %4561 = vmatprep.subr.bf16.mxu0 0
      %4562 = vmatpush1.bf16.msra.mxu0 0
      %4563 = vmatprep.subr.bf16.mxu0 0
      %4564 = vmatpush1.bf16.msra.mxu0 0
      %4565 = vmatprep.subr.bf16.mxu0 0
      %4566 = vmatpush1.bf16.msra.mxu0 0
      %4567 = vmatprep.subr.bf16.mxu0 0
      %4568 = vmatpush1.bf16.msra.mxu0 0
      %4569 = vmatprep.subr.bf16.mxu0 0
      %4570 = vmatpush1.bf16.msra.mxu0 0
      %4571 = vmatprep.subr.bf16.mxu0 0
      %4572 = vmatpush1.bf16.msra.mxu0 0
      %4573 = vmatprep.subr.bf16.mxu0 0
      %4574 = vmatpush1.bf16.msra.mxu0 0
      %4575 = vmatprep.mubr.bf16.mxu0 0
      %4576 = vmatmul.mubr.bf16.gmra.mrb[0].mxu0 %v4525
      %v4577 = vpop.f32.mrb[0].mxu0
      %v4578 = vadd.f32 %v4489, %v4577
      %v4579 = vpop.f32.mrb[0].mxu0
      %v4580 = vadd.f32 %v4489, %v4579
      %v4581 = vpop.f32.mrb[0].mxu0
      %v4582 = vadd.f32 %v4494, %v4581
      %v4583 = vpop.f32.mrb[0].mxu0
      %v4584 = vadd.f32 %v4494, %v4583
      %4585 = vmatprep.mubr.bf16.mxu0 0
      %4586 = vmatmul.mubr.bf16.gmra.mrb[0].mxu0 %v4528
      %v4587 = vpop.f32.mrb[0].mxu0
      %v4588 = vadd.f32 %v4499, %v4587
      %v4589 = vpop.f32.mrb[0].mxu0
      %v4590 = vadd.f32 %v4499, %v4589
      %v4591 = vpop.f32.mrb[0].mxu0
      %v4592 = vadd.f32 %v4504, %v4591
      %v4593 = vpop.f32.mrb[0].mxu0
      %v4594 = vadd.f32 %v4504, %v4593
      %4595 = vmatprep.mubr.bf16.mxu0 0
      %4596 = vmatmul.mubr.bf16.gmra.mrb[0].mxu0 %v4531
      %v4597 = vpop.f32.mrb[0].mxu0
      %v4598 = vadd.f32 %v4509, %v4597
      %v4599 = vpop.f32.mrb[0].mxu0
      %v4600 = vadd.f32 %v4509, %v4599
      %v4601 = vpop.f32.mrb[0].mxu0
      %v4602 = vpop.f32.mrb[0].mxu0
      %4603 = vdwg.mxu0
      %4604 = vmatprep.subr.bf16.mxu0 0
      %4605 = vmatpush1.bf16.msra.mxu0 %v4541
      %4606 = vmatprep.subr.bf16.mxu0 0
      %4607 = vmatpush1.bf16.msra.mxu0 0
      %4608 = vmatprep.subr.bf16.mxu0 0
      %4609 = vmatpush1.bf16.msra.mxu0 0
      %4610 = vmatprep.subr.bf16.mxu0 0
      %4611 = vmatpush1.bf16.msra.mxu0 0
      %4612 = vmatprep.subr.bf16.mxu0 0
      %4613 = vmatpush1.bf16.msra.mxu0 0
      %4614 = vmatprep.subr.bf16.mxu0 0
      %4615 = vmatpush1.bf16.msra.mxu0 0
      %4616 = vmatprep.subr.bf16.mxu0 0
      %4617 = vmatpush1.bf16.msra.mxu0 0
      %4618 = vmatprep.subr.bf16.mxu0 0
      %4619 = vmatpush1.bf16.msra.mxu0 0
      %4620 = vmatprep.subr.bf16.mxu0 0
      %4621 = vmatpush1.bf16.msra.mxu0 0
      %4622 = vmatprep.subr.bf16.mxu0 0
      %4623 = vmatpush1.bf16.msra.mxu0 0
      %4624 = vmatprep.subr.bf16.mxu0 0
      %4625 = vmatpush1.bf16.msra.mxu0 0
      %4626 = vmatprep.subr.bf16.mxu0 0
      %4627 = vmatpush1.bf16.msra.mxu0 0
      %4628 = vmatprep.subr.bf16.mxu0 0
      %4629 = vmatpush1.bf16.msra.mxu0 0
      %4630 = vmatprep.subr.bf16.mxu0 0
      %4631 = vmatpush1.bf16.msra.mxu0 0
      %4632 = vmatprep.subr.bf16.mxu0 0
      %4633 = vmatpush1.bf16.msra.mxu0 0
      %4634 = vmatprep.subr.bf16.mxu0 0
      %4635 = vmatpush1.bf16.msra.mxu0 0
      %4636 = vmatprep.mubr.bf16.mxu0 0
      %4637 = vmatmul.mubr.bf16.gmra.mrb[0].mxu0 %v4525
      %v4638 = vpop.f32.mrb[0].mxu0
      %v4639 = vadd.f32 %v4489, %v4638
      %v4640 = vpop.f32.mrb[0].mxu0
      %v4641 = vpop.f32.mrb[0].mxu0
      %v4642 = vadd.f32 %v4494, %v4641
      %v4643 = vpop.f32.mrb[0].mxu0
      %4644 = vmatprep.mubr.bf16.mxu0 0
      %4645 = vmatmul.mubr.bf16.gmra.mrb[0].mxu0 %v4528
      %v4646 = vpop.f32.mrb[0].mxu0
      %v4647 = vadd.f32 %v4499, %v4646
      %v4648 = vpop.f32.mrb[0].mxu0
      %v4649 = vpop.f32.mrb[0].mxu0
      %v4650 = vadd.f32 %v4504, %v4649
      %v4651 = vpop.f32.mrb[0].mxu0
      %4652 = vmatprep.mubr.bf16.mxu0 0
      %4653 = vmatmul.mubr.bf16.gmra.mrb[0].mxu0 %v4531
      %v4654 = vpop.f32.mrb[0].mxu0
      %v4655 = vadd.f32 %v4509, %v4654
      %v4656 = vpop.f32.mrb[0].mxu0
      %v4657 = vpop.f32.mrb[0].mxu0
      %v4658 = vpop.f32.mrb[0].mxu0
      %4659 = vdwg.mxu0
      %v4660 = vxor.u32 %v4588, 2147483648
      %v4661 = vxor.u32 %v4590, 2147483648
      %v4662 = vxor.u32 %v4647, 2147483648
      %v4663 = vxor.u32 %v4592, 2147483648
      %v4664 = vxor.u32 %v4594, 2147483648
      %v4665 = vxor.u32 %v4650, 2147483648
      %v4666 = vxor.u32 %v4598, 2147483648
      %v4667 = vxor.u32 %v4600, 2147483648
      %v4668 = vxor.u32 %v4655, 2147483648
      %v4669 = vmul.f32 %v4660, 1.442695
      %v4670 = vpow.pop %v4669
      %v4671 = vmul.f32 %v4661, 1.442695
      %v4672 = vpow.pop %v4671
      %v4673 = vmul.f32 %v4662, 1.442695
      %v4674 = vpow.pop %v4673
      %v4675 = vmul.f32 %v4663, 1.442695
      %v4676 = vpow.pop %v4675
      %v4677 = vmul.f32 %v4664, 1.442695
      %v4678 = vpow.pop %v4677
      %v4679 = vmul.f32 %v4665, 1.442695
      %v4680 = vpow.pop %v4679
      %v4681 = vmul.f32 %v4666, 1.442695
      %v4682 = vpow.pop %v4681
      %v4683 = vmul.f32 %v4667, 1.442695
      %v4684 = vpow.pop %v4683
      %v4685 = vmul.f32 %v4668, 1.442695
      %v4686 = vpow.pop %v4685
      %v4687 = vadd.f32 %v4670, 1.0
      %v4688 = vadd.f32 %v4672, 1.0
      %v4689 = vadd.f32 %v4674, 1.0
      %v4690 = vadd.f32 %v4676, 1.0
      %v4691 = vadd.f32 %v4678, 1.0
      %v4692 = vadd.f32 %v4680, 1.0
      %v4693 = vadd.f32 %v4682, 1.0
      %v4694 = vadd.f32 %v4684, 1.0
      %v4695 = vadd.f32 %v4686, 1.0
      %v4696 = vrcp.pop %v4687
      %v4697 = vmul.f32 1.0, %v4696
      %v4698 = vrcp.pop %v4688
      %v4699 = vmul.f32 1.0, %v4698
      %v4700 = vrcp.pop %v4689
      %v4701 = vmul.f32 1.0, %v4700
      %v4702 = vrcp.pop %v4690
      %v4703 = vmul.f32 1.0, %v4702
      %v4704 = vrcp.pop %v4691
      %v4705 = vmul.f32 1.0, %v4704
      %v4706 = vrcp.pop %v4692
      %v4707 = vmul.f32 1.0, %v4706
      %v4708 = vrcp.pop %v4693
      %v4709 = vmul.f32 1.0, %v4708
      %v4710 = vrcp.pop %v4694
      %v4711 = vmul.f32 1.0, %v4710
      %v4712 = vrcp.pop %v4695
      %v4713 = vmul.f32 1.0, %v4712
      %4714 = vst [vmem:[%s978] sm:$0xff] %v4578
      %4715 = vst [vmem:[%s978 + $0x8] sm:$0xff] %v4580
      %4716 = vst [vmem:[%s978 + $0x10] sm:$0xff] %v4639
      %4717 = vst [vmem:[%s978 + $0x18] sm:$0xff] %v4582
      %4718 = vst [vmem:[%s978 + $0x20] sm:$0xff] %v4584
      %4719 = vst [vmem:[%s978 + $0x28] sm:$0xff] %v4642
      %4720 = vst [vmem:[%s978 + $0x30] sm:$0x3] %v4588
      %4721 = vst [vmem:[%s978 + $0x38] sm:$0x3] %v4590
      %4722 = vst [vmem:[%s978 + $0x40] sm:$0x3] %v4647
      %vm4732 = vcmask 1045504
      %v4733 = vrot.slane %v4697, 2
      %v4734 = vrot.slane %v4703, 2
      %v4735 = vsel %vm4732, %v4733, %v4734
      %v4736 = vrot.slane %v4699, 2
      %v4737 = vrot.slane %v4705, 2
      %v4738 = vsel %vm4732, %v4736, %v4737
      %v4739 = vrot.slane %v4701, 2
      %v4740 = vrot.slane %v4707, 2
      %v4741 = vsel %vm4732, %v4739, %v4740
      %v4742 = vrot.slane %v4709, 2
      %v4743 = vsel %vm4732, %v4734, %v4742
      %v4744 = vrot.slane %v4711, 2
      %v4745 = vsel %vm4732, %v4737, %v4744
      %v4746 = vrot.slane %v4713, 2
      %v4747 = vsel %vm4732, %v4740, %v4746
      %4757 = vst [vmem:[%s983] sm:$0xff] %v4735
      %4758 = vst [vmem:[%s983 + $0x8] sm:$0xff] %v4738
      %4759 = vst [vmem:[%s983 + $0x10] sm:$0xff] %v4741
      %4760 = vst [vmem:[%s983 + $0x18] sm:$0xff] %v4743
      %4761 = vst [vmem:[%s983 + $0x20] sm:$0xff] %v4745
      %4762 = vst [vmem:[%s983 + $0x28] sm:$0xff] %v4747
      %4763 = vst [vmem:[%s983 + $0x30] sm:$0x3] %v4742
      %4764 = vst [vmem:[%s983 + $0x38] sm:$0x3] %v4744
      %4765 = vst [vmem:[%s983 + $0x40] sm:$0x3] %v4746
      %v4766 = vmul.f32 %v4578, %v4578
      %v4767 = vmul.f32 %v4580, %v4580
      %v4768 = vmul.f32 %v4639, %v4639
      %v4769 = vmul.f32 %v4582, %v4582
      %v4770 = vmul.f32 %v4584, %v4584
      %v4771 = vmul.f32 %v4642, %v4642
      %v4772 = vmul.f32 %v4588, %v4588
      %v4773 = vmul.f32 %v4590, %v4590
      %v4774 = vmul.f32 %v4647, %v4647
      %vm4781 = vcmask 1046528
      %v4782 = vrot.slane %v4769, 1
      %v4783 = vrot.slane %v4772, 1
      %v4784 = vsel %vm4781, %v4782, %v4783
      %v4785 = vrot.slane %v4770, 1
      %v4786 = vrot.slane %v4773, 1
      %v4787 = vsel %vm4781, %v4785, %v4786
      %v4788 = vrot.slane %v4771, 1
      %v4789 = vrot.slane %v4774, 1
      %v4790 = vsel %vm4781, %v4788, %v4789
      %v4797 = vadd.f32 %v4766, %v4784
      %v4798 = vadd.f32 %v4767, %v4787
      %v4799 = vadd.f32 %v4768, %v4790
      %v4800 = vadd.f32 %v4769, %v4783
      %v4801 = vadd.f32 %v4770, %v4786
      %v4802 = vadd.f32 %v4771, %v4789
      %vm4803 = vcmp.lt.f32.partialorder %v4797, 0.25
      %vm4804 = vcmp.lt.f32.partialorder %v4798, 0.25
      %vm4805 = vcmp.lt.f32.partialorder %v4799, 0.25
      %vm4806 = vcmp.lt.f32.partialorder %v4800, 0.25
      %vm4807 = vcmp.lt.f32.partialorder %v4801, 0.25
      %vm4808 = vcmp.lt.f32.partialorder %v4802, 0.25
      %v4809 = vsel %vm4803, 1, 0
      %v4810 = vsel %vm4804, 1, 0
      %v4811 = vsel %vm4805, 1, 0
      %v4812 = vsel %vm4806, 1, 0
      %v4813 = vsel %vm4807, 1, 0
      %v4814 = vsel %vm4808, 1, 0
      %v4815 = vcvt.s32.f32 %v4809
      %v4816 = vcvt.s32.f32 %v4810
      %v4817 = vcvt.s32.f32 %v4811
      %v4818 = vcvt.s32.f32 %v4812
      %v4819 = vcvt.s32.f32 %v4813
      %v4820 = vcvt.s32.f32 %v4814
      %vm4821 = vcmask 1040384
      %v4822 = vsel %vm4821, %v4818, 0.0
      %v4823 = vadd.f32 %v4815, %v4822
      %v4824 = vrot.slane %v4823, 4
      %v4825 = vadd.f32 %v4823, %v4824
      %v4826 = vrot.slane %v4825, 2
      %v4827 = vadd.f32 %v4825, %v4826
      %v4828 = vrot.slane %v4827, 1
      %v4829 = vadd.f32 %v4827, %v4828
      %v4830 = vsel %vm4821, %v4819, 0.0
      %v4831 = vadd.f32 %v4816, %v4830
      %v4832 = vrot.slane %v4831, 4
      %v4833 = vadd.f32 %v4831, %v4832
      %v4834 = vrot.slane %v4833, 2
      %v4835 = vadd.f32 %v4833, %v4834
      %v4836 = vrot.slane %v4835, 1
      %v4837 = vadd.f32 %v4835, %v4836
      %v4838 = vsel %vm4821, %v4820, 0.0
      %v4839 = vadd.f32 %v4817, %v4838
      %v4840 = vrot.slane %v4839, 4
      %v4841 = vadd.f32 %v4839, %v4840
      %v4842 = vrot.slane %v4841, 2
      %v4843 = vadd.f32 %v4841, %v4842
      %v4844 = vrot.slane %v4843, 1
      %v4845 = vadd.f32 %v4843, %v4844
      %v4846 = vrcp.pop 9.0
      %v4847 = vmul.f32 %v4829, %v4846
      %v4848 = vmul.f32 %v4837, %v4846
      %v4849 = vmul.f32 %v4845, %v4846
      %v4853 = vsel %vm4821, %v4734, 0.0
      %v4854 = vadd.f32 %v4735, %v4853
      %v4855 = vrot.slane %v4854, 4
      %v4856 = vadd.f32 %v4854, %v4855
      %v4857 = vrot.slane %v4856, 2
      %v4858 = vadd.f32 %v4856, %v4857
      %v4859 = vrot.slane %v4858, 1
      %v4860 = vadd.f32 %v4858, %v4859
      %v4861 = vsel %vm4821, %v4737, 0.0
      %v4862 = vadd.f32 %v4738, %v4861
      %v4863 = vrot.slane %v4862, 4
      %v4864 = vadd.f32 %v4862, %v4863
      %v4865 = vrot.slane %v4864, 2
      %v4866 = vadd.f32 %v4864, %v4865
      %v4867 = vrot.slane %v4866, 1
      %v4868 = vadd.f32 %v4866, %v4867
      %v4869 = vsel %vm4821, %v4740, 0.0
      %v4870 = vadd.f32 %v4741, %v4869
      %v4871 = vrot.slane %v4870, 4
      %v4872 = vadd.f32 %v4870, %v4871
      %v4873 = vrot.slane %v4872, 2
      %v4874 = vadd.f32 %v4872, %v4873
      %v4875 = vrot.slane %v4874, 1
      %v4876 = vadd.f32 %v4874, %v4875
      %v4877 = vmul.f32 %v4860, %v4846
      %v4878 = vmul.f32 %v4868, %v4846
      %v4879 = vmul.f32 %v4876, %v4846
      %vm4880 = vcmask 1044480
      %v4881 = vrot.slane %v4703, 3
      %v4882 = vrot.slane %v4709, 3
      %v4883 = vsel %vm4880, %v4881, %v4882
      %v4884 = vrot.slane %v4705, 3
      %v4885 = vrot.slane %v4711, 3
      %v4886 = vsel %vm4880, %v4884, %v4885
      %v4887 = vrot.slane %v4707, 3
      %v4888 = vrot.slane %v4713, 3
      %v4889 = vsel %vm4880, %v4887, %v4888
      %v4896 = vsel %vm4821, %v4882, 0.0
      %v4897 = vadd.f32 %v4883, %v4896
      %v4898 = vrot.slane %v4897, 4
      %v4899 = vadd.f32 %v4897, %v4898
      %v4900 = vrot.slane %v4899, 2
      %v4901 = vadd.f32 %v4899, %v4900
      %v4902 = vrot.slane %v4901, 1
      %v4903 = vadd.f32 %v4901, %v4902
      %v4904 = vsel %vm4821, %v4885, 0.0
      %v4905 = vadd.f32 %v4886, %v4904
      %v4906 = vrot.slane %v4905, 4
      %v4907 = vadd.f32 %v4905, %v4906
      %v4908 = vrot.slane %v4907, 2
      %v4909 = vadd.f32 %v4907, %v4908
      %v4910 = vrot.slane %v4909, 1
      %v4911 = vadd.f32 %v4909, %v4910
      %v4912 = vsel %vm4821, %v4888, 0.0
      %v4913 = vadd.f32 %v4889, %v4912
      %v4914 = vrot.slane %v4913, 4
      %v4915 = vadd.f32 %v4913, %v4914
      %v4916 = vrot.slane %v4915, 2
      %v4917 = vadd.f32 %v4915, %v4916
      %v4918 = vrot.slane %v4917, 1
      %v4919 = vadd.f32 %v4917, %v4918
      %v4920 = vmul.f32 %v4903, %v4846
      %v4921 = vmul.f32 %v4911, %v4846
      %v4922 = vmul.f32 %v4919, %v4846
      %vm4923 = vcmp.gt.f32.partialorder %v4877, %v4920
      %vm4924 = vcmp.gt.f32.partialorder %v4878, %v4921
      %vm4925 = vcmp.gt.f32.partialorder %v4879, %v4922
      %v4926 = vsel %vm4923, 1, 0
      %v4927 = vsel %vm4924, 1, 0
      %v4928 = vsel %vm4925, 1, 0
      %v4929 = vcvt.s32.f32 %v4926
      %v4930 = vcvt.s32.f32 %v4927
      %v4931 = vcvt.s32.f32 %v4928
      %vm4932 = vcmp.gt.f32.partialorder %v4929, 0.5
      %vm4933 = vcmp.gt.f32.partialorder %v4930, 0.5
      %vm4934 = vcmp.gt.f32.partialorder %v4931, 0.5
      %v4935 = vsel %vm4932, 1, 0
      %v4936 = vsel %vm4933, 1, 0
      %v4937 = vsel %vm4934, 1, 0
      %vm4938 = vcmp.eq.s32.totalorder %v4935, 1
      %vm4939 = vcmp.eq.s32.totalorder %v4936, 1
      %vm4940 = vcmp.eq.s32.totalorder %v4937, 1
      %4949 = vrot.lane.b32.xlu0 %v1175, 109
      %v4950 = vpop.permute.xlu0 %4949
      %4951 = vrot.lane.b32.xlu0 %v1176, 109
      %v4952 = vpop.permute.xlu0 %4951
      %4953 = vrot.lane.b32.xlu0 %v1177, 109
      %v4954 = vpop.permute.xlu0 %4953
      %4955 = vrot.lane.b32.xlu0 %v1197, 109
      %v4956 = vpop.permute.xlu0 %4955
      %4957 = vrot.lane.b32.xlu0 %v1178, 109
      %v4958 = vpop.permute.xlu0 %4957
      %4959 = vrot.lane.b32.xlu0 %v1179, 109
      %v4960 = vpop.permute.xlu0 %4959
      %4961 = vrot.lane.b32.xlu0 %v1180, 109
      %v4962 = vpop.permute.xlu0 %4961
      %4963 = vrot.lane.b32.xlu0 %v1198, 109
      %v4964 = vpop.permute.xlu0 %4963
      %v4965 = vsel %vm1416, %v4950, %v4952
      %v4966 = vsel %vm1416, %v4952, %v4954
      %v4967 = vsel %vm1416, %v4954, %v4956
      %v4968 = vsel %vm1416, %v4958, %v4960
      %v4969 = vsel %vm1416, %v4960, %v4962
      %v4970 = vsel %vm1416, %v4962, %v4964
      %4985 = vrot.lane.b32.xlu0 %v1673, 109
      %v4986 = vpop.permute.xlu0 %4985
      %4987 = vrot.lane.b32.xlu0 %v1674, 109
      %v4988 = vpop.permute.xlu0 %4987
      %4989 = vrot.lane.b32.xlu0 %v1675, 109
      %v4990 = vpop.permute.xlu0 %4989
      %4991 = vrot.lane.b32.xlu0 %v1695, 109
      %v4992 = vpop.permute.xlu0 %4991
      %4993 = vrot.lane.b32.xlu0 %v1676, 109
      %v4994 = vpop.permute.xlu0 %4993
      %4995 = vrot.lane.b32.xlu0 %v1677, 109
      %v4996 = vpop.permute.xlu0 %4995
      %4997 = vrot.lane.b32.xlu0 %v1678, 109
      %v4998 = vpop.permute.xlu0 %4997
      %4999 = vrot.lane.b32.xlu0 %v1696, 109
      %v5000 = vpop.permute.xlu0 %4999
      %v5001 = vsel %vm1416, %v4986, %v4988
      %v5002 = vsel %vm1416, %v4988, %v4990
      %v5003 = vsel %vm1416, %v4990, %v4992
      %v5004 = vsel %vm1416, %v4994, %v4996
      %v5005 = vsel %vm1416, %v4996, %v4998
      %v5006 = vsel %vm1416, %v4998, %v5000
      %v5013 = vsel %vm4938, %v4965, %v5001
      %v5014 = vsel %vm4939, %v4966, %v5002
      %v5015 = vsel %vm4940, %v4967, %v5003
      %v5016 = vsel %vm4938, %v4968, %v5004
      %v5017 = vsel %vm4939, %v4969, %v5005
      %v5018 = vsel %vm4940, %v4970, %v5006
      %vm5019 = vcmp.gt.f32.partialorder %v4847, 0.5
      %vm5020 = vcmp.gt.f32.partialorder %v4848, 0.5
      %vm5021 = vcmp.gt.f32.partialorder %v4849, 0.5
      %v5022 = vsel %vm5019, 1, 0
      %v5023 = vsel %vm5020, 1, 0
      %v5024 = vsel %vm5021, 1, 0
      %vm5025 = vcmp.eq.s32.totalorder %v5022, 1
      %vm5026 = vcmp.eq.s32.totalorder %v5023, 1
      %vm5027 = vcmp.eq.s32.totalorder %v5024, 1
      %v5028 = vsel %vm5025, %v3411, %v5013
      %v5029 = vsel %vm5026, %v3412, %v5014
      %v5030 = vsel %vm5027, %v3413, %v5015
      %v5031 = vsel %vm5025, %v3414, %v5016
      %v5032 = vsel %vm5026, %v3415, %v5017
      %v5033 = vsel %vm5027, %v3416, %v5018
      %v5034 = vld [vmem:[%s47] sm:$0xf]
      %v5035 = vld [vmem:[%s47 + $0x4] sm:$0xf]
      %v5036 = vpack.c.bf16 %v5031, %v5028
      %v5037 = vpack.c.bf16 %v5032, %v5029
      %v5038 = vpack.c.bf16 %v5033, %v5030
      %v5041 = vunpack.c.l.b16 %v5034
      %v5042 = vunpack.c.l.b16 %v5035
      %v5043 = vpack.c.b16 %v5042, %v5041
      %v5045 = vsel %vm2171, %v5043, 0
      %5047 = vmatprep.subr.bf16.mxu0 %v5037
      %5048 = vmatpush1.bf16.msra.mxu0 %v5036
      %5049 = vmatprep.subr.bf16.mxu0 0
      %5050 = vmatpush1.bf16.msra.mxu0 0
      %5051 = vmatprep.subr.bf16.mxu0 0
      %5052 = vmatpush1.bf16.msra.mxu0 0
      %5053 = vmatprep.subr.bf16.mxu0 0
      %5054 = vmatpush1.bf16.msra.mxu0 0
      %5055 = vmatprep.subr.bf16.mxu0 0
      %5056 = vmatpush1.bf16.msra.mxu0 0
      %5057 = vmatprep.subr.bf16.mxu0 0
      %5058 = vmatpush1.bf16.msra.mxu0 0
      %5059 = vmatprep.subr.bf16.mxu0 0
      %5060 = vmatpush1.bf16.msra.mxu0 0
      %5061 = vmatprep.subr.bf16.mxu0 0
      %5062 = vmatpush1.bf16.msra.mxu0 0
      %5063 = vmatprep.subr.bf16.mxu0 0
      %5064 = vmatpush1.bf16.msra.mxu0 0
      %5065 = vmatprep.subr.bf16.mxu0 0
      %5066 = vmatpush1.bf16.msra.mxu0 0
      %5067 = vmatprep.subr.bf16.mxu0 0
      %5068 = vmatpush1.bf16.msra.mxu0 0
      %5069 = vmatprep.subr.bf16.mxu0 0
      %5070 = vmatpush1.bf16.msra.mxu0 0
      %5071 = vmatprep.subr.bf16.mxu0 0
      %5072 = vmatpush1.bf16.msra.mxu0 0
      %5073 = vmatprep.subr.bf16.mxu0 0
      %5074 = vmatpush1.bf16.msra.mxu0 0
      %5075 = vmatprep.subr.bf16.mxu0 0
      %5076 = vmatpush1.bf16.msra.mxu0 0
      %5077 = vmatprep.subr.bf16.mxu0 0
      %5078 = vmatpush1.bf16.msra.mxu0 0
      %5079 = vmatprep.mubr.bf16.mxu0 0
      %5080 = vmatmul.mubr.bf16.gmra.mrb[0].mxu0 %v5045
      %v5081 = vpop.f32.mrb[0].mxu0
      %v5082 = vadd.f32 0.0, %v5081
      %v5083 = vpop.f32.mrb[0].mxu0
      %v5084 = vadd.f32 0.0, %v5083
      %v5085 = vpop.f32.mrb[0].mxu0
      %v5086 = vadd.f32 0.0, %v5085
      %v5087 = vpop.f32.mrb[0].mxu0
      %v5088 = vadd.f32 0.0, %v5087
      %5089 = vdwg.mxu0
      %5090 = vmatprep.subr.bf16.mxu0 0
      %5091 = vmatpush1.bf16.msra.mxu0 %v5038
      %5092 = vmatprep.subr.bf16.mxu0 0
      %5093 = vmatpush1.bf16.msra.mxu0 0
      %5094 = vmatprep.subr.bf16.mxu0 0
      %5095 = vmatpush1.bf16.msra.mxu0 0
      %5096 = vmatprep.subr.bf16.mxu0 0
      %5097 = vmatpush1.bf16.msra.mxu0 0
      %5098 = vmatprep.subr.bf16.mxu0 0
      %5099 = vmatpush1.bf16.msra.mxu0 0
      %5100 = vmatprep.subr.bf16.mxu0 0
      %5101 = vmatpush1.bf16.msra.mxu0 0
      %5102 = vmatprep.subr.bf16.mxu0 0
      %5103 = vmatpush1.bf16.msra.mxu0 0
      %5104 = vmatprep.subr.bf16.mxu0 0
      %5105 = vmatpush1.bf16.msra.mxu0 0
      %5106 = vmatprep.subr.bf16.mxu0 0
      %5107 = vmatpush1.bf16.msra.mxu0 0
      %5108 = vmatprep.subr.bf16.mxu0 0
      %5109 = vmatpush1.bf16.msra.mxu0 0
      %5110 = vmatprep.subr.bf16.mxu0 0
      %5111 = vmatpush1.bf16.msra.mxu0 0
      %5112 = vmatprep.subr.bf16.mxu0 0
      %5113 = vmatpush1.bf16.msra.mxu0 0
      %5114 = vmatprep.subr.bf16.mxu0 0
      %5115 = vmatpush1.bf16.msra.mxu0 0
      %5116 = vmatprep.subr.bf16.mxu0 0
      %5117 = vmatpush1.bf16.msra.mxu0 0
      %5118 = vmatprep.subr.bf16.mxu0 0
      %5119 = vmatpush1.bf16.msra.mxu0 0
      %5120 = vmatprep.subr.bf16.mxu0 0
      %5121 = vmatpush1.bf16.msra.mxu0 0
      %5122 = vmatprep.mubr.bf16.mxu0 0
      %5123 = vmatmul.mubr.bf16.gmra.mrb[0].mxu0 %v5045
      %v5124 = vpop.f32.mrb[0].mxu0
      %v5125 = vadd.f32 0.0, %v5124
      %v5126 = vpop.f32.mrb[0].mxu0
      %v5127 = vpop.f32.mrb[0].mxu0
      %v5128 = vadd.f32 0.0, %v5127
      %v5129 = vpop.f32.mrb[0].mxu0
      %5130 = vdwg.mxu0
      %v5131 = vld [vmem:[%s49] sm:$0xff]
      %v5132 = vld [vmem:[%s49 + $0x8] sm:$0xff]
      %5134 = vset.pattern.permute.xlu0 0
      %5135 = vperm.xlu0 %5134, %v5131
      %v5136 = vpop.permute.xlu0 %5135
      %5139 = vset.pattern.permute.xlu0 0
      %5140 = vperm.xlu0 %5139, %v5132
      %v5141 = vpop.permute.xlu0 %5140
      %v5143 = vmul.f32 %v5082, %v5136
      %v5144 = vmul.f32 %v5084, %v5136
      %v5145 = vmul.f32 %v5125, %v5136
      %v5146 = vmul.f32 %v5086, %v5141
      %v5147 = vmul.f32 %v5088, %v5141
      %v5148 = vmul.f32 %v5128, %v5141
      %v5149 = vld [vmem:[%s51] sm:$0xff]
      %v5150 = vld [vmem:[%s51 + $0x8] sm:$0xff]
      %5152 = vset.pattern.permute.xlu0 0
      %5153 = vperm.xlu0 %5152, %v5149
      %v5154 = vpop.permute.xlu0 %5153
      %5157 = vset.pattern.permute.xlu0 0
      %5158 = vperm.xlu0 %5157, %v5150
      %v5159 = vpop.permute.xlu0 %5158
      %v5161 = vadd.f32 %v5143, %v5154
      %v5162 = vadd.f32 %v5144, %v5154
      %v5163 = vadd.f32 %v5145, %v5154
      %v5164 = vadd.f32 %v5146, %v5159
      %v5165 = vadd.f32 %v5147, %v5159
      %v5166 = vadd.f32 %v5148, %v5159
      %v5167 = vld [vmem:[#allocation4] sm:$0x1]
      %v5169 = vlaneseq
      %v5170 = vshrl.u32 %v5169, 7
      %v5171 = vsub.s32 0, %v5170
      %v5172 = vrot.slane %v5167, %v5171
      %5173 = vset.pattern.permute.xlu0 0
      %5174 = vperm.xlu0 %5173, %v5172
      %v5175 = vpop.permute.xlu0 %5174
      %v5177 = vmul.f32 %v5175, %v3411
      %v5178 = vmul.f32 %v5175, %v3412
      %v5179 = vmul.f32 %v5175, %v3413
      %v5180 = vmul.f32 %v5175, %v3414
      %v5181 = vmul.f32 %v5175, %v3415
      %v5182 = vmul.f32 %v5175, %v3416
      %v5183 = vadd.f32 %v5161, %v5177
      %v5184 = vadd.f32 %v5162, %v5178
      %v5185 = vadd.f32 %v5163, %v5179
      %v5186 = vadd.f32 %v5164, %v5180
      %v5187 = vadd.f32 %v5165, %v5181
      %v5188 = vadd.f32 %v5166, %v5182
      %5189 = vst [vmem:[%s973] sm:$0xff] %v5183
      %5190 = vst [vmem:[%s973 + $0x8] sm:$0xff] %v5184
      %5191 = vst [vmem:[%s973 + $0x10] sm:$0xff] %v5185
      %5192 = vst [vmem:[%s973 + $0x18] sm:$0xff] %v5186
      %5193 = vst [vmem:[%s973 + $0x20] sm:$0xff] %v5187
      %5194 = vst [vmem:[%s973 + $0x28] sm:$0xff] %v5188
      %p5195 = scmp.lt.s32.totalorder %s75, 1
      %s5196 = scalar_select %p5195, %s75, 1
      %s5197 = smul.addr %s5196, 6
      %s5198 = smul.addr %s5197, 8
      %s5199 = scalar_lea.vmem %s55, %s5198
      %p5200 = scmp.lt.s32.totalorder %s75, 1
      %s5201 = scalar_select %p5200, %s75, 1
      %s5202 = smul.addr %s5201, 9
      %s5203 = smul.addr %s5202, 8
      %s5204 = scalar_lea.vmem %s57, %s5203
      %p5205 = scmp.lt.s32.totalorder %s75, 1
      %s5206 = scalar_select %p5205, %s75, 1
      %s5207 = smul.addr %s5206, 9
      %s5208 = smul.addr %s5207, 8
      %s5209 = scalar_lea.vmem %s59, %s5208
      %p5210 = scmp.lt.s32.totalorder %s75, 1
      %s5211 = scalar_select %p5210, %s75, 1
      %s5212 = smul.addr %s5211, 3
      %s5213 = scalar_lea.vmem %s61, %s5212
      // Predicated region
      $region129: #{abam_forward.1} parent=127 // pred_check
        %p5214 = pneg %p670
      $region130: #{abam_forward.1} parent=127 // pred_check_branch
        %5216 = sbr.rel (%p5214) target = $region132
      $region131: #{abam_forward.1} parent=127 // pred_region
        _
      $region132: #{abam_forward.1} parent=127 // pred_fallthru
        _
      // Predicated region
      $region133: #{abam_forward.1} parent=127 // pred_check
        %p5217 = pneg %p696
      $region134: #{abam_forward.1} parent=127 // pred_check_branch
        %5219 = sbr.rel (%p5217) target = $region136
      $region135: #{abam_forward.1} parent=127 // pred_region
        _
      $region136: #{abam_forward.1} parent=127 // pred_fallthru
        _
      // Predicated region
      $region137: #{abam_forward.1} parent=127 // pred_check
        %p5220 = pneg %p722
      $region138: #{abam_forward.1} parent=127 // pred_check_branch
        %5222 = sbr.rel (%p5220) target = $region140
      $region139: #{abam_forward.1} parent=127 // pred_region
        _
      $region140: #{abam_forward.1} parent=127 // pred_fallthru
        _
      // Predicated region
      $region141: #{abam_forward.1} parent=127 // pred_check
        %p5223 = pneg %p748
      $region142: #{abam_forward.1} parent=127 // pred_check_branch
        %5225 = sbr.rel (%p5223) target = $region144
      $region143: #{abam_forward.1} parent=127 // pred_region
        _
      $region144: #{abam_forward.1} parent=127 // pred_fallthru
        _
    $region128: #{abam_forward.1} parent=5 // pred_fallthru
      _
    %p5226 = scmp.le.s32.totalorder 2, %s70
    // Predicated region
    $region145: #{abam_forward.1} parent=5 // pred_check
      %p5227 = pneg %p5226
    $region146: #{abam_forward.1} parent=5 // pred_check_branch
      %5229 = sbr.rel (%p5227) target = $region148
    $region147: #{abam_forward.1} parent=5 // pred_region
      %s5230 = ssub.s32 %s70, 2
      // Predicated region
      $region149: #{abam_forward.1} parent=147 // pred_check
        %p5231 = pneg %p676
      $region150: #{abam_forward.1} parent=147 // pred_check_branch
        %5233 = sbr.rel (%p5231) target = $region152
      $region151: #{abam_forward.1} parent=147 // pred_region
        %p5234 = scmp.lt.s32.totalorder %s76, 1
        %s5235 = scalar_select %p5234, %s76, 1
        %s5236 = smul.addr %s5235, 6
        %s5237 = smul.addr %s5236, 8
        %s5238 = scalar_lea.vmem %s55, %s5237
      $region152: #{abam_forward.1} parent=147 // pred_fallthru
        _
      // Predicated region
      $region153: #{abam_forward.1} parent=147 // pred_check
        %p5239 = pneg %p702
      $region154: #{abam_forward.1} parent=147 // pred_check_branch
        %5241 = sbr.rel (%p5239) target = $region156
      $region155: #{abam_forward.1} parent=147 // pred_region
        %p5242 = scmp.lt.s32.totalorder %s76, 1
        %s5243 = scalar_select %p5242, %s76, 1
        %s5244 = smul.addr %s5243, 9
        %s5245 = smul.addr %s5244, 8
        %s5246 = scalar_lea.vmem %s57, %s5245
      $region156: #{abam_forward.1} parent=147 // pred_fallthru
        _
      // Predicated region
      $region157: #{abam_forward.1} parent=147 // pred_check
        %p5247 = pneg %p728
      $region158: #{abam_forward.1} parent=147 // pred_check_branch
        %5249 = sbr.rel (%p5247) target = $region160
      $region159: #{abam_forward.1} parent=147 // pred_region
        %p5250 = scmp.lt.s32.totalorder %s76, 1
        %s5251 = scalar_select %p5250, %s76, 1
        %s5252 = smul.addr %s5251, 9
        %s5253 = smul.addr %s5252, 8
        %s5254 = scalar_lea.vmem %s59, %s5253
      $region160: #{abam_forward.1} parent=147 // pred_fallthru
        _
      // Predicated region
      $region161: #{abam_forward.1} parent=147 // pred_check
        %p5255 = pneg %p754
      $region162: #{abam_forward.1} parent=147 // pred_check_branch
        %5257 = sbr.rel (%p5255) target = $region164
      $region163: #{abam_forward.1} parent=147 // pred_region
        %p5258 = scmp.lt.s32.totalorder %s76, 1
        %s5259 = scalar_select %p5258, %s76, 1
        %s5260 = smul.addr %s5259, 3
        %s5261 = scalar_lea.vmem %s61, %s5260
      $region164: #{abam_forward.1} parent=147 // pred_fallthru
        _
    $region148: #{abam_forward.1} parent=5 // pred_fallthru
      _
  $region6: #{abam_forward.1} parent=0 // loop_footer
    %s74 = sadd.s32 1, %s70
  $region7: #{abam_forward.1} parent=0 // loop_footer_branch
    %69 = sbr.rel target = $region3
  $region8: #{abam_forward.1} parent=0 // loop_exit
    _

</llo_original>
